<compile_context>
chip_gen: v5e
topology: v5e:2x2
jax: 0.10.0
libtpu: 0.0.40
codegen_flags: <defaults>
</compile_context>

<pallas_src>
import numpy as np

import jax
import jax.numpy as jnp
from jax import lax
from jax.experimental import pallas as pl
from jax.experimental.pallas import tpu as pltpu


# ----------------------------------------------------------------------------
# Fused Bottleneck3D kernel (one batch element per grid step).
# ----------------------------------------------------------------------------
def _make_bottleneck_kernel(D, H, W, planes):
    P = planes
    M = D * H * W
    S = H * W              # halo size = largest tap stride (the D-axis conv)

    def kernel(x_ref, mwlo_ref, mwhi_ref, mhlo_ref, mhhi_ref,
               w1_ref, b1_ref, w2_ref, b2_ref, w3_ref, b3_ref,
               w4_ref, b4_ref, w5_ref, b5_ref, o_ref, pad_ref):
        f32 = jnp.float32
        relu = lambda v: jnp.maximum(v, 0.0)

        # Zero the halo regions of the shift scratch (aligned stores).
        pad_ref[0:S, :] = jnp.zeros((S, P), f32)
        pad_ref[S + M:S + M + S, :] = jnp.zeros((S, P), f32)

        def tap3(y, w_ref, b_ref, stride, mlo_ref=None, mhi_ref=None):
            # 3-tap conv (pad=1) along one spatial axis on the flattened
            # (M, P) activation.  Neighbours are +/- `stride` rows; outer
            # boundaries come from the zero halo, inner boundaries (rows
            # whose neighbour wraps across a faster axis) are killed by the
            # 0/1 masks.
            pad_ref[S:S + M, :] = y
            left = pad_ref[S - stride:S - stride + M, :]    # row m -> y[m-stride]
            right = pad_ref[S + stride:S + stride + M, :]   # row m -> y[m+stride]
            if mlo_ref is not None:
                left = left * mlo_ref[...]
            if mhi_ref is not None:
                right = right * mhi_ref[...]
            acc = jnp.dot(left, w_ref[0], preferred_element_type=f32)
            acc = acc + jnp.dot(y, w_ref[1], preferred_element_type=f32)
            acc = acc + jnp.dot(right, w_ref[2], preferred_element_type=f32)
            return acc + b_ref[...]

        x = x_ref[0].astype(f32)                                   # (M, Cin)

        # out1 = relu(bn1(conv1(x)))                 1x1x1
        out1 = relu(jnp.dot(x, w1_ref[...], preferred_element_type=f32)
                    + b1_ref[...])                                 # (M, P)
        # out2 = bn2(conv2(out1))                    (1,1,3) along W
        out2 = tap3(out1, w2_ref, b2_ref, 1, mwlo_ref, mwhi_ref)
        # out3 = bn3(conv3(relu(out2))) + out2       (1,3,1) along H
        out3 = tap3(relu(out2), w3_ref, b3_ref, W, mhlo_ref, mhhi_ref) + out2
        # out4 = bn4(conv4(relu(out3))) + out2+out3  (3,1,1) along D
        out4 = tap3(relu(out3), w4_ref, b4_ref, H * W) + out2 + out3
        # out  = relu(bn5(conv5(relu(out4))) + residual)
        out5 = (jnp.dot(relu(out4), w5_ref[...], preferred_element_type=f32)
                + b5_ref[...])
        o_ref[0] = relu(out5 + x).astype(o_ref.dtype)

    return kernel


def bottleneck3d_forward(x_ncdhw, p):
    N, Cin, D, H, W = x_ncdhw.shape
    P = p["planes"]
    Cout = p["w5"].shape[1]
    assert Cout == Cin, "residual add requires Cin == planes * expansion"
    M = D * H * W

    # NCDHW -> flattened channels-last (N, D*H*W, Cin).
    x = jnp.transpose(x_ncdhw, (0, 2, 3, 4, 1)).reshape(N, M, Cin)

    # Inner-boundary masks for the W- and H-axis shifted-row convs.
    idx = np.arange(M)
    wpos = idx % W
    hpos = (idx // W) % H
    msk = lambda b: jnp.asarray(b.astype(np.float32).reshape(M, 1))
    mw_lo, mw_hi = msk(wpos >= 1), msk(wpos <= W - 2)
    mh_lo, mh_hi = msk(hpos >= 1), msk(hpos <= H - 2)

    kernel = _make_bottleneck_kernel(D, H, W, P)

    in_specs = [
        pl.BlockSpec((1, M, Cin), lambda n: (n, 0, 0)),
        pl.BlockSpec((M, 1), lambda n: (0, 0)),
        pl.BlockSpec((M, 1), lambda n: (0, 0)),
        pl.BlockSpec((M, 1), lambda n: (0, 0)),
        pl.BlockSpec((M, 1), lambda n: (0, 0)),
        pl.BlockSpec(p["w1"].shape, lambda n: (0, 0)),
        pl.BlockSpec(p["b1"].shape, lambda n: (0, 0)),
        pl.BlockSpec(p["w2"].shape, lambda n: (0, 0, 0)),
        pl.BlockSpec(p["b2"].shape, lambda n: (0, 0)),
        pl.BlockSpec(p["w3"].shape, lambda n: (0, 0, 0)),
        pl.BlockSpec(p["b3"].shape, lambda n: (0, 0)),
        pl.BlockSpec(p["w4"].shape, lambda n: (0, 0, 0)),
        pl.BlockSpec(p["b4"].shape, lambda n: (0, 0)),
        pl.BlockSpec(p["w5"].shape, lambda n: (0, 0)),
        pl.BlockSpec(p["b5"].shape, lambda n: (0, 0)),
    ]

    out = pl.pallas_call(
        kernel,
        out_shape=jax.ShapeDtypeStruct((N, M, Cout), x_ncdhw.dtype),
        grid=(N,),
        in_specs=in_specs,
        out_specs=pl.BlockSpec((1, M, Cout), lambda n: (n, 0, 0)),
        scratch_shapes=[pltpu.VMEM((M + 2 * H * W, P), jnp.float32)],
        compiler_params=pltpu.CompilerParams(dimension_semantics=("parallel",)),
    )(x, mw_lo, mw_hi, mh_lo, mh_hi,
      p["w1"], p["b1"], p["w2"], p["b2"], p["w3"], p["b3"],
      p["w4"], p["b4"], p["w5"], p["b5"])

    return jnp.transpose(out.reshape(N, D, H, W, Cout), (0, 4, 1, 2, 3))


# ----------------------------------------------------------------------------
# Deterministic synthetic parameters (+ folded-BN versions for the kernel).
# ----------------------------------------------------------------------------
def make_params(key, inplanes, planes, expansion=4, eps=1e-5):
    ks = iter(jax.random.split(key, 25))

    def nrm(shape, scale):
        return scale * jax.random.normal(next(ks), shape, jnp.float32)

    def bn_params(C):
        gamma = 1.0 + 0.1 * jax.random.normal(next(ks), (C,), jnp.float32)
        beta = 0.1 * jax.random.normal(next(ks), (C,), jnp.float32)
        mean = 0.1 * jax.random.normal(next(ks), (C,), jnp.float32)
        var = 1.0 + 0.1 * jnp.abs(jax.random.normal(next(ks), (C,), jnp.float32))
        return (gamma, beta, mean, var)

    P, E = planes, expansion
    raw = {
        "w1": nrm((inplanes, P), 1.0 / jnp.sqrt(inplanes)),   # (Ci, Co)
        "w2": nrm((3, P, P), 1.0 / jnp.sqrt(3.0 * P)),        # taps over W
        "w3": nrm((3, P, P), 1.0 / jnp.sqrt(3.0 * P)),        # taps over H
        "w4": nrm((3, P, P), 1.0 / jnp.sqrt(3.0 * P)),        # taps over D
        "w5": nrm((P, P * E), 1.0 / jnp.sqrt(P)),
        "bn1": bn_params(P), "bn2": bn_params(P), "bn3": bn_params(P),
        "bn4": bn_params(P), "bn5": bn_params(P * E),
    }

    def fold(w, bnp):
        gamma, beta, mean, var = bnp
        scale = gamma / jnp.sqrt(var + eps)
        return w * scale, (beta - mean * scale).reshape(1, -1)

    folded = {"planes": P}
    for i in (1, 2, 3, 4, 5):
        fw, fb = fold(raw[f"w{i}"], raw[f"bn{i}"])
        folded[f"w{i}"], folded[f"b{i}"] = fw, fb
    return raw, folded


# ----------------------------------------------------------------------------
# Pure-JAX reference (mirrors the PyTorch forward) for validation.
# ----------------------------------------------------------------------------
def reference_forward(x_ncdhw, raw, planes, expansion, eps=1e-5):
    P, E = planes, expansion
    x = jnp.transpose(x_ncdhw, (0, 2, 3, 4, 1))
    Cin = x.shape[-1]
    relu = lambda v: jnp.maximum(v, 0.0)

    def bn(y, bnp):
        gamma, beta, mean, var = bnp
        return (y - mean) / jnp.sqrt(var + eps) * gamma + beta

    def conv(y, k, pad):
        return lax.conv_general_dilated(
            y, k, window_strides=(1, 1, 1), padding=pad,
            dimension_numbers=("NDHWC", "DHWIO", "NDHWC"),
            precision=lax.Precision.HIGHEST)

    out1 = relu(bn(conv(x, raw["w1"].reshape(1, 1, 1, Cin, P), [(0, 0)] * 3), raw["bn1"]))
    out2 = bn(conv(out1, raw["w2"][None, None], [(0, 0), (0, 0), (1, 1)]), raw["bn2"])
    out3 = bn(conv(relu(out2), raw["w3"][None, :, None], [(0, 0), (1, 1), (0, 0)]), raw["bn3"])
    out3 = out3 + out2
    out4 = bn(conv(relu(out3), raw["w4"][:, None, None], [(1, 1), (0, 0), (0, 0)]), raw["bn4"])
    out4 = out4 + out2 + out3
    out5 = bn(conv(relu(out4), raw["w5"].reshape(1, 1, 1, P, P * E), [(0, 0)] * 3), raw["bn5"])
    out = relu(out5 + x)
    return jnp.transpose(out, (0, 4, 1, 2, 3))


if __name__ == "__main__":
    N, D, H, W = 2, 8, 8, 8
    planes, expansion = 4, 4
    inplanes = planes * expansion        # residual add requires Cin == planes*expansion

    key = jax.random.PRNGKey(0)
    k_x, k_p = jax.random.split(key)
    x = jax.random.normal(k_x, (N, inplanes, D, H, W), jnp.float32)   # NCDHW like PyTorch
    raw, folded = make_params(k_p, inplanes, planes, expansion)

    out = jax.block_until_ready(bottleneck3d_forward(x, folded))
    ref = reference_forward(x, raw, planes, expansion)

    assert out.shape == ref.shape == (N, inplanes, D, H, W)
    assert bool(jnp.allclose(out, ref, atol=2e-2, rtol=2e-2)), \
        f"max abs err {float(jnp.max(jnp.abs(out - ref)))}"
    print("KERNEL_OK")
</pallas_src>

<mosaic_0001>
module attributes {stable_mosaic.version = 11 : i64} {
  func.func @kernel(%arg0: i32, %arg1: memref<1x512x16xf32, #tpu.memory_space<vmem>>, %arg2: memref<512x1xf32, #tpu.memory_space<vmem>>, %arg3: memref<512x1xf32, #tpu.memory_space<vmem>>, %arg4: memref<512x1xf32, #tpu.memory_space<vmem>>, %arg5: memref<512x1xf32, #tpu.memory_space<vmem>>, %arg6: memref<16x4xf32, #tpu.memory_space<vmem>>, %arg7: memref<1x4xf32, #tpu.memory_space<vmem>>, %arg8: memref<3x4x4xf32, #tpu.memory_space<vmem>>, %arg9: memref<1x4xf32, #tpu.memory_space<vmem>>, %arg10: memref<3x4x4xf32, #tpu.memory_space<vmem>>, %arg11: memref<1x4xf32, #tpu.memory_space<vmem>>, %arg12: memref<3x4x4xf32, #tpu.memory_space<vmem>>, %arg13: memref<1x4xf32, #tpu.memory_space<vmem>>, %arg14: memref<4x16xf32, #tpu.memory_space<vmem>>, %arg15: memref<1x16xf32, #tpu.memory_space<vmem>>, %arg16: memref<1x512x16xf32, #tpu.memory_space<vmem>>, %arg17: memref<640x4xf32, #tpu.memory_space<vmem>>) attributes {dimension_semantics = [#tpu.dimension_semantics<parallel>], iteration_bounds = array<i64: 2>, scalar_prefetch = 0 : i64, scratch_operands = 1 : i64, tpu.core_type = #tpu.core_type<tc>, window_params = [{transform_indices = @transform_0, window_bounds = array<i64: 1, 512, 16>}, {pipeline_mode = #tpu.pipeline_mode<synchronous>, transform_indices = @transform_1, window_bounds = array<i64: 512, 1>}, {pipeline_mode = #tpu.pipeline_mode<synchronous>, transform_indices = @transform_2, window_bounds = array<i64: 512, 1>}, {pipeline_mode = #tpu.pipeline_mode<synchronous>, transform_indices = @transform_3, window_bounds = array<i64: 512, 1>}, {pipeline_mode = #tpu.pipeline_mode<synchronous>, transform_indices = @transform_4, window_bounds = array<i64: 512, 1>}, {pipeline_mode = #tpu.pipeline_mode<synchronous>, transform_indices = @transform_5, window_bounds = array<i64: 16, 4>}, {pipeline_mode = #tpu.pipeline_mode<synchronous>, transform_indices = @transform_6, window_bounds = array<i64: 1, 4>}, {pipeline_mode = #tpu.pipeline_mode<synchronous>, transform_indices = @transform_7, window_bounds = array<i64: 3, 4, 4>}, {pipeline_mode = #tpu.pipeline_mode<synchronous>, transform_indices = @transform_8, window_bounds = array<i64: 1, 4>}, {pipeline_mode = #tpu.pipeline_mode<synchronous>, transform_indices = @transform_9, window_bounds = array<i64: 3, 4, 4>}, {pipeline_mode = #tpu.pipeline_mode<synchronous>, transform_indices = @transform_10, window_bounds = array<i64: 1, 4>}, {pipeline_mode = #tpu.pipeline_mode<synchronous>, transform_indices = @transform_11, window_bounds = array<i64: 3, 4, 4>}, {pipeline_mode = #tpu.pipeline_mode<synchronous>, transform_indices = @transform_12, window_bounds = array<i64: 1, 4>}, {pipeline_mode = #tpu.pipeline_mode<synchronous>, transform_indices = @transform_13, window_bounds = array<i64: 4, 16>}, {pipeline_mode = #tpu.pipeline_mode<synchronous>, transform_indices = @transform_14, window_bounds = array<i64: 1, 16>}, {transform_indices = @transform_15, window_bounds = array<i64: 1, 512, 16>}]} {
    %cst = arith.constant 0.000000e+00 : f32
    %0 = vector.broadcast %cst : f32 to vector<64x4xf32>
    %c0 = arith.constant 0 : index
    %c0_0 = arith.constant 0 : index
    %1 = vector.load %arg17[%c0, %c0_0] : memref<640x4xf32, #tpu.memory_space<vmem>>, vector<64x4xf32>
    tpu.vector_store %arg17[%c0, %c0_0], %0 {strides = array<i32>} : memref<640x4xf32, #tpu.memory_space<vmem>>, vector<64x4xf32>,
    %cst_1 = arith.constant 0.000000e+00 : f32
    %2 = vector.broadcast %cst_1 : f32 to vector<64x4xf32>
    %c576 = arith.constant 576 : index
    %c0_2 = arith.constant 0 : index
    %3 = vector.load %arg17[%c576, %c0_2] : memref<640x4xf32, #tpu.memory_space<vmem>>, vector<64x4xf32>
    tpu.vector_store %arg17[%c576, %c0_2], %2 {strides = array<i32>} : memref<640x4xf32, #tpu.memory_space<vmem>>, vector<64x4xf32>,
    %c0_3 = arith.constant 0 : index
    %c0_4 = arith.constant 0 : index
    %c0_5 = arith.constant 0 : index
    %4 = vector.load %arg1[%c0_3, %c0_4, %c0_5] : memref<1x512x16xf32, #tpu.memory_space<vmem>>, vector<1x512x16xf32>
    %5 = vector.shape_cast %4 : vector<1x512x16xf32> to vector<512x16xf32>
    %c0_6 = arith.constant 0 : index
    %c0_7 = arith.constant 0 : index
    %6 = vector.load %arg6[%c0_6, %c0_7] : memref<16x4xf32, #tpu.memory_space<vmem>>, vector<16x4xf32>
    %cst_8 = arith.constant dense<0.000000e+00> : vector<512x4xf32>
    %7 = tpu.matmul %5, %6, %cst_8 {dimension_numbers = #tpu.dot_dimension_numbers<[1], [0], [0], [1], [0, 0, 1, 1], [], []>} : vector<512x16xf32>, vector<16x4xf32>, vector<512x4xf32> -> vector<512x4xf32>
    %c0_9 = arith.constant 0 : index
    %c0_10 = arith.constant 0 : index
    %8 = vector.load %arg7[%c0_9, %c0_10] : memref<1x4xf32, #tpu.memory_space<vmem>>, vector<1x4xf32>
    %9 = vector.broadcast %8 : vector<1x4xf32> to vector<512x4xf32>
    %10 = arith.addf %7, %9 : vector<512x4xf32>
    %cst_11 = arith.constant 0.000000e+00 : f32
    %11 = vector.broadcast %cst_11 : f32 to vector<512x4xf32>
    %12 = arith.maximumf %10, %11 : vector<512x4xf32>
    %c64 = arith.constant 64 : index
    %c0_12 = arith.constant 0 : index
    %13 = vector.load %arg17[%c64, %c0_12] : memref<640x4xf32, #tpu.memory_space<vmem>>, vector<512x4xf32>
    tpu.vector_store %arg17[%c64, %c0_12], %12 {strides = array<i32>} : memref<640x4xf32, #tpu.memory_space<vmem>>, vector<512x4xf32>,
    %c63 = arith.constant 63 : index
    %c0_13 = arith.constant 0 : index
    %14 = vector.load %arg17[%c63, %c0_13] : memref<640x4xf32, #tpu.memory_space<vmem>>, vector<512x4xf32>
    %c65 = arith.constant 65 : index
    %c0_14 = arith.constant 0 : index
    %15 = vector.load %arg17[%c65, %c0_14] : memref<640x4xf32, #tpu.memory_space<vmem>>, vector<512x4xf32>
    %c0_15 = arith.constant 0 : index
    %c0_16 = arith.constant 0 : index
    %16 = vector.load %arg2[%c0_15, %c0_16] : memref<512x1xf32, #tpu.memory_space<vmem>>, vector<512x1xf32>
    %17 = vector.broadcast %16 : vector<512x1xf32> to vector<512x4xf32>
    %18 = arith.mulf %14, %17 : vector<512x4xf32>
    %c0_17 = arith.constant 0 : index
    %c0_18 = arith.constant 0 : index
    %19 = vector.load %arg3[%c0_17, %c0_18] : memref<512x1xf32, #tpu.memory_space<vmem>>, vector<512x1xf32>
    %20 = vector.broadcast %19 : vector<512x1xf32> to vector<512x4xf32>
    %21 = arith.mulf %15, %20 : vector<512x4xf32>
    %c0_19 = arith.constant 0 : index
    %c0_20 = arith.constant 0 : index
    %c0_21 = arith.constant 0 : index
    %22 = vector.load %arg8[%c0_19, %c0_20, %c0_21] : memref<3x4x4xf32, #tpu.memory_space<vmem>>, vector<1x4x4xf32>
    %23 = vector.shape_cast %22 : vector<1x4x4xf32> to vector<4x4xf32>
    %cst_22 = arith.constant dense<0.000000e+00> : vector<512x4xf32>
    %24 = tpu.matmul %18, %23, %cst_22 {dimension_numbers = #tpu.dot_dimension_numbers<[1], [0], [0], [1], [0, 0, 1, 1], [], []>} : vector<512x4xf32>, vector<4x4xf32>, vector<512x4xf32> -> vector<512x4xf32>
    %c1 = arith.constant 1 : index
    %c0_23 = arith.constant 0 : index
    %c0_24 = arith.constant 0 : index
    %25 = vector.load %arg8[%c1, %c0_23, %c0_24] : memref<3x4x4xf32, #tpu.memory_space<vmem>>, vector<1x4x4xf32>
    %26 = vector.shape_cast %25 : vector<1x4x4xf32> to vector<4x4xf32>
    %cst_25 = arith.constant dense<0.000000e+00> : vector<512x4xf32>
    %27 = tpu.matmul %12, %26, %cst_25 {dimension_numbers = #tpu.dot_dimension_numbers<[1], [0], [0], [1], [0, 0, 1, 1], [], []>} : vector<512x4xf32>, vector<4x4xf32>, vector<512x4xf32> -> vector<512x4xf32>
    %28 = arith.addf %24, %27 : vector<512x4xf32>
    %c2 = arith.constant 2 : index
    %c0_26 = arith.constant 0 : index
    %c0_27 = arith.constant 0 : index
    %29 = vector.load %arg8[%c2, %c0_26, %c0_27] : memref<3x4x4xf32, #tpu.memory_space<vmem>>, vector<1x4x4xf32>
    %30 = vector.shape_cast %29 : vector<1x4x4xf32> to vector<4x4xf32>
    %cst_28 = arith.constant dense<0.000000e+00> : vector<512x4xf32>
    %31 = tpu.matmul %21, %30, %cst_28 {dimension_numbers = #tpu.dot_dimension_numbers<[1], [0], [0], [1], [0, 0, 1, 1], [], []>} : vector<512x4xf32>, vector<4x4xf32>, vector<512x4xf32> -> vector<512x4xf32>
    %32 = arith.addf %28, %31 : vector<512x4xf32>
    %c0_29 = arith.constant 0 : index
    %c0_30 = arith.constant 0 : index
    %33 = vector.load %arg9[%c0_29, %c0_30] : memref<1x4xf32, #tpu.memory_space<vmem>>, vector<1x4xf32>
    %34 = vector.broadcast %33 : vector<1x4xf32> to vector<512x4xf32>
    %35 = arith.addf %32, %34 : vector<512x4xf32>
    %cst_31 = arith.constant 0.000000e+00 : f32
    %36 = vector.broadcast %cst_31 : f32 to vector<512x4xf32>
    %37 = arith.maximumf %35, %36 : vector<512x4xf32>
    %c64_32 = arith.constant 64 : index
    %c0_33 = arith.constant 0 : index
    %38 = vector.load %arg17[%c64_32, %c0_33] : memref<640x4xf32, #tpu.memory_space<vmem>>, vector<512x4xf32>
    tpu.vector_store %arg17[%c64_32, %c0_33], %37 {strides = array<i32>} : memref<640x4xf32, #tpu.memory_space<vmem>>, vector<512x4xf32>,
    %c56 = arith.constant 56 : index
    %c0_34 = arith.constant 0 : index
    %39 = vector.load %arg17[%c56, %c0_34] : memref<640x4xf32, #tpu.memory_space<vmem>>, vector<512x4xf32>
    %c72 = arith.constant 72 : index
    %c0_35 = arith.constant 0 : index
    %40 = vector.load %arg17[%c72, %c0_35] : memref<640x4xf32, #tpu.memory_space<vmem>>, vector<512x4xf32>
    %c0_36 = arith.constant 0 : index
    %c0_37 = arith.constant 0 : index
    %41 = vector.load %arg4[%c0_36, %c0_37] : memref<512x1xf32, #tpu.memory_space<vmem>>, vector<512x1xf32>
    %42 = vector.broadcast %41 : vector<512x1xf32> to vector<512x4xf32>
    %43 = arith.mulf %39, %42 : vector<512x4xf32>
    %c0_38 = arith.constant 0 : index
    %c0_39 = arith.constant 0 : index
    %44 = vector.load %arg5[%c0_38, %c0_39] : memref<512x1xf32, #tpu.memory_space<vmem>>, vector<512x1xf32>
    %45 = vector.broadcast %44 : vector<512x1xf32> to vector<512x4xf32>
    %46 = arith.mulf %40, %45 : vector<512x4xf32>
    %c0_40 = arith.constant 0 : index
    %c0_41 = arith.constant 0 : index
    %c0_42 = arith.constant 0 : index
    %47 = vector.load %arg10[%c0_40, %c0_41, %c0_42] : memref<3x4x4xf32, #tpu.memory_space<vmem>>, vector<1x4x4xf32>
    %48 = vector.shape_cast %47 : vector<1x4x4xf32> to vector<4x4xf32>
    %cst_43 = arith.constant dense<0.000000e+00> : vector<512x4xf32>
    %49 = tpu.matmul %43, %48, %cst_43 {dimension_numbers = #tpu.dot_dimension_numbers<[1], [0], [0], [1], [0, 0, 1, 1], [], []>} : vector<512x4xf32>, vector<4x4xf32>, vector<512x4xf32> -> vector<512x4xf32>
    %c1_44 = arith.constant 1 : index
    %c0_45 = arith.constant 0 : index
    %c0_46 = arith.constant 0 : index
    %50 = vector.load %arg10[%c1_44, %c0_45, %c0_46] : memref<3x4x4xf32, #tpu.memory_space<vmem>>, vector<1x4x4xf32>
    %51 = vector.shape_cast %50 : vector<1x4x4xf32> to vector<4x4xf32>
    %cst_47 = arith.constant dense<0.000000e+00> : vector<512x4xf32>
    %52 = tpu.matmul %37, %51, %cst_47 {dimension_numbers = #tpu.dot_dimension_numbers<[1], [0], [0], [1], [0, 0, 1, 1], [], []>} : vector<512x4xf32>, vector<4x4xf32>, vector<512x4xf32> -> vector<512x4xf32>
    %53 = arith.addf %49, %52 : vector<512x4xf32>
    %c2_48 = arith.constant 2 : index
    %c0_49 = arith.constant 0 : index
    %c0_50 = arith.constant 0 : index
    %54 = vector.load %arg10[%c2_48, %c0_49, %c0_50] : memref<3x4x4xf32, #tpu.memory_space<vmem>>, vector<1x4x4xf32>
    %55 = vector.shape_cast %54 : vector<1x4x4xf32> to vector<4x4xf32>
    %cst_51 = arith.constant dense<0.000000e+00> : vector<512x4xf32>
    %56 = tpu.matmul %46, %55, %cst_51 {dimension_numbers = #tpu.dot_dimension_numbers<[1], [0], [0], [1], [0, 0, 1, 1], [], []>} : vector<512x4xf32>, vector<4x4xf32>, vector<512x4xf32> -> vector<512x4xf32>
    %57 = arith.addf %53, %56 : vector<512x4xf32>
    %c0_52 = arith.constant 0 : index
    %c0_53 = arith.constant 0 : index
    %58 = vector.load %arg11[%c0_52, %c0_53] : memref<1x4xf32, #tpu.memory_space<vmem>>, vector<1x4xf32>
    %59 = vector.broadcast %58 : vector<1x4xf32> to vector<512x4xf32>
    %60 = arith.addf %57, %59 : vector<512x4xf32>
    %61 = arith.addf %60, %35 : vector<512x4xf32>
    %cst_54 = arith.constant 0.000000e+00 : f32
    %62 = vector.broadcast %cst_54 : f32 to vector<512x4xf32>
    %63 = arith.maximumf %61, %62 : vector<512x4xf32>
    %c64_55 = arith.constant 64 : index
    %c0_56 = arith.constant 0 : index
    %64 = vector.load %arg17[%c64_55, %c0_56] : memref<640x4xf32, #tpu.memory_space<vmem>>, vector<512x4xf32>
    tpu.vector_store %arg17[%c64_55, %c0_56], %63 {strides = array<i32>} : memref<640x4xf32, #tpu.memory_space<vmem>>, vector<512x4xf32>,
    %c0_57 = arith.constant 0 : index
    %c0_58 = arith.constant 0 : index
    %65 = vector.load %arg17[%c0_57, %c0_58] : memref<640x4xf32, #tpu.memory_space<vmem>>, vector<512x4xf32>
    %c128 = arith.constant 128 : index
    %c0_59 = arith.constant 0 : index
    %66 = vector.load %arg17[%c128, %c0_59] : memref<640x4xf32, #tpu.memory_space<vmem>>, vector<512x4xf32>
    %c0_60 = arith.constant 0 : index
    %c0_61 = arith.constant 0 : index
    %c0_62 = arith.constant 0 : index
    %67 = vector.load %arg12[%c0_60, %c0_61, %c0_62] : memref<3x4x4xf32, #tpu.memory_space<vmem>>, vector<1x4x4xf32>
    %68 = vector.shape_cast %67 : vector<1x4x4xf32> to vector<4x4xf32>
    %cst_63 = arith.constant dense<0.000000e+00> : vector<512x4xf32>
    %69 = tpu.matmul %65, %68, %cst_63 {dimension_numbers = #tpu.dot_dimension_numbers<[1], [0], [0], [1], [0, 0, 1, 1], [], []>} : vector<512x4xf32>, vector<4x4xf32>, vector<512x4xf32> -> vector<512x4xf32>
    %c1_64 = arith.constant 1 : index
    %c0_65 = arith.constant 0 : index
    %c0_66 = arith.constant 0 : index
    %70 = vector.load %arg12[%c1_64, %c0_65, %c0_66] : memref<3x4x4xf32, #tpu.memory_space<vmem>>, vector<1x4x4xf32>
    %71 = vector.shape_cast %70 : vector<1x4x4xf32> to vector<4x4xf32>
    %cst_67 = arith.constant dense<0.000000e+00> : vector<512x4xf32>
    %72 = tpu.matmul %63, %71, %cst_67 {dimension_numbers = #tpu.dot_dimension_numbers<[1], [0], [0], [1], [0, 0, 1, 1], [], []>} : vector<512x4xf32>, vector<4x4xf32>, vector<512x4xf32> -> vector<512x4xf32>
    %73 = arith.addf %69, %72 : vector<512x4xf32>
    %c2_68 = arith.constant 2 : index
    %c0_69 = arith.constant 0 : index
    %c0_70 = arith.constant 0 : index
    %74 = vector.load %arg12[%c2_68, %c0_69, %c0_70] : memref<3x4x4xf32, #tpu.memory_space<vmem>>, vector<1x4x4xf32>
    %75 = vector.shape_cast %74 : vector<1x4x4xf32> to vector<4x4xf32>
    %cst_71 = arith.constant dense<0.000000e+00> : vector<512x4xf32>
    %76 = tpu.matmul %66, %75, %cst_71 {dimension_numbers = #tpu.dot_dimension_numbers<[1], [0], [0], [1], [0, 0, 1, 1], [], []>} : vector<512x4xf32>, vector<4x4xf32>, vector<512x4xf32> -> vector<512x4xf32>
    %77 = arith.addf %73, %76 : vector<512x4xf32>
    %c0_72 = arith.constant 0 : index
    %c0_73 = arith.constant 0 : index
    %78 = vector.load %arg13[%c0_72, %c0_73] : memref<1x4xf32, #tpu.memory_space<vmem>>, vector<1x4xf32>
    %79 = vector.broadcast %78 : vector<1x4xf32> to vector<512x4xf32>
    %80 = arith.addf %77, %79 : vector<512x4xf32>
    %81 = arith.addf %80, %35 : vector<512x4xf32>
    %82 = arith.addf %81, %61 : vector<512x4xf32>
    %cst_74 = arith.constant 0.000000e+00 : f32
    %83 = vector.broadcast %cst_74 : f32 to vector<512x4xf32>
    %84 = arith.maximumf %82, %83 : vector<512x4xf32>
    %c0_75 = arith.constant 0 : index
    %c0_76 = arith.constant 0 : index
    %85 = vector.load %arg14[%c0_75, %c0_76] : memref<4x16xf32, #tpu.memory_space<vmem>>, vector<4x16xf32>
    %cst_77 = arith.constant dense<0.000000e+00> : vector<512x16xf32>
    %86 = tpu.matmul %84, %85, %cst_77 {dimension_numbers = #tpu.dot_dimension_numbers<[1], [0], [0], [1], [0, 0, 1, 1], [], []>} : vector<512x4xf32>, vector<4x16xf32>, vector<512x16xf32> -> vector<512x16xf32>
    %c0_78 = arith.constant 0 : index
    %c0_79 = arith.constant 0 : index
    %87 = vector.load %arg15[%c0_78, %c0_79] : memref<1x16xf32, #tpu.memory_space<vmem>>, vector<1x16xf32>
    %88 = vector.broadcast %87 : vector<1x16xf32> to vector<512x16xf32>
    %89 = arith.addf %86, %88 : vector<512x16xf32>
    %90 = arith.addf %89, %5 : vector<512x16xf32>
    %cst_80 = arith.constant 0.000000e+00 : f32
    %91 = vector.broadcast %cst_80 : f32 to vector<512x16xf32>
    %92 = arith.maximumf %90, %91 : vector<512x16xf32>
    %c0_81 = arith.constant 0 : index
    %c0_82 = arith.constant 0 : index
    %c0_83 = arith.constant 0 : index
    %93 = vector.load %arg16[%c0_81, %c0_82, %c0_83] : memref<1x512x16xf32, #tpu.memory_space<vmem>>, vector<1x512x16xf32>
    %94 = vector.shape_cast %93 : vector<1x512x16xf32> to vector<512x16xf32>
    %95 = vector.shape_cast %92 : vector<512x16xf32> to vector<1x512x16xf32>
    tpu.vector_store %arg16[%c0_81, %c0_82, %c0_83], %95 {strides = array<i32>} : memref<1x512x16xf32, #tpu.memory_space<vmem>>, vector<1x512x16xf32>,
    return
  }
  func.func @transform_0(%arg0: i32) -> (i32, i32, i32) {
    %c0_i32 = arith.constant 0 : i32
    %c0_i32_0 = arith.constant 0 : i32
    %c0_i32_1 = arith.constant 0 : i32
    return %arg0, %c0_i32, %c0_i32_0 : i32, i32, i32
  }
  func.func @transform_1(%arg0: i32) -> (i32, i32) {
    %c0_i32 = arith.constant 0 : i32
    %c0_i32_0 = arith.constant 0 : i32
    %c0_i32_1 = arith.constant 0 : i32
    return %c0_i32, %c0_i32_0 : i32, i32
  }
  func.func @transform_2(%arg0: i32) -> (i32, i32) {
    %c0_i32 = arith.constant 0 : i32
    %c0_i32_0 = arith.constant 0 : i32
    %c0_i32_1 = arith.constant 0 : i32
    return %c0_i32, %c0_i32_0 : i32, i32
  }
  func.func @transform_3(%arg0: i32) -> (i32, i32) {
    %c0_i32 = arith.constant 0 : i32
    %c0_i32_0 = arith.constant 0 : i32
    %c0_i32_1 = arith.constant 0 : i32
    return %c0_i32, %c0_i32_0 : i32, i32
  }
  func.func @transform_4(%arg0: i32) -> (i32, i32) {
    %c0_i32 = arith.constant 0 : i32
    %c0_i32_0 = arith.constant 0 : i32
    %c0_i32_1 = arith.constant 0 : i32
    return %c0_i32, %c0_i32_0 : i32, i32
  }
  func.func @transform_5(%arg0: i32) -> (i32, i32) {
    %c0_i32 = arith.constant 0 : i32
    %c0_i32_0 = arith.constant 0 : i32
    %c0_i32_1 = arith.constant 0 : i32
    return %c0_i32, %c0_i32_0 : i32, i32
  }
  func.func @transform_6(%arg0: i32) -> (i32, i32) {
    %c0_i32 = arith.constant 0 : i32
    %c0_i32_0 = arith.constant 0 : i32
    %c0_i32_1 = arith.constant 0 : i32
    return %c0_i32, %c0_i32_0 : i32, i32
  }
  func.func @transform_7(%arg0: i32) -> (i32, i32, i32) {
    %c0_i32 = arith.constant 0 : i32
    %c0_i32_0 = arith.constant 0 : i32
    %c0_i32_1 = arith.constant 0 : i32
    %c0_i32_2 = arith.constant 0 : i32
    return %c0_i32, %c0_i32_0, %c0_i32_1 : i32, i32, i32
  }
  func.func @transform_8(%arg0: i32) -> (i32, i32) {
    %c0_i32 = arith.constant 0 : i32
    %c0_i32_0 = arith.constant 0 : i32
    %c0_i32_1 = arith.constant 0 : i32
    return %c0_i32, %c0_i32_0 : i32, i32
  }
  func.func @transform_9(%arg0: i32) -> (i32, i32, i32) {
    %c0_i32 = arith.constant 0 : i32
    %c0_i32_0 = arith.constant 0 : i32
    %c0_i32_1 = arith.constant 0 : i32
    %c0_i32_2 = arith.constant 0 : i32
    return %c0_i32, %c0_i32_0, %c0_i32_1 : i32, i32, i32
  }
  func.func @transform_10(%arg0: i32) -> (i32, i32) {
    %c0_i32 = arith.constant 0 : i32
    %c0_i32_0 = arith.constant 0 : i32
    %c0_i32_1 = arith.constant 0 : i32
    return %c0_i32, %c0_i32_0 : i32, i32
  }
  func.func @transform_11(%arg0: i32) -> (i32, i32, i32) {
    %c0_i32 = arith.constant 0 : i32
    %c0_i32_0 = arith.constant 0 : i32
    %c0_i32_1 = arith.constant 0 : i32
    %c0_i32_2 = arith.constant 0 : i32
    return %c0_i32, %c0_i32_0, %c0_i32_1 : i32, i32, i32
  }
  func.func @transform_12(%arg0: i32) -> (i32, i32) {
    %c0_i32 = arith.constant 0 : i32
    %c0_i32_0 = arith.constant 0 : i32
    %c0_i32_1 = arith.constant 0 : i32
    return %c0_i32, %c0_i32_0 : i32, i32
  }
  func.func @transform_13(%arg0: i32) -> (i32, i32) {
    %c0_i32 = arith.constant 0 : i32
    %c0_i32_0 = arith.constant 0 : i32
    %c0_i32_1 = arith.constant 0 : i32
    return %c0_i32, %c0_i32_0 : i32, i32
  }
  func.func @transform_14(%arg0: i32) -> (i32, i32) {
    %c0_i32 = arith.constant 0 : i32
    %c0_i32_0 = arith.constant 0 : i32
    %c0_i32_1 = arith.constant 0 : i32
    return %c0_i32, %c0_i32_0 : i32, i32
  }
  func.func @transform_15(%arg0: i32) -> (i32, i32, i32) {
    %c0_i32 = arith.constant 0 : i32
    %c0_i32_0 = arith.constant 0 : i32
    %c0_i32_1 = arith.constant 0 : i32
    return %arg0, %c0_i32, %c0_i32_0 : i32, i32, i32
  }
}

</mosaic_0001>

<llo_original>
// kernel: tpu_custom_call.1
$region0: #{tpu_custom_call.1}
  #allocation0 [shape = 'u32[]', space=smem, size = 0x4, offset = 0x4, fixed_abs, tag = 'smem constant byte address 0x4 - core index']
  #allocation1 [shape = 'u32[72,128]{1,0:T(1,128)}', space=vmem, size = 0x9000, scoped, tag = 'internal scratch']
  #allocation2 [shape = 'f32[640,4]{1,0:T(8,128)}', space=vmem, size = 0x50000, scoped, tag = 'scratch operand']
  %s0 = inlined_call_operand.vmem [shape: f32[2,512,16], index: 0, kind: input, shape index: {}]
  %s1 = inlined_call_operand.vmem [shape: f32[512,1], index: 1, kind: input, shape index: {}]
  %s2 = inlined_call_operand.vmem [shape: f32[512,1], index: 2, kind: input, shape index: {}]
  %s3 = inlined_call_operand.vmem [shape: f32[512,1], index: 3, kind: input, shape index: {}]
  %s4 = inlined_call_operand.vmem [shape: f32[512,1], index: 4, kind: input, shape index: {}]
  %s5 = inlined_call_operand.vmem [shape: f32[16,4], index: 5, kind: input, shape index: {}]
  %s6 = inlined_call_operand.vmem [shape: f32[1,4], index: 6, kind: input, shape index: {}]
  %s7 = inlined_call_operand.vmem [shape: f32[3,4,4], index: 7, kind: input, shape index: {}]
  %s8 = inlined_call_operand.vmem [shape: f32[1,4], index: 8, kind: input, shape index: {}]
  %s9 = inlined_call_operand.vmem [shape: f32[3,4,4], index: 9, kind: input, shape index: {}]
  %s10 = inlined_call_operand.vmem [shape: f32[1,4], index: 10, kind: input, shape index: {}]
  %s11 = inlined_call_operand.vmem [shape: f32[3,4,4], index: 11, kind: input, shape index: {}]
  %s12 = inlined_call_operand.vmem [shape: f32[1,4], index: 12, kind: input, shape index: {}]
  %s13 = inlined_call_operand.vmem [shape: f32[4,16], index: 13, kind: input, shape index: {}]
  %s14 = inlined_call_operand.vmem [shape: f32[1,16], index: 14, kind: input, shape index: {}]
  %s15 = inlined_call_operand.vmem [shape: f32[2,512,16], index: 15, kind: output, shape index: {}]
  %s16 = sld [smem:[#allocation0]]
  $region93: #{tpu_custom_call.1} parent=0
    _
  %s18 = ssub.s32 1, %s16
  %s19 = scalar_select 0, %s18, %s16
  loop: start=0, step=1, limit=4
  $region2: #{tpu_custom_call.1} parent=0 // loop_pre_header
    _
  $region3: #{tpu_custom_call.1} parent=0 // loop_header
    %s21 = sphi 0, %s25
    %p22 = scmp.ge.s32.totalorder %s21, 4
    %s31 = sphi 0, %s33
    %s34 = sphi 0, %s31
    %s35 = sphi 0, %s34
    %s51 = sphi 0, %s35
    %s55 = sphi 0, %s55
    %s57 = sphi 0, %s55
    %s58 = sphi 0, %s57
    %s72 = sphi 0, %s58
    %s76 = sphi 0, %s76
    %s78 = sphi 0, %s76
    %s79 = sphi 0, %s78
    %s93 = sphi 0, %s79
    %s97 = sphi 0, %s97
    %s99 = sphi 0, %s97
    %s100 = sphi 0, %s99
    %s114 = sphi 0, %s100
    %s118 = sphi 0, %s118
    %s120 = sphi 0, %s118
    %s121 = sphi 0, %s120
    %s135 = sphi 0, %s121
    %s139 = sphi 0, %s139
    %s141 = sphi 0, %s139
    %s142 = sphi 0, %s141
    %s156 = sphi 0, %s142
    %s160 = sphi 0, %s160
    %s162 = sphi 0, %s160
    %s163 = sphi 0, %s162
    %s177 = sphi 0, %s163
    %s181 = sphi 0, %s181
    %s183 = sphi 0, %s181
    %s184 = sphi 0, %s183
    %s198 = sphi 0, %s184
    %s202 = sphi 0, %s202
    %s204 = sphi 0, %s202
    %s205 = sphi 0, %s204
    %s219 = sphi 0, %s205
    %s223 = sphi 0, %s223
    %s225 = sphi 0, %s223
    %s226 = sphi 0, %s225
    %s240 = sphi 0, %s226
    %s244 = sphi 0, %s244
    %s246 = sphi 0, %s244
    %s247 = sphi 0, %s246
    %s261 = sphi 0, %s247
    %s265 = sphi 0, %s265
    %s267 = sphi 0, %s265
    %s268 = sphi 0, %s267
    %s282 = sphi 0, %s268
    %s286 = sphi 0, %s286
    %s288 = sphi 0, %s286
    %s289 = sphi 0, %s288
    %s303 = sphi 0, %s289
    %s307 = sphi 0, %s307
    %s309 = sphi 0, %s307
    %s310 = sphi 0, %s309
    %s324 = sphi 0, %s310
    %s328 = sphi 0, %s328
    %s330 = sphi 0, %s328
    %s331 = sphi 0, %s330
    %s345 = sphi 0, %s331
    %s351 = sphi 0, %s353
    %s354 = sphi 0, %s351
    %s355 = sphi 0, %s354
    %s371 = sphi 0, %s355
  $region4: #{tpu_custom_call.1} parent=0 // loop_header_branch
    %24 = sbr.rel (%p22) target = $region8
  $region5: #{tpu_custom_call.1} parent=0 // loop_body
    %s26 = ssub.s32 %s21, 1
    %s27 = ssub.s32 %s21, 2
    %s28 = sadd.s32 %s21, 1
    %s29 = ssub.s32 %s21, %s28
    %p30 = scmp.eq.s32.totalorder %s29, 0
    %s32 = sadd.s32 %s31, 1
    %s33 = scalar_select %p30, %s31, %s32
    %p36 = pneg %p30
    %p37 = scmp.eq.s32.totalorder %s21, 1
    %p38 = por %p36, %p37
    %p39 = scmp.ne.s32.totalorder %s31, %s34
    %p40 = scmp.eq.s32.totalorder %s21, 0
    %p41 = por %p39, %p40
    %p42 = scmp.ne.s32.totalorder %s31, %s34
    %p43 = scmp.eq.s32.totalorder %s26, 1
    %p44 = por %p42, %p43
    %p45 = scmp.ne.s32.totalorder %s34, %s35
    %p46 = scmp.eq.s32.totalorder %s26, 0
    %p47 = por %p45, %p46
    %p48 = scmp.ne.s32.totalorder %s34, %s35
    %p49 = scmp.eq.s32.totalorder %s27, 1
    %p50 = por %p48, %p49
    %p52 = scmp.ne.s32.totalorder %s35, %s51
    %p53 = scmp.eq.s32.totalorder %s27, 0
    %p54 = por %p52, %p53
    %s56 = sadd.s32 %s55, 1
    %p59 = scmp.eq.s32.totalorder %s21, 1
    %p60 = scmp.ne.s32.totalorder %s55, %s57
    %p61 = scmp.eq.s32.totalorder %s21, 0
    %p62 = por %p60, %p61
    %p63 = scmp.ne.s32.totalorder %s55, %s57
    %p64 = scmp.eq.s32.totalorder %s26, 1
    %p65 = por %p63, %p64
    %p66 = scmp.ne.s32.totalorder %s57, %s58
    %p67 = scmp.eq.s32.totalorder %s26, 0
    %p68 = por %p66, %p67
    %p69 = scmp.ne.s32.totalorder %s57, %s58
    %p70 = scmp.eq.s32.totalorder %s27, 1
    %p71 = por %p69, %p70
    %p73 = scmp.ne.s32.totalorder %s58, %s72
    %p74 = scmp.eq.s32.totalorder %s27, 0
    %p75 = por %p73, %p74
    %s77 = sadd.s32 %s76, 1
    %p80 = scmp.eq.s32.totalorder %s21, 1
    %p81 = scmp.ne.s32.totalorder %s76, %s78
    %p82 = scmp.eq.s32.totalorder %s21, 0
    %p83 = por %p81, %p82
    %p84 = scmp.ne.s32.totalorder %s76, %s78
    %p85 = scmp.eq.s32.totalorder %s26, 1
    %p86 = por %p84, %p85
    %p87 = scmp.ne.s32.totalorder %s78, %s79
    %p88 = scmp.eq.s32.totalorder %s26, 0
    %p89 = por %p87, %p88
    %p90 = scmp.ne.s32.totalorder %s78, %s79
    %p91 = scmp.eq.s32.totalorder %s27, 1
    %p92 = por %p90, %p91
    %p94 = scmp.ne.s32.totalorder %s79, %s93
    %p95 = scmp.eq.s32.totalorder %s27, 0
    %p96 = por %p94, %p95
    %s98 = sadd.s32 %s97, 1
    %p101 = scmp.eq.s32.totalorder %s21, 1
    %p102 = scmp.ne.s32.totalorder %s97, %s99
    %p103 = scmp.eq.s32.totalorder %s21, 0
    %p104 = por %p102, %p103
    %p105 = scmp.ne.s32.totalorder %s97, %s99
    %p106 = scmp.eq.s32.totalorder %s26, 1
    %p107 = por %p105, %p106
    %p108 = scmp.ne.s32.totalorder %s99, %s100
    %p109 = scmp.eq.s32.totalorder %s26, 0
    %p110 = por %p108, %p109
    %p111 = scmp.ne.s32.totalorder %s99, %s100
    %p112 = scmp.eq.s32.totalorder %s27, 1
    %p113 = por %p111, %p112
    %p115 = scmp.ne.s32.totalorder %s100, %s114
    %p116 = scmp.eq.s32.totalorder %s27, 0
    %p117 = por %p115, %p116
    %s119 = sadd.s32 %s118, 1
    %p122 = scmp.eq.s32.totalorder %s21, 1
    %p123 = scmp.ne.s32.totalorder %s118, %s120
    %p124 = scmp.eq.s32.totalorder %s21, 0
    %p125 = por %p123, %p124
    %p126 = scmp.ne.s32.totalorder %s118, %s120
    %p127 = scmp.eq.s32.totalorder %s26, 1
    %p128 = por %p126, %p127
    %p129 = scmp.ne.s32.totalorder %s120, %s121
    %p130 = scmp.eq.s32.totalorder %s26, 0
    %p131 = por %p129, %p130
    %p132 = scmp.ne.s32.totalorder %s120, %s121
    %p133 = scmp.eq.s32.totalorder %s27, 1
    %p134 = por %p132, %p133
    %p136 = scmp.ne.s32.totalorder %s121, %s135
    %p137 = scmp.eq.s32.totalorder %s27, 0
    %p138 = por %p136, %p137
    %s140 = sadd.s32 %s139, 1
    %p143 = scmp.eq.s32.totalorder %s21, 1
    %p144 = scmp.ne.s32.totalorder %s139, %s141
    %p145 = scmp.eq.s32.totalorder %s21, 0
    %p146 = por %p144, %p145
    %p147 = scmp.ne.s32.totalorder %s139, %s141
    %p148 = scmp.eq.s32.totalorder %s26, 1
    %p149 = por %p147, %p148
    %p150 = scmp.ne.s32.totalorder %s141, %s142
    %p151 = scmp.eq.s32.totalorder %s26, 0
    %p152 = por %p150, %p151
    %p153 = scmp.ne.s32.totalorder %s141, %s142
    %p154 = scmp.eq.s32.totalorder %s27, 1
    %p155 = por %p153, %p154
    %p157 = scmp.ne.s32.totalorder %s142, %s156
    %p158 = scmp.eq.s32.totalorder %s27, 0
    %p159 = por %p157, %p158
    %s161 = sadd.s32 %s160, 1
    %p164 = scmp.eq.s32.totalorder %s21, 1
    %p165 = scmp.ne.s32.totalorder %s160, %s162
    %p166 = scmp.eq.s32.totalorder %s21, 0
    %p167 = por %p165, %p166
    %p168 = scmp.ne.s32.totalorder %s160, %s162
    %p169 = scmp.eq.s32.totalorder %s26, 1
    %p170 = por %p168, %p169
    %p171 = scmp.ne.s32.totalorder %s162, %s163
    %p172 = scmp.eq.s32.totalorder %s26, 0
    %p173 = por %p171, %p172
    %p174 = scmp.ne.s32.totalorder %s162, %s163
    %p175 = scmp.eq.s32.totalorder %s27, 1
    %p176 = por %p174, %p175
    %p178 = scmp.ne.s32.totalorder %s163, %s177
    %p179 = scmp.eq.s32.totalorder %s27, 0
    %p180 = por %p178, %p179
    %s182 = sadd.s32 %s181, 1
    %p185 = scmp.eq.s32.totalorder %s21, 1
    %p186 = scmp.ne.s32.totalorder %s181, %s183
    %p187 = scmp.eq.s32.totalorder %s21, 0
    %p188 = por %p186, %p187
    %p189 = scmp.ne.s32.totalorder %s181, %s183
    %p190 = scmp.eq.s32.totalorder %s26, 1
    %p191 = por %p189, %p190
    %p192 = scmp.ne.s32.totalorder %s183, %s184
    %p193 = scmp.eq.s32.totalorder %s26, 0
    %p194 = por %p192, %p193
    %p195 = scmp.ne.s32.totalorder %s183, %s184
    %p196 = scmp.eq.s32.totalorder %s27, 1
    %p197 = por %p195, %p196
    %p199 = scmp.ne.s32.totalorder %s184, %s198
    %p200 = scmp.eq.s32.totalorder %s27, 0
    %p201 = por %p199, %p200
    %s203 = sadd.s32 %s202, 1
    %p206 = scmp.eq.s32.totalorder %s21, 1
    %p207 = scmp.ne.s32.totalorder %s202, %s204
    %p208 = scmp.eq.s32.totalorder %s21, 0
    %p209 = por %p207, %p208
    %p210 = scmp.ne.s32.totalorder %s202, %s204
    %p211 = scmp.eq.s32.totalorder %s26, 1
    %p212 = por %p210, %p211
    %p213 = scmp.ne.s32.totalorder %s204, %s205
    %p214 = scmp.eq.s32.totalorder %s26, 0
    %p215 = por %p213, %p214
    %p216 = scmp.ne.s32.totalorder %s204, %s205
    %p217 = scmp.eq.s32.totalorder %s27, 1
    %p218 = por %p216, %p217
    %p220 = scmp.ne.s32.totalorder %s205, %s219
    %p221 = scmp.eq.s32.totalorder %s27, 0
    %p222 = por %p220, %p221
    %s224 = sadd.s32 %s223, 1
    %p227 = scmp.eq.s32.totalorder %s21, 1
    %p228 = scmp.ne.s32.totalorder %s223, %s225
    %p229 = scmp.eq.s32.totalorder %s21, 0
    %p230 = por %p228, %p229
    %p231 = scmp.ne.s32.totalorder %s223, %s225
    %p232 = scmp.eq.s32.totalorder %s26, 1
    %p233 = por %p231, %p232
    %p234 = scmp.ne.s32.totalorder %s225, %s226
    %p235 = scmp.eq.s32.totalorder %s26, 0
    %p236 = por %p234, %p235
    %p237 = scmp.ne.s32.totalorder %s225, %s226
    %p238 = scmp.eq.s32.totalorder %s27, 1
    %p239 = por %p237, %p238
    %p241 = scmp.ne.s32.totalorder %s226, %s240
    %p242 = scmp.eq.s32.totalorder %s27, 0
    %p243 = por %p241, %p242
    %s245 = sadd.s32 %s244, 1
    %p248 = scmp.eq.s32.totalorder %s21, 1
    %p249 = scmp.ne.s32.totalorder %s244, %s246
    %p250 = scmp.eq.s32.totalorder %s21, 0
    %p251 = por %p249, %p250
    %p252 = scmp.ne.s32.totalorder %s244, %s246
    %p253 = scmp.eq.s32.totalorder %s26, 1
    %p254 = por %p252, %p253
    %p255 = scmp.ne.s32.totalorder %s246, %s247
    %p256 = scmp.eq.s32.totalorder %s26, 0
    %p257 = por %p255, %p256
    %p258 = scmp.ne.s32.totalorder %s246, %s247
    %p259 = scmp.eq.s32.totalorder %s27, 1
    %p260 = por %p258, %p259
    %p262 = scmp.ne.s32.totalorder %s247, %s261
    %p263 = scmp.eq.s32.totalorder %s27, 0
    %p264 = por %p262, %p263
    %s266 = sadd.s32 %s265, 1
    %p269 = scmp.eq.s32.totalorder %s21, 1
    %p270 = scmp.ne.s32.totalorder %s265, %s267
    %p271 = scmp.eq.s32.totalorder %s21, 0
    %p272 = por %p270, %p271
    %p273 = scmp.ne.s32.totalorder %s265, %s267
    %p274 = scmp.eq.s32.totalorder %s26, 1
    %p275 = por %p273, %p274
    %p276 = scmp.ne.s32.totalorder %s267, %s268
    %p277 = scmp.eq.s32.totalorder %s26, 0
    %p278 = por %p276, %p277
    %p279 = scmp.ne.s32.totalorder %s267, %s268
    %p280 = scmp.eq.s32.totalorder %s27, 1
    %p281 = por %p279, %p280
    %p283 = scmp.ne.s32.totalorder %s268, %s282
    %p284 = scmp.eq.s32.totalorder %s27, 0
    %p285 = por %p283, %p284
    %s287 = sadd.s32 %s286, 1
    %p290 = scmp.eq.s32.totalorder %s21, 1
    %p291 = scmp.ne.s32.totalorder %s286, %s288
    %p292 = scmp.eq.s32.totalorder %s21, 0
    %p293 = por %p291, %p292
    %p294 = scmp.ne.s32.totalorder %s286, %s288
    %p295 = scmp.eq.s32.totalorder %s26, 1
    %p296 = por %p294, %p295
    %p297 = scmp.ne.s32.totalorder %s288, %s289
    %p298 = scmp.eq.s32.totalorder %s26, 0
    %p299 = por %p297, %p298
    %p300 = scmp.ne.s32.totalorder %s288, %s289
    %p301 = scmp.eq.s32.totalorder %s27, 1
    %p302 = por %p300, %p301
    %p304 = scmp.ne.s32.totalorder %s289, %s303
    %p305 = scmp.eq.s32.totalorder %s27, 0
    %p306 = por %p304, %p305
    %s308 = sadd.s32 %s307, 1
    %p311 = scmp.eq.s32.totalorder %s21, 1
    %p312 = scmp.ne.s32.totalorder %s307, %s309
    %p313 = scmp.eq.s32.totalorder %s21, 0
    %p314 = por %p312, %p313
    %p315 = scmp.ne.s32.totalorder %s307, %s309
    %p316 = scmp.eq.s32.totalorder %s26, 1
    %p317 = por %p315, %p316
    %p318 = scmp.ne.s32.totalorder %s309, %s310
    %p319 = scmp.eq.s32.totalorder %s26, 0
    %p320 = por %p318, %p319
    %p321 = scmp.ne.s32.totalorder %s309, %s310
    %p322 = scmp.eq.s32.totalorder %s27, 1
    %p323 = por %p321, %p322
    %p325 = scmp.ne.s32.totalorder %s310, %s324
    %p326 = scmp.eq.s32.totalorder %s27, 0
    %p327 = por %p325, %p326
    %s329 = sadd.s32 %s328, 1
    %p332 = scmp.eq.s32.totalorder %s21, 1
    %p333 = scmp.ne.s32.totalorder %s328, %s330
    %p334 = scmp.eq.s32.totalorder %s21, 0
    %p335 = por %p333, %p334
    %p336 = scmp.ne.s32.totalorder %s328, %s330
    %p337 = scmp.eq.s32.totalorder %s26, 1
    %p338 = por %p336, %p337
    %p339 = scmp.ne.s32.totalorder %s330, %s331
    %p340 = scmp.eq.s32.totalorder %s26, 0
    %p341 = por %p339, %p340
    %p342 = scmp.ne.s32.totalorder %s330, %s331
    %p343 = scmp.eq.s32.totalorder %s27, 1
    %p344 = por %p342, %p343
    %p346 = scmp.ne.s32.totalorder %s331, %s345
    %p347 = scmp.eq.s32.totalorder %s27, 0
    %p348 = por %p346, %p347
    %s349 = ssub.s32 %s21, %s28
    %p350 = scmp.eq.s32.totalorder %s349, 0
    %s352 = sadd.s32 %s351, 1
    %s353 = scalar_select %p350, %s351, %s352
    %p356 = pneg %p350
    %p357 = scmp.eq.s32.totalorder %s21, 1
    %p358 = por %p356, %p357
    %p359 = scmp.ne.s32.totalorder %s351, %s354
    %p360 = scmp.eq.s32.totalorder %s21, 0
    %p361 = por %p359, %p360
    %p362 = scmp.ne.s32.totalorder %s351, %s354
    %p363 = scmp.eq.s32.totalorder %s26, 1
    %p364 = por %p362, %p363
    %p365 = scmp.ne.s32.totalorder %s354, %s355
    %p366 = scmp.eq.s32.totalorder %s26, 0
    %p367 = por %p365, %p366
    %p368 = scmp.ne.s32.totalorder %s354, %s355
    %p369 = scmp.eq.s32.totalorder %s27, 1
    %p370 = por %p368, %p369
    %p372 = scmp.ne.s32.totalorder %s355, %s371
    %p373 = scmp.eq.s32.totalorder %s27, 0
    %p374 = por %p372, %p373
    %p375 = scmp.le.s32.totalorder 1, %s21
    %p376 = scmp.lt.s32.totalorder %s21, 3
    %p377 = pnand %p375, %p376
    %p378 = pneg %p377
    // Predicated region
    $region9: #{tpu_custom_call.1} parent=5 // pred_check
      _
    $region10: #{tpu_custom_call.1} parent=5 // pred_check_branch
      %380 = sbr.rel (%p377) target = $region12
    $region11: #{tpu_custom_call.1} parent=5 // pred_region
      %s381 = ssub.s32 %s21, 1
      // Predicated region
      $region13: #{tpu_custom_call.1} parent=11 // pred_check
        %p382 = pneg %p68
      $region14: #{tpu_custom_call.1} parent=11 // pred_check_branch
        %384 = sbr.rel (%p382) target = $region16
      $region15: #{tpu_custom_call.1} parent=11 // pred_region
        _
      $region16: #{tpu_custom_call.1} parent=11 // pred_fallthru
        _
      // Predicated region
      $region17: #{tpu_custom_call.1} parent=11 // pred_check
        %p385 = pneg %p89
      $region18: #{tpu_custom_call.1} parent=11 // pred_check_branch
        %387 = sbr.rel (%p385) target = $region20
      $region19: #{tpu_custom_call.1} parent=11 // pred_region
        _
      $region20: #{tpu_custom_call.1} parent=11 // pred_fallthru
        _
      // Predicated region
      $region21: #{tpu_custom_call.1} parent=11 // pred_check
        %p388 = pneg %p110
      $region22: #{tpu_custom_call.1} parent=11 // pred_check_branch
        %390 = sbr.rel (%p388) target = $region24
      $region23: #{tpu_custom_call.1} parent=11 // pred_region
        _
      $region24: #{tpu_custom_call.1} parent=11 // pred_fallthru
        _
      // Predicated region
      $region25: #{tpu_custom_call.1} parent=11 // pred_check
        %p391 = pneg %p131
      $region26: #{tpu_custom_call.1} parent=11 // pred_check_branch
        %393 = sbr.rel (%p391) target = $region28
      $region27: #{tpu_custom_call.1} parent=11 // pred_region
        _
      $region28: #{tpu_custom_call.1} parent=11 // pred_fallthru
        _
      // Predicated region
      $region29: #{tpu_custom_call.1} parent=11 // pred_check
        %p394 = pneg %p152
      $region30: #{tpu_custom_call.1} parent=11 // pred_check_branch
        %396 = sbr.rel (%p394) target = $region32
      $region31: #{tpu_custom_call.1} parent=11 // pred_region
        _
      $region32: #{tpu_custom_call.1} parent=11 // pred_fallthru
        _
      // Predicated region
      $region33: #{tpu_custom_call.1} parent=11 // pred_check
        %p397 = pneg %p173
      $region34: #{tpu_custom_call.1} parent=11 // pred_check_branch
        %399 = sbr.rel (%p397) target = $region36
      $region35: #{tpu_custom_call.1} parent=11 // pred_region
        _
      $region36: #{tpu_custom_call.1} parent=11 // pred_fallthru
        _
      // Predicated region
      $region37: #{tpu_custom_call.1} parent=11 // pred_check
        %p400 = pneg %p194
      $region38: #{tpu_custom_call.1} parent=11 // pred_check_branch
        %402 = sbr.rel (%p400) target = $region40
      $region39: #{tpu_custom_call.1} parent=11 // pred_region
        _
      $region40: #{tpu_custom_call.1} parent=11 // pred_fallthru
        _
      // Predicated region
      $region41: #{tpu_custom_call.1} parent=11 // pred_check
        %p403 = pneg %p215
      $region42: #{tpu_custom_call.1} parent=11 // pred_check_branch
        %405 = sbr.rel (%p403) target = $region44
      $region43: #{tpu_custom_call.1} parent=11 // pred_region
        _
      $region44: #{tpu_custom_call.1} parent=11 // pred_fallthru
        _
      // Predicated region
      $region45: #{tpu_custom_call.1} parent=11 // pred_check
        %p406 = pneg %p236
      $region46: #{tpu_custom_call.1} parent=11 // pred_check_branch
        %408 = sbr.rel (%p406) target = $region48
      $region47: #{tpu_custom_call.1} parent=11 // pred_region
        _
      $region48: #{tpu_custom_call.1} parent=11 // pred_fallthru
        _
      // Predicated region
      $region49: #{tpu_custom_call.1} parent=11 // pred_check
        %p409 = pneg %p257
      $region50: #{tpu_custom_call.1} parent=11 // pred_check_branch
        %411 = sbr.rel (%p409) target = $region52
      $region51: #{tpu_custom_call.1} parent=11 // pred_region
        _
      $region52: #{tpu_custom_call.1} parent=11 // pred_fallthru
        _
      // Predicated region
      $region53: #{tpu_custom_call.1} parent=11 // pred_check
        %p412 = pneg %p278
      $region54: #{tpu_custom_call.1} parent=11 // pred_check_branch
        %414 = sbr.rel (%p412) target = $region56
      $region55: #{tpu_custom_call.1} parent=11 // pred_region
        _
      $region56: #{tpu_custom_call.1} parent=11 // pred_fallthru
        _
      // Predicated region
      $region57: #{tpu_custom_call.1} parent=11 // pred_check
        %p415 = pneg %p299
      $region58: #{tpu_custom_call.1} parent=11 // pred_check_branch
        %417 = sbr.rel (%p415) target = $region60
      $region59: #{tpu_custom_call.1} parent=11 // pred_region
        _
      $region60: #{tpu_custom_call.1} parent=11 // pred_fallthru
        _
      // Predicated region
      $region61: #{tpu_custom_call.1} parent=11 // pred_check
        %p418 = pneg %p320
      $region62: #{tpu_custom_call.1} parent=11 // pred_check_branch
        %420 = sbr.rel (%p418) target = $region64
      $region63: #{tpu_custom_call.1} parent=11 // pred_region
        _
      $region64: #{tpu_custom_call.1} parent=11 // pred_fallthru
        _
      // Predicated region
      $region65: #{tpu_custom_call.1} parent=11 // pred_check
        %p421 = pneg %p341
      $region66: #{tpu_custom_call.1} parent=11 // pred_check_branch
        %423 = sbr.rel (%p421) target = $region68
      $region67: #{tpu_custom_call.1} parent=11 // pred_region
        _
      $region68: #{tpu_custom_call.1} parent=11 // pred_fallthru
        _
    $region12: #{tpu_custom_call.1} parent=5 // pred_fallthru
      _
    %p424 = scmp.lt.s32.totalorder %s21, 2
    // Predicated region
    $region69: #{tpu_custom_call.1} parent=5 // pred_check
      %p425 = pneg %p424
    $region70: #{tpu_custom_call.1} parent=5 // pred_check_branch
      %427 = sbr.rel (%p425) target = $region72
    $region71: #{tpu_custom_call.1} parent=5 // pred_region
      // Predicated region
      $region73: #{tpu_custom_call.1} parent=71 // pred_check
        %p428 = pneg %p41
      $region74: #{tpu_custom_call.1} parent=71 // pred_check_branch
        %430 = sbr.rel (%p428) target = $region76
      $region75: #{tpu_custom_call.1} parent=71 // pred_region
        %p431 = scmp.lt.s32.totalorder %s21, 1
        %s432 = scalar_select %p431, %s21, 1
        %s433 = smul.addr %s432, 64
        %s434 = smul.addr %s433, 8
        %s435 = scalar_lea.vmem %s0, %s434
      $region76: #{tpu_custom_call.1} parent=71 // pred_fallthru
        _
    $region72: #{tpu_custom_call.1} parent=5 // pred_fallthru
      _
    %p436 = scmp.le.s32.totalorder 1, %s21
    %p437 = scmp.lt.s32.totalorder %s21, 3
    %p438 = pnand %p436, %p437
    %p439 = pneg %p438
    // Predicated region
    $region77: #{tpu_custom_call.1} parent=5 // pred_check
      _
    $region78: #{tpu_custom_call.1} parent=5 // pred_check_branch
      %441 = sbr.rel (%p438) target = $region80
    $region79: #{tpu_custom_call.1} parent=5 // pred_region
      %s442 = ssub.s32 %s21, 1
      %p443 = scmp.lt.s32.totalorder %s26, 1
      %s444 = scalar_select %p443, %s26, 1
      %s445 = smul.addr %s444, 64
      %s446 = smul.addr %s445, 8
      %s447 = scalar_lea.vmem %s0, %s446
      %p448 = pneg %p47
      %p449 = pneg %p44
      %p450 = pneg %p68
      %p451 = pneg %p65
      %p452 = pneg %p89
      %p453 = pneg %p86
      %p454 = pneg %p110
      %p455 = pneg %p107
      %p456 = pneg %p131
      %p457 = pneg %p128
      %p458 = pneg %p152
      %p459 = pneg %p149
      %p460 = pneg %p173
      %p461 = pneg %p170
      %p462 = pneg %p194
      %p463 = pneg %p191
      %p464 = pneg %p215
      %p465 = pneg %p212
      %p466 = pneg %p236
      %p467 = pneg %p233
      %p468 = pneg %p257
      %p469 = pneg %p254
      %p470 = pneg %p278
      %p471 = pneg %p275
      %p472 = pneg %p299
      %p473 = pneg %p296
      %p474 = pneg %p320
      %p475 = pneg %p317
      %p476 = pneg %p341
      %p477 = pneg %p338
      %p478 = pneg %p367
      %p479 = pneg %p364
      %p480 = scmp.lt.s32.totalorder %s26, 1
      %s481 = scalar_select %p480, %s26, 1
      %s482 = smul.addr %s481, 64
      %s483 = smul.addr %s482, 8
      %s484 = scalar_lea.vmem %s15, %s483
      %p485 = scmp.lt.s32.totalorder %s26, 1
      %s486 = scalar_select %p485, %s26, 1
      %s487 = smul.addr %s486, 64
      %s488 = smul.addr %s487, 8
      %s489 = scalar_lea.vmem %s0, %s488
      %p490 = scmp.lt.s32.totalorder %s26, 1
      %s491 = scalar_select %p490, %s26, 1
      %s492 = smul.addr %s491, 64
      %s493 = smul.addr %s492, 8
      %s494 = scalar_lea.vmem %s15, %s493
      %vm495 = vcmask 31744
      %496 = vst.msk [vmem:[#allocation2] sm:$0xff] %vm495, 0.0
      %497 = vst.msk [vmem:[#allocation2 + $0x8] sm:$0xff] %vm495, 0.0
      %498 = vst.msk [vmem:[#allocation2 + $0x10] sm:$0xff] %vm495, 0.0
      %499 = vst.msk [vmem:[#allocation2 + $0x18] sm:$0xff] %vm495, 0.0
      %500 = vst.msk [vmem:[#allocation2 + $0x20] sm:$0xff] %vm495, 0.0
      %501 = vst.msk [vmem:[#allocation2 + $0x28] sm:$0xff] %vm495, 0.0
      %502 = vst.msk [vmem:[#allocation2 + $0x30] sm:$0xff] %vm495, 0.0
      %503 = vst.msk [vmem:[#allocation2 + $0x38] sm:$0xff] %vm495, 0.0
      %504 = vst.msk [vmem:[#allocation2 + $0x240] sm:$0xff] %vm495, 0.0
      %505 = vst.msk [vmem:[#allocation2 + $0x248] sm:$0xff] %vm495, 0.0
      %506 = vst.msk [vmem:[#allocation2 + $0x250] sm:$0xff] %vm495, 0.0
      %507 = vst.msk [vmem:[#allocation2 + $0x258] sm:$0xff] %vm495, 0.0
      %508 = vst.msk [vmem:[#allocation2 + $0x260] sm:$0xff] %vm495, 0.0
      %509 = vst.msk [vmem:[#allocation2 + $0x268] sm:$0xff] %vm495, 0.0
      %510 = vst.msk [vmem:[#allocation2 + $0x270] sm:$0xff] %vm495, 0.0
      %511 = vst.msk [vmem:[#allocation2 + $0x278] sm:$0xff] %vm495, 0.0
      %v512 = vld [vmem:[%s489] sm:$0xff]
      %v513 = vld [vmem:[%s489 + $0x8] sm:$0xff]
      %v514 = vld [vmem:[%s489 + $0x10] sm:$0xff]
      %v515 = vld [vmem:[%s489 + $0x18] sm:$0xff]
      %v516 = vld [vmem:[%s489 + $0x20] sm:$0xff]
      %v517 = vld [vmem:[%s489 + $0x28] sm:$0xff]
      %v518 = vld [vmem:[%s489 + $0x30] sm:$0xff]
      %v519 = vld [vmem:[%s489 + $0x38] sm:$0xff]
      %v520 = vld [vmem:[%s489 + $0x40] sm:$0xff]
      %v521 = vld [vmem:[%s489 + $0x48] sm:$0xff]
      %v522 = vld [vmem:[%s489 + $0x50] sm:$0xff]
      %v523 = vld [vmem:[%s489 + $0x58] sm:$0xff]
      %v524 = vld [vmem:[%s489 + $0x60] sm:$0xff]
      %v525 = vld [vmem:[%s489 + $0x68] sm:$0xff]
      %v526 = vld [vmem:[%s489 + $0x70] sm:$0xff]
      %v527 = vld [vmem:[%s489 + $0x78] sm:$0xff]
      %v528 = vld [vmem:[%s489 + $0x80] sm:$0xff]
      %v529 = vld [vmem:[%s489 + $0x88] sm:$0xff]
      %v530 = vld [vmem:[%s489 + $0x90] sm:$0xff]
      %v531 = vld [vmem:[%s489 + $0x98] sm:$0xff]
      %v532 = vld [vmem:[%s489 + $0xa0] sm:$0xff]
      %v533 = vld [vmem:[%s489 + $0xa8] sm:$0xff]
      %v534 = vld [vmem:[%s489 + $0xb0] sm:$0xff]
      %v535 = vld [vmem:[%s489 + $0xb8] sm:$0xff]
      %v536 = vld [vmem:[%s489 + $0xc0] sm:$0xff]
      %v537 = vld [vmem:[%s489 + $0xc8] sm:$0xff]
      %v538 = vld [vmem:[%s489 + $0xd0] sm:$0xff]
      %v539 = vld [vmem:[%s489 + $0xd8] sm:$0xff]
      %v540 = vld [vmem:[%s489 + $0xe0] sm:$0xff]
      %v541 = vld [vmem:[%s489 + $0xe8] sm:$0xff]
      %v542 = vld [vmem:[%s489 + $0xf0] sm:$0xff]
      %v543 = vld [vmem:[%s489 + $0xf8] sm:$0xff]
      %v544 = vld [vmem:[%s489 + $0x100] sm:$0xff]
      %v545 = vld [vmem:[%s489 + $0x108] sm:$0xff]
      %v546 = vld [vmem:[%s489 + $0x110] sm:$0xff]
      %v547 = vld [vmem:[%s489 + $0x118] sm:$0xff]
      %v548 = vld [vmem:[%s489 + $0x120] sm:$0xff]
      %v549 = vld [vmem:[%s489 + $0x128] sm:$0xff]
      %v550 = vld [vmem:[%s489 + $0x130] sm:$0xff]
      %v551 = vld [vmem:[%s489 + $0x138] sm:$0xff]
      %v552 = vld [vmem:[%s489 + $0x140] sm:$0xff]
      %v553 = vld [vmem:[%s489 + $0x148] sm:$0xff]
      %v554 = vld [vmem:[%s489 + $0x150] sm:$0xff]
      %v555 = vld [vmem:[%s489 + $0x158] sm:$0xff]
      %v556 = vld [vmem:[%s489 + $0x160] sm:$0xff]
      %v557 = vld [vmem:[%s489 + $0x168] sm:$0xff]
      %v558 = vld [vmem:[%s489 + $0x170] sm:$0xff]
      %v559 = vld [vmem:[%s489 + $0x178] sm:$0xff]
      %v560 = vld [vmem:[%s489 + $0x180] sm:$0xff]
      %v561 = vld [vmem:[%s489 + $0x188] sm:$0xff]
      %v562 = vld [vmem:[%s489 + $0x190] sm:$0xff]
      %v563 = vld [vmem:[%s489 + $0x198] sm:$0xff]
      %v564 = vld [vmem:[%s489 + $0x1a0] sm:$0xff]
      %v565 = vld [vmem:[%s489 + $0x1a8] sm:$0xff]
      %v566 = vld [vmem:[%s489 + $0x1b0] sm:$0xff]
      %v567 = vld [vmem:[%s489 + $0x1b8] sm:$0xff]
      %v568 = vld [vmem:[%s489 + $0x1c0] sm:$0xff]
      %v569 = vld [vmem:[%s489 + $0x1c8] sm:$0xff]
      %v570 = vld [vmem:[%s489 + $0x1d0] sm:$0xff]
      %v571 = vld [vmem:[%s489 + $0x1d8] sm:$0xff]
      %v572 = vld [vmem:[%s489 + $0x1e0] sm:$0xff]
      %v573 = vld [vmem:[%s489 + $0x1e8] sm:$0xff]
      %v574 = vld [vmem:[%s489 + $0x1f0] sm:$0xff]
      %v575 = vld [vmem:[%s489 + $0x1f8] sm:$0xff]
      %v576 = vld [vmem:[%s5] sm:$0xff]
      %v577 = vld [vmem:[%s5 + $0x8] sm:$0xff]
      %v578 = vld [vmem:[%s6] sm:$0x1]
      %v580 = vperm.slane %v578, 0
      %vm582 = vcmask 130048
      %v584 = vsel %vm582, %v512, 0
      %v587 = vsel %vm582, %v513, 0
      %v590 = vsel %vm582, %v514, 0
      %v593 = vsel %vm582, %v515, 0
      %v596 = vsel %vm582, %v516, 0
      %v599 = vsel %vm582, %v517, 0
      %v602 = vsel %vm582, %v518, 0
      %v605 = vsel %vm582, %v519, 0
      %v608 = vsel %vm582, %v520, 0
      %v611 = vsel %vm582, %v521, 0
      %v614 = vsel %vm582, %v522, 0
      %v617 = vsel %vm582, %v523, 0
      %v620 = vsel %vm582, %v524, 0
      %v623 = vsel %vm582, %v525, 0
      %v626 = vsel %vm582, %v526, 0
      %v629 = vsel %vm582, %v527, 0
      %v632 = vsel %vm582, %v528, 0
      %v635 = vsel %vm582, %v529, 0
      %v638 = vsel %vm582, %v530, 0
      %v641 = vsel %vm582, %v531, 0
      %v644 = vsel %vm582, %v532, 0
      %v647 = vsel %vm582, %v533, 0
      %v650 = vsel %vm582, %v534, 0
      %v653 = vsel %vm582, %v535, 0
      %v656 = vsel %vm582, %v536, 0
      %v659 = vsel %vm582, %v537, 0
      %v662 = vsel %vm582, %v538, 0
      %v665 = vsel %vm582, %v539, 0
      %v668 = vsel %vm582, %v540, 0
      %v671 = vsel %vm582, %v541, 0
      %v674 = vsel %vm582, %v542, 0
      %v677 = vsel %vm582, %v543, 0
      %v680 = vsel %vm582, %v544, 0
      %v683 = vsel %vm582, %v545, 0
      %v686 = vsel %vm582, %v546, 0
      %v689 = vsel %vm582, %v547, 0
      %v692 = vsel %vm582, %v548, 0
      %v695 = vsel %vm582, %v549, 0
      %v698 = vsel %vm582, %v550, 0
      %v701 = vsel %vm582, %v551, 0
      %v704 = vsel %vm582, %v552, 0
      %v707 = vsel %vm582, %v553, 0
      %v710 = vsel %vm582, %v554, 0
      %v713 = vsel %vm582, %v555, 0
      %v716 = vsel %vm582, %v556, 0
      %v719 = vsel %vm582, %v557, 0
      %v722 = vsel %vm582, %v558, 0
      %v725 = vsel %vm582, %v559, 0
      %v728 = vsel %vm582, %v560, 0
      %v731 = vsel %vm582, %v561, 0
      %v734 = vsel %vm582, %v562, 0
      %v737 = vsel %vm582, %v563, 0
      %v740 = vsel %vm582, %v564, 0
      %v743 = vsel %vm582, %v565, 0
      %v746 = vsel %vm582, %v566, 0
      %v749 = vsel %vm582, %v567, 0
      %v752 = vsel %vm582, %v568, 0
      %v755 = vsel %vm582, %v569, 0
      %v758 = vsel %vm582, %v570, 0
      %v761 = vsel %vm582, %v571, 0
      %v764 = vsel %vm582, %v572, 0
      %v767 = vsel %vm582, %v573, 0
      %v770 = vsel %vm582, %v574, 0
      %v773 = vsel %vm582, %v575, 0
      %775 = vmatpush.msra.mxu0 0.0
      %776 = vmatpush.msra.mxu0 0.0
      %777 = vmatpush.msra.mxu0 0.0
      %778 = vmatpush.msra.mxu0 0.0
      %779 = vmatpush.msra.mxu0 0.0
      %780 = vmatpush.msra.mxu0 0.0
      %781 = vmatpush.msra.mxu0 0.0
      %782 = vmatpush.msra.mxu0 0.0
      %783 = vmatpush.msra.mxu0 0.0
      %784 = vmatpush.msra.mxu0 0.0
      %785 = vmatpush.msra.mxu0 0.0
      %786 = vmatpush.msra.mxu0 0.0
      %787 = vmatpush.msra.mxu0 0.0
      %788 = vmatpush.msra.mxu0 0.0
      %789 = vmatpush.msra.mxu0 %v577
      %790 = vmatpush.msra.mxu0 %v576
      %791 = vmatmul.f32.gmra.mxu0 %v584
      %v792 = vpop.f32.mrf.mxu0
      %v793 = vadd.f32 %v580, %v792
      %794 = vmatmul.f32.gmra.mxu0 %v587
      %v795 = vpop.f32.mrf.mxu0
      %v796 = vadd.f32 %v580, %v795
      %797 = vmatmul.f32.gmra.mxu0 %v590
      %v798 = vpop.f32.mrf.mxu0
      %v799 = vadd.f32 %v580, %v798
      %800 = vmatmul.f32.gmra.mxu0 %v593
      %v801 = vpop.f32.mrf.mxu0
      %v802 = vadd.f32 %v580, %v801
      %803 = vmatmul.f32.gmra.mxu0 %v596
      %v804 = vpop.f32.mrf.mxu0
      %v805 = vadd.f32 %v580, %v804
      %806 = vmatmul.f32.gmra.mxu0 %v599
      %v807 = vpop.f32.mrf.mxu0
      %v808 = vadd.f32 %v580, %v807
      %809 = vmatmul.f32.gmra.mxu0 %v602
      %v810 = vpop.f32.mrf.mxu0
      %v811 = vadd.f32 %v580, %v810
      %812 = vmatmul.f32.gmra.mxu0 %v605
      %v813 = vpop.f32.mrf.mxu0
      %v814 = vadd.f32 %v580, %v813
      %815 = vmatmul.f32.gmra.mxu0 %v608
      %v816 = vpop.f32.mrf.mxu0
      %v817 = vadd.f32 %v580, %v816
      %818 = vmatmul.f32.gmra.mxu0 %v611
      %v819 = vpop.f32.mrf.mxu0
      %v820 = vadd.f32 %v580, %v819
      %821 = vmatmul.f32.gmra.mxu0 %v614
      %v822 = vpop.f32.mrf.mxu0
      %v823 = vadd.f32 %v580, %v822
      %824 = vmatmul.f32.gmra.mxu0 %v617
      %v825 = vpop.f32.mrf.mxu0
      %v826 = vadd.f32 %v580, %v825
      %827 = vmatmul.f32.gmra.mxu0 %v620
      %v828 = vpop.f32.mrf.mxu0
      %v829 = vadd.f32 %v580, %v828
      %830 = vmatmul.f32.gmra.mxu0 %v623
      %v831 = vpop.f32.mrf.mxu0
      %v832 = vadd.f32 %v580, %v831
      %833 = vmatmul.f32.gmra.mxu0 %v626
      %v834 = vpop.f32.mrf.mxu0
      %v835 = vadd.f32 %v580, %v834
      %836 = vmatmul.f32.gmra.mxu0 %v629
      %v837 = vpop.f32.mrf.mxu0
      %v838 = vadd.f32 %v580, %v837
      %839 = vmatmul.f32.gmra.mxu0 %v632
      %v840 = vpop.f32.mrf.mxu0
      %v841 = vadd.f32 %v580, %v840
      %842 = vmatmul.f32.gmra.mxu0 %v635
      %v843 = vpop.f32.mrf.mxu0
      %v844 = vadd.f32 %v580, %v843
      %845 = vmatmul.f32.gmra.mxu0 %v638
      %v846 = vpop.f32.mrf.mxu0
      %v847 = vadd.f32 %v580, %v846
      %848 = vmatmul.f32.gmra.mxu0 %v641
      %v849 = vpop.f32.mrf.mxu0
      %v850 = vadd.f32 %v580, %v849
      %851 = vmatmul.f32.gmra.mxu0 %v644
      %v852 = vpop.f32.mrf.mxu0
      %v853 = vadd.f32 %v580, %v852
      %854 = vmatmul.f32.gmra.mxu0 %v647
      %v855 = vpop.f32.mrf.mxu0
      %v856 = vadd.f32 %v580, %v855
      %857 = vmatmul.f32.gmra.mxu0 %v650
      %v858 = vpop.f32.mrf.mxu0
      %v859 = vadd.f32 %v580, %v858
      %860 = vmatmul.f32.gmra.mxu0 %v653
      %v861 = vpop.f32.mrf.mxu0
      %v862 = vadd.f32 %v580, %v861
      %863 = vmatmul.f32.gmra.mxu0 %v656
      %v864 = vpop.f32.mrf.mxu0
      %v865 = vadd.f32 %v580, %v864
      %866 = vmatmul.f32.gmra.mxu0 %v659
      %v867 = vpop.f32.mrf.mxu0
      %v868 = vadd.f32 %v580, %v867
      %869 = vmatmul.f32.gmra.mxu0 %v662
      %v870 = vpop.f32.mrf.mxu0
      %v871 = vadd.f32 %v580, %v870
      %872 = vmatmul.f32.gmra.mxu0 %v665
      %v873 = vpop.f32.mrf.mxu0
      %v874 = vadd.f32 %v580, %v873
      %875 = vmatmul.f32.gmra.mxu0 %v668
      %v876 = vpop.f32.mrf.mxu0
      %v877 = vadd.f32 %v580, %v876
      %878 = vmatmul.f32.gmra.mxu0 %v671
      %v879 = vpop.f32.mrf.mxu0
      %v880 = vadd.f32 %v580, %v879
      %881 = vmatmul.f32.gmra.mxu0 %v674
      %v882 = vpop.f32.mrf.mxu0
      %v883 = vadd.f32 %v580, %v882
      %884 = vmatmul.f32.gmra.mxu0 %v677
      %v885 = vpop.f32.mrf.mxu0
      %v886 = vadd.f32 %v580, %v885
      %887 = vmatmul.f32.gmra.mxu0 %v680
      %v888 = vpop.f32.mrf.mxu0
      %v889 = vadd.f32 %v580, %v888
      %890 = vmatmul.f32.gmra.mxu0 %v683
      %v891 = vpop.f32.mrf.mxu0
      %v892 = vadd.f32 %v580, %v891
      %893 = vmatmul.f32.gmra.mxu0 %v686
      %v894 = vpop.f32.mrf.mxu0
      %v895 = vadd.f32 %v580, %v894
      %896 = vmatmul.f32.gmra.mxu0 %v689
      %v897 = vpop.f32.mrf.mxu0
      %v898 = vadd.f32 %v580, %v897
      %899 = vmatmul.f32.gmra.mxu0 %v692
      %v900 = vpop.f32.mrf.mxu0
      %v901 = vadd.f32 %v580, %v900
      %902 = vmatmul.f32.gmra.mxu0 %v695
      %v903 = vpop.f32.mrf.mxu0
      %v904 = vadd.f32 %v580, %v903
      %905 = vmatmul.f32.gmra.mxu0 %v698
      %v906 = vpop.f32.mrf.mxu0
      %v907 = vadd.f32 %v580, %v906
      %908 = vmatmul.f32.gmra.mxu0 %v701
      %v909 = vpop.f32.mrf.mxu0
      %v910 = vadd.f32 %v580, %v909
      %911 = vmatmul.f32.gmra.mxu0 %v704
      %v912 = vpop.f32.mrf.mxu0
      %v913 = vadd.f32 %v580, %v912
      %914 = vmatmul.f32.gmra.mxu0 %v707
      %v915 = vpop.f32.mrf.mxu0
      %v916 = vadd.f32 %v580, %v915
      %917 = vmatmul.f32.gmra.mxu0 %v710
      %v918 = vpop.f32.mrf.mxu0
      %v919 = vadd.f32 %v580, %v918
      %920 = vmatmul.f32.gmra.mxu0 %v713
      %v921 = vpop.f32.mrf.mxu0
      %v922 = vadd.f32 %v580, %v921
      %923 = vmatmul.f32.gmra.mxu0 %v716
      %v924 = vpop.f32.mrf.mxu0
      %v925 = vadd.f32 %v580, %v924
      %926 = vmatmul.f32.gmra.mxu0 %v719
      %v927 = vpop.f32.mrf.mxu0
      %v928 = vadd.f32 %v580, %v927
      %929 = vmatmul.f32.gmra.mxu0 %v722
      %v930 = vpop.f32.mrf.mxu0
      %v931 = vadd.f32 %v580, %v930
      %932 = vmatmul.f32.gmra.mxu0 %v725
      %v933 = vpop.f32.mrf.mxu0
      %v934 = vadd.f32 %v580, %v933
      %935 = vmatmul.f32.gmra.mxu0 %v728
      %v936 = vpop.f32.mrf.mxu0
      %v937 = vadd.f32 %v580, %v936
      %938 = vmatmul.f32.gmra.mxu0 %v731
      %v939 = vpop.f32.mrf.mxu0
      %v940 = vadd.f32 %v580, %v939
      %941 = vmatmul.f32.gmra.mxu0 %v734
      %v942 = vpop.f32.mrf.mxu0
      %v943 = vadd.f32 %v580, %v942
      %944 = vmatmul.f32.gmra.mxu0 %v737
      %v945 = vpop.f32.mrf.mxu0
      %v946 = vadd.f32 %v580, %v945
      %947 = vmatmul.f32.gmra.mxu0 %v740
      %v948 = vpop.f32.mrf.mxu0
      %v949 = vadd.f32 %v580, %v948
      %950 = vmatmul.f32.gmra.mxu0 %v743
      %v951 = vpop.f32.mrf.mxu0
      %v952 = vadd.f32 %v580, %v951
      %953 = vmatmul.f32.gmra.mxu0 %v746
      %v954 = vpop.f32.mrf.mxu0
      %v955 = vadd.f32 %v580, %v954
      %956 = vmatmul.f32.gmra.mxu0 %v749
      %v957 = vpop.f32.mrf.mxu0
      %v958 = vadd.f32 %v580, %v957
      %959 = vmatmul.f32.gmra.mxu0 %v752
      %v960 = vpop.f32.mrf.mxu0
      %v961 = vadd.f32 %v580, %v960
      %962 = vmatmul.f32.gmra.mxu0 %v755
      %v963 = vpop.f32.mrf.mxu0
      %v964 = vadd.f32 %v580, %v963
      %965 = vmatmul.f32.gmra.mxu0 %v758
      %v966 = vpop.f32.mrf.mxu0
      %v967 = vadd.f32 %v580, %v966
      %968 = vmatmul.f32.gmra.mxu0 %v761
      %v969 = vpop.f32.mrf.mxu0
      %v970 = vadd.f32 %v580, %v969
      %971 = vmatmul.f32.gmra.mxu0 %v764
      %v972 = vpop.f32.mrf.mxu0
      %v973 = vadd.f32 %v580, %v972
      %974 = vmatmul.f32.gmra.mxu0 %v767
      %v975 = vpop.f32.mrf.mxu0
      %v976 = vadd.f32 %v580, %v975
      %977 = vmatmul.f32.gmra.mxu0 %v770
      %v978 = vpop.f32.mrf.mxu0
      %v979 = vadd.f32 %v580, %v978
      %980 = vmatmul.f32.gmra.mxu0 %v773
      %v981 = vpop.f32.mrf.mxu0
      %v982 = vadd.f32 %v580, %v981
      %983 = vdwg.mxu0
      %v984 = vmax.f32 %v793, 0.0
      %v985 = vmax.f32 %v796, 0.0
      %v986 = vmax.f32 %v799, 0.0
      %v987 = vmax.f32 %v802, 0.0
      %v988 = vmax.f32 %v805, 0.0
      %v989 = vmax.f32 %v808, 0.0
      %v990 = vmax.f32 %v811, 0.0
      %v991 = vmax.f32 %v814, 0.0
      %v992 = vmax.f32 %v817, 0.0
      %v993 = vmax.f32 %v820, 0.0
      %v994 = vmax.f32 %v823, 0.0
      %v995 = vmax.f32 %v826, 0.0
      %v996 = vmax.f32 %v829, 0.0
      %v997 = vmax.f32 %v832, 0.0
      %v998 = vmax.f32 %v835, 0.0
      %v999 = vmax.f32 %v838, 0.0
      %v1000 = vmax.f32 %v841, 0.0
      %v1001 = vmax.f32 %v844, 0.0
      %v1002 = vmax.f32 %v847, 0.0
      %v1003 = vmax.f32 %v850, 0.0
      %v1004 = vmax.f32 %v853, 0.0
      %v1005 = vmax.f32 %v856, 0.0
      %v1006 = vmax.f32 %v859, 0.0
      %v1007 = vmax.f32 %v862, 0.0
      %v1008 = vmax.f32 %v865, 0.0
      %v1009 = vmax.f32 %v868, 0.0
      %v1010 = vmax.f32 %v871, 0.0
      %v1011 = vmax.f32 %v874, 0.0
      %v1012 = vmax.f32 %v877, 0.0
      %v1013 = vmax.f32 %v880, 0.0
      %v1014 = vmax.f32 %v883, 0.0
      %v1015 = vmax.f32 %v886, 0.0
      %v1016 = vmax.f32 %v889, 0.0
      %v1017 = vmax.f32 %v892, 0.0
      %v1018 = vmax.f32 %v895, 0.0
      %v1019 = vmax.f32 %v898, 0.0
      %v1020 = vmax.f32 %v901, 0.0
      %v1021 = vmax.f32 %v904, 0.0
      %v1022 = vmax.f32 %v907, 0.0
      %v1023 = vmax.f32 %v910, 0.0
      %v1024 = vmax.f32 %v913, 0.0
      %v1025 = vmax.f32 %v916, 0.0
      %v1026 = vmax.f32 %v919, 0.0
      %v1027 = vmax.f32 %v922, 0.0
      %v1028 = vmax.f32 %v925, 0.0
      %v1029 = vmax.f32 %v928, 0.0
      %v1030 = vmax.f32 %v931, 0.0
      %v1031 = vmax.f32 %v934, 0.0
      %v1032 = vmax.f32 %v937, 0.0
      %v1033 = vmax.f32 %v940, 0.0
      %v1034 = vmax.f32 %v943, 0.0
      %v1035 = vmax.f32 %v946, 0.0
      %v1036 = vmax.f32 %v949, 0.0
      %v1037 = vmax.f32 %v952, 0.0
      %v1038 = vmax.f32 %v955, 0.0
      %v1039 = vmax.f32 %v958, 0.0
      %v1040 = vmax.f32 %v961, 0.0
      %v1041 = vmax.f32 %v964, 0.0
      %v1042 = vmax.f32 %v967, 0.0
      %v1043 = vmax.f32 %v970, 0.0
      %v1044 = vmax.f32 %v973, 0.0
      %v1045 = vmax.f32 %v976, 0.0
      %v1046 = vmax.f32 %v979, 0.0
      %v1047 = vmax.f32 %v982, 0.0
      %1048 = vst.msk [vmem:[#allocation2 + $0x40] sm:$0xff] %vm495, %v984
      %1049 = vst.msk [vmem:[#allocation2 + $0x48] sm:$0xff] %vm495, %v985
      %1050 = vst.msk [vmem:[#allocation2 + $0x50] sm:$0xff] %vm495, %v986
      %1051 = vst.msk [vmem:[#allocation2 + $0x58] sm:$0xff] %vm495, %v987
      %1052 = vst.msk [vmem:[#allocation2 + $0x60] sm:$0xff] %vm495, %v988
      %1053 = vst.msk [vmem:[#allocation2 + $0x68] sm:$0xff] %vm495, %v989
      %1054 = vst.msk [vmem:[#allocation2 + $0x70] sm:$0xff] %vm495, %v990
      %1055 = vst.msk [vmem:[#allocation2 + $0x78] sm:$0xff] %vm495, %v991
      %1056 = vst.msk [vmem:[#allocation2 + $0x80] sm:$0xff] %vm495, %v992
      %1057 = vst.msk [vmem:[#allocation2 + $0x88] sm:$0xff] %vm495, %v993
      %1058 = vst.msk [vmem:[#allocation2 + $0x90] sm:$0xff] %vm495, %v994
      %1059 = vst.msk [vmem:[#allocation2 + $0x98] sm:$0xff] %vm495, %v995
      %1060 = vst.msk [vmem:[#allocation2 + $0xa0] sm:$0xff] %vm495, %v996
      %1061 = vst.msk [vmem:[#allocation2 + $0xa8] sm:$0xff] %vm495, %v997
      %1062 = vst.msk [vmem:[#allocation2 + $0xb0] sm:$0xff] %vm495, %v998
      %1063 = vst.msk [vmem:[#allocation2 + $0xb8] sm:$0xff] %vm495, %v999
      %1064 = vst.msk [vmem:[#allocation2 + $0xc0] sm:$0xff] %vm495, %v1000
      %1065 = vst.msk [vmem:[#allocation2 + $0xc8] sm:$0xff] %vm495, %v1001
      %1066 = vst.msk [vmem:[#allocation2 + $0xd0] sm:$0xff] %vm495, %v1002
      %1067 = vst.msk [vmem:[#allocation2 + $0xd8] sm:$0xff] %vm495, %v1003
      %1068 = vst.msk [vmem:[#allocation2 + $0xe0] sm:$0xff] %vm495, %v1004
      %1069 = vst.msk [vmem:[#allocation2 + $0xe8] sm:$0xff] %vm495, %v1005
      %1070 = vst.msk [vmem:[#allocation2 + $0xf0] sm:$0xff] %vm495, %v1006
      %1071 = vst.msk [vmem:[#allocation2 + $0xf8] sm:$0xff] %vm495, %v1007
      %1072 = vst.msk [vmem:[#allocation2 + $0x100] sm:$0xff] %vm495, %v1008
      %1073 = vst.msk [vmem:[#allocation2 + $0x108] sm:$0xff] %vm495, %v1009
      %1074 = vst.msk [vmem:[#allocation2 + $0x110] sm:$0xff] %vm495, %v1010
      %1075 = vst.msk [vmem:[#allocation2 + $0x118] sm:$0xff] %vm495, %v1011
      %1076 = vst.msk [vmem:[#allocation2 + $0x120] sm:$0xff] %vm495, %v1012
      %1077 = vst.msk [vmem:[#allocation2 + $0x128] sm:$0xff] %vm495, %v1013
      %1078 = vst.msk [vmem:[#allocation2 + $0x130] sm:$0xff] %vm495, %v1014
      %1079 = vst.msk [vmem:[#allocation2 + $0x138] sm:$0xff] %vm495, %v1015
      %1080 = vst.msk [vmem:[#allocation2 + $0x140] sm:$0xff] %vm495, %v1016
      %1081 = vst.msk [vmem:[#allocation2 + $0x148] sm:$0xff] %vm495, %v1017
      %1082 = vst.msk [vmem:[#allocation2 + $0x150] sm:$0xff] %vm495, %v1018
      %1083 = vst.msk [vmem:[#allocation2 + $0x158] sm:$0xff] %vm495, %v1019
      %1084 = vst.msk [vmem:[#allocation2 + $0x160] sm:$0xff] %vm495, %v1020
      %1085 = vst.msk [vmem:[#allocation2 + $0x168] sm:$0xff] %vm495, %v1021
      %1086 = vst.msk [vmem:[#allocation2 + $0x170] sm:$0xff] %vm495, %v1022
      %1087 = vst.msk [vmem:[#allocation2 + $0x178] sm:$0xff] %vm495, %v1023
      %1088 = vst.msk [vmem:[#allocation2 + $0x180] sm:$0xff] %vm495, %v1024
      %1089 = vst.msk [vmem:[#allocation2 + $0x188] sm:$0xff] %vm495, %v1025
      %1090 = vst.msk [vmem:[#allocation2 + $0x190] sm:$0xff] %vm495, %v1026
      %1091 = vst.msk [vmem:[#allocation2 + $0x198] sm:$0xff] %vm495, %v1027
      %1092 = vst.msk [vmem:[#allocation2 + $0x1a0] sm:$0xff] %vm495, %v1028
      %1093 = vst.msk [vmem:[#allocation2 + $0x1a8] sm:$0xff] %vm495, %v1029
      %1094 = vst.msk [vmem:[#allocation2 + $0x1b0] sm:$0xff] %vm495, %v1030
      %1095 = vst.msk [vmem:[#allocation2 + $0x1b8] sm:$0xff] %vm495, %v1031
      %1096 = vst.msk [vmem:[#allocation2 + $0x1c0] sm:$0xff] %vm495, %v1032
      %1097 = vst.msk [vmem:[#allocation2 + $0x1c8] sm:$0xff] %vm495, %v1033
      %1098 = vst.msk [vmem:[#allocation2 + $0x1d0] sm:$0xff] %vm495, %v1034
      %1099 = vst.msk [vmem:[#allocation2 + $0x1d8] sm:$0xff] %vm495, %v1035
      %1100 = vst.msk [vmem:[#allocation2 + $0x1e0] sm:$0xff] %vm495, %v1036
      %1101 = vst.msk [vmem:[#allocation2 + $0x1e8] sm:$0xff] %vm495, %v1037
      %1102 = vst.msk [vmem:[#allocation2 + $0x1f0] sm:$0xff] %vm495, %v1038
      %1103 = vst.msk [vmem:[#allocation2 + $0x1f8] sm:$0xff] %vm495, %v1039
      %1104 = vst.msk [vmem:[#allocation2 + $0x200] sm:$0xff] %vm495, %v1040
      %1105 = vst.msk [vmem:[#allocation2 + $0x208] sm:$0xff] %vm495, %v1041
      %1106 = vst.msk [vmem:[#allocation2 + $0x210] sm:$0xff] %vm495, %v1042
      %1107 = vst.msk [vmem:[#allocation2 + $0x218] sm:$0xff] %vm495, %v1043
      %1108 = vst.msk [vmem:[#allocation2 + $0x220] sm:$0xff] %vm495, %v1044
      %1109 = vst.msk [vmem:[#allocation2 + $0x228] sm:$0xff] %vm495, %v1045
      %1110 = vst.msk [vmem:[#allocation2 + $0x230] sm:$0xff] %vm495, %v1046
      %1111 = vst.msk [vmem:[#allocation2 + $0x238] sm:$0xff] %vm495, %v1047
      %v1112 = vld [vmem:[#allocation2 + $0x3f] sm:$0xff]
      %v1113 = vld [vmem:[#allocation2 + $0x47] sm:$0xff]
      %v1114 = vld [vmem:[#allocation2 + $0x4f] sm:$0xff]
      %v1115 = vld [vmem:[#allocation2 + $0x57] sm:$0xff]
      %v1116 = vld [vmem:[#allocation2 + $0x5f] sm:$0xff]
      %v1117 = vld [vmem:[#allocation2 + $0x67] sm:$0xff]
      %v1118 = vld [vmem:[#allocation2 + $0x6f] sm:$0xff]
      %v1119 = vld [vmem:[#allocation2 + $0x77] sm:$0xff]
      %v1120 = vld [vmem:[#allocation2 + $0x7f] sm:$0xff]
      %v1121 = vld [vmem:[#allocation2 + $0x87] sm:$0xff]
      %v1122 = vld [vmem:[#allocation2 + $0x8f] sm:$0xff]
      %v1123 = vld [vmem:[#allocation2 + $0x97] sm:$0xff]
      %v1124 = vld [vmem:[#allocation2 + $0x9f] sm:$0xff]
      %v1125 = vld [vmem:[#allocation2 + $0xa7] sm:$0xff]
      %v1126 = vld [vmem:[#allocation2 + $0xaf] sm:$0xff]
      %v1127 = vld [vmem:[#allocation2 + $0xb7] sm:$0xff]
      %v1128 = vld [vmem:[#allocation2 + $0xbf] sm:$0xff]
      %v1129 = vld [vmem:[#allocation2 + $0xc7] sm:$0xff]
      %v1130 = vld [vmem:[#allocation2 + $0xcf] sm:$0xff]
      %v1131 = vld [vmem:[#allocation2 + $0xd7] sm:$0xff]
      %v1132 = vld [vmem:[#allocation2 + $0xdf] sm:$0xff]
      %v1133 = vld [vmem:[#allocation2 + $0xe7] sm:$0xff]
      %v1134 = vld [vmem:[#allocation2 + $0xef] sm:$0xff]
      %v1135 = vld [vmem:[#allocation2 + $0xf7] sm:$0xff]
      %v1136 = vld [vmem:[#allocation2 + $0xff] sm:$0xff]
      %v1137 = vld [vmem:[#allocation2 + $0x107] sm:$0xff]
      %v1138 = vld [vmem:[#allocation2 + $0x10f] sm:$0xff]
      %v1139 = vld [vmem:[#allocation2 + $0x117] sm:$0xff]
      %v1140 = vld [vmem:[#allocation2 + $0x11f] sm:$0xff]
      %v1141 = vld [vmem:[#allocation2 + $0x127] sm:$0xff]
      %v1142 = vld [vmem:[#allocation2 + $0x12f] sm:$0xff]
      %v1143 = vld [vmem:[#allocation2 + $0x137] sm:$0xff]
      %v1144 = vld [vmem:[#allocation2 + $0x13f] sm:$0xff]
      %v1145 = vld [vmem:[#allocation2 + $0x147] sm:$0xff]
      %v1146 = vld [vmem:[#allocation2 + $0x14f] sm:$0xff]
      %v1147 = vld [vmem:[#allocation2 + $0x157] sm:$0xff]
      %v1148 = vld [vmem:[#allocation2 + $0x15f] sm:$0xff]
      %v1149 = vld [vmem:[#allocation2 + $0x167] sm:$0xff]
      %v1150 = vld [vmem:[#allocation2 + $0x16f] sm:$0xff]
      %v1151 = vld [vmem:[#allocation2 + $0x177] sm:$0xff]
      %v1152 = vld [vmem:[#allocation2 + $0x17f] sm:$0xff]
      %v1153 = vld [vmem:[#allocation2 + $0x187] sm:$0xff]
      %v1154 = vld [vmem:[#allocation2 + $0x18f] sm:$0xff]
      %v1155 = vld [vmem:[#allocation2 + $0x197] sm:$0xff]
      %v1156 = vld [vmem:[#allocation2 + $0x19f] sm:$0xff]
      %v1157 = vld [vmem:[#allocation2 + $0x1a7] sm:$0xff]
      %v1158 = vld [vmem:[#allocation2 + $0x1af] sm:$0xff]
      %v1159 = vld [vmem:[#allocation2 + $0x1b7] sm:$0xff]
      %v1160 = vld [vmem:[#allocation2 + $0x1bf] sm:$0xff]
      %v1161 = vld [vmem:[#allocation2 + $0x1c7] sm:$0xff]
      %v1162 = vld [vmem:[#allocation2 + $0x1cf] sm:$0xff]
      %v1163 = vld [vmem:[#allocation2 + $0x1d7] sm:$0xff]
      %v1164 = vld [vmem:[#allocation2 + $0x1df] sm:$0xff]
      %v1165 = vld [vmem:[#allocation2 + $0x1e7] sm:$0xff]
      %v1166 = vld [vmem:[#allocation2 + $0x1ef] sm:$0xff]
      %v1167 = vld [vmem:[#allocation2 + $0x1f7] sm:$0xff]
      %v1168 = vld [vmem:[#allocation2 + $0x1ff] sm:$0xff]
      %v1169 = vld [vmem:[#allocation2 + $0x207] sm:$0xff]
      %v1170 = vld [vmem:[#allocation2 + $0x20f] sm:$0xff]
      %v1171 = vld [vmem:[#allocation2 + $0x217] sm:$0xff]
      %v1172 = vld [vmem:[#allocation2 + $0x21f] sm:$0xff]
      %v1173 = vld [vmem:[#allocation2 + $0x227] sm:$0xff]
      %v1174 = vld [vmem:[#allocation2 + $0x22f] sm:$0xff]
      %v1175 = vld [vmem:[#allocation2 + $0x237] sm:$0xff]
      %v1176 = vld [vmem:[#allocation2 + $0x41] sm:$0xff]
      %v1177 = vld [vmem:[#allocation2 + $0x49] sm:$0xff]
      %v1178 = vld [vmem:[#allocation2 + $0x51] sm:$0xff]
      %v1179 = vld [vmem:[#allocation2 + $0x59] sm:$0xff]
      %v1180 = vld [vmem:[#allocation2 + $0x61] sm:$0xff]
      %v1181 = vld [vmem:[#allocation2 + $0x69] sm:$0xff]
      %v1182 = vld [vmem:[#allocation2 + $0x71] sm:$0xff]
      %v1183 = vld [vmem:[#allocation2 + $0x79] sm:$0xff]
      %v1184 = vld [vmem:[#allocation2 + $0x81] sm:$0xff]
      %v1185 = vld [vmem:[#allocation2 + $0x89] sm:$0xff]
      %v1186 = vld [vmem:[#allocation2 + $0x91] sm:$0xff]
      %v1187 = vld [vmem:[#allocation2 + $0x99] sm:$0xff]
      %v1188 = vld [vmem:[#allocation2 + $0xa1] sm:$0xff]
      %v1189 = vld [vmem:[#allocation2 + $0xa9] sm:$0xff]
      %v1190 = vld [vmem:[#allocation2 + $0xb1] sm:$0xff]
      %v1191 = vld [vmem:[#allocation2 + $0xb9] sm:$0xff]
      %v1192 = vld [vmem:[#allocation2 + $0xc1] sm:$0xff]
      %v1193 = vld [vmem:[#allocation2 + $0xc9] sm:$0xff]
      %v1194 = vld [vmem:[#allocation2 + $0xd1] sm:$0xff]
      %v1195 = vld [vmem:[#allocation2 + $0xd9] sm:$0xff]
      %v1196 = vld [vmem:[#allocation2 + $0xe1] sm:$0xff]
      %v1197 = vld [vmem:[#allocation2 + $0xe9] sm:$0xff]
      %v1198 = vld [vmem:[#allocation2 + $0xf1] sm:$0xff]
      %v1199 = vld [vmem:[#allocation2 + $0xf9] sm:$0xff]
      %v1200 = vld [vmem:[#allocation2 + $0x101] sm:$0xff]
      %v1201 = vld [vmem:[#allocation2 + $0x109] sm:$0xff]
      %v1202 = vld [vmem:[#allocation2 + $0x111] sm:$0xff]
      %v1203 = vld [vmem:[#allocation2 + $0x119] sm:$0xff]
      %v1204 = vld [vmem:[#allocation2 + $0x121] sm:$0xff]
      %v1205 = vld [vmem:[#allocation2 + $0x129] sm:$0xff]
      %v1206 = vld [vmem:[#allocation2 + $0x131] sm:$0xff]
      %v1207 = vld [vmem:[#allocation2 + $0x139] sm:$0xff]
      %v1208 = vld [vmem:[#allocation2 + $0x141] sm:$0xff]
      %v1209 = vld [vmem:[#allocation2 + $0x149] sm:$0xff]
      %v1210 = vld [vmem:[#allocation2 + $0x151] sm:$0xff]
      %v1211 = vld [vmem:[#allocation2 + $0x159] sm:$0xff]
      %v1212 = vld [vmem:[#allocation2 + $0x161] sm:$0xff]
      %v1213 = vld [vmem:[#allocation2 + $0x169] sm:$0xff]
      %v1214 = vld [vmem:[#allocation2 + $0x171] sm:$0xff]
      %v1215 = vld [vmem:[#allocation2 + $0x179] sm:$0xff]
      %v1216 = vld [vmem:[#allocation2 + $0x181] sm:$0xff]
      %v1217 = vld [vmem:[#allocation2 + $0x189] sm:$0xff]
      %v1218 = vld [vmem:[#allocation2 + $0x191] sm:$0xff]
      %v1219 = vld [vmem:[#allocation2 + $0x199] sm:$0xff]
      %v1220 = vld [vmem:[#allocation2 + $0x1a1] sm:$0xff]
      %v1221 = vld [vmem:[#allocation2 + $0x1a9] sm:$0xff]
      %v1222 = vld [vmem:[#allocation2 + $0x1b1] sm:$0xff]
      %v1223 = vld [vmem:[#allocation2 + $0x1b9] sm:$0xff]
      %v1224 = vld [vmem:[#allocation2 + $0x1c1] sm:$0xff]
      %v1225 = vld [vmem:[#allocation2 + $0x1c9] sm:$0xff]
      %v1226 = vld [vmem:[#allocation2 + $0x1d1] sm:$0xff]
      %v1227 = vld [vmem:[#allocation2 + $0x1d9] sm:$0xff]
      %v1228 = vld [vmem:[#allocation2 + $0x1e1] sm:$0xff]
      %v1229 = vld [vmem:[#allocation2 + $0x1e9] sm:$0xff]
      %v1230 = vld [vmem:[#allocation2 + $0x1f1] sm:$0xff]
      %v1231 = vld [vmem:[#allocation2 + $0x1f9] sm:$0xff]
      %v1232 = vld [vmem:[#allocation2 + $0x201] sm:$0xff]
      %v1233 = vld [vmem:[#allocation2 + $0x209] sm:$0xff]
      %v1234 = vld [vmem:[#allocation2 + $0x211] sm:$0xff]
      %v1235 = vld [vmem:[#allocation2 + $0x219] sm:$0xff]
      %v1236 = vld [vmem:[#allocation2 + $0x221] sm:$0xff]
      %v1237 = vld [vmem:[#allocation2 + $0x229] sm:$0xff]
      %v1238 = vld [vmem:[#allocation2 + $0x231] sm:$0xff]
      %v1239 = vld [vmem:[#allocation2 + $0x239] sm:$0xff]
      %v1240 = vld [vmem:[%s1] sm:$0xff]
      %v1241 = vld [vmem:[%s1 + $0x8] sm:$0xff]
      %v1242 = vld [vmem:[%s1 + $0x10] sm:$0xff]
      %v1243 = vld [vmem:[%s1 + $0x18] sm:$0xff]
      %v1244 = vld [vmem:[%s1 + $0x20] sm:$0xff]
      %v1245 = vld [vmem:[%s1 + $0x28] sm:$0xff]
      %v1246 = vld [vmem:[%s1 + $0x30] sm:$0xff]
      %v1247 = vld [vmem:[%s1 + $0x38] sm:$0xff]
      %v1248 = vld [vmem:[%s1 + $0x40] sm:$0xff]
      %v1249 = vld [vmem:[%s1 + $0x48] sm:$0xff]
      %v1250 = vld [vmem:[%s1 + $0x50] sm:$0xff]
      %v1251 = vld [vmem:[%s1 + $0x58] sm:$0xff]
      %v1252 = vld [vmem:[%s1 + $0x60] sm:$0xff]
      %v1253 = vld [vmem:[%s1 + $0x68] sm:$0xff]
      %v1254 = vld [vmem:[%s1 + $0x70] sm:$0xff]
      %v1255 = vld [vmem:[%s1 + $0x78] sm:$0xff]
      %v1256 = vld [vmem:[%s1 + $0x80] sm:$0xff]
      %v1257 = vld [vmem:[%s1 + $0x88] sm:$0xff]
      %v1258 = vld [vmem:[%s1 + $0x90] sm:$0xff]
      %v1259 = vld [vmem:[%s1 + $0x98] sm:$0xff]
      %v1260 = vld [vmem:[%s1 + $0xa0] sm:$0xff]
      %v1261 = vld [vmem:[%s1 + $0xa8] sm:$0xff]
      %v1262 = vld [vmem:[%s1 + $0xb0] sm:$0xff]
      %v1263 = vld [vmem:[%s1 + $0xb8] sm:$0xff]
      %v1264 = vld [vmem:[%s1 + $0xc0] sm:$0xff]
      %v1265 = vld [vmem:[%s1 + $0xc8] sm:$0xff]
      %v1266 = vld [vmem:[%s1 + $0xd0] sm:$0xff]
      %v1267 = vld [vmem:[%s1 + $0xd8] sm:$0xff]
      %v1268 = vld [vmem:[%s1 + $0xe0] sm:$0xff]
      %v1269 = vld [vmem:[%s1 + $0xe8] sm:$0xff]
      %v1270 = vld [vmem:[%s1 + $0xf0] sm:$0xff]
      %v1271 = vld [vmem:[%s1 + $0xf8] sm:$0xff]
      %v1272 = vld [vmem:[%s1 + $0x100] sm:$0xff]
      %v1273 = vld [vmem:[%s1 + $0x108] sm:$0xff]
      %v1274 = vld [vmem:[%s1 + $0x110] sm:$0xff]
      %v1275 = vld [vmem:[%s1 + $0x118] sm:$0xff]
      %v1276 = vld [vmem:[%s1 + $0x120] sm:$0xff]
      %v1277 = vld [vmem:[%s1 + $0x128] sm:$0xff]
      %v1278 = vld [vmem:[%s1 + $0x130] sm:$0xff]
      %v1279 = vld [vmem:[%s1 + $0x138] sm:$0xff]
      %v1280 = vld [vmem:[%s1 + $0x140] sm:$0xff]
      %v1281 = vld [vmem:[%s1 + $0x148] sm:$0xff]
      %v1282 = vld [vmem:[%s1 + $0x150] sm:$0xff]
      %v1283 = vld [vmem:[%s1 + $0x158] sm:$0xff]
      %v1284 = vld [vmem:[%s1 + $0x160] sm:$0xff]
      %v1285 = vld [vmem:[%s1 + $0x168] sm:$0xff]
      %v1286 = vld [vmem:[%s1 + $0x170] sm:$0xff]
      %v1287 = vld [vmem:[%s1 + $0x178] sm:$0xff]
      %v1288 = vld [vmem:[%s1 + $0x180] sm:$0xff]
      %v1289 = vld [vmem:[%s1 + $0x188] sm:$0xff]
      %v1290 = vld [vmem:[%s1 + $0x190] sm:$0xff]
      %v1291 = vld [vmem:[%s1 + $0x198] sm:$0xff]
      %v1292 = vld [vmem:[%s1 + $0x1a0] sm:$0xff]
      %v1293 = vld [vmem:[%s1 + $0x1a8] sm:$0xff]
      %v1294 = vld [vmem:[%s1 + $0x1b0] sm:$0xff]
      %v1295 = vld [vmem:[%s1 + $0x1b8] sm:$0xff]
      %v1296 = vld [vmem:[%s1 + $0x1c0] sm:$0xff]
      %v1297 = vld [vmem:[%s1 + $0x1c8] sm:$0xff]
      %v1298 = vld [vmem:[%s1 + $0x1d0] sm:$0xff]
      %v1299 = vld [vmem:[%s1 + $0x1d8] sm:$0xff]
      %v1300 = vld [vmem:[%s1 + $0x1e0] sm:$0xff]
      %v1301 = vld [vmem:[%s1 + $0x1e8] sm:$0xff]
      %v1302 = vld [vmem:[%s1 + $0x1f0] sm:$0xff]
      %v1303 = vld [vmem:[%s1 + $0x1f8] sm:$0xff]
      %1305 = vset.pattern.permute.xlu0 0
      %1306 = vperm.xlu0 %1305, %v1240
      %v1307 = vpop.permute.xlu0 %1306
      %1310 = vset.pattern.permute.xlu0 0
      %1311 = vperm.xlu0 %1310, %v1241
      %v1312 = vpop.permute.xlu0 %1311
      %1315 = vset.pattern.permute.xlu0 0
      %1316 = vperm.xlu0 %1315, %v1242
      %v1317 = vpop.permute.xlu0 %1316
      %1320 = vset.pattern.permute.xlu0 0
      %1321 = vperm.xlu0 %1320, %v1243
      %v1322 = vpop.permute.xlu0 %1321
      %1325 = vset.pattern.permute.xlu0 0
      %1326 = vperm.xlu0 %1325, %v1244
      %v1327 = vpop.permute.xlu0 %1326
      %1330 = vset.pattern.permute.xlu0 0
      %1331 = vperm.xlu0 %1330, %v1245
      %v1332 = vpop.permute.xlu0 %1331
      %1335 = vset.pattern.permute.xlu0 0
      %1336 = vperm.xlu0 %1335, %v1246
      %v1337 = vpop.permute.xlu0 %1336
      %1340 = vset.pattern.permute.xlu0 0
      %1341 = vperm.xlu0 %1340, %v1247
      %v1342 = vpop.permute.xlu0 %1341
      %1345 = vset.pattern.permute.xlu0 0
      %1346 = vperm.xlu0 %1345, %v1248
      %v1347 = vpop.permute.xlu0 %1346
      %1350 = vset.pattern.permute.xlu0 0
      %1351 = vperm.xlu0 %1350, %v1249
      %v1352 = vpop.permute.xlu0 %1351
      %1355 = vset.pattern.permute.xlu0 0
      %1356 = vperm.xlu0 %1355, %v1250
      %v1357 = vpop.permute.xlu0 %1356
      %1360 = vset.pattern.permute.xlu0 0
      %1361 = vperm.xlu0 %1360, %v1251
      %v1362 = vpop.permute.xlu0 %1361
      %1365 = vset.pattern.permute.xlu0 0
      %1366 = vperm.xlu0 %1365, %v1252
      %v1367 = vpop.permute.xlu0 %1366
      %1370 = vset.pattern.permute.xlu0 0
      %1371 = vperm.xlu0 %1370, %v1253
      %v1372 = vpop.permute.xlu0 %1371
      %1375 = vset.pattern.permute.xlu0 0
      %1376 = vperm.xlu0 %1375, %v1254
      %v1377 = vpop.permute.xlu0 %1376
      %1380 = vset.pattern.permute.xlu0 0
      %1381 = vperm.xlu0 %1380, %v1255
      %v1382 = vpop.permute.xlu0 %1381
      %1385 = vset.pattern.permute.xlu0 0
      %1386 = vperm.xlu0 %1385, %v1256
      %v1387 = vpop.permute.xlu0 %1386
      %1390 = vset.pattern.permute.xlu0 0
      %1391 = vperm.xlu0 %1390, %v1257
      %v1392 = vpop.permute.xlu0 %1391
      %1395 = vset.pattern.permute.xlu0 0
      %1396 = vperm.xlu0 %1395, %v1258
      %v1397 = vpop.permute.xlu0 %1396
      %1400 = vset.pattern.permute.xlu0 0
      %1401 = vperm.xlu0 %1400, %v1259
      %v1402 = vpop.permute.xlu0 %1401
      %1405 = vset.pattern.permute.xlu0 0
      %1406 = vperm.xlu0 %1405, %v1260
      %v1407 = vpop.permute.xlu0 %1406
      %1410 = vset.pattern.permute.xlu0 0
      %1411 = vperm.xlu0 %1410, %v1261
      %v1412 = vpop.permute.xlu0 %1411
      %1415 = vset.pattern.permute.xlu0 0
      %1416 = vperm.xlu0 %1415, %v1262
      %v1417 = vpop.permute.xlu0 %1416
      %1420 = vset.pattern.permute.xlu0 0
      %1421 = vperm.xlu0 %1420, %v1263
      %v1422 = vpop.permute.xlu0 %1421
      %1425 = vset.pattern.permute.xlu0 0
      %1426 = vperm.xlu0 %1425, %v1264
      %v1427 = vpop.permute.xlu0 %1426
      %1430 = vset.pattern.permute.xlu0 0
      %1431 = vperm.xlu0 %1430, %v1265
      %v1432 = vpop.permute.xlu0 %1431
      %1435 = vset.pattern.permute.xlu0 0
      %1436 = vperm.xlu0 %1435, %v1266
      %v1437 = vpop.permute.xlu0 %1436
      %1440 = vset.pattern.permute.xlu0 0
      %1441 = vperm.xlu0 %1440, %v1267
      %v1442 = vpop.permute.xlu0 %1441
      %1445 = vset.pattern.permute.xlu0 0
      %1446 = vperm.xlu0 %1445, %v1268
      %v1447 = vpop.permute.xlu0 %1446
      %1450 = vset.pattern.permute.xlu0 0
      %1451 = vperm.xlu0 %1450, %v1269
      %v1452 = vpop.permute.xlu0 %1451
      %1455 = vset.pattern.permute.xlu0 0
      %1456 = vperm.xlu0 %1455, %v1270
      %v1457 = vpop.permute.xlu0 %1456
      %1460 = vset.pattern.permute.xlu0 0
      %1461 = vperm.xlu0 %1460, %v1271
      %v1462 = vpop.permute.xlu0 %1461
      %1465 = vset.pattern.permute.xlu0 0
      %1466 = vperm.xlu0 %1465, %v1272
      %v1467 = vpop.permute.xlu0 %1466
      %1470 = vset.pattern.permute.xlu0 0
      %1471 = vperm.xlu0 %1470, %v1273
      %v1472 = vpop.permute.xlu0 %1471
      %1475 = vset.pattern.permute.xlu0 0
      %1476 = vperm.xlu0 %1475, %v1274
      %v1477 = vpop.permute.xlu0 %1476
      %1480 = vset.pattern.permute.xlu0 0
      %1481 = vperm.xlu0 %1480, %v1275
      %v1482 = vpop.permute.xlu0 %1481
      %1485 = vset.pattern.permute.xlu0 0
      %1486 = vperm.xlu0 %1485, %v1276
      %v1487 = vpop.permute.xlu0 %1486
      %1490 = vset.pattern.permute.xlu0 0
      %1491 = vperm.xlu0 %1490, %v1277
      %v1492 = vpop.permute.xlu0 %1491
      %1495 = vset.pattern.permute.xlu0 0
      %1496 = vperm.xlu0 %1495, %v1278
      %v1497 = vpop.permute.xlu0 %1496
      %1500 = vset.pattern.permute.xlu0 0
      %1501 = vperm.xlu0 %1500, %v1279
      %v1502 = vpop.permute.xlu0 %1501
      %1505 = vset.pattern.permute.xlu0 0
      %1506 = vperm.xlu0 %1505, %v1280
      %v1507 = vpop.permute.xlu0 %1506
      %1510 = vset.pattern.permute.xlu0 0
      %1511 = vperm.xlu0 %1510, %v1281
      %v1512 = vpop.permute.xlu0 %1511
      %1515 = vset.pattern.permute.xlu0 0
      %1516 = vperm.xlu0 %1515, %v1282
      %v1517 = vpop.permute.xlu0 %1516
      %1520 = vset.pattern.permute.xlu0 0
      %1521 = vperm.xlu0 %1520, %v1283
      %v1522 = vpop.permute.xlu0 %1521
      %1525 = vset.pattern.permute.xlu0 0
      %1526 = vperm.xlu0 %1525, %v1284
      %v1527 = vpop.permute.xlu0 %1526
      %1530 = vset.pattern.permute.xlu0 0
      %1531 = vperm.xlu0 %1530, %v1285
      %v1532 = vpop.permute.xlu0 %1531
      %1535 = vset.pattern.permute.xlu0 0
      %1536 = vperm.xlu0 %1535, %v1286
      %v1537 = vpop.permute.xlu0 %1536
      %1540 = vset.pattern.permute.xlu0 0
      %1541 = vperm.xlu0 %1540, %v1287
      %v1542 = vpop.permute.xlu0 %1541
      %1545 = vset.pattern.permute.xlu0 0
      %1546 = vperm.xlu0 %1545, %v1288
      %v1547 = vpop.permute.xlu0 %1546
      %1550 = vset.pattern.permute.xlu0 0
      %1551 = vperm.xlu0 %1550, %v1289
      %v1552 = vpop.permute.xlu0 %1551
      %1555 = vset.pattern.permute.xlu0 0
      %1556 = vperm.xlu0 %1555, %v1290
      %v1557 = vpop.permute.xlu0 %1556
      %1560 = vset.pattern.permute.xlu0 0
      %1561 = vperm.xlu0 %1560, %v1291
      %v1562 = vpop.permute.xlu0 %1561
      %1565 = vset.pattern.permute.xlu0 0
      %1566 = vperm.xlu0 %1565, %v1292
      %v1567 = vpop.permute.xlu0 %1566
      %1570 = vset.pattern.permute.xlu0 0
      %1571 = vperm.xlu0 %1570, %v1293
      %v1572 = vpop.permute.xlu0 %1571
      %1575 = vset.pattern.permute.xlu0 0
      %1576 = vperm.xlu0 %1575, %v1294
      %v1577 = vpop.permute.xlu0 %1576
      %1580 = vset.pattern.permute.xlu0 0
      %1581 = vperm.xlu0 %1580, %v1295
      %v1582 = vpop.permute.xlu0 %1581
      %1585 = vset.pattern.permute.xlu0 0
      %1586 = vperm.xlu0 %1585, %v1296
      %v1587 = vpop.permute.xlu0 %1586
      %1590 = vset.pattern.permute.xlu0 0
      %1591 = vperm.xlu0 %1590, %v1297
      %v1592 = vpop.permute.xlu0 %1591
      %1595 = vset.pattern.permute.xlu0 0
      %1596 = vperm.xlu0 %1595, %v1298
      %v1597 = vpop.permute.xlu0 %1596
      %1600 = vset.pattern.permute.xlu0 0
      %1601 = vperm.xlu0 %1600, %v1299
      %v1602 = vpop.permute.xlu0 %1601
      %1605 = vset.pattern.permute.xlu0 0
      %1606 = vperm.xlu0 %1605, %v1300
      %v1607 = vpop.permute.xlu0 %1606
      %1610 = vset.pattern.permute.xlu0 0
      %1611 = vperm.xlu0 %1610, %v1301
      %v1612 = vpop.permute.xlu0 %1611
      %1615 = vset.pattern.permute.xlu0 0
      %1616 = vperm.xlu0 %1615, %v1302
      %v1617 = vpop.permute.xlu0 %1616
      %1620 = vset.pattern.permute.xlu0 0
      %1621 = vperm.xlu0 %1620, %v1303
      %v1622 = vpop.permute.xlu0 %1621
      %v1624 = vmul.f32 %v1112, %v1307
      %v1625 = vmul.f32 %v1113, %v1312
      %v1626 = vmul.f32 %v1114, %v1317
      %v1627 = vmul.f32 %v1115, %v1322
      %v1628 = vmul.f32 %v1116, %v1327
      %v1629 = vmul.f32 %v1117, %v1332
      %v1630 = vmul.f32 %v1118, %v1337
      %v1631 = vmul.f32 %v1119, %v1342
      %v1632 = vmul.f32 %v1120, %v1347
      %v1633 = vmul.f32 %v1121, %v1352
      %v1634 = vmul.f32 %v1122, %v1357
      %v1635 = vmul.f32 %v1123, %v1362
      %v1636 = vmul.f32 %v1124, %v1367
      %v1637 = vmul.f32 %v1125, %v1372
      %v1638 = vmul.f32 %v1126, %v1377
      %v1639 = vmul.f32 %v1127, %v1382
      %v1640 = vmul.f32 %v1128, %v1387
      %v1641 = vmul.f32 %v1129, %v1392
      %v1642 = vmul.f32 %v1130, %v1397
      %v1643 = vmul.f32 %v1131, %v1402
      %v1644 = vmul.f32 %v1132, %v1407
      %v1645 = vmul.f32 %v1133, %v1412
      %v1646 = vmul.f32 %v1134, %v1417
      %v1647 = vmul.f32 %v1135, %v1422
      %v1648 = vmul.f32 %v1136, %v1427
      %v1649 = vmul.f32 %v1137, %v1432
      %v1650 = vmul.f32 %v1138, %v1437
      %v1651 = vmul.f32 %v1139, %v1442
      %v1652 = vmul.f32 %v1140, %v1447
      %v1653 = vmul.f32 %v1141, %v1452
      %v1654 = vmul.f32 %v1142, %v1457
      %v1655 = vmul.f32 %v1143, %v1462
      %v1656 = vmul.f32 %v1144, %v1467
      %v1657 = vmul.f32 %v1145, %v1472
      %v1658 = vmul.f32 %v1146, %v1477
      %v1659 = vmul.f32 %v1147, %v1482
      %v1660 = vmul.f32 %v1148, %v1487
      %v1661 = vmul.f32 %v1149, %v1492
      %v1662 = vmul.f32 %v1150, %v1497
      %v1663 = vmul.f32 %v1151, %v1502
      %v1664 = vmul.f32 %v1152, %v1507
      %v1665 = vmul.f32 %v1153, %v1512
      %v1666 = vmul.f32 %v1154, %v1517
      %v1667 = vmul.f32 %v1155, %v1522
      %v1668 = vmul.f32 %v1156, %v1527
      %v1669 = vmul.f32 %v1157, %v1532
      %v1670 = vmul.f32 %v1158, %v1537
      %v1671 = vmul.f32 %v1159, %v1542
      %v1672 = vmul.f32 %v1160, %v1547
      %v1673 = vmul.f32 %v1161, %v1552
      %v1674 = vmul.f32 %v1162, %v1557
      %v1675 = vmul.f32 %v1163, %v1562
      %v1676 = vmul.f32 %v1164, %v1567
      %v1677 = vmul.f32 %v1165, %v1572
      %v1678 = vmul.f32 %v1166, %v1577
      %v1679 = vmul.f32 %v1167, %v1582
      %v1680 = vmul.f32 %v1168, %v1587
      %v1681 = vmul.f32 %v1169, %v1592
      %v1682 = vmul.f32 %v1170, %v1597
      %v1683 = vmul.f32 %v1171, %v1602
      %v1684 = vmul.f32 %v1172, %v1607
      %v1685 = vmul.f32 %v1173, %v1612
      %v1686 = vmul.f32 %v1174, %v1617
      %v1687 = vmul.f32 %v1175, %v1622
      %v1688 = vld [vmem:[%s2] sm:$0xff]
      %v1689 = vld [vmem:[%s2 + $0x8] sm:$0xff]
      %v1690 = vld [vmem:[%s2 + $0x10] sm:$0xff]
      %v1691 = vld [vmem:[%s2 + $0x18] sm:$0xff]
      %v1692 = vld [vmem:[%s2 + $0x20] sm:$0xff]
      %v1693 = vld [vmem:[%s2 + $0x28] sm:$0xff]
      %v1694 = vld [vmem:[%s2 + $0x30] sm:$0xff]
      %v1695 = vld [vmem:[%s2 + $0x38] sm:$0xff]
      %v1696 = vld [vmem:[%s2 + $0x40] sm:$0xff]
      %v1697 = vld [vmem:[%s2 + $0x48] sm:$0xff]
      %v1698 = vld [vmem:[%s2 + $0x50] sm:$0xff]
      %v1699 = vld [vmem:[%s2 + $0x58] sm:$0xff]
      %v1700 = vld [vmem:[%s2 + $0x60] sm:$0xff]
      %v1701 = vld [vmem:[%s2 + $0x68] sm:$0xff]
      %v1702 = vld [vmem:[%s2 + $0x70] sm:$0xff]
      %v1703 = vld [vmem:[%s2 + $0x78] sm:$0xff]
      %v1704 = vld [vmem:[%s2 + $0x80] sm:$0xff]
      %v1705 = vld [vmem:[%s2 + $0x88] sm:$0xff]
      %v1706 = vld [vmem:[%s2 + $0x90] sm:$0xff]
      %v1707 = vld [vmem:[%s2 + $0x98] sm:$0xff]
      %v1708 = vld [vmem:[%s2 + $0xa0] sm:$0xff]
      %v1709 = vld [vmem:[%s2 + $0xa8] sm:$0xff]
      %v1710 = vld [vmem:[%s2 + $0xb0] sm:$0xff]
      %v1711 = vld [vmem:[%s2 + $0xb8] sm:$0xff]
      %v1712 = vld [vmem:[%s2 + $0xc0] sm:$0xff]
      %v1713 = vld [vmem:[%s2 + $0xc8] sm:$0xff]
      %v1714 = vld [vmem:[%s2 + $0xd0] sm:$0xff]
      %v1715 = vld [vmem:[%s2 + $0xd8] sm:$0xff]
      %v1716 = vld [vmem:[%s2 + $0xe0] sm:$0xff]
      %v1717 = vld [vmem:[%s2 + $0xe8] sm:$0xff]
      %v1718 = vld [vmem:[%s2 + $0xf0] sm:$0xff]
      %v1719 = vld [vmem:[%s2 + $0xf8] sm:$0xff]
      %v1720 = vld [vmem:[%s2 + $0x100] sm:$0xff]
      %v1721 = vld [vmem:[%s2 + $0x108] sm:$0xff]
      %v1722 = vld [vmem:[%s2 + $0x110] sm:$0xff]
      %v1723 = vld [vmem:[%s2 + $0x118] sm:$0xff]
      %v1724 = vld [vmem:[%s2 + $0x120] sm:$0xff]
      %v1725 = vld [vmem:[%s2 + $0x128] sm:$0xff]
      %v1726 = vld [vmem:[%s2 + $0x130] sm:$0xff]
      %v1727 = vld [vmem:[%s2 + $0x138] sm:$0xff]
      %v1728 = vld [vmem:[%s2 + $0x140] sm:$0xff]
      %v1729 = vld [vmem:[%s2 + $0x148] sm:$0xff]
      %v1730 = vld [vmem:[%s2 + $0x150] sm:$0xff]
      %v1731 = vld [vmem:[%s2 + $0x158] sm:$0xff]
      %v1732 = vld [vmem:[%s2 + $0x160] sm:$0xff]
      %v1733 = vld [vmem:[%s2 + $0x168] sm:$0xff]
      %v1734 = vld [vmem:[%s2 + $0x170] sm:$0xff]
      %v1735 = vld [vmem:[%s2 + $0x178] sm:$0xff]
      %v1736 = vld [vmem:[%s2 + $0x180] sm:$0xff]
      %v1737 = vld [vmem:[%s2 + $0x188] sm:$0xff]
      %v1738 = vld [vmem:[%s2 + $0x190] sm:$0xff]
      %v1739 = vld [vmem:[%s2 + $0x198] sm:$0xff]
      %v1740 = vld [vmem:[%s2 + $0x1a0] sm:$0xff]
      %v1741 = vld [vmem:[%s2 + $0x1a8] sm:$0xff]
      %v1742 = vld [vmem:[%s2 + $0x1b0] sm:$0xff]
      %v1743 = vld [vmem:[%s2 + $0x1b8] sm:$0xff]
      %v1744 = vld [vmem:[%s2 + $0x1c0] sm:$0xff]
      %v1745 = vld [vmem:[%s2 + $0x1c8] sm:$0xff]
      %v1746 = vld [vmem:[%s2 + $0x1d0] sm:$0xff]
      %v1747 = vld [vmem:[%s2 + $0x1d8] sm:$0xff]
      %v1748 = vld [vmem:[%s2 + $0x1e0] sm:$0xff]
      %v1749 = vld [vmem:[%s2 + $0x1e8] sm:$0xff]
      %v1750 = vld [vmem:[%s2 + $0x1f0] sm:$0xff]
      %v1751 = vld [vmem:[%s2 + $0x1f8] sm:$0xff]
      %1753 = vset.pattern.permute.xlu0 0
      %1754 = vperm.xlu0 %1753, %v1688
      %v1755 = vpop.permute.xlu0 %1754
      %1758 = vset.pattern.permute.xlu0 0
      %1759 = vperm.xlu0 %1758, %v1689
      %v1760 = vpop.permute.xlu0 %1759
      %1763 = vset.pattern.permute.xlu0 0
      %1764 = vperm.xlu0 %1763, %v1690
      %v1765 = vpop.permute.xlu0 %1764
      %1768 = vset.pattern.permute.xlu0 0
      %1769 = vperm.xlu0 %1768, %v1691
      %v1770 = vpop.permute.xlu0 %1769
      %1773 = vset.pattern.permute.xlu0 0
      %1774 = vperm.xlu0 %1773, %v1692
      %v1775 = vpop.permute.xlu0 %1774
      %1778 = vset.pattern.permute.xlu0 0
      %1779 = vperm.xlu0 %1778, %v1693
      %v1780 = vpop.permute.xlu0 %1779
      %1783 = vset.pattern.permute.xlu0 0
      %1784 = vperm.xlu0 %1783, %v1694
      %v1785 = vpop.permute.xlu0 %1784
      %1788 = vset.pattern.permute.xlu0 0
      %1789 = vperm.xlu0 %1788, %v1695
      %v1790 = vpop.permute.xlu0 %1789
      %1793 = vset.pattern.permute.xlu0 0
      %1794 = vperm.xlu0 %1793, %v1696
      %v1795 = vpop.permute.xlu0 %1794
      %1798 = vset.pattern.permute.xlu0 0
      %1799 = vperm.xlu0 %1798, %v1697
      %v1800 = vpop.permute.xlu0 %1799
      %1803 = vset.pattern.permute.xlu0 0
      %1804 = vperm.xlu0 %1803, %v1698
      %v1805 = vpop.permute.xlu0 %1804
      %1808 = vset.pattern.permute.xlu0 0
      %1809 = vperm.xlu0 %1808, %v1699
      %v1810 = vpop.permute.xlu0 %1809
      %1813 = vset.pattern.permute.xlu0 0
      %1814 = vperm.xlu0 %1813, %v1700
      %v1815 = vpop.permute.xlu0 %1814
      %1818 = vset.pattern.permute.xlu0 0
      %1819 = vperm.xlu0 %1818, %v1701
      %v1820 = vpop.permute.xlu0 %1819
      %1823 = vset.pattern.permute.xlu0 0
      %1824 = vperm.xlu0 %1823, %v1702
      %v1825 = vpop.permute.xlu0 %1824
      %1828 = vset.pattern.permute.xlu0 0
      %1829 = vperm.xlu0 %1828, %v1703
      %v1830 = vpop.permute.xlu0 %1829
      %1833 = vset.pattern.permute.xlu0 0
      %1834 = vperm.xlu0 %1833, %v1704
      %v1835 = vpop.permute.xlu0 %1834
      %1838 = vset.pattern.permute.xlu0 0
      %1839 = vperm.xlu0 %1838, %v1705
      %v1840 = vpop.permute.xlu0 %1839
      %1843 = vset.pattern.permute.xlu0 0
      %1844 = vperm.xlu0 %1843, %v1706
      %v1845 = vpop.permute.xlu0 %1844
      %1848 = vset.pattern.permute.xlu0 0
      %1849 = vperm.xlu0 %1848, %v1707
      %v1850 = vpop.permute.xlu0 %1849
      %1853 = vset.pattern.permute.xlu0 0
      %1854 = vperm.xlu0 %1853, %v1708
      %v1855 = vpop.permute.xlu0 %1854
      %1858 = vset.pattern.permute.xlu0 0
      %1859 = vperm.xlu0 %1858, %v1709
      %v1860 = vpop.permute.xlu0 %1859
      %1863 = vset.pattern.permute.xlu0 0
      %1864 = vperm.xlu0 %1863, %v1710
      %v1865 = vpop.permute.xlu0 %1864
      %1868 = vset.pattern.permute.xlu0 0
      %1869 = vperm.xlu0 %1868, %v1711
      %v1870 = vpop.permute.xlu0 %1869
      %1873 = vset.pattern.permute.xlu0 0
      %1874 = vperm.xlu0 %1873, %v1712
      %v1875 = vpop.permute.xlu0 %1874
      %1878 = vset.pattern.permute.xlu0 0
      %1879 = vperm.xlu0 %1878, %v1713
      %v1880 = vpop.permute.xlu0 %1879
      %1883 = vset.pattern.permute.xlu0 0
      %1884 = vperm.xlu0 %1883, %v1714
      %v1885 = vpop.permute.xlu0 %1884
      %1888 = vset.pattern.permute.xlu0 0
      %1889 = vperm.xlu0 %1888, %v1715
      %v1890 = vpop.permute.xlu0 %1889
      %1893 = vset.pattern.permute.xlu0 0
      %1894 = vperm.xlu0 %1893, %v1716
      %v1895 = vpop.permute.xlu0 %1894
      %1898 = vset.pattern.permute.xlu0 0
      %1899 = vperm.xlu0 %1898, %v1717
      %v1900 = vpop.permute.xlu0 %1899
      %1903 = vset.pattern.permute.xlu0 0
      %1904 = vperm.xlu0 %1903, %v1718
      %v1905 = vpop.permute.xlu0 %1904
      %1908 = vset.pattern.permute.xlu0 0
      %1909 = vperm.xlu0 %1908, %v1719
      %v1910 = vpop.permute.xlu0 %1909
      %1913 = vset.pattern.permute.xlu0 0
      %1914 = vperm.xlu0 %1913, %v1720
      %v1915 = vpop.permute.xlu0 %1914
      %1918 = vset.pattern.permute.xlu0 0
      %1919 = vperm.xlu0 %1918, %v1721
      %v1920 = vpop.permute.xlu0 %1919
      %1923 = vset.pattern.permute.xlu0 0
      %1924 = vperm.xlu0 %1923, %v1722
      %v1925 = vpop.permute.xlu0 %1924
      %1928 = vset.pattern.permute.xlu0 0
      %1929 = vperm.xlu0 %1928, %v1723
      %v1930 = vpop.permute.xlu0 %1929
      %1933 = vset.pattern.permute.xlu0 0
      %1934 = vperm.xlu0 %1933, %v1724
      %v1935 = vpop.permute.xlu0 %1934
      %1938 = vset.pattern.permute.xlu0 0
      %1939 = vperm.xlu0 %1938, %v1725
      %v1940 = vpop.permute.xlu0 %1939
      %1943 = vset.pattern.permute.xlu0 0
      %1944 = vperm.xlu0 %1943, %v1726
      %v1945 = vpop.permute.xlu0 %1944
      %1948 = vset.pattern.permute.xlu0 0
      %1949 = vperm.xlu0 %1948, %v1727
      %v1950 = vpop.permute.xlu0 %1949
      %1953 = vset.pattern.permute.xlu0 0
      %1954 = vperm.xlu0 %1953, %v1728
      %v1955 = vpop.permute.xlu0 %1954
      %1958 = vset.pattern.permute.xlu0 0
      %1959 = vperm.xlu0 %1958, %v1729
      %v1960 = vpop.permute.xlu0 %1959
      %1963 = vset.pattern.permute.xlu0 0
      %1964 = vperm.xlu0 %1963, %v1730
      %v1965 = vpop.permute.xlu0 %1964
      %1968 = vset.pattern.permute.xlu0 0
      %1969 = vperm.xlu0 %1968, %v1731
      %v1970 = vpop.permute.xlu0 %1969
      %1973 = vset.pattern.permute.xlu0 0
      %1974 = vperm.xlu0 %1973, %v1732
      %v1975 = vpop.permute.xlu0 %1974
      %1978 = vset.pattern.permute.xlu0 0
      %1979 = vperm.xlu0 %1978, %v1733
      %v1980 = vpop.permute.xlu0 %1979
      %1983 = vset.pattern.permute.xlu0 0
      %1984 = vperm.xlu0 %1983, %v1734
      %v1985 = vpop.permute.xlu0 %1984
      %1988 = vset.pattern.permute.xlu0 0
      %1989 = vperm.xlu0 %1988, %v1735
      %v1990 = vpop.permute.xlu0 %1989
      %1993 = vset.pattern.permute.xlu0 0
      %1994 = vperm.xlu0 %1993, %v1736
      %v1995 = vpop.permute.xlu0 %1994
      %1998 = vset.pattern.permute.xlu0 0
      %1999 = vperm.xlu0 %1998, %v1737
      %v2000 = vpop.permute.xlu0 %1999
      %2003 = vset.pattern.permute.xlu0 0
      %2004 = vperm.xlu0 %2003, %v1738
      %v2005 = vpop.permute.xlu0 %2004
      %2008 = vset.pattern.permute.xlu0 0
      %2009 = vperm.xlu0 %2008, %v1739
      %v2010 = vpop.permute.xlu0 %2009
      %2013 = vset.pattern.permute.xlu0 0
      %2014 = vperm.xlu0 %2013, %v1740
      %v2015 = vpop.permute.xlu0 %2014
      %2018 = vset.pattern.permute.xlu0 0
      %2019 = vperm.xlu0 %2018, %v1741
      %v2020 = vpop.permute.xlu0 %2019
      %2023 = vset.pattern.permute.xlu0 0
      %2024 = vperm.xlu0 %2023, %v1742
      %v2025 = vpop.permute.xlu0 %2024
      %2028 = vset.pattern.permute.xlu0 0
      %2029 = vperm.xlu0 %2028, %v1743
      %v2030 = vpop.permute.xlu0 %2029
      %2033 = vset.pattern.permute.xlu0 0
      %2034 = vperm.xlu0 %2033, %v1744
      %v2035 = vpop.permute.xlu0 %2034
      %2038 = vset.pattern.permute.xlu0 0
      %2039 = vperm.xlu0 %2038, %v1745
      %v2040 = vpop.permute.xlu0 %2039
      %2043 = vset.pattern.permute.xlu0 0
      %2044 = vperm.xlu0 %2043, %v1746
      %v2045 = vpop.permute.xlu0 %2044
      %2048 = vset.pattern.permute.xlu0 0
      %2049 = vperm.xlu0 %2048, %v1747
      %v2050 = vpop.permute.xlu0 %2049
      %2053 = vset.pattern.permute.xlu0 0
      %2054 = vperm.xlu0 %2053, %v1748
      %v2055 = vpop.permute.xlu0 %2054
      %2058 = vset.pattern.permute.xlu0 0
      %2059 = vperm.xlu0 %2058, %v1749
      %v2060 = vpop.permute.xlu0 %2059
      %2063 = vset.pattern.permute.xlu0 0
      %2064 = vperm.xlu0 %2063, %v1750
      %v2065 = vpop.permute.xlu0 %2064
      %2068 = vset.pattern.permute.xlu0 0
      %2069 = vperm.xlu0 %2068, %v1751
      %v2070 = vpop.permute.xlu0 %2069
      %v2072 = vmul.f32 %v1176, %v1755
      %v2073 = vmul.f32 %v1177, %v1760
      %v2074 = vmul.f32 %v1178, %v1765
      %v2075 = vmul.f32 %v1179, %v1770
      %v2076 = vmul.f32 %v1180, %v1775
      %v2077 = vmul.f32 %v1181, %v1780
      %v2078 = vmul.f32 %v1182, %v1785
      %v2079 = vmul.f32 %v1183, %v1790
      %v2080 = vmul.f32 %v1184, %v1795
      %v2081 = vmul.f32 %v1185, %v1800
      %v2082 = vmul.f32 %v1186, %v1805
      %v2083 = vmul.f32 %v1187, %v1810
      %v2084 = vmul.f32 %v1188, %v1815
      %v2085 = vmul.f32 %v1189, %v1820
      %v2086 = vmul.f32 %v1190, %v1825
      %v2087 = vmul.f32 %v1191, %v1830
      %v2088 = vmul.f32 %v1192, %v1835
      %v2089 = vmul.f32 %v1193, %v1840
      %v2090 = vmul.f32 %v1194, %v1845
      %v2091 = vmul.f32 %v1195, %v1850
      %v2092 = vmul.f32 %v1196, %v1855
      %v2093 = vmul.f32 %v1197, %v1860
      %v2094 = vmul.f32 %v1198, %v1865
      %v2095 = vmul.f32 %v1199, %v1870
      %v2096 = vmul.f32 %v1200, %v1875
      %v2097 = vmul.f32 %v1201, %v1880
      %v2098 = vmul.f32 %v1202, %v1885
      %v2099 = vmul.f32 %v1203, %v1890
      %v2100 = vmul.f32 %v1204, %v1895
      %v2101 = vmul.f32 %v1205, %v1900
      %v2102 = vmul.f32 %v1206, %v1905
      %v2103 = vmul.f32 %v1207, %v1910
      %v2104 = vmul.f32 %v1208, %v1915
      %v2105 = vmul.f32 %v1209, %v1920
      %v2106 = vmul.f32 %v1210, %v1925
      %v2107 = vmul.f32 %v1211, %v1930
      %v2108 = vmul.f32 %v1212, %v1935
      %v2109 = vmul.f32 %v1213, %v1940
      %v2110 = vmul.f32 %v1214, %v1945
      %v2111 = vmul.f32 %v1215, %v1950
      %v2112 = vmul.f32 %v1216, %v1955
      %v2113 = vmul.f32 %v1217, %v1960
      %v2114 = vmul.f32 %v1218, %v1965
      %v2115 = vmul.f32 %v1219, %v1970
      %v2116 = vmul.f32 %v1220, %v1975
      %v2117 = vmul.f32 %v1221, %v1980
      %v2118 = vmul.f32 %v1222, %v1985
      %v2119 = vmul.f32 %v1223, %v1990
      %v2120 = vmul.f32 %v1224, %v1995
      %v2121 = vmul.f32 %v1225, %v2000
      %v2122 = vmul.f32 %v1226, %v2005
      %v2123 = vmul.f32 %v1227, %v2010
      %v2124 = vmul.f32 %v1228, %v2015
      %v2125 = vmul.f32 %v1229, %v2020
      %v2126 = vmul.f32 %v1230, %v2025
      %v2127 = vmul.f32 %v1231, %v2030
      %v2128 = vmul.f32 %v1232, %v2035
      %v2129 = vmul.f32 %v1233, %v2040
      %v2130 = vmul.f32 %v1234, %v2045
      %v2131 = vmul.f32 %v1235, %v2050
      %v2132 = vmul.f32 %v1236, %v2055
      %v2133 = vmul.f32 %v1237, %v2060
      %v2134 = vmul.f32 %v1238, %v2065
      %v2135 = vmul.f32 %v1239, %v2070
      %v2136 = vld [vmem:[%s7] sm:$0xf]
      %s2137 = scalar_lea.vmem %s7, 4
      %v2138 = vld [vmem:[%s2137] sm:$0xf]
      %v2140 = vsel %vm495, %v984, 0
      %v2143 = vsel %vm495, %v985, 0
      %v2146 = vsel %vm495, %v986, 0
      %v2149 = vsel %vm495, %v987, 0
      %v2152 = vsel %vm495, %v988, 0
      %v2155 = vsel %vm495, %v989, 0
      %v2158 = vsel %vm495, %v990, 0
      %v2161 = vsel %vm495, %v991, 0
      %v2164 = vsel %vm495, %v992, 0
      %v2167 = vsel %vm495, %v993, 0
      %v2170 = vsel %vm495, %v994, 0
      %v2173 = vsel %vm495, %v995, 0
      %v2176 = vsel %vm495, %v996, 0
      %v2179 = vsel %vm495, %v997, 0
      %v2182 = vsel %vm495, %v998, 0
      %v2185 = vsel %vm495, %v999, 0
      %v2188 = vsel %vm495, %v1000, 0
      %v2191 = vsel %vm495, %v1001, 0
      %v2194 = vsel %vm495, %v1002, 0
      %v2197 = vsel %vm495, %v1003, 0
      %v2200 = vsel %vm495, %v1004, 0
      %v2203 = vsel %vm495, %v1005, 0
      %v2206 = vsel %vm495, %v1006, 0
      %v2209 = vsel %vm495, %v1007, 0
      %v2212 = vsel %vm495, %v1008, 0
      %v2215 = vsel %vm495, %v1009, 0
      %v2218 = vsel %vm495, %v1010, 0
      %v2221 = vsel %vm495, %v1011, 0
      %v2224 = vsel %vm495, %v1012, 0
      %v2227 = vsel %vm495, %v1013, 0
      %v2230 = vsel %vm495, %v1014, 0
      %v2233 = vsel %vm495, %v1015, 0
      %v2236 = vsel %vm495, %v1016, 0
      %v2239 = vsel %vm495, %v1017, 0
      %v2242 = vsel %vm495, %v1018, 0
      %v2245 = vsel %vm495, %v1019, 0
      %v2248 = vsel %vm495, %v1020, 0
      %v2251 = vsel %vm495, %v1021, 0
      %v2254 = vsel %vm495, %v1022, 0
      %v2257 = vsel %vm495, %v1023, 0
      %v2260 = vsel %vm495, %v1024, 0
      %v2263 = vsel %vm495, %v1025, 0
      %v2266 = vsel %vm495, %v1026, 0
      %v2269 = vsel %vm495, %v1027, 0
      %v2272 = vsel %vm495, %v1028, 0
      %v2275 = vsel %vm495, %v1029, 0
      %v2278 = vsel %vm495, %v1030, 0
      %v2281 = vsel %vm495, %v1031, 0
      %v2284 = vsel %vm495, %v1032, 0
      %v2287 = vsel %vm495, %v1033, 0
      %v2290 = vsel %vm495, %v1034, 0
      %v2293 = vsel %vm495, %v1035, 0
      %v2296 = vsel %vm495, %v1036, 0
      %v2299 = vsel %vm495, %v1037, 0
      %v2302 = vsel %vm495, %v1038, 0
      %v2305 = vsel %vm495, %v1039, 0
      %v2308 = vsel %vm495, %v1040, 0
      %v2311 = vsel %vm495, %v1041, 0
      %v2314 = vsel %vm495, %v1042, 0
      %v2317 = vsel %vm495, %v1043, 0
      %v2320 = vsel %vm495, %v1044, 0
      %v2323 = vsel %vm495, %v1045, 0
      %v2326 = vsel %vm495, %v1046, 0
      %v2329 = vsel %vm495, %v1047, 0
      %vm2331 = vcmask 1043456
      %v2333 = vsel %vm2331, %v2138, 0
      %2335 = vmatpush.msra.mxu0 0.0
      %2336 = vmatpush.msra.mxu0 0.0
      %2337 = vmatpush.msra.mxu0 0.0
      %2338 = vmatpush.msra.mxu0 0.0
      %2339 = vmatpush.msra.mxu0 0.0
      %2340 = vmatpush.msra.mxu0 0.0
      %2341 = vmatpush.msra.mxu0 0.0
      %2342 = vmatpush.msra.mxu0 0.0
      %2343 = vmatpush.msra.mxu0 0.0
      %2344 = vmatpush.msra.mxu0 0.0
      %2345 = vmatpush.msra.mxu0 0.0
      %2346 = vmatpush.msra.mxu0 0.0
      %2347 = vmatpush.msra.mxu0 0.0
      %2348 = vmatpush.msra.mxu0 0.0
      %2349 = vmatpush.msra.mxu0 0.0
      %2350 = vmatpush.msra.mxu0 %v2333
      %2351 = vmatmul.f32.gmra.mxu0 %v2140
      %v2352 = vpop.f32.mrf.mxu0
      %v2353 = vadd.f32 0.0, %v2352
      %2354 = vmatmul.f32.gmra.mxu0 %v2143
      %v2355 = vpop.f32.mrf.mxu0
      %v2356 = vadd.f32 0.0, %v2355
      %2357 = vmatmul.f32.gmra.mxu0 %v2146
      %v2358 = vpop.f32.mrf.mxu0
      %v2359 = vadd.f32 0.0, %v2358
      %2360 = vmatmul.f32.gmra.mxu0 %v2149
      %v2361 = vpop.f32.mrf.mxu0
      %v2362 = vadd.f32 0.0, %v2361
      %2363 = vmatmul.f32.gmra.mxu0 %v2152
      %v2364 = vpop.f32.mrf.mxu0
      %v2365 = vadd.f32 0.0, %v2364
      %2366 = vmatmul.f32.gmra.mxu0 %v2155
      %v2367 = vpop.f32.mrf.mxu0
      %v2368 = vadd.f32 0.0, %v2367
      %2369 = vmatmul.f32.gmra.mxu0 %v2158
      %v2370 = vpop.f32.mrf.mxu0
      %v2371 = vadd.f32 0.0, %v2370
      %2372 = vmatmul.f32.gmra.mxu0 %v2161
      %v2373 = vpop.f32.mrf.mxu0
      %v2374 = vadd.f32 0.0, %v2373
      %2375 = vmatmul.f32.gmra.mxu0 %v2164
      %v2376 = vpop.f32.mrf.mxu0
      %v2377 = vadd.f32 0.0, %v2376
      %2378 = vmatmul.f32.gmra.mxu0 %v2167
      %v2379 = vpop.f32.mrf.mxu0
      %v2380 = vadd.f32 0.0, %v2379
      %2381 = vmatmul.f32.gmra.mxu0 %v2170
      %v2382 = vpop.f32.mrf.mxu0
      %v2383 = vadd.f32 0.0, %v2382
      %2384 = vmatmul.f32.gmra.mxu0 %v2173
      %v2385 = vpop.f32.mrf.mxu0
      %v2386 = vadd.f32 0.0, %v2385
      %2387 = vmatmul.f32.gmra.mxu0 %v2176
      %v2388 = vpop.f32.mrf.mxu0
      %v2389 = vadd.f32 0.0, %v2388
      %2390 = vmatmul.f32.gmra.mxu0 %v2179
      %v2391 = vpop.f32.mrf.mxu0
      %v2392 = vadd.f32 0.0, %v2391
      %2393 = vmatmul.f32.gmra.mxu0 %v2182
      %v2394 = vpop.f32.mrf.mxu0
      %v2395 = vadd.f32 0.0, %v2394
      %2396 = vmatmul.f32.gmra.mxu0 %v2185
      %v2397 = vpop.f32.mrf.mxu0
      %v2398 = vadd.f32 0.0, %v2397
      %2399 = vmatmul.f32.gmra.mxu0 %v2188
      %v2400 = vpop.f32.mrf.mxu0
      %v2401 = vadd.f32 0.0, %v2400
      %2402 = vmatmul.f32.gmra.mxu0 %v2191
      %v2403 = vpop.f32.mrf.mxu0
      %v2404 = vadd.f32 0.0, %v2403
      %2405 = vmatmul.f32.gmra.mxu0 %v2194
      %v2406 = vpop.f32.mrf.mxu0
      %v2407 = vadd.f32 0.0, %v2406
      %2408 = vmatmul.f32.gmra.mxu0 %v2197
      %v2409 = vpop.f32.mrf.mxu0
      %v2410 = vadd.f32 0.0, %v2409
      %2411 = vmatmul.f32.gmra.mxu0 %v2200
      %v2412 = vpop.f32.mrf.mxu0
      %v2413 = vadd.f32 0.0, %v2412
      %2414 = vmatmul.f32.gmra.mxu0 %v2203
      %v2415 = vpop.f32.mrf.mxu0
      %v2416 = vadd.f32 0.0, %v2415
      %2417 = vmatmul.f32.gmra.mxu0 %v2206
      %v2418 = vpop.f32.mrf.mxu0
      %v2419 = vadd.f32 0.0, %v2418
      %2420 = vmatmul.f32.gmra.mxu0 %v2209
      %v2421 = vpop.f32.mrf.mxu0
      %v2422 = vadd.f32 0.0, %v2421
      %2423 = vmatmul.f32.gmra.mxu0 %v2212
      %v2424 = vpop.f32.mrf.mxu0
      %v2425 = vadd.f32 0.0, %v2424
      %2426 = vmatmul.f32.gmra.mxu0 %v2215
      %v2427 = vpop.f32.mrf.mxu0
      %v2428 = vadd.f32 0.0, %v2427
      %2429 = vmatmul.f32.gmra.mxu0 %v2218
      %v2430 = vpop.f32.mrf.mxu0
      %v2431 = vadd.f32 0.0, %v2430
      %2432 = vmatmul.f32.gmra.mxu0 %v2221
      %v2433 = vpop.f32.mrf.mxu0
      %v2434 = vadd.f32 0.0, %v2433
      %2435 = vmatmul.f32.gmra.mxu0 %v2224
      %v2436 = vpop.f32.mrf.mxu0
      %v2437 = vadd.f32 0.0, %v2436
      %2438 = vmatmul.f32.gmra.mxu0 %v2227
      %v2439 = vpop.f32.mrf.mxu0
      %v2440 = vadd.f32 0.0, %v2439
      %2441 = vmatmul.f32.gmra.mxu0 %v2230
      %v2442 = vpop.f32.mrf.mxu0
      %v2443 = vadd.f32 0.0, %v2442
      %2444 = vmatmul.f32.gmra.mxu0 %v2233
      %v2445 = vpop.f32.mrf.mxu0
      %v2446 = vadd.f32 0.0, %v2445
      %2447 = vmatmul.f32.gmra.mxu0 %v2236
      %v2448 = vpop.f32.mrf.mxu0
      %v2449 = vadd.f32 0.0, %v2448
      %2450 = vmatmul.f32.gmra.mxu0 %v2239
      %v2451 = vpop.f32.mrf.mxu0
      %v2452 = vadd.f32 0.0, %v2451
      %2453 = vmatmul.f32.gmra.mxu0 %v2242
      %v2454 = vpop.f32.mrf.mxu0
      %v2455 = vadd.f32 0.0, %v2454
      %2456 = vmatmul.f32.gmra.mxu0 %v2245
      %v2457 = vpop.f32.mrf.mxu0
      %v2458 = vadd.f32 0.0, %v2457
      %2459 = vmatmul.f32.gmra.mxu0 %v2248
      %v2460 = vpop.f32.mrf.mxu0
      %v2461 = vadd.f32 0.0, %v2460
      %2462 = vmatmul.f32.gmra.mxu0 %v2251
      %v2463 = vpop.f32.mrf.mxu0
      %v2464 = vadd.f32 0.0, %v2463
      %2465 = vmatmul.f32.gmra.mxu0 %v2254
      %v2466 = vpop.f32.mrf.mxu0
      %v2467 = vadd.f32 0.0, %v2466
      %2468 = vmatmul.f32.gmra.mxu0 %v2257
      %v2469 = vpop.f32.mrf.mxu0
      %v2470 = vadd.f32 0.0, %v2469
      %2471 = vmatmul.f32.gmra.mxu0 %v2260
      %v2472 = vpop.f32.mrf.mxu0
      %v2473 = vadd.f32 0.0, %v2472
      %2474 = vmatmul.f32.gmra.mxu0 %v2263
      %v2475 = vpop.f32.mrf.mxu0
      %v2476 = vadd.f32 0.0, %v2475
      %2477 = vmatmul.f32.gmra.mxu0 %v2266
      %v2478 = vpop.f32.mrf.mxu0
      %v2479 = vadd.f32 0.0, %v2478
      %2480 = vmatmul.f32.gmra.mxu0 %v2269
      %v2481 = vpop.f32.mrf.mxu0
      %v2482 = vadd.f32 0.0, %v2481
      %2483 = vmatmul.f32.gmra.mxu0 %v2272
      %v2484 = vpop.f32.mrf.mxu0
      %v2485 = vadd.f32 0.0, %v2484
      %2486 = vmatmul.f32.gmra.mxu0 %v2275
      %v2487 = vpop.f32.mrf.mxu0
      %v2488 = vadd.f32 0.0, %v2487
      %2489 = vmatmul.f32.gmra.mxu0 %v2278
      %v2490 = vpop.f32.mrf.mxu0
      %v2491 = vadd.f32 0.0, %v2490
      %2492 = vmatmul.f32.gmra.mxu0 %v2281
      %v2493 = vpop.f32.mrf.mxu0
      %v2494 = vadd.f32 0.0, %v2493
      %2495 = vmatmul.f32.gmra.mxu0 %v2284
      %v2496 = vpop.f32.mrf.mxu0
      %v2497 = vadd.f32 0.0, %v2496
      %2498 = vmatmul.f32.gmra.mxu0 %v2287
      %v2499 = vpop.f32.mrf.mxu0
      %v2500 = vadd.f32 0.0, %v2499
      %2501 = vmatmul.f32.gmra.mxu0 %v2290
      %v2502 = vpop.f32.mrf.mxu0
      %v2503 = vadd.f32 0.0, %v2502
      %2504 = vmatmul.f32.gmra.mxu0 %v2293
      %v2505 = vpop.f32.mrf.mxu0
      %v2506 = vadd.f32 0.0, %v2505
      %2507 = vmatmul.f32.gmra.mxu0 %v2296
      %v2508 = vpop.f32.mrf.mxu0
      %v2509 = vadd.f32 0.0, %v2508
      %2510 = vmatmul.f32.gmra.mxu0 %v2299
      %v2511 = vpop.f32.mrf.mxu0
      %v2512 = vadd.f32 0.0, %v2511
      %2513 = vmatmul.f32.gmra.mxu0 %v2302
      %v2514 = vpop.f32.mrf.mxu0
      %v2515 = vadd.f32 0.0, %v2514
      %2516 = vmatmul.f32.gmra.mxu0 %v2305
      %v2517 = vpop.f32.mrf.mxu0
      %v2518 = vadd.f32 0.0, %v2517
      %2519 = vmatmul.f32.gmra.mxu0 %v2308
      %v2520 = vpop.f32.mrf.mxu0
      %v2521 = vadd.f32 0.0, %v2520
      %2522 = vmatmul.f32.gmra.mxu0 %v2311
      %v2523 = vpop.f32.mrf.mxu0
      %v2524 = vadd.f32 0.0, %v2523
      %2525 = vmatmul.f32.gmra.mxu0 %v2314
      %v2526 = vpop.f32.mrf.mxu0
      %v2527 = vadd.f32 0.0, %v2526
      %2528 = vmatmul.f32.gmra.mxu0 %v2317
      %v2529 = vpop.f32.mrf.mxu0
      %v2530 = vadd.f32 0.0, %v2529
      %2531 = vmatmul.f32.gmra.mxu0 %v2320
      %v2532 = vpop.f32.mrf.mxu0
      %v2533 = vadd.f32 0.0, %v2532
      %2534 = vmatmul.f32.gmra.mxu0 %v2323
      %v2535 = vpop.f32.mrf.mxu0
      %v2536 = vadd.f32 0.0, %v2535
      %2537 = vmatmul.f32.gmra.mxu0 %v2326
      %v2538 = vpop.f32.mrf.mxu0
      %v2539 = vadd.f32 0.0, %v2538
      %2540 = vmatmul.f32.gmra.mxu0 %v2329
      %v2541 = vpop.f32.mrf.mxu0
      %v2542 = vadd.f32 0.0, %v2541
      %2543 = vdwg.mxu0
      %v2545 = vsel %vm495, %v1624, 0
      %v2548 = vsel %vm495, %v1625, 0
      %v2551 = vsel %vm495, %v1626, 0
      %v2554 = vsel %vm495, %v1627, 0
      %v2557 = vsel %vm495, %v1628, 0
      %v2560 = vsel %vm495, %v1629, 0
      %v2563 = vsel %vm495, %v1630, 0
      %v2566 = vsel %vm495, %v1631, 0
      %v2569 = vsel %vm495, %v1632, 0
      %v2572 = vsel %vm495, %v1633, 0
      %v2575 = vsel %vm495, %v1634, 0
      %v2578 = vsel %vm495, %v1635, 0
      %v2581 = vsel %vm495, %v1636, 0
      %v2584 = vsel %vm495, %v1637, 0
      %v2587 = vsel %vm495, %v1638, 0
      %v2590 = vsel %vm495, %v1639, 0
      %v2593 = vsel %vm495, %v1640, 0
      %v2596 = vsel %vm495, %v1641, 0
      %v2599 = vsel %vm495, %v1642, 0
      %v2602 = vsel %vm495, %v1643, 0
      %v2605 = vsel %vm495, %v1644, 0
      %v2608 = vsel %vm495, %v1645, 0
      %v2611 = vsel %vm495, %v1646, 0
      %v2614 = vsel %vm495, %v1647, 0
      %v2617 = vsel %vm495, %v1648, 0
      %v2620 = vsel %vm495, %v1649, 0
      %v2623 = vsel %vm495, %v1650, 0
      %v2626 = vsel %vm495, %v1651, 0
      %v2629 = vsel %vm495, %v1652, 0
      %v2632 = vsel %vm495, %v1653, 0
      %v2635 = vsel %vm495, %v1654, 0
      %v2638 = vsel %vm495, %v1655, 0
      %v2641 = vsel %vm495, %v1656, 0
      %v2644 = vsel %vm495, %v1657, 0
      %v2647 = vsel %vm495, %v1658, 0
      %v2650 = vsel %vm495, %v1659, 0
      %v2653 = vsel %vm495, %v1660, 0
      %v2656 = vsel %vm495, %v1661, 0
      %v2659 = vsel %vm495, %v1662, 0
      %v2662 = vsel %vm495, %v1663, 0
      %v2665 = vsel %vm495, %v1664, 0
      %v2668 = vsel %vm495, %v1665, 0
      %v2671 = vsel %vm495, %v1666, 0
      %v2674 = vsel %vm495, %v1667, 0
      %v2677 = vsel %vm495, %v1668, 0
      %v2680 = vsel %vm495, %v1669, 0
      %v2683 = vsel %vm495, %v1670, 0
      %v2686 = vsel %vm495, %v1671, 0
      %v2689 = vsel %vm495, %v1672, 0
      %v2692 = vsel %vm495, %v1673, 0
      %v2695 = vsel %vm495, %v1674, 0
      %v2698 = vsel %vm495, %v1675, 0
      %v2701 = vsel %vm495, %v1676, 0
      %v2704 = vsel %vm495, %v1677, 0
      %v2707 = vsel %vm495, %v1678, 0
      %v2710 = vsel %vm495, %v1679, 0
      %v2713 = vsel %vm495, %v1680, 0
      %v2716 = vsel %vm495, %v1681, 0
      %v2719 = vsel %vm495, %v1682, 0
      %v2722 = vsel %vm495, %v1683, 0
      %v2725 = vsel %vm495, %v1684, 0
      %v2728 = vsel %vm495, %v1685, 0
      %v2731 = vsel %vm495, %v1686, 0
      %v2734 = vsel %vm495, %v1687, 0
      %v2737 = vsel %vm2331, %v2136, 0
      %2739 = vmatpush.msra.mxu0 0.0
      %2740 = vmatpush.msra.mxu0 0.0
      %2741 = vmatpush.msra.mxu0 0.0
      %2742 = vmatpush.msra.mxu0 0.0
      %2743 = vmatpush.msra.mxu0 0.0
      %2744 = vmatpush.msra.mxu0 0.0
      %2745 = vmatpush.msra.mxu0 0.0
      %2746 = vmatpush.msra.mxu0 0.0
      %2747 = vmatpush.msra.mxu0 0.0
      %2748 = vmatpush.msra.mxu0 0.0
      %2749 = vmatpush.msra.mxu0 0.0
      %2750 = vmatpush.msra.mxu0 0.0
      %2751 = vmatpush.msra.mxu0 0.0
      %2752 = vmatpush.msra.mxu0 0.0
      %2753 = vmatpush.msra.mxu0 0.0
      %2754 = vmatpush.msra.mxu0 %v2737
      %2755 = vmatmul.f32.gmra.mxu0 %v2545
      %v2756 = vpop.f32.mrf.mxu0
      %v2757 = vadd.f32 %v2353, %v2756
      %2758 = vmatmul.f32.gmra.mxu0 %v2548
      %v2759 = vpop.f32.mrf.mxu0
      %v2760 = vadd.f32 %v2356, %v2759
      %2761 = vmatmul.f32.gmra.mxu0 %v2551
      %v2762 = vpop.f32.mrf.mxu0
      %v2763 = vadd.f32 %v2359, %v2762
      %2764 = vmatmul.f32.gmra.mxu0 %v2554
      %v2765 = vpop.f32.mrf.mxu0
      %v2766 = vadd.f32 %v2362, %v2765
      %2767 = vmatmul.f32.gmra.mxu0 %v2557
      %v2768 = vpop.f32.mrf.mxu0
      %v2769 = vadd.f32 %v2365, %v2768
      %2770 = vmatmul.f32.gmra.mxu0 %v2560
      %v2771 = vpop.f32.mrf.mxu0
      %v2772 = vadd.f32 %v2368, %v2771
      %2773 = vmatmul.f32.gmra.mxu0 %v2563
      %v2774 = vpop.f32.mrf.mxu0
      %v2775 = vadd.f32 %v2371, %v2774
      %2776 = vmatmul.f32.gmra.mxu0 %v2566
      %v2777 = vpop.f32.mrf.mxu0
      %v2778 = vadd.f32 %v2374, %v2777
      %2779 = vmatmul.f32.gmra.mxu0 %v2569
      %v2780 = vpop.f32.mrf.mxu0
      %v2781 = vadd.f32 %v2377, %v2780
      %2782 = vmatmul.f32.gmra.mxu0 %v2572
      %v2783 = vpop.f32.mrf.mxu0
      %v2784 = vadd.f32 %v2380, %v2783
      %2785 = vmatmul.f32.gmra.mxu0 %v2575
      %v2786 = vpop.f32.mrf.mxu0
      %v2787 = vadd.f32 %v2383, %v2786
      %2788 = vmatmul.f32.gmra.mxu0 %v2578
      %v2789 = vpop.f32.mrf.mxu0
      %v2790 = vadd.f32 %v2386, %v2789
      %2791 = vmatmul.f32.gmra.mxu0 %v2581
      %v2792 = vpop.f32.mrf.mxu0
      %v2793 = vadd.f32 %v2389, %v2792
      %2794 = vmatmul.f32.gmra.mxu0 %v2584
      %v2795 = vpop.f32.mrf.mxu0
      %v2796 = vadd.f32 %v2392, %v2795
      %2797 = vmatmul.f32.gmra.mxu0 %v2587
      %v2798 = vpop.f32.mrf.mxu0
      %v2799 = vadd.f32 %v2395, %v2798
      %2800 = vmatmul.f32.gmra.mxu0 %v2590
      %v2801 = vpop.f32.mrf.mxu0
      %v2802 = vadd.f32 %v2398, %v2801
      %2803 = vmatmul.f32.gmra.mxu0 %v2593
      %v2804 = vpop.f32.mrf.mxu0
      %v2805 = vadd.f32 %v2401, %v2804
      %2806 = vmatmul.f32.gmra.mxu0 %v2596
      %v2807 = vpop.f32.mrf.mxu0
      %v2808 = vadd.f32 %v2404, %v2807
      %2809 = vmatmul.f32.gmra.mxu0 %v2599
      %v2810 = vpop.f32.mrf.mxu0
      %v2811 = vadd.f32 %v2407, %v2810
      %2812 = vmatmul.f32.gmra.mxu0 %v2602
      %v2813 = vpop.f32.mrf.mxu0
      %v2814 = vadd.f32 %v2410, %v2813
      %2815 = vmatmul.f32.gmra.mxu0 %v2605
      %v2816 = vpop.f32.mrf.mxu0
      %v2817 = vadd.f32 %v2413, %v2816
      %2818 = vmatmul.f32.gmra.mxu0 %v2608
      %v2819 = vpop.f32.mrf.mxu0
      %v2820 = vadd.f32 %v2416, %v2819
      %2821 = vmatmul.f32.gmra.mxu0 %v2611
      %v2822 = vpop.f32.mrf.mxu0
      %v2823 = vadd.f32 %v2419, %v2822
      %2824 = vmatmul.f32.gmra.mxu0 %v2614
      %v2825 = vpop.f32.mrf.mxu0
      %v2826 = vadd.f32 %v2422, %v2825
      %2827 = vmatmul.f32.gmra.mxu0 %v2617
      %v2828 = vpop.f32.mrf.mxu0
      %v2829 = vadd.f32 %v2425, %v2828
      %2830 = vmatmul.f32.gmra.mxu0 %v2620
      %v2831 = vpop.f32.mrf.mxu0
      %v2832 = vadd.f32 %v2428, %v2831
      %2833 = vmatmul.f32.gmra.mxu0 %v2623
      %v2834 = vpop.f32.mrf.mxu0
      %v2835 = vadd.f32 %v2431, %v2834
      %2836 = vmatmul.f32.gmra.mxu0 %v2626
      %v2837 = vpop.f32.mrf.mxu0
      %v2838 = vadd.f32 %v2434, %v2837
      %2839 = vmatmul.f32.gmra.mxu0 %v2629
      %v2840 = vpop.f32.mrf.mxu0
      %v2841 = vadd.f32 %v2437, %v2840
      %2842 = vmatmul.f32.gmra.mxu0 %v2632
      %v2843 = vpop.f32.mrf.mxu0
      %v2844 = vadd.f32 %v2440, %v2843
      %2845 = vmatmul.f32.gmra.mxu0 %v2635
      %v2846 = vpop.f32.mrf.mxu0
      %v2847 = vadd.f32 %v2443, %v2846
      %2848 = vmatmul.f32.gmra.mxu0 %v2638
      %v2849 = vpop.f32.mrf.mxu0
      %v2850 = vadd.f32 %v2446, %v2849
      %2851 = vmatmul.f32.gmra.mxu0 %v2641
      %v2852 = vpop.f32.mrf.mxu0
      %v2853 = vadd.f32 %v2449, %v2852
      %2854 = vmatmul.f32.gmra.mxu0 %v2644
      %v2855 = vpop.f32.mrf.mxu0
      %v2856 = vadd.f32 %v2452, %v2855
      %2857 = vmatmul.f32.gmra.mxu0 %v2647
      %v2858 = vpop.f32.mrf.mxu0
      %v2859 = vadd.f32 %v2455, %v2858
      %2860 = vmatmul.f32.gmra.mxu0 %v2650
      %v2861 = vpop.f32.mrf.mxu0
      %v2862 = vadd.f32 %v2458, %v2861
      %2863 = vmatmul.f32.gmra.mxu0 %v2653
      %v2864 = vpop.f32.mrf.mxu0
      %v2865 = vadd.f32 %v2461, %v2864
      %2866 = vmatmul.f32.gmra.mxu0 %v2656
      %v2867 = vpop.f32.mrf.mxu0
      %v2868 = vadd.f32 %v2464, %v2867
      %2869 = vmatmul.f32.gmra.mxu0 %v2659
      %v2870 = vpop.f32.mrf.mxu0
      %v2871 = vadd.f32 %v2467, %v2870
      %2872 = vmatmul.f32.gmra.mxu0 %v2662
      %v2873 = vpop.f32.mrf.mxu0
      %v2874 = vadd.f32 %v2470, %v2873
      %2875 = vmatmul.f32.gmra.mxu0 %v2665
      %v2876 = vpop.f32.mrf.mxu0
      %v2877 = vadd.f32 %v2473, %v2876
      %2878 = vmatmul.f32.gmra.mxu0 %v2668
      %v2879 = vpop.f32.mrf.mxu0
      %v2880 = vadd.f32 %v2476, %v2879
      %2881 = vmatmul.f32.gmra.mxu0 %v2671
      %v2882 = vpop.f32.mrf.mxu0
      %v2883 = vadd.f32 %v2479, %v2882
      %2884 = vmatmul.f32.gmra.mxu0 %v2674
      %v2885 = vpop.f32.mrf.mxu0
      %v2886 = vadd.f32 %v2482, %v2885
      %2887 = vmatmul.f32.gmra.mxu0 %v2677
      %v2888 = vpop.f32.mrf.mxu0
      %v2889 = vadd.f32 %v2485, %v2888
      %2890 = vmatmul.f32.gmra.mxu0 %v2680
      %v2891 = vpop.f32.mrf.mxu0
      %v2892 = vadd.f32 %v2488, %v2891
      %2893 = vmatmul.f32.gmra.mxu0 %v2683
      %v2894 = vpop.f32.mrf.mxu0
      %v2895 = vadd.f32 %v2491, %v2894
      %2896 = vmatmul.f32.gmra.mxu0 %v2686
      %v2897 = vpop.f32.mrf.mxu0
      %v2898 = vadd.f32 %v2494, %v2897
      %2899 = vmatmul.f32.gmra.mxu0 %v2689
      %v2900 = vpop.f32.mrf.mxu0
      %v2901 = vadd.f32 %v2497, %v2900
      %2902 = vmatmul.f32.gmra.mxu0 %v2692
      %v2903 = vpop.f32.mrf.mxu0
      %v2904 = vadd.f32 %v2500, %v2903
      %2905 = vmatmul.f32.gmra.mxu0 %v2695
      %v2906 = vpop.f32.mrf.mxu0
      %v2907 = vadd.f32 %v2503, %v2906
      %2908 = vmatmul.f32.gmra.mxu0 %v2698
      %v2909 = vpop.f32.mrf.mxu0
      %v2910 = vadd.f32 %v2506, %v2909
      %2911 = vmatmul.f32.gmra.mxu0 %v2701
      %v2912 = vpop.f32.mrf.mxu0
      %v2913 = vadd.f32 %v2509, %v2912
      %2914 = vmatmul.f32.gmra.mxu0 %v2704
      %v2915 = vpop.f32.mrf.mxu0
      %v2916 = vadd.f32 %v2512, %v2915
      %2917 = vmatmul.f32.gmra.mxu0 %v2707
      %v2918 = vpop.f32.mrf.mxu0
      %v2919 = vadd.f32 %v2515, %v2918
      %2920 = vmatmul.f32.gmra.mxu0 %v2710
      %v2921 = vpop.f32.mrf.mxu0
      %v2922 = vadd.f32 %v2518, %v2921
      %2923 = vmatmul.f32.gmra.mxu0 %v2713
      %v2924 = vpop.f32.mrf.mxu0
      %v2925 = vadd.f32 %v2521, %v2924
      %2926 = vmatmul.f32.gmra.mxu0 %v2716
      %v2927 = vpop.f32.mrf.mxu0
      %v2928 = vadd.f32 %v2524, %v2927
      %2929 = vmatmul.f32.gmra.mxu0 %v2719
      %v2930 = vpop.f32.mrf.mxu0
      %v2931 = vadd.f32 %v2527, %v2930
      %2932 = vmatmul.f32.gmra.mxu0 %v2722
      %v2933 = vpop.f32.mrf.mxu0
      %v2934 = vadd.f32 %v2530, %v2933
      %2935 = vmatmul.f32.gmra.mxu0 %v2725
      %v2936 = vpop.f32.mrf.mxu0
      %v2937 = vadd.f32 %v2533, %v2936
      %2938 = vmatmul.f32.gmra.mxu0 %v2728
      %v2939 = vpop.f32.mrf.mxu0
      %v2940 = vadd.f32 %v2536, %v2939
      %2941 = vmatmul.f32.gmra.mxu0 %v2731
      %v2942 = vpop.f32.mrf.mxu0
      %v2943 = vadd.f32 %v2539, %v2942
      %2944 = vmatmul.f32.gmra.mxu0 %v2734
      %v2945 = vpop.f32.mrf.mxu0
      %v2946 = vadd.f32 %v2542, %v2945
      %2947 = vdwg.mxu0
      %s2948 = scalar_lea.vmem %s7, 8
      %v2949 = vld [vmem:[%s2948] sm:$0xf]
      %v2951 = vsel %vm495, %v2072, 0
      %v2954 = vsel %vm495, %v2073, 0
      %v2957 = vsel %vm495, %v2074, 0
      %v2960 = vsel %vm495, %v2075, 0
      %v2963 = vsel %vm495, %v2076, 0
      %v2966 = vsel %vm495, %v2077, 0
      %v2969 = vsel %vm495, %v2078, 0
      %v2972 = vsel %vm495, %v2079, 0
      %v2975 = vsel %vm495, %v2080, 0
      %v2978 = vsel %vm495, %v2081, 0
      %v2981 = vsel %vm495, %v2082, 0
      %v2984 = vsel %vm495, %v2083, 0
      %v2987 = vsel %vm495, %v2084, 0
      %v2990 = vsel %vm495, %v2085, 0
      %v2993 = vsel %vm495, %v2086, 0
      %v2996 = vsel %vm495, %v2087, 0
      %v2999 = vsel %vm495, %v2088, 0
      %v3002 = vsel %vm495, %v2089, 0
      %v3005 = vsel %vm495, %v2090, 0
      %v3008 = vsel %vm495, %v2091, 0
      %v3011 = vsel %vm495, %v2092, 0
      %v3014 = vsel %vm495, %v2093, 0
      %v3017 = vsel %vm495, %v2094, 0
      %v3020 = vsel %vm495, %v2095, 0
      %v3023 = vsel %vm495, %v2096, 0
      %v3026 = vsel %vm495, %v2097, 0
      %v3029 = vsel %vm495, %v2098, 0
      %v3032 = vsel %vm495, %v2099, 0
      %v3035 = vsel %vm495, %v2100, 0
      %v3038 = vsel %vm495, %v2101, 0
      %v3041 = vsel %vm495, %v2102, 0
      %v3044 = vsel %vm495, %v2103, 0
      %v3047 = vsel %vm495, %v2104, 0
      %v3050 = vsel %vm495, %v2105, 0
      %v3053 = vsel %vm495, %v2106, 0
      %v3056 = vsel %vm495, %v2107, 0
      %v3059 = vsel %vm495, %v2108, 0
      %v3062 = vsel %vm495, %v2109, 0
      %v3065 = vsel %vm495, %v2110, 0
      %v3068 = vsel %vm495, %v2111, 0
      %v3071 = vsel %vm495, %v2112, 0
      %v3074 = vsel %vm495, %v2113, 0
      %v3077 = vsel %vm495, %v2114, 0
      %v3080 = vsel %vm495, %v2115, 0
      %v3083 = vsel %vm495, %v2116, 0
      %v3086 = vsel %vm495, %v2117, 0
      %v3089 = vsel %vm495, %v2118, 0
      %v3092 = vsel %vm495, %v2119, 0
      %v3095 = vsel %vm495, %v2120, 0
      %v3098 = vsel %vm495, %v2121, 0
      %v3101 = vsel %vm495, %v2122, 0
      %v3104 = vsel %vm495, %v2123, 0
      %v3107 = vsel %vm495, %v2124, 0
      %v3110 = vsel %vm495, %v2125, 0
      %v3113 = vsel %vm495, %v2126, 0
      %v3116 = vsel %vm495, %v2127, 0
      %v3119 = vsel %vm495, %v2128, 0
      %v3122 = vsel %vm495, %v2129, 0
      %v3125 = vsel %vm495, %v2130, 0
      %v3128 = vsel %vm495, %v2131, 0
      %v3131 = vsel %vm495, %v2132, 0
      %v3134 = vsel %vm495, %v2133, 0
      %v3137 = vsel %vm495, %v2134, 0
      %v3140 = vsel %vm495, %v2135, 0
      %v3143 = vsel %vm2331, %v2949, 0
      %3145 = vmatpush.msra.mxu0 0.0
      %3146 = vmatpush.msra.mxu0 0.0
      %3147 = vmatpush.msra.mxu0 0.0
      %3148 = vmatpush.msra.mxu0 0.0
      %3149 = vmatpush.msra.mxu0 0.0
      %3150 = vmatpush.msra.mxu0 0.0
      %3151 = vmatpush.msra.mxu0 0.0
      %3152 = vmatpush.msra.mxu0 0.0
      %3153 = vmatpush.msra.mxu0 0.0
      %3154 = vmatpush.msra.mxu0 0.0
      %3155 = vmatpush.msra.mxu0 0.0
      %3156 = vmatpush.msra.mxu0 0.0
      %3157 = vmatpush.msra.mxu0 0.0
      %3158 = vmatpush.msra.mxu0 0.0
      %3159 = vmatpush.msra.mxu0 0.0
      %3160 = vmatpush.msra.mxu0 %v3143
      %3161 = vmatmul.f32.gmra.mxu0 %v2951
      %v3162 = vpop.f32.mrf.mxu0
      %v3163 = vadd.f32 0.0, %v3162
      %3164 = vmatmul.f32.gmra.mxu0 %v2954
      %v3165 = vpop.f32.mrf.mxu0
      %v3166 = vadd.f32 0.0, %v3165
      %3167 = vmatmul.f32.gmra.mxu0 %v2957
      %v3168 = vpop.f32.mrf.mxu0
      %v3169 = vadd.f32 0.0, %v3168
      %3170 = vmatmul.f32.gmra.mxu0 %v2960
      %v3171 = vpop.f32.mrf.mxu0
      %v3172 = vadd.f32 0.0, %v3171
      %3173 = vmatmul.f32.gmra.mxu0 %v2963
      %v3174 = vpop.f32.mrf.mxu0
      %v3175 = vadd.f32 0.0, %v3174
      %3176 = vmatmul.f32.gmra.mxu0 %v2966
      %v3177 = vpop.f32.mrf.mxu0
      %v3178 = vadd.f32 0.0, %v3177
      %3179 = vmatmul.f32.gmra.mxu0 %v2969
      %v3180 = vpop.f32.mrf.mxu0
      %v3181 = vadd.f32 0.0, %v3180
      %3182 = vmatmul.f32.gmra.mxu0 %v2972
      %v3183 = vpop.f32.mrf.mxu0
      %v3184 = vadd.f32 0.0, %v3183
      %3185 = vmatmul.f32.gmra.mxu0 %v2975
      %v3186 = vpop.f32.mrf.mxu0
      %v3187 = vadd.f32 0.0, %v3186
      %3188 = vmatmul.f32.gmra.mxu0 %v2978
      %v3189 = vpop.f32.mrf.mxu0
      %v3190 = vadd.f32 0.0, %v3189
      %3191 = vmatmul.f32.gmra.mxu0 %v2981
      %v3192 = vpop.f32.mrf.mxu0
      %v3193 = vadd.f32 0.0, %v3192
      %3194 = vmatmul.f32.gmra.mxu0 %v2984
      %v3195 = vpop.f32.mrf.mxu0
      %v3196 = vadd.f32 0.0, %v3195
      %3197 = vmatmul.f32.gmra.mxu0 %v2987
      %v3198 = vpop.f32.mrf.mxu0
      %v3199 = vadd.f32 0.0, %v3198
      %3200 = vmatmul.f32.gmra.mxu0 %v2990
      %v3201 = vpop.f32.mrf.mxu0
      %v3202 = vadd.f32 0.0, %v3201
      %3203 = vmatmul.f32.gmra.mxu0 %v2993
      %v3204 = vpop.f32.mrf.mxu0
      %v3205 = vadd.f32 0.0, %v3204
      %3206 = vmatmul.f32.gmra.mxu0 %v2996
      %v3207 = vpop.f32.mrf.mxu0
      %v3208 = vadd.f32 0.0, %v3207
      %3209 = vmatmul.f32.gmra.mxu0 %v2999
      %v3210 = vpop.f32.mrf.mxu0
      %v3211 = vadd.f32 0.0, %v3210
      %3212 = vmatmul.f32.gmra.mxu0 %v3002
      %v3213 = vpop.f32.mrf.mxu0
      %v3214 = vadd.f32 0.0, %v3213
      %3215 = vmatmul.f32.gmra.mxu0 %v3005
      %v3216 = vpop.f32.mrf.mxu0
      %v3217 = vadd.f32 0.0, %v3216
      %3218 = vmatmul.f32.gmra.mxu0 %v3008
      %v3219 = vpop.f32.mrf.mxu0
      %v3220 = vadd.f32 0.0, %v3219
      %3221 = vmatmul.f32.gmra.mxu0 %v3011
      %v3222 = vpop.f32.mrf.mxu0
      %v3223 = vadd.f32 0.0, %v3222
      %3224 = vmatmul.f32.gmra.mxu0 %v3014
      %v3225 = vpop.f32.mrf.mxu0
      %v3226 = vadd.f32 0.0, %v3225
      %3227 = vmatmul.f32.gmra.mxu0 %v3017
      %v3228 = vpop.f32.mrf.mxu0
      %v3229 = vadd.f32 0.0, %v3228
      %3230 = vmatmul.f32.gmra.mxu0 %v3020
      %v3231 = vpop.f32.mrf.mxu0
      %v3232 = vadd.f32 0.0, %v3231
      %3233 = vmatmul.f32.gmra.mxu0 %v3023
      %v3234 = vpop.f32.mrf.mxu0
      %v3235 = vadd.f32 0.0, %v3234
      %3236 = vmatmul.f32.gmra.mxu0 %v3026
      %v3237 = vpop.f32.mrf.mxu0
      %v3238 = vadd.f32 0.0, %v3237
      %3239 = vmatmul.f32.gmra.mxu0 %v3029
      %v3240 = vpop.f32.mrf.mxu0
      %v3241 = vadd.f32 0.0, %v3240
      %3242 = vmatmul.f32.gmra.mxu0 %v3032
      %v3243 = vpop.f32.mrf.mxu0
      %v3244 = vadd.f32 0.0, %v3243
      %3245 = vmatmul.f32.gmra.mxu0 %v3035
      %v3246 = vpop.f32.mrf.mxu0
      %v3247 = vadd.f32 0.0, %v3246
      %3248 = vmatmul.f32.gmra.mxu0 %v3038
      %v3249 = vpop.f32.mrf.mxu0
      %v3250 = vadd.f32 0.0, %v3249
      %3251 = vmatmul.f32.gmra.mxu0 %v3041
      %v3252 = vpop.f32.mrf.mxu0
      %v3253 = vadd.f32 0.0, %v3252
      %3254 = vmatmul.f32.gmra.mxu0 %v3044
      %v3255 = vpop.f32.mrf.mxu0
      %v3256 = vadd.f32 0.0, %v3255
      %3257 = vmatmul.f32.gmra.mxu0 %v3047
      %v3258 = vpop.f32.mrf.mxu0
      %v3259 = vadd.f32 0.0, %v3258
      %3260 = vmatmul.f32.gmra.mxu0 %v3050
      %v3261 = vpop.f32.mrf.mxu0
      %v3262 = vadd.f32 0.0, %v3261
      %3263 = vmatmul.f32.gmra.mxu0 %v3053
      %v3264 = vpop.f32.mrf.mxu0
      %v3265 = vadd.f32 0.0, %v3264
      %3266 = vmatmul.f32.gmra.mxu0 %v3056
      %v3267 = vpop.f32.mrf.mxu0
      %v3268 = vadd.f32 0.0, %v3267
      %3269 = vmatmul.f32.gmra.mxu0 %v3059
      %v3270 = vpop.f32.mrf.mxu0
      %v3271 = vadd.f32 0.0, %v3270
      %3272 = vmatmul.f32.gmra.mxu0 %v3062
      %v3273 = vpop.f32.mrf.mxu0
      %v3274 = vadd.f32 0.0, %v3273
      %3275 = vmatmul.f32.gmra.mxu0 %v3065
      %v3276 = vpop.f32.mrf.mxu0
      %v3277 = vadd.f32 0.0, %v3276
      %3278 = vmatmul.f32.gmra.mxu0 %v3068
      %v3279 = vpop.f32.mrf.mxu0
      %v3280 = vadd.f32 0.0, %v3279
      %3281 = vmatmul.f32.gmra.mxu0 %v3071
      %v3282 = vpop.f32.mrf.mxu0
      %v3283 = vadd.f32 0.0, %v3282
      %3284 = vmatmul.f32.gmra.mxu0 %v3074
      %v3285 = vpop.f32.mrf.mxu0
      %v3286 = vadd.f32 0.0, %v3285
      %3287 = vmatmul.f32.gmra.mxu0 %v3077
      %v3288 = vpop.f32.mrf.mxu0
      %v3289 = vadd.f32 0.0, %v3288
      %3290 = vmatmul.f32.gmra.mxu0 %v3080
      %v3291 = vpop.f32.mrf.mxu0
      %v3292 = vadd.f32 0.0, %v3291
      %3293 = vmatmul.f32.gmra.mxu0 %v3083
      %v3294 = vpop.f32.mrf.mxu0
      %v3295 = vadd.f32 0.0, %v3294
      %3296 = vmatmul.f32.gmra.mxu0 %v3086
      %v3297 = vpop.f32.mrf.mxu0
      %v3298 = vadd.f32 0.0, %v3297
      %3299 = vmatmul.f32.gmra.mxu0 %v3089
      %v3300 = vpop.f32.mrf.mxu0
      %v3301 = vadd.f32 0.0, %v3300
      %3302 = vmatmul.f32.gmra.mxu0 %v3092
      %v3303 = vpop.f32.mrf.mxu0
      %v3304 = vadd.f32 0.0, %v3303
      %3305 = vmatmul.f32.gmra.mxu0 %v3095
      %v3306 = vpop.f32.mrf.mxu0
      %v3307 = vadd.f32 0.0, %v3306
      %3308 = vmatmul.f32.gmra.mxu0 %v3098
      %v3309 = vpop.f32.mrf.mxu0
      %v3310 = vadd.f32 0.0, %v3309
      %3311 = vmatmul.f32.gmra.mxu0 %v3101
      %v3312 = vpop.f32.mrf.mxu0
      %v3313 = vadd.f32 0.0, %v3312
      %3314 = vmatmul.f32.gmra.mxu0 %v3104
      %v3315 = vpop.f32.mrf.mxu0
      %v3316 = vadd.f32 0.0, %v3315
      %3317 = vmatmul.f32.gmra.mxu0 %v3107
      %v3318 = vpop.f32.mrf.mxu0
      %v3319 = vadd.f32 0.0, %v3318
      %3320 = vmatmul.f32.gmra.mxu0 %v3110
      %v3321 = vpop.f32.mrf.mxu0
      %v3322 = vadd.f32 0.0, %v3321
      %3323 = vmatmul.f32.gmra.mxu0 %v3113
      %v3324 = vpop.f32.mrf.mxu0
      %v3325 = vadd.f32 0.0, %v3324
      %3326 = vmatmul.f32.gmra.mxu0 %v3116
      %v3327 = vpop.f32.mrf.mxu0
      %v3328 = vadd.f32 0.0, %v3327
      %3329 = vmatmul.f32.gmra.mxu0 %v3119
      %v3330 = vpop.f32.mrf.mxu0
      %v3331 = vadd.f32 0.0, %v3330
      %3332 = vmatmul.f32.gmra.mxu0 %v3122
      %v3333 = vpop.f32.mrf.mxu0
      %v3334 = vadd.f32 0.0, %v3333
      %3335 = vmatmul.f32.gmra.mxu0 %v3125
      %v3336 = vpop.f32.mrf.mxu0
      %v3337 = vadd.f32 0.0, %v3336
      %3338 = vmatmul.f32.gmra.mxu0 %v3128
      %v3339 = vpop.f32.mrf.mxu0
      %v3340 = vadd.f32 0.0, %v3339
      %3341 = vmatmul.f32.gmra.mxu0 %v3131
      %v3342 = vpop.f32.mrf.mxu0
      %v3343 = vadd.f32 0.0, %v3342
      %3344 = vmatmul.f32.gmra.mxu0 %v3134
      %v3345 = vpop.f32.mrf.mxu0
      %v3346 = vadd.f32 0.0, %v3345
      %3347 = vmatmul.f32.gmra.mxu0 %v3137
      %v3348 = vpop.f32.mrf.mxu0
      %v3349 = vadd.f32 0.0, %v3348
      %3350 = vmatmul.f32.gmra.mxu0 %v3140
      %v3351 = vpop.f32.mrf.mxu0
      %v3352 = vadd.f32 0.0, %v3351
      %3353 = vdwg.mxu0
      %v3354 = vadd.f32 %v2757, %v3163
      %v3355 = vadd.f32 %v2760, %v3166
      %v3356 = vadd.f32 %v2763, %v3169
      %v3357 = vadd.f32 %v2766, %v3172
      %v3358 = vadd.f32 %v2769, %v3175
      %v3359 = vadd.f32 %v2772, %v3178
      %v3360 = vadd.f32 %v2775, %v3181
      %v3361 = vadd.f32 %v2778, %v3184
      %v3362 = vadd.f32 %v2781, %v3187
      %v3363 = vadd.f32 %v2784, %v3190
      %v3364 = vadd.f32 %v2787, %v3193
      %v3365 = vadd.f32 %v2790, %v3196
      %v3366 = vadd.f32 %v2793, %v3199
      %v3367 = vadd.f32 %v2796, %v3202
      %v3368 = vadd.f32 %v2799, %v3205
      %v3369 = vadd.f32 %v2802, %v3208
      %v3370 = vadd.f32 %v2805, %v3211
      %v3371 = vadd.f32 %v2808, %v3214
      %v3372 = vadd.f32 %v2811, %v3217
      %v3373 = vadd.f32 %v2814, %v3220
      %v3374 = vadd.f32 %v2817, %v3223
      %v3375 = vadd.f32 %v2820, %v3226
      %v3376 = vadd.f32 %v2823, %v3229
      %v3377 = vadd.f32 %v2826, %v3232
      %v3378 = vadd.f32 %v2829, %v3235
      %v3379 = vadd.f32 %v2832, %v3238
      %v3380 = vadd.f32 %v2835, %v3241
      %v3381 = vadd.f32 %v2838, %v3244
      %v3382 = vadd.f32 %v2841, %v3247
      %v3383 = vadd.f32 %v2844, %v3250
      %v3384 = vadd.f32 %v2847, %v3253
      %v3385 = vadd.f32 %v2850, %v3256
      %v3386 = vadd.f32 %v2853, %v3259
      %v3387 = vadd.f32 %v2856, %v3262
      %v3388 = vadd.f32 %v2859, %v3265
      %v3389 = vadd.f32 %v2862, %v3268
      %v3390 = vadd.f32 %v2865, %v3271
      %v3391 = vadd.f32 %v2868, %v3274
      %v3392 = vadd.f32 %v2871, %v3277
      %v3393 = vadd.f32 %v2874, %v3280
      %v3394 = vadd.f32 %v2877, %v3283
      %v3395 = vadd.f32 %v2880, %v3286
      %v3396 = vadd.f32 %v2883, %v3289
      %v3397 = vadd.f32 %v2886, %v3292
      %v3398 = vadd.f32 %v2889, %v3295
      %v3399 = vadd.f32 %v2892, %v3298
      %v3400 = vadd.f32 %v2895, %v3301
      %v3401 = vadd.f32 %v2898, %v3304
      %v3402 = vadd.f32 %v2901, %v3307
      %v3403 = vadd.f32 %v2904, %v3310
      %v3404 = vadd.f32 %v2907, %v3313
      %v3405 = vadd.f32 %v2910, %v3316
      %v3406 = vadd.f32 %v2913, %v3319
      %v3407 = vadd.f32 %v2916, %v3322
      %v3408 = vadd.f32 %v2919, %v3325
      %v3409 = vadd.f32 %v2922, %v3328
      %v3410 = vadd.f32 %v2925, %v3331
      %v3411 = vadd.f32 %v2928, %v3334
      %v3412 = vadd.f32 %v2931, %v3337
      %v3413 = vadd.f32 %v2934, %v3340
      %v3414 = vadd.f32 %v2937, %v3343
      %v3415 = vadd.f32 %v2940, %v3346
      %v3416 = vadd.f32 %v2943, %v3349
      %v3417 = vadd.f32 %v2946, %v3352
      %v3418 = vld [vmem:[%s8] sm:$0x1]
      %v3420 = vperm.slane %v3418, 0
      %v3422 = vadd.f32 %v3354, %v3420
      %v3423 = vadd.f32 %v3355, %v3420
      %v3424 = vadd.f32 %v3356, %v3420
      %v3425 = vadd.f32 %v3357, %v3420
      %v3426 = vadd.f32 %v3358, %v3420
      %v3427 = vadd.f32 %v3359, %v3420
      %v3428 = vadd.f32 %v3360, %v3420
      %v3429 = vadd.f32 %v3361, %v3420
      %v3430 = vadd.f32 %v3362, %v3420
      %v3431 = vadd.f32 %v3363, %v3420
      %v3432 = vadd.f32 %v3364, %v3420
      %v3433 = vadd.f32 %v3365, %v3420
      %v3434 = vadd.f32 %v3366, %v3420
      %v3435 = vadd.f32 %v3367, %v3420
      %v3436 = vadd.f32 %v3368, %v3420
      %v3437 = vadd.f32 %v3369, %v3420
      %v3438 = vadd.f32 %v3370, %v3420
      %v3439 = vadd.f32 %v3371, %v3420
      %v3440 = vadd.f32 %v3372, %v3420
      %v3441 = vadd.f32 %v3373, %v3420
      %v3442 = vadd.f32 %v3374, %v3420
      %v3443 = vadd.f32 %v3375, %v3420
      %v3444 = vadd.f32 %v3376, %v3420
      %v3445 = vadd.f32 %v3377, %v3420
      %v3446 = vadd.f32 %v3378, %v3420
      %v3447 = vadd.f32 %v3379, %v3420
      %v3448 = vadd.f32 %v3380, %v3420
      %v3449 = vadd.f32 %v3381, %v3420
      %v3450 = vadd.f32 %v3382, %v3420
      %v3451 = vadd.f32 %v3383, %v3420
      %v3452 = vadd.f32 %v3384, %v3420
      %v3453 = vadd.f32 %v3385, %v3420
      %v3454 = vadd.f32 %v3386, %v3420
      %v3455 = vadd.f32 %v3387, %v3420
      %v3456 = vadd.f32 %v3388, %v3420
      %v3457 = vadd.f32 %v3389, %v3420
      %v3458 = vadd.f32 %v3390, %v3420
      %v3459 = vadd.f32 %v3391, %v3420
      %v3460 = vadd.f32 %v3392, %v3420
      %v3461 = vadd.f32 %v3393, %v3420
      %v3462 = vadd.f32 %v3394, %v3420
      %v3463 = vadd.f32 %v3395, %v3420
      %v3464 = vadd.f32 %v3396, %v3420
      %v3465 = vadd.f32 %v3397, %v3420
      %v3466 = vadd.f32 %v3398, %v3420
      %v3467 = vadd.f32 %v3399, %v3420
      %v3468 = vadd.f32 %v3400, %v3420
      %v3469 = vadd.f32 %v3401, %v3420
      %v3470 = vadd.f32 %v3402, %v3420
      %v3471 = vadd.f32 %v3403, %v3420
      %v3472 = vadd.f32 %v3404, %v3420
      %v3473 = vadd.f32 %v3405, %v3420
      %v3474 = vadd.f32 %v3406, %v3420
      %v3475 = vadd.f32 %v3407, %v3420
      %v3476 = vadd.f32 %v3408, %v3420
      %v3477 = vadd.f32 %v3409, %v3420
      %v3478 = vadd.f32 %v3410, %v3420
      %v3479 = vadd.f32 %v3411, %v3420
      %v3480 = vadd.f32 %v3412, %v3420
      %v3481 = vadd.f32 %v3413, %v3420
      %v3482 = vadd.f32 %v3414, %v3420
      %v3483 = vadd.f32 %v3415, %v3420
      %v3484 = vadd.f32 %v3416, %v3420
      %v3485 = vadd.f32 %v3417, %v3420
      %v3486 = vmax.f32 %v3422, 0.0
      %v3487 = vmax.f32 %v3423, 0.0
      %v3488 = vmax.f32 %v3424, 0.0
      %v3489 = vmax.f32 %v3425, 0.0
      %v3490 = vmax.f32 %v3426, 0.0
      %v3491 = vmax.f32 %v3427, 0.0
      %v3492 = vmax.f32 %v3428, 0.0
      %v3493 = vmax.f32 %v3429, 0.0
      %v3494 = vmax.f32 %v3430, 0.0
      %v3495 = vmax.f32 %v3431, 0.0
      %v3496 = vmax.f32 %v3432, 0.0
      %v3497 = vmax.f32 %v3433, 0.0
      %v3498 = vmax.f32 %v3434, 0.0
      %v3499 = vmax.f32 %v3435, 0.0
      %v3500 = vmax.f32 %v3436, 0.0
      %v3501 = vmax.f32 %v3437, 0.0
      %v3502 = vmax.f32 %v3438, 0.0
      %v3503 = vmax.f32 %v3439, 0.0
      %v3504 = vmax.f32 %v3440, 0.0
      %v3505 = vmax.f32 %v3441, 0.0
      %v3506 = vmax.f32 %v3442, 0.0
      %v3507 = vmax.f32 %v3443, 0.0
      %v3508 = vmax.f32 %v3444, 0.0
      %v3509 = vmax.f32 %v3445, 0.0
      %v3510 = vmax.f32 %v3446, 0.0
      %v3511 = vmax.f32 %v3447, 0.0
      %v3512 = vmax.f32 %v3448, 0.0
      %v3513 = vmax.f32 %v3449, 0.0
      %v3514 = vmax.f32 %v3450, 0.0
      %v3515 = vmax.f32 %v3451, 0.0
      %v3516 = vmax.f32 %v3452, 0.0
      %v3517 = vmax.f32 %v3453, 0.0
      %v3518 = vmax.f32 %v3454, 0.0
      %v3519 = vmax.f32 %v3455, 0.0
      %v3520 = vmax.f32 %v3456, 0.0
      %v3521 = vmax.f32 %v3457, 0.0
      %v3522 = vmax.f32 %v3458, 0.0
      %v3523 = vmax.f32 %v3459, 0.0
      %v3524 = vmax.f32 %v3460, 0.0
      %v3525 = vmax.f32 %v3461, 0.0
      %v3526 = vmax.f32 %v3462, 0.0
      %v3527 = vmax.f32 %v3463, 0.0
      %v3528 = vmax.f32 %v3464, 0.0
      %v3529 = vmax.f32 %v3465, 0.0
      %v3530 = vmax.f32 %v3466, 0.0
      %v3531 = vmax.f32 %v3467, 0.0
      %v3532 = vmax.f32 %v3468, 0.0
      %v3533 = vmax.f32 %v3469, 0.0
      %v3534 = vmax.f32 %v3470, 0.0
      %v3535 = vmax.f32 %v3471, 0.0
      %v3536 = vmax.f32 %v3472, 0.0
      %v3537 = vmax.f32 %v3473, 0.0
      %v3538 = vmax.f32 %v3474, 0.0
      %v3539 = vmax.f32 %v3475, 0.0
      %v3540 = vmax.f32 %v3476, 0.0
      %v3541 = vmax.f32 %v3477, 0.0
      %v3542 = vmax.f32 %v3478, 0.0
      %v3543 = vmax.f32 %v3479, 0.0
      %v3544 = vmax.f32 %v3480, 0.0
      %v3545 = vmax.f32 %v3481, 0.0
      %v3546 = vmax.f32 %v3482, 0.0
      %v3547 = vmax.f32 %v3483, 0.0
      %v3548 = vmax.f32 %v3484, 0.0
      %v3549 = vmax.f32 %v3485, 0.0
      %3550 = vst.msk [vmem:[#allocation2 + $0x40] sm:$0xff] %vm495, %v3486
      %3551 = vst.msk [vmem:[#allocation2 + $0x48] sm:$0xff] %vm495, %v3487
      %3552 = vst.msk [vmem:[#allocation2 + $0x50] sm:$0xff] %vm495, %v3488
      %3553 = vst.msk [vmem:[#allocation2 + $0x58] sm:$0xff] %vm495, %v3489
      %3554 = vst.msk [vmem:[#allocation2 + $0x60] sm:$0xff] %vm495, %v3490
      %3555 = vst.msk [vmem:[#allocation2 + $0x68] sm:$0xff] %vm495, %v3491
      %3556 = vst.msk [vmem:[#allocation2 + $0x70] sm:$0xff] %vm495, %v3492
      %3557 = vst.msk [vmem:[#allocation2 + $0x78] sm:$0xff] %vm495, %v3493
      %3558 = vst.msk [vmem:[#allocation2 + $0x80] sm:$0xff] %vm495, %v3494
      %3559 = vst.msk [vmem:[#allocation2 + $0x88] sm:$0xff] %vm495, %v3495
      %3560 = vst.msk [vmem:[#allocation2 + $0x90] sm:$0xff] %vm495, %v3496
      %3561 = vst.msk [vmem:[#allocation2 + $0x98] sm:$0xff] %vm495, %v3497
      %3562 = vst.msk [vmem:[#allocation2 + $0xa0] sm:$0xff] %vm495, %v3498
      %3563 = vst.msk [vmem:[#allocation2 + $0xa8] sm:$0xff] %vm495, %v3499
      %3564 = vst.msk [vmem:[#allocation2 + $0xb0] sm:$0xff] %vm495, %v3500
      %3565 = vst.msk [vmem:[#allocation2 + $0xb8] sm:$0xff] %vm495, %v3501
      %3566 = vst.msk [vmem:[#allocation2 + $0xc0] sm:$0xff] %vm495, %v3502
      %3567 = vst.msk [vmem:[#allocation2 + $0xc8] sm:$0xff] %vm495, %v3503
      %3568 = vst.msk [vmem:[#allocation2 + $0xd0] sm:$0xff] %vm495, %v3504
      %3569 = vst.msk [vmem:[#allocation2 + $0xd8] sm:$0xff] %vm495, %v3505
      %3570 = vst.msk [vmem:[#allocation2 + $0xe0] sm:$0xff] %vm495, %v3506
      %3571 = vst.msk [vmem:[#allocation2 + $0xe8] sm:$0xff] %vm495, %v3507
      %3572 = vst.msk [vmem:[#allocation2 + $0xf0] sm:$0xff] %vm495, %v3508
      %3573 = vst.msk [vmem:[#allocation2 + $0xf8] sm:$0xff] %vm495, %v3509
      %3574 = vst.msk [vmem:[#allocation2 + $0x100] sm:$0xff] %vm495, %v3510
      %3575 = vst.msk [vmem:[#allocation2 + $0x108] sm:$0xff] %vm495, %v3511
      %3576 = vst.msk [vmem:[#allocation2 + $0x110] sm:$0xff] %vm495, %v3512
      %3577 = vst.msk [vmem:[#allocation2 + $0x118] sm:$0xff] %vm495, %v3513
      %3578 = vst.msk [vmem:[#allocation2 + $0x120] sm:$0xff] %vm495, %v3514
      %3579 = vst.msk [vmem:[#allocation2 + $0x128] sm:$0xff] %vm495, %v3515
      %3580 = vst.msk [vmem:[#allocation2 + $0x130] sm:$0xff] %vm495, %v3516
      %3581 = vst.msk [vmem:[#allocation2 + $0x138] sm:$0xff] %vm495, %v3517
      %3582 = vst.msk [vmem:[#allocation2 + $0x140] sm:$0xff] %vm495, %v3518
      %3583 = vst.msk [vmem:[#allocation2 + $0x148] sm:$0xff] %vm495, %v3519
      %3584 = vst.msk [vmem:[#allocation2 + $0x150] sm:$0xff] %vm495, %v3520
      %3585 = vst.msk [vmem:[#allocation2 + $0x158] sm:$0xff] %vm495, %v3521
      %3586 = vst.msk [vmem:[#allocation2 + $0x160] sm:$0xff] %vm495, %v3522
      %3587 = vst.msk [vmem:[#allocation2 + $0x168] sm:$0xff] %vm495, %v3523
      %3588 = vst.msk [vmem:[#allocation2 + $0x170] sm:$0xff] %vm495, %v3524
      %3589 = vst.msk [vmem:[#allocation2 + $0x178] sm:$0xff] %vm495, %v3525
      %3590 = vst.msk [vmem:[#allocation2 + $0x180] sm:$0xff] %vm495, %v3526
      %3591 = vst.msk [vmem:[#allocation2 + $0x188] sm:$0xff] %vm495, %v3527
      %3592 = vst.msk [vmem:[#allocation2 + $0x190] sm:$0xff] %vm495, %v3528
      %3593 = vst.msk [vmem:[#allocation2 + $0x198] sm:$0xff] %vm495, %v3529
      %3594 = vst.msk [vmem:[#allocation2 + $0x1a0] sm:$0xff] %vm495, %v3530
      %3595 = vst.msk [vmem:[#allocation2 + $0x1a8] sm:$0xff] %vm495, %v3531
      %3596 = vst.msk [vmem:[#allocation2 + $0x1b0] sm:$0xff] %vm495, %v3532
      %3597 = vst.msk [vmem:[#allocation2 + $0x1b8] sm:$0xff] %vm495, %v3533
      %3598 = vst.msk [vmem:[#allocation2 + $0x1c0] sm:$0xff] %vm495, %v3534
      %3599 = vst.msk [vmem:[#allocation2 + $0x1c8] sm:$0xff] %vm495, %v3535
      %3600 = vst.msk [vmem:[#allocation2 + $0x1d0] sm:$0xff] %vm495, %v3536
      %3601 = vst.msk [vmem:[#allocation2 + $0x1d8] sm:$0xff] %vm495, %v3537
      %3602 = vst.msk [vmem:[#allocation2 + $0x1e0] sm:$0xff] %vm495, %v3538
      %3603 = vst.msk [vmem:[#allocation2 + $0x1e8] sm:$0xff] %vm495, %v3539
      %3604 = vst.msk [vmem:[#allocation2 + $0x1f0] sm:$0xff] %vm495, %v3540
      %3605 = vst.msk [vmem:[#allocation2 + $0x1f8] sm:$0xff] %vm495, %v3541
      %3606 = vst.msk [vmem:[#allocation2 + $0x200] sm:$0xff] %vm495, %v3542
      %3607 = vst.msk [vmem:[#allocation2 + $0x208] sm:$0xff] %vm495, %v3543
      %3608 = vst.msk [vmem:[#allocation2 + $0x210] sm:$0xff] %vm495, %v3544
      %3609 = vst.msk [vmem:[#allocation2 + $0x218] sm:$0xff] %vm495, %v3545
      %3610 = vst.msk [vmem:[#allocation2 + $0x220] sm:$0xff] %vm495, %v3546
      %3611 = vst.msk [vmem:[#allocation2 + $0x228] sm:$0xff] %vm495, %v3547
      %3612 = vst.msk [vmem:[#allocation2 + $0x230] sm:$0xff] %vm495, %v3548
      %3613 = vst.msk [vmem:[#allocation2 + $0x238] sm:$0xff] %vm495, %v3549
      %v3614 = vld [vmem:[#allocation2 + $0x38] sm:$0xff]
      %v3615 = vld [vmem:[#allocation2 + $0x40] sm:$0xff]
      %v3616 = vld [vmem:[#allocation2 + $0x48] sm:$0xff]
      %v3617 = vld [vmem:[#allocation2 + $0x50] sm:$0xff]
      %v3618 = vld [vmem:[#allocation2 + $0x58] sm:$0xff]
      %v3619 = vld [vmem:[#allocation2 + $0x60] sm:$0xff]
      %v3620 = vld [vmem:[#allocation2 + $0x68] sm:$0xff]
      %v3621 = vld [vmem:[#allocation2 + $0x70] sm:$0xff]
      %v3622 = vld [vmem:[#allocation2 + $0x78] sm:$0xff]
      %v3623 = vld [vmem:[#allocation2 + $0x80] sm:$0xff]
      %v3624 = vld [vmem:[#allocation2 + $0x88] sm:$0xff]
      %v3625 = vld [vmem:[#allocation2 + $0x90] sm:$0xff]
      %v3626 = vld [vmem:[#allocation2 + $0x98] sm:$0xff]
      %v3627 = vld [vmem:[#allocation2 + $0xa0] sm:$0xff]
      %v3628 = vld [vmem:[#allocation2 + $0xa8] sm:$0xff]
      %v3629 = vld [vmem:[#allocation2 + $0xb0] sm:$0xff]
      %v3630 = vld [vmem:[#allocation2 + $0xb8] sm:$0xff]
      %v3631 = vld [vmem:[#allocation2 + $0xc0] sm:$0xff]
      %v3632 = vld [vmem:[#allocation2 + $0xc8] sm:$0xff]
      %v3633 = vld [vmem:[#allocation2 + $0xd0] sm:$0xff]
      %v3634 = vld [vmem:[#allocation2 + $0xd8] sm:$0xff]
      %v3635 = vld [vmem:[#allocation2 + $0xe0] sm:$0xff]
      %v3636 = vld [vmem:[#allocation2 + $0xe8] sm:$0xff]
      %v3637 = vld [vmem:[#allocation2 + $0xf0] sm:$0xff]
      %v3638 = vld [vmem:[#allocation2 + $0xf8] sm:$0xff]
      %v3639 = vld [vmem:[#allocation2 + $0x100] sm:$0xff]
      %v3640 = vld [vmem:[#allocation2 + $0x108] sm:$0xff]
      %v3641 = vld [vmem:[#allocation2 + $0x110] sm:$0xff]
      %v3642 = vld [vmem:[#allocation2 + $0x118] sm:$0xff]
      %v3643 = vld [vmem:[#allocation2 + $0x120] sm:$0xff]
      %v3644 = vld [vmem:[#allocation2 + $0x128] sm:$0xff]
      %v3645 = vld [vmem:[#allocation2 + $0x130] sm:$0xff]
      %v3646 = vld [vmem:[#allocation2 + $0x138] sm:$0xff]
      %v3647 = vld [vmem:[#allocation2 + $0x140] sm:$0xff]
      %v3648 = vld [vmem:[#allocation2 + $0x148] sm:$0xff]
      %v3649 = vld [vmem:[#allocation2 + $0x150] sm:$0xff]
      %v3650 = vld [vmem:[#allocation2 + $0x158] sm:$0xff]
      %v3651 = vld [vmem:[#allocation2 + $0x160] sm:$0xff]
      %v3652 = vld [vmem:[#allocation2 + $0x168] sm:$0xff]
      %v3653 = vld [vmem:[#allocation2 + $0x170] sm:$0xff]
      %v3654 = vld [vmem:[#allocation2 + $0x178] sm:$0xff]
      %v3655 = vld [vmem:[#allocation2 + $0x180] sm:$0xff]
      %v3656 = vld [vmem:[#allocation2 + $0x188] sm:$0xff]
      %v3657 = vld [vmem:[#allocation2 + $0x190] sm:$0xff]
      %v3658 = vld [vmem:[#allocation2 + $0x198] sm:$0xff]
      %v3659 = vld [vmem:[#allocation2 + $0x1a0] sm:$0xff]
      %v3660 = vld [vmem:[#allocation2 + $0x1a8] sm:$0xff]
      %v3661 = vld [vmem:[#allocation2 + $0x1b0] sm:$0xff]
      %v3662 = vld [vmem:[#allocation2 + $0x1b8] sm:$0xff]
      %v3663 = vld [vmem:[#allocation2 + $0x1c0] sm:$0xff]
      %v3664 = vld [vmem:[#allocation2 + $0x1c8] sm:$0xff]
      %v3665 = vld [vmem:[#allocation2 + $0x1d0] sm:$0xff]
      %v3666 = vld [vmem:[#allocation2 + $0x1d8] sm:$0xff]
      %v3667 = vld [vmem:[#allocation2 + $0x1e0] sm:$0xff]
      %v3668 = vld [vmem:[#allocation2 + $0x1e8] sm:$0xff]
      %v3669 = vld [vmem:[#allocation2 + $0x1f0] sm:$0xff]
      %v3670 = vld [vmem:[#allocation2 + $0x1f8] sm:$0xff]
      %v3671 = vld [vmem:[#allocation2 + $0x200] sm:$0xff]
      %v3672 = vld [vmem:[#allocation2 + $0x208] sm:$0xff]
      %v3673 = vld [vmem:[#allocation2 + $0x210] sm:$0xff]
      %v3674 = vld [vmem:[#allocation2 + $0x218] sm:$0xff]
      %v3675 = vld [vmem:[#allocation2 + $0x220] sm:$0xff]
      %v3676 = vld [vmem:[#allocation2 + $0x228] sm:$0xff]
      %v3677 = vld [vmem:[#allocation2 + $0x230] sm:$0xff]
      %v3678 = vld [vmem:[#allocation2 + $0x238] sm:$0xff]
      %v3679 = vld [vmem:[#allocation2 + $0x240] sm:$0xff]
      %v3680 = vld [vmem:[%s3] sm:$0xff]
      %v3681 = vld [vmem:[%s3 + $0x8] sm:$0xff]
      %v3682 = vld [vmem:[%s3 + $0x10] sm:$0xff]
      %v3683 = vld [vmem:[%s3 + $0x18] sm:$0xff]
      %v3684 = vld [vmem:[%s3 + $0x20] sm:$0xff]
      %v3685 = vld [vmem:[%s3 + $0x28] sm:$0xff]
      %v3686 = vld [vmem:[%s3 + $0x30] sm:$0xff]
      %v3687 = vld [vmem:[%s3 + $0x38] sm:$0xff]
      %v3688 = vld [vmem:[%s3 + $0x40] sm:$0xff]
      %v3689 = vld [vmem:[%s3 + $0x48] sm:$0xff]
      %v3690 = vld [vmem:[%s3 + $0x50] sm:$0xff]
      %v3691 = vld [vmem:[%s3 + $0x58] sm:$0xff]
      %v3692 = vld [vmem:[%s3 + $0x60] sm:$0xff]
      %v3693 = vld [vmem:[%s3 + $0x68] sm:$0xff]
      %v3694 = vld [vmem:[%s3 + $0x70] sm:$0xff]
      %v3695 = vld [vmem:[%s3 + $0x78] sm:$0xff]
      %v3696 = vld [vmem:[%s3 + $0x80] sm:$0xff]
      %v3697 = vld [vmem:[%s3 + $0x88] sm:$0xff]
      %v3698 = vld [vmem:[%s3 + $0x90] sm:$0xff]
      %v3699 = vld [vmem:[%s3 + $0x98] sm:$0xff]
      %v3700 = vld [vmem:[%s3 + $0xa0] sm:$0xff]
      %v3701 = vld [vmem:[%s3 + $0xa8] sm:$0xff]
      %v3702 = vld [vmem:[%s3 + $0xb0] sm:$0xff]
      %v3703 = vld [vmem:[%s3 + $0xb8] sm:$0xff]
      %v3704 = vld [vmem:[%s3 + $0xc0] sm:$0xff]
      %v3705 = vld [vmem:[%s3 + $0xc8] sm:$0xff]
      %v3706 = vld [vmem:[%s3 + $0xd0] sm:$0xff]
      %v3707 = vld [vmem:[%s3 + $0xd8] sm:$0xff]
      %v3708 = vld [vmem:[%s3 + $0xe0] sm:$0xff]
      %v3709 = vld [vmem:[%s3 + $0xe8] sm:$0xff]
      %v3710 = vld [vmem:[%s3 + $0xf0] sm:$0xff]
      %v3711 = vld [vmem:[%s3 + $0xf8] sm:$0xff]
      %v3712 = vld [vmem:[%s3 + $0x100] sm:$0xff]
      %v3713 = vld [vmem:[%s3 + $0x108] sm:$0xff]
      %v3714 = vld [vmem:[%s3 + $0x110] sm:$0xff]
      %v3715 = vld [vmem:[%s3 + $0x118] sm:$0xff]
      %v3716 = vld [vmem:[%s3 + $0x120] sm:$0xff]
      %v3717 = vld [vmem:[%s3 + $0x128] sm:$0xff]
      %v3718 = vld [vmem:[%s3 + $0x130] sm:$0xff]
      %v3719 = vld [vmem:[%s3 + $0x138] sm:$0xff]
      %v3720 = vld [vmem:[%s3 + $0x140] sm:$0xff]
      %v3721 = vld [vmem:[%s3 + $0x148] sm:$0xff]
      %v3722 = vld [vmem:[%s3 + $0x150] sm:$0xff]
      %v3723 = vld [vmem:[%s3 + $0x158] sm:$0xff]
      %v3724 = vld [vmem:[%s3 + $0x160] sm:$0xff]
      %v3725 = vld [vmem:[%s3 + $0x168] sm:$0xff]
      %v3726 = vld [vmem:[%s3 + $0x170] sm:$0xff]
      %v3727 = vld [vmem:[%s3 + $0x178] sm:$0xff]
      %v3728 = vld [vmem:[%s3 + $0x180] sm:$0xff]
      %v3729 = vld [vmem:[%s3 + $0x188] sm:$0xff]
      %v3730 = vld [vmem:[%s3 + $0x190] sm:$0xff]
      %v3731 = vld [vmem:[%s3 + $0x198] sm:$0xff]
      %v3732 = vld [vmem:[%s3 + $0x1a0] sm:$0xff]
      %v3733 = vld [vmem:[%s3 + $0x1a8] sm:$0xff]
      %v3734 = vld [vmem:[%s3 + $0x1b0] sm:$0xff]
      %v3735 = vld [vmem:[%s3 + $0x1b8] sm:$0xff]
      %v3736 = vld [vmem:[%s3 + $0x1c0] sm:$0xff]
      %v3737 = vld [vmem:[%s3 + $0x1c8] sm:$0xff]
      %v3738 = vld [vmem:[%s3 + $0x1d0] sm:$0xff]
      %v3739 = vld [vmem:[%s3 + $0x1d8] sm:$0xff]
      %v3740 = vld [vmem:[%s3 + $0x1e0] sm:$0xff]
      %v3741 = vld [vmem:[%s3 + $0x1e8] sm:$0xff]
      %v3742 = vld [vmem:[%s3 + $0x1f0] sm:$0xff]
      %v3743 = vld [vmem:[%s3 + $0x1f8] sm:$0xff]
      %3745 = vset.pattern.permute.xlu0 0
      %3746 = vperm.xlu0 %3745, %v3680
      %v3747 = vpop.permute.xlu0 %3746
      %3750 = vset.pattern.permute.xlu0 0
      %3751 = vperm.xlu0 %3750, %v3681
      %v3752 = vpop.permute.xlu0 %3751
      %3755 = vset.pattern.permute.xlu0 0
      %3756 = vperm.xlu0 %3755, %v3682
      %v3757 = vpop.permute.xlu0 %3756
      %3760 = vset.pattern.permute.xlu0 0
      %3761 = vperm.xlu0 %3760, %v3683
      %v3762 = vpop.permute.xlu0 %3761
      %3765 = vset.pattern.permute.xlu0 0
      %3766 = vperm.xlu0 %3765, %v3684
      %v3767 = vpop.permute.xlu0 %3766
      %3770 = vset.pattern.permute.xlu0 0
      %3771 = vperm.xlu0 %3770, %v3685
      %v3772 = vpop.permute.xlu0 %3771
      %3775 = vset.pattern.permute.xlu0 0
      %3776 = vperm.xlu0 %3775, %v3686
      %v3777 = vpop.permute.xlu0 %3776
      %3780 = vset.pattern.permute.xlu0 0
      %3781 = vperm.xlu0 %3780, %v3687
      %v3782 = vpop.permute.xlu0 %3781
      %3785 = vset.pattern.permute.xlu0 0
      %3786 = vperm.xlu0 %3785, %v3688
      %v3787 = vpop.permute.xlu0 %3786
      %3790 = vset.pattern.permute.xlu0 0
      %3791 = vperm.xlu0 %3790, %v3689
      %v3792 = vpop.permute.xlu0 %3791
      %3795 = vset.pattern.permute.xlu0 0
      %3796 = vperm.xlu0 %3795, %v3690
      %v3797 = vpop.permute.xlu0 %3796
      %3800 = vset.pattern.permute.xlu0 0
      %3801 = vperm.xlu0 %3800, %v3691
      %v3802 = vpop.permute.xlu0 %3801
      %3805 = vset.pattern.permute.xlu0 0
      %3806 = vperm.xlu0 %3805, %v3692
      %v3807 = vpop.permute.xlu0 %3806
      %3810 = vset.pattern.permute.xlu0 0
      %3811 = vperm.xlu0 %3810, %v3693
      %v3812 = vpop.permute.xlu0 %3811
      %3815 = vset.pattern.permute.xlu0 0
      %3816 = vperm.xlu0 %3815, %v3694
      %v3817 = vpop.permute.xlu0 %3816
      %3820 = vset.pattern.permute.xlu0 0
      %3821 = vperm.xlu0 %3820, %v3695
      %v3822 = vpop.permute.xlu0 %3821
      %3825 = vset.pattern.permute.xlu0 0
      %3826 = vperm.xlu0 %3825, %v3696
      %v3827 = vpop.permute.xlu0 %3826
      %3830 = vset.pattern.permute.xlu0 0
      %3831 = vperm.xlu0 %3830, %v3697
      %v3832 = vpop.permute.xlu0 %3831
      %3835 = vset.pattern.permute.xlu0 0
      %3836 = vperm.xlu0 %3835, %v3698
      %v3837 = vpop.permute.xlu0 %3836
      %3840 = vset.pattern.permute.xlu0 0
      %3841 = vperm.xlu0 %3840, %v3699
      %v3842 = vpop.permute.xlu0 %3841
      %3845 = vset.pattern.permute.xlu0 0
      %3846 = vperm.xlu0 %3845, %v3700
      %v3847 = vpop.permute.xlu0 %3846
      %3850 = vset.pattern.permute.xlu0 0
      %3851 = vperm.xlu0 %3850, %v3701
      %v3852 = vpop.permute.xlu0 %3851
      %3855 = vset.pattern.permute.xlu0 0
      %3856 = vperm.xlu0 %3855, %v3702
      %v3857 = vpop.permute.xlu0 %3856
      %3860 = vset.pattern.permute.xlu0 0
      %3861 = vperm.xlu0 %3860, %v3703
      %v3862 = vpop.permute.xlu0 %3861
      %3865 = vset.pattern.permute.xlu0 0
      %3866 = vperm.xlu0 %3865, %v3704
      %v3867 = vpop.permute.xlu0 %3866
      %3870 = vset.pattern.permute.xlu0 0
      %3871 = vperm.xlu0 %3870, %v3705
      %v3872 = vpop.permute.xlu0 %3871
      %3875 = vset.pattern.permute.xlu0 0
      %3876 = vperm.xlu0 %3875, %v3706
      %v3877 = vpop.permute.xlu0 %3876
      %3880 = vset.pattern.permute.xlu0 0
      %3881 = vperm.xlu0 %3880, %v3707
      %v3882 = vpop.permute.xlu0 %3881
      %3885 = vset.pattern.permute.xlu0 0
      %3886 = vperm.xlu0 %3885, %v3708
      %v3887 = vpop.permute.xlu0 %3886
      %3890 = vset.pattern.permute.xlu0 0
      %3891 = vperm.xlu0 %3890, %v3709
      %v3892 = vpop.permute.xlu0 %3891
      %3895 = vset.pattern.permute.xlu0 0
      %3896 = vperm.xlu0 %3895, %v3710
      %v3897 = vpop.permute.xlu0 %3896
      %3900 = vset.pattern.permute.xlu0 0
      %3901 = vperm.xlu0 %3900, %v3711
      %v3902 = vpop.permute.xlu0 %3901
      %3905 = vset.pattern.permute.xlu0 0
      %3906 = vperm.xlu0 %3905, %v3712
      %v3907 = vpop.permute.xlu0 %3906
      %3910 = vset.pattern.permute.xlu0 0
      %3911 = vperm.xlu0 %3910, %v3713
      %v3912 = vpop.permute.xlu0 %3911
      %3915 = vset.pattern.permute.xlu0 0
      %3916 = vperm.xlu0 %3915, %v3714
      %v3917 = vpop.permute.xlu0 %3916
      %3920 = vset.pattern.permute.xlu0 0
      %3921 = vperm.xlu0 %3920, %v3715
      %v3922 = vpop.permute.xlu0 %3921
      %3925 = vset.pattern.permute.xlu0 0
      %3926 = vperm.xlu0 %3925, %v3716
      %v3927 = vpop.permute.xlu0 %3926
      %3930 = vset.pattern.permute.xlu0 0
      %3931 = vperm.xlu0 %3930, %v3717
      %v3932 = vpop.permute.xlu0 %3931
      %3935 = vset.pattern.permute.xlu0 0
      %3936 = vperm.xlu0 %3935, %v3718
      %v3937 = vpop.permute.xlu0 %3936
      %3940 = vset.pattern.permute.xlu0 0
      %3941 = vperm.xlu0 %3940, %v3719
      %v3942 = vpop.permute.xlu0 %3941
      %3945 = vset.pattern.permute.xlu0 0
      %3946 = vperm.xlu0 %3945, %v3720
      %v3947 = vpop.permute.xlu0 %3946
      %3950 = vset.pattern.permute.xlu0 0
      %3951 = vperm.xlu0 %3950, %v3721
      %v3952 = vpop.permute.xlu0 %3951
      %3955 = vset.pattern.permute.xlu0 0
      %3956 = vperm.xlu0 %3955, %v3722
      %v3957 = vpop.permute.xlu0 %3956
      %3960 = vset.pattern.permute.xlu0 0
      %3961 = vperm.xlu0 %3960, %v3723
      %v3962 = vpop.permute.xlu0 %3961
      %3965 = vset.pattern.permute.xlu0 0
      %3966 = vperm.xlu0 %3965, %v3724
      %v3967 = vpop.permute.xlu0 %3966
      %3970 = vset.pattern.permute.xlu0 0
      %3971 = vperm.xlu0 %3970, %v3725
      %v3972 = vpop.permute.xlu0 %3971
      %3975 = vset.pattern.permute.xlu0 0
      %3976 = vperm.xlu0 %3975, %v3726
      %v3977 = vpop.permute.xlu0 %3976
      %3980 = vset.pattern.permute.xlu0 0
      %3981 = vperm.xlu0 %3980, %v3727
      %v3982 = vpop.permute.xlu0 %3981
      %3985 = vset.pattern.permute.xlu0 0
      %3986 = vperm.xlu0 %3985, %v3728
      %v3987 = vpop.permute.xlu0 %3986
      %3990 = vset.pattern.permute.xlu0 0
      %3991 = vperm.xlu0 %3990, %v3729
      %v3992 = vpop.permute.xlu0 %3991
      %3995 = vset.pattern.permute.xlu0 0
      %3996 = vperm.xlu0 %3995, %v3730
      %v3997 = vpop.permute.xlu0 %3996
      %4000 = vset.pattern.permute.xlu0 0
      %4001 = vperm.xlu0 %4000, %v3731
      %v4002 = vpop.permute.xlu0 %4001
      %4005 = vset.pattern.permute.xlu0 0
      %4006 = vperm.xlu0 %4005, %v3732
      %v4007 = vpop.permute.xlu0 %4006
      %4010 = vset.pattern.permute.xlu0 0
      %4011 = vperm.xlu0 %4010, %v3733
      %v4012 = vpop.permute.xlu0 %4011
      %4015 = vset.pattern.permute.xlu0 0
      %4016 = vperm.xlu0 %4015, %v3734
      %v4017 = vpop.permute.xlu0 %4016
      %4020 = vset.pattern.permute.xlu0 0
      %4021 = vperm.xlu0 %4020, %v3735
      %v4022 = vpop.permute.xlu0 %4021
      %4025 = vset.pattern.permute.xlu0 0
      %4026 = vperm.xlu0 %4025, %v3736
      %v4027 = vpop.permute.xlu0 %4026
      %4030 = vset.pattern.permute.xlu0 0
      %4031 = vperm.xlu0 %4030, %v3737
      %v4032 = vpop.permute.xlu0 %4031
      %4035 = vset.pattern.permute.xlu0 0
      %4036 = vperm.xlu0 %4035, %v3738
      %v4037 = vpop.permute.xlu0 %4036
      %4040 = vset.pattern.permute.xlu0 0
      %4041 = vperm.xlu0 %4040, %v3739
      %v4042 = vpop.permute.xlu0 %4041
      %4045 = vset.pattern.permute.xlu0 0
      %4046 = vperm.xlu0 %4045, %v3740
      %v4047 = vpop.permute.xlu0 %4046
      %4050 = vset.pattern.permute.xlu0 0
      %4051 = vperm.xlu0 %4050, %v3741
      %v4052 = vpop.permute.xlu0 %4051
      %4055 = vset.pattern.permute.xlu0 0
      %4056 = vperm.xlu0 %4055, %v3742
      %v4057 = vpop.permute.xlu0 %4056
      %4060 = vset.pattern.permute.xlu0 0
      %4061 = vperm.xlu0 %4060, %v3743
      %v4062 = vpop.permute.xlu0 %4061
      %v4064 = vmul.f32 %v3614, %v3747
      %v4065 = vmul.f32 %v3615, %v3752
      %v4066 = vmul.f32 %v3616, %v3757
      %v4067 = vmul.f32 %v3617, %v3762
      %v4068 = vmul.f32 %v3618, %v3767
      %v4069 = vmul.f32 %v3619, %v3772
      %v4070 = vmul.f32 %v3620, %v3777
      %v4071 = vmul.f32 %v3621, %v3782
      %v4072 = vmul.f32 %v3622, %v3787
      %v4073 = vmul.f32 %v3623, %v3792
      %v4074 = vmul.f32 %v3624, %v3797
      %v4075 = vmul.f32 %v3625, %v3802
      %v4076 = vmul.f32 %v3626, %v3807
      %v4077 = vmul.f32 %v3627, %v3812
      %v4078 = vmul.f32 %v3628, %v3817
      %v4079 = vmul.f32 %v3629, %v3822
      %v4080 = vmul.f32 %v3630, %v3827
      %v4081 = vmul.f32 %v3631, %v3832
      %v4082 = vmul.f32 %v3632, %v3837
      %v4083 = vmul.f32 %v3633, %v3842
      %v4084 = vmul.f32 %v3634, %v3847
      %v4085 = vmul.f32 %v3635, %v3852
      %v4086 = vmul.f32 %v3636, %v3857
      %v4087 = vmul.f32 %v3637, %v3862
      %v4088 = vmul.f32 %v3638, %v3867
      %v4089 = vmul.f32 %v3639, %v3872
      %v4090 = vmul.f32 %v3640, %v3877
      %v4091 = vmul.f32 %v3641, %v3882
      %v4092 = vmul.f32 %v3642, %v3887
      %v4093 = vmul.f32 %v3643, %v3892
      %v4094 = vmul.f32 %v3644, %v3897
      %v4095 = vmul.f32 %v3645, %v3902
      %v4096 = vmul.f32 %v3646, %v3907
      %v4097 = vmul.f32 %v3647, %v3912
      %v4098 = vmul.f32 %v3648, %v3917
      %v4099 = vmul.f32 %v3649, %v3922
      %v4100 = vmul.f32 %v3650, %v3927
      %v4101 = vmul.f32 %v3651, %v3932
      %v4102 = vmul.f32 %v3652, %v3937
      %v4103 = vmul.f32 %v3653, %v3942
      %v4104 = vmul.f32 %v3654, %v3947
      %v4105 = vmul.f32 %v3655, %v3952
      %v4106 = vmul.f32 %v3656, %v3957
      %v4107 = vmul.f32 %v3657, %v3962
      %v4108 = vmul.f32 %v3658, %v3967
      %v4109 = vmul.f32 %v3659, %v3972
      %v4110 = vmul.f32 %v3660, %v3977
      %v4111 = vmul.f32 %v3661, %v3982
      %v4112 = vmul.f32 %v3662, %v3987
      %v4113 = vmul.f32 %v3663, %v3992
      %v4114 = vmul.f32 %v3664, %v3997
      %v4115 = vmul.f32 %v3665, %v4002
      %v4116 = vmul.f32 %v3666, %v4007
      %v4117 = vmul.f32 %v3667, %v4012
      %v4118 = vmul.f32 %v3668, %v4017
      %v4119 = vmul.f32 %v3669, %v4022
      %v4120 = vmul.f32 %v3670, %v4027
      %v4121 = vmul.f32 %v3671, %v4032
      %v4122 = vmul.f32 %v3672, %v4037
      %v4123 = vmul.f32 %v3673, %v4042
      %v4124 = vmul.f32 %v3674, %v4047
      %v4125 = vmul.f32 %v3675, %v4052
      %v4126 = vmul.f32 %v3676, %v4057
      %v4127 = vmul.f32 %v3677, %v4062
      %v4128 = vld [vmem:[%s4] sm:$0xff]
      %v4129 = vld [vmem:[%s4 + $0x8] sm:$0xff]
      %v4130 = vld [vmem:[%s4 + $0x10] sm:$0xff]
      %v4131 = vld [vmem:[%s4 + $0x18] sm:$0xff]
      %v4132 = vld [vmem:[%s4 + $0x20] sm:$0xff]
      %v4133 = vld [vmem:[%s4 + $0x28] sm:$0xff]
      %v4134 = vld [vmem:[%s4 + $0x30] sm:$0xff]
      %v4135 = vld [vmem:[%s4 + $0x38] sm:$0xff]
      %v4136 = vld [vmem:[%s4 + $0x40] sm:$0xff]
      %v4137 = vld [vmem:[%s4 + $0x48] sm:$0xff]
      %v4138 = vld [vmem:[%s4 + $0x50] sm:$0xff]
      %v4139 = vld [vmem:[%s4 + $0x58] sm:$0xff]
      %v4140 = vld [vmem:[%s4 + $0x60] sm:$0xff]
      %v4141 = vld [vmem:[%s4 + $0x68] sm:$0xff]
      %v4142 = vld [vmem:[%s4 + $0x70] sm:$0xff]
      %v4143 = vld [vmem:[%s4 + $0x78] sm:$0xff]
      %v4144 = vld [vmem:[%s4 + $0x80] sm:$0xff]
      %v4145 = vld [vmem:[%s4 + $0x88] sm:$0xff]
      %v4146 = vld [vmem:[%s4 + $0x90] sm:$0xff]
      %v4147 = vld [vmem:[%s4 + $0x98] sm:$0xff]
      %v4148 = vld [vmem:[%s4 + $0xa0] sm:$0xff]
      %v4149 = vld [vmem:[%s4 + $0xa8] sm:$0xff]
      %v4150 = vld [vmem:[%s4 + $0xb0] sm:$0xff]
      %v4151 = vld [vmem:[%s4 + $0xb8] sm:$0xff]
      %v4152 = vld [vmem:[%s4 + $0xc0] sm:$0xff]
      %v4153 = vld [vmem:[%s4 + $0xc8] sm:$0xff]
      %v4154 = vld [vmem:[%s4 + $0xd0] sm:$0xff]
      %v4155 = vld [vmem:[%s4 + $0xd8] sm:$0xff]
      %v4156 = vld [vmem:[%s4 + $0xe0] sm:$0xff]
      %v4157 = vld [vmem:[%s4 + $0xe8] sm:$0xff]
      %v4158 = vld [vmem:[%s4 + $0xf0] sm:$0xff]
      %v4159 = vld [vmem:[%s4 + $0xf8] sm:$0xff]
      %v4160 = vld [vmem:[%s4 + $0x100] sm:$0xff]
      %v4161 = vld [vmem:[%s4 + $0x108] sm:$0xff]
      %v4162 = vld [vmem:[%s4 + $0x110] sm:$0xff]
      %v4163 = vld [vmem:[%s4 + $0x118] sm:$0xff]
      %v4164 = vld [vmem:[%s4 + $0x120] sm:$0xff]
      %v4165 = vld [vmem:[%s4 + $0x128] sm:$0xff]
      %v4166 = vld [vmem:[%s4 + $0x130] sm:$0xff]
      %v4167 = vld [vmem:[%s4 + $0x138] sm:$0xff]
      %v4168 = vld [vmem:[%s4 + $0x140] sm:$0xff]
      %v4169 = vld [vmem:[%s4 + $0x148] sm:$0xff]
      %v4170 = vld [vmem:[%s4 + $0x150] sm:$0xff]
      %v4171 = vld [vmem:[%s4 + $0x158] sm:$0xff]
      %v4172 = vld [vmem:[%s4 + $0x160] sm:$0xff]
      %v4173 = vld [vmem:[%s4 + $0x168] sm:$0xff]
      %v4174 = vld [vmem:[%s4 + $0x170] sm:$0xff]
      %v4175 = vld [vmem:[%s4 + $0x178] sm:$0xff]
      %v4176 = vld [vmem:[%s4 + $0x180] sm:$0xff]
      %v4177 = vld [vmem:[%s4 + $0x188] sm:$0xff]
      %v4178 = vld [vmem:[%s4 + $0x190] sm:$0xff]
      %v4179 = vld [vmem:[%s4 + $0x198] sm:$0xff]
      %v4180 = vld [vmem:[%s4 + $0x1a0] sm:$0xff]
      %v4181 = vld [vmem:[%s4 + $0x1a8] sm:$0xff]
      %v4182 = vld [vmem:[%s4 + $0x1b0] sm:$0xff]
      %v4183 = vld [vmem:[%s4 + $0x1b8] sm:$0xff]
      %v4184 = vld [vmem:[%s4 + $0x1c0] sm:$0xff]
      %v4185 = vld [vmem:[%s4 + $0x1c8] sm:$0xff]
      %v4186 = vld [vmem:[%s4 + $0x1d0] sm:$0xff]
      %v4187 = vld [vmem:[%s4 + $0x1d8] sm:$0xff]
      %v4188 = vld [vmem:[%s4 + $0x1e0] sm:$0xff]
      %v4189 = vld [vmem:[%s4 + $0x1e8] sm:$0xff]
      %v4190 = vld [vmem:[%s4 + $0x1f0] sm:$0xff]
      %v4191 = vld [vmem:[%s4 + $0x1f8] sm:$0xff]
      %4193 = vset.pattern.permute.xlu0 0
      %4194 = vperm.xlu0 %4193, %v4128
      %v4195 = vpop.permute.xlu0 %4194
      %4198 = vset.pattern.permute.xlu0 0
      %4199 = vperm.xlu0 %4198, %v4129
      %v4200 = vpop.permute.xlu0 %4199
      %4203 = vset.pattern.permute.xlu0 0
      %4204 = vperm.xlu0 %4203, %v4130
      %v4205 = vpop.permute.xlu0 %4204
      %4208 = vset.pattern.permute.xlu0 0
      %4209 = vperm.xlu0 %4208, %v4131
      %v4210 = vpop.permute.xlu0 %4209
      %4213 = vset.pattern.permute.xlu0 0
      %4214 = vperm.xlu0 %4213, %v4132
      %v4215 = vpop.permute.xlu0 %4214
      %4218 = vset.pattern.permute.xlu0 0
      %4219 = vperm.xlu0 %4218, %v4133
      %v4220 = vpop.permute.xlu0 %4219
      %4223 = vset.pattern.permute.xlu0 0
      %4224 = vperm.xlu0 %4223, %v4134
      %v4225 = vpop.permute.xlu0 %4224
      %4228 = vset.pattern.permute.xlu0 0
      %4229 = vperm.xlu0 %4228, %v4135
      %v4230 = vpop.permute.xlu0 %4229
      %4233 = vset.pattern.permute.xlu0 0
      %4234 = vperm.xlu0 %4233, %v4136
      %v4235 = vpop.permute.xlu0 %4234
      %4238 = vset.pattern.permute.xlu0 0
      %4239 = vperm.xlu0 %4238, %v4137
      %v4240 = vpop.permute.xlu0 %4239
      %4243 = vset.pattern.permute.xlu0 0
      %4244 = vperm.xlu0 %4243, %v4138
      %v4245 = vpop.permute.xlu0 %4244
      %4248 = vset.pattern.permute.xlu0 0
      %4249 = vperm.xlu0 %4248, %v4139
      %v4250 = vpop.permute.xlu0 %4249
      %4253 = vset.pattern.permute.xlu0 0
      %4254 = vperm.xlu0 %4253, %v4140
      %v4255 = vpop.permute.xlu0 %4254
      %4258 = vset.pattern.permute.xlu0 0
      %4259 = vperm.xlu0 %4258, %v4141
      %v4260 = vpop.permute.xlu0 %4259
      %4263 = vset.pattern.permute.xlu0 0
      %4264 = vperm.xlu0 %4263, %v4142
      %v4265 = vpop.permute.xlu0 %4264
      %4268 = vset.pattern.permute.xlu0 0
      %4269 = vperm.xlu0 %4268, %v4143
      %v4270 = vpop.permute.xlu0 %4269
      %4273 = vset.pattern.permute.xlu0 0
      %4274 = vperm.xlu0 %4273, %v4144
      %v4275 = vpop.permute.xlu0 %4274
      %4278 = vset.pattern.permute.xlu0 0
      %4279 = vperm.xlu0 %4278, %v4145
      %v4280 = vpop.permute.xlu0 %4279
      %4283 = vset.pattern.permute.xlu0 0
      %4284 = vperm.xlu0 %4283, %v4146
      %v4285 = vpop.permute.xlu0 %4284
      %4288 = vset.pattern.permute.xlu0 0
      %4289 = vperm.xlu0 %4288, %v4147
      %v4290 = vpop.permute.xlu0 %4289
      %4293 = vset.pattern.permute.xlu0 0
      %4294 = vperm.xlu0 %4293, %v4148
      %v4295 = vpop.permute.xlu0 %4294
      %4298 = vset.pattern.permute.xlu0 0
      %4299 = vperm.xlu0 %4298, %v4149
      %v4300 = vpop.permute.xlu0 %4299
      %4303 = vset.pattern.permute.xlu0 0
      %4304 = vperm.xlu0 %4303, %v4150
      %v4305 = vpop.permute.xlu0 %4304
      %4308 = vset.pattern.permute.xlu0 0
      %4309 = vperm.xlu0 %4308, %v4151
      %v4310 = vpop.permute.xlu0 %4309
      %4313 = vset.pattern.permute.xlu0 0
      %4314 = vperm.xlu0 %4313, %v4152
      %v4315 = vpop.permute.xlu0 %4314
      %4318 = vset.pattern.permute.xlu0 0
      %4319 = vperm.xlu0 %4318, %v4153
      %v4320 = vpop.permute.xlu0 %4319
      %4323 = vset.pattern.permute.xlu0 0
      %4324 = vperm.xlu0 %4323, %v4154
      %v4325 = vpop.permute.xlu0 %4324
      %4328 = vset.pattern.permute.xlu0 0
      %4329 = vperm.xlu0 %4328, %v4155
      %v4330 = vpop.permute.xlu0 %4329
      %4333 = vset.pattern.permute.xlu0 0
      %4334 = vperm.xlu0 %4333, %v4156
      %v4335 = vpop.permute.xlu0 %4334
      %4338 = vset.pattern.permute.xlu0 0
      %4339 = vperm.xlu0 %4338, %v4157
      %v4340 = vpop.permute.xlu0 %4339
      %4343 = vset.pattern.permute.xlu0 0
      %4344 = vperm.xlu0 %4343, %v4158
      %v4345 = vpop.permute.xlu0 %4344
      %4348 = vset.pattern.permute.xlu0 0
      %4349 = vperm.xlu0 %4348, %v4159
      %v4350 = vpop.permute.xlu0 %4349
      %4353 = vset.pattern.permute.xlu0 0
      %4354 = vperm.xlu0 %4353, %v4160
      %v4355 = vpop.permute.xlu0 %4354
      %4358 = vset.pattern.permute.xlu0 0
      %4359 = vperm.xlu0 %4358, %v4161
      %v4360 = vpop.permute.xlu0 %4359
      %4363 = vset.pattern.permute.xlu0 0
      %4364 = vperm.xlu0 %4363, %v4162
      %v4365 = vpop.permute.xlu0 %4364
      %4368 = vset.pattern.permute.xlu0 0
      %4369 = vperm.xlu0 %4368, %v4163
      %v4370 = vpop.permute.xlu0 %4369
      %4373 = vset.pattern.permute.xlu0 0
      %4374 = vperm.xlu0 %4373, %v4164
      %v4375 = vpop.permute.xlu0 %4374
      %4378 = vset.pattern.permute.xlu0 0
      %4379 = vperm.xlu0 %4378, %v4165
      %v4380 = vpop.permute.xlu0 %4379
      %4383 = vset.pattern.permute.xlu0 0
      %4384 = vperm.xlu0 %4383, %v4166
      %v4385 = vpop.permute.xlu0 %4384
      %4388 = vset.pattern.permute.xlu0 0
      %4389 = vperm.xlu0 %4388, %v4167
      %v4390 = vpop.permute.xlu0 %4389
      %4393 = vset.pattern.permute.xlu0 0
      %4394 = vperm.xlu0 %4393, %v4168
      %v4395 = vpop.permute.xlu0 %4394
      %4398 = vset.pattern.permute.xlu0 0
      %4399 = vperm.xlu0 %4398, %v4169
      %v4400 = vpop.permute.xlu0 %4399
      %4403 = vset.pattern.permute.xlu0 0
      %4404 = vperm.xlu0 %4403, %v4170
      %v4405 = vpop.permute.xlu0 %4404
      %4408 = vset.pattern.permute.xlu0 0
      %4409 = vperm.xlu0 %4408, %v4171
      %v4410 = vpop.permute.xlu0 %4409
      %4413 = vset.pattern.permute.xlu0 0
      %4414 = vperm.xlu0 %4413, %v4172
      %v4415 = vpop.permute.xlu0 %4414
      %4418 = vset.pattern.permute.xlu0 0
      %4419 = vperm.xlu0 %4418, %v4173
      %v4420 = vpop.permute.xlu0 %4419
      %4423 = vset.pattern.permute.xlu0 0
      %4424 = vperm.xlu0 %4423, %v4174
      %v4425 = vpop.permute.xlu0 %4424
      %4428 = vset.pattern.permute.xlu0 0
      %4429 = vperm.xlu0 %4428, %v4175
      %v4430 = vpop.permute.xlu0 %4429
      %4433 = vset.pattern.permute.xlu0 0
      %4434 = vperm.xlu0 %4433, %v4176
      %v4435 = vpop.permute.xlu0 %4434
      %4438 = vset.pattern.permute.xlu0 0
      %4439 = vperm.xlu0 %4438, %v4177
      %v4440 = vpop.permute.xlu0 %4439
      %4443 = vset.pattern.permute.xlu0 0
      %4444 = vperm.xlu0 %4443, %v4178
      %v4445 = vpop.permute.xlu0 %4444
      %4448 = vset.pattern.permute.xlu0 0
      %4449 = vperm.xlu0 %4448, %v4179
      %v4450 = vpop.permute.xlu0 %4449
      %4453 = vset.pattern.permute.xlu0 0
      %4454 = vperm.xlu0 %4453, %v4180
      %v4455 = vpop.permute.xlu0 %4454
      %4458 = vset.pattern.permute.xlu0 0
      %4459 = vperm.xlu0 %4458, %v4181
      %v4460 = vpop.permute.xlu0 %4459
      %4463 = vset.pattern.permute.xlu0 0
      %4464 = vperm.xlu0 %4463, %v4182
      %v4465 = vpop.permute.xlu0 %4464
      %4468 = vset.pattern.permute.xlu0 0
      %4469 = vperm.xlu0 %4468, %v4183
      %v4470 = vpop.permute.xlu0 %4469
      %4473 = vset.pattern.permute.xlu0 0
      %4474 = vperm.xlu0 %4473, %v4184
      %v4475 = vpop.permute.xlu0 %4474
      %4478 = vset.pattern.permute.xlu0 0
      %4479 = vperm.xlu0 %4478, %v4185
      %v4480 = vpop.permute.xlu0 %4479
      %4483 = vset.pattern.permute.xlu0 0
      %4484 = vperm.xlu0 %4483, %v4186
      %v4485 = vpop.permute.xlu0 %4484
      %4488 = vset.pattern.permute.xlu0 0
      %4489 = vperm.xlu0 %4488, %v4187
      %v4490 = vpop.permute.xlu0 %4489
      %4493 = vset.pattern.permute.xlu0 0
      %4494 = vperm.xlu0 %4493, %v4188
      %v4495 = vpop.permute.xlu0 %4494
      %4498 = vset.pattern.permute.xlu0 0
      %4499 = vperm.xlu0 %4498, %v4189
      %v4500 = vpop.permute.xlu0 %4499
      %4503 = vset.pattern.permute.xlu0 0
      %4504 = vperm.xlu0 %4503, %v4190
      %v4505 = vpop.permute.xlu0 %4504
      %4508 = vset.pattern.permute.xlu0 0
      %4509 = vperm.xlu0 %4508, %v4191
      %v4510 = vpop.permute.xlu0 %4509
      %v4512 = vmul.f32 %v3616, %v4195
      %v4513 = vmul.f32 %v3617, %v4200
      %v4514 = vmul.f32 %v3618, %v4205
      %v4515 = vmul.f32 %v3619, %v4210
      %v4516 = vmul.f32 %v3620, %v4215
      %v4517 = vmul.f32 %v3621, %v4220
      %v4518 = vmul.f32 %v3622, %v4225
      %v4519 = vmul.f32 %v3623, %v4230
      %v4520 = vmul.f32 %v3624, %v4235
      %v4521 = vmul.f32 %v3625, %v4240
      %v4522 = vmul.f32 %v3626, %v4245
      %v4523 = vmul.f32 %v3627, %v4250
      %v4524 = vmul.f32 %v3628, %v4255
      %v4525 = vmul.f32 %v3629, %v4260
      %v4526 = vmul.f32 %v3630, %v4265
      %v4527 = vmul.f32 %v3631, %v4270
      %v4528 = vmul.f32 %v3632, %v4275
      %v4529 = vmul.f32 %v3633, %v4280
      %v4530 = vmul.f32 %v3634, %v4285
      %v4531 = vmul.f32 %v3635, %v4290
      %v4532 = vmul.f32 %v3636, %v4295
      %v4533 = vmul.f32 %v3637, %v4300
      %v4534 = vmul.f32 %v3638, %v4305
      %v4535 = vmul.f32 %v3639, %v4310
      %v4536 = vmul.f32 %v3640, %v4315
      %v4537 = vmul.f32 %v3641, %v4320
      %v4538 = vmul.f32 %v3642, %v4325
      %v4539 = vmul.f32 %v3643, %v4330
      %v4540 = vmul.f32 %v3644, %v4335
      %v4541 = vmul.f32 %v3645, %v4340
      %v4542 = vmul.f32 %v3646, %v4345
      %v4543 = vmul.f32 %v3647, %v4350
      %v4544 = vmul.f32 %v3648, %v4355
      %v4545 = vmul.f32 %v3649, %v4360
      %v4546 = vmul.f32 %v3650, %v4365
      %v4547 = vmul.f32 %v3651, %v4370
      %v4548 = vmul.f32 %v3652, %v4375
      %v4549 = vmul.f32 %v3653, %v4380
      %v4550 = vmul.f32 %v3654, %v4385
      %v4551 = vmul.f32 %v3655, %v4390
      %v4552 = vmul.f32 %v3656, %v4395
      %v4553 = vmul.f32 %v3657, %v4400
      %v4554 = vmul.f32 %v3658, %v4405
      %v4555 = vmul.f32 %v3659, %v4410
      %v4556 = vmul.f32 %v3660, %v4415
      %v4557 = vmul.f32 %v3661, %v4420
      %v4558 = vmul.f32 %v3662, %v4425
      %v4559 = vmul.f32 %v3663, %v4430
      %v4560 = vmul.f32 %v3664, %v4435
      %v4561 = vmul.f32 %v3665, %v4440
      %v4562 = vmul.f32 %v3666, %v4445
      %v4563 = vmul.f32 %v3667, %v4450
      %v4564 = vmul.f32 %v3668, %v4455
      %v4565 = vmul.f32 %v3669, %v4460
      %v4566 = vmul.f32 %v3670, %v4465
      %v4567 = vmul.f32 %v3671, %v4470
      %v4568 = vmul.f32 %v3672, %v4475
      %v4569 = vmul.f32 %v3673, %v4480
      %v4570 = vmul.f32 %v3674, %v4485
      %v4571 = vmul.f32 %v3675, %v4490
      %v4572 = vmul.f32 %v3676, %v4495
      %v4573 = vmul.f32 %v3677, %v4500
      %v4574 = vmul.f32 %v3678, %v4505
      %v4575 = vmul.f32 %v3679, %v4510
      %v4576 = vld [vmem:[%s9] sm:$0xf]
      %s4577 = scalar_lea.vmem %s9, 4
      %v4578 = vld [vmem:[%s4577] sm:$0xf]
      %v4580 = vsel %vm495, %v3486, 0
      %v4583 = vsel %vm495, %v3487, 0
      %v4586 = vsel %vm495, %v3488, 0
      %v4589 = vsel %vm495, %v3489, 0
      %v4592 = vsel %vm495, %v3490, 0
      %v4595 = vsel %vm495, %v3491, 0
      %v4598 = vsel %vm495, %v3492, 0
      %v4601 = vsel %vm495, %v3493, 0
      %v4604 = vsel %vm495, %v3494, 0
      %v4607 = vsel %vm495, %v3495, 0
      %v4610 = vsel %vm495, %v3496, 0
      %v4613 = vsel %vm495, %v3497, 0
      %v4616 = vsel %vm495, %v3498, 0
      %v4619 = vsel %vm495, %v3499, 0
      %v4622 = vsel %vm495, %v3500, 0
      %v4625 = vsel %vm495, %v3501, 0
      %v4628 = vsel %vm495, %v3502, 0
      %v4631 = vsel %vm495, %v3503, 0
      %v4634 = vsel %vm495, %v3504, 0
      %v4637 = vsel %vm495, %v3505, 0
      %v4640 = vsel %vm495, %v3506, 0
      %v4643 = vsel %vm495, %v3507, 0
      %v4646 = vsel %vm495, %v3508, 0
      %v4649 = vsel %vm495, %v3509, 0
      %v4652 = vsel %vm495, %v3510, 0
      %v4655 = vsel %vm495, %v3511, 0
      %v4658 = vsel %vm495, %v3512, 0
      %v4661 = vsel %vm495, %v3513, 0
      %v4664 = vsel %vm495, %v3514, 0
      %v4667 = vsel %vm495, %v3515, 0
      %v4670 = vsel %vm495, %v3516, 0
      %v4673 = vsel %vm495, %v3517, 0
      %v4676 = vsel %vm495, %v3518, 0
      %v4679 = vsel %vm495, %v3519, 0
      %v4682 = vsel %vm495, %v3520, 0
      %v4685 = vsel %vm495, %v3521, 0
      %v4688 = vsel %vm495, %v3522, 0
      %v4691 = vsel %vm495, %v3523, 0
      %v4694 = vsel %vm495, %v3524, 0
      %v4697 = vsel %vm495, %v3525, 0
      %v4700 = vsel %vm495, %v3526, 0
      %v4703 = vsel %vm495, %v3527, 0
      %v4706 = vsel %vm495, %v3528, 0
      %v4709 = vsel %vm495, %v3529, 0
      %v4712 = vsel %vm495, %v3530, 0
      %v4715 = vsel %vm495, %v3531, 0
      %v4718 = vsel %vm495, %v3532, 0
      %v4721 = vsel %vm495, %v3533, 0
      %v4724 = vsel %vm495, %v3534, 0
      %v4727 = vsel %vm495, %v3535, 0
      %v4730 = vsel %vm495, %v3536, 0
      %v4733 = vsel %vm495, %v3537, 0
      %v4736 = vsel %vm495, %v3538, 0
      %v4739 = vsel %vm495, %v3539, 0
      %v4742 = vsel %vm495, %v3540, 0
      %v4745 = vsel %vm495, %v3541, 0
      %v4748 = vsel %vm495, %v3542, 0
      %v4751 = vsel %vm495, %v3543, 0
      %v4754 = vsel %vm495, %v3544, 0
      %v4757 = vsel %vm495, %v3545, 0
      %v4760 = vsel %vm495, %v3546, 0
      %v4763 = vsel %vm495, %v3547, 0
      %v4766 = vsel %vm495, %v3548, 0
      %v4769 = vsel %vm495, %v3549, 0
      %v4772 = vsel %vm2331, %v4578, 0
      %4774 = vmatpush.msra.mxu0 0.0
      %4775 = vmatpush.msra.mxu0 0.0
      %4776 = vmatpush.msra.mxu0 0.0
      %4777 = vmatpush.msra.mxu0 0.0
      %4778 = vmatpush.msra.mxu0 0.0
      %4779 = vmatpush.msra.mxu0 0.0
      %4780 = vmatpush.msra.mxu0 0.0
      %4781 = vmatpush.msra.mxu0 0.0
      %4782 = vmatpush.msra.mxu0 0.0
      %4783 = vmatpush.msra.mxu0 0.0
      %4784 = vmatpush.msra.mxu0 0.0
      %4785 = vmatpush.msra.mxu0 0.0
      %4786 = vmatpush.msra.mxu0 0.0
      %4787 = vmatpush.msra.mxu0 0.0
      %4788 = vmatpush.msra.mxu0 0.0
      %4789 = vmatpush.msra.mxu0 %v4772
      %4790 = vmatmul.f32.gmra.mxu0 %v4580
      %v4791 = vpop.f32.mrf.mxu0
      %v4792 = vadd.f32 0.0, %v4791
      %4793 = vmatmul.f32.gmra.mxu0 %v4583
      %v4794 = vpop.f32.mrf.mxu0
      %v4795 = vadd.f32 0.0, %v4794
      %4796 = vmatmul.f32.gmra.mxu0 %v4586
      %v4797 = vpop.f32.mrf.mxu0
      %v4798 = vadd.f32 0.0, %v4797
      %4799 = vmatmul.f32.gmra.mxu0 %v4589
      %v4800 = vpop.f32.mrf.mxu0
      %v4801 = vadd.f32 0.0, %v4800
      %4802 = vmatmul.f32.gmra.mxu0 %v4592
      %v4803 = vpop.f32.mrf.mxu0
      %v4804 = vadd.f32 0.0, %v4803
      %4805 = vmatmul.f32.gmra.mxu0 %v4595
      %v4806 = vpop.f32.mrf.mxu0
      %v4807 = vadd.f32 0.0, %v4806
      %4808 = vmatmul.f32.gmra.mxu0 %v4598
      %v4809 = vpop.f32.mrf.mxu0
      %v4810 = vadd.f32 0.0, %v4809
      %4811 = vmatmul.f32.gmra.mxu0 %v4601
      %v4812 = vpop.f32.mrf.mxu0
      %v4813 = vadd.f32 0.0, %v4812
      %4814 = vmatmul.f32.gmra.mxu0 %v4604
      %v4815 = vpop.f32.mrf.mxu0
      %v4816 = vadd.f32 0.0, %v4815
      %4817 = vmatmul.f32.gmra.mxu0 %v4607
      %v4818 = vpop.f32.mrf.mxu0
      %v4819 = vadd.f32 0.0, %v4818
      %4820 = vmatmul.f32.gmra.mxu0 %v4610
      %v4821 = vpop.f32.mrf.mxu0
      %v4822 = vadd.f32 0.0, %v4821
      %4823 = vmatmul.f32.gmra.mxu0 %v4613
      %v4824 = vpop.f32.mrf.mxu0
      %v4825 = vadd.f32 0.0, %v4824
      %4826 = vmatmul.f32.gmra.mxu0 %v4616
      %v4827 = vpop.f32.mrf.mxu0
      %v4828 = vadd.f32 0.0, %v4827
      %4829 = vmatmul.f32.gmra.mxu0 %v4619
      %v4830 = vpop.f32.mrf.mxu0
      %v4831 = vadd.f32 0.0, %v4830
      %4832 = vmatmul.f32.gmra.mxu0 %v4622
      %v4833 = vpop.f32.mrf.mxu0
      %v4834 = vadd.f32 0.0, %v4833
      %4835 = vmatmul.f32.gmra.mxu0 %v4625
      %v4836 = vpop.f32.mrf.mxu0
      %v4837 = vadd.f32 0.0, %v4836
      %4838 = vmatmul.f32.gmra.mxu0 %v4628
      %v4839 = vpop.f32.mrf.mxu0
      %v4840 = vadd.f32 0.0, %v4839
      %4841 = vmatmul.f32.gmra.mxu0 %v4631
      %v4842 = vpop.f32.mrf.mxu0
      %v4843 = vadd.f32 0.0, %v4842
      %4844 = vmatmul.f32.gmra.mxu0 %v4634
      %v4845 = vpop.f32.mrf.mxu0
      %v4846 = vadd.f32 0.0, %v4845
      %4847 = vmatmul.f32.gmra.mxu0 %v4637
      %v4848 = vpop.f32.mrf.mxu0
      %v4849 = vadd.f32 0.0, %v4848
      %4850 = vmatmul.f32.gmra.mxu0 %v4640
      %v4851 = vpop.f32.mrf.mxu0
      %v4852 = vadd.f32 0.0, %v4851
      %4853 = vmatmul.f32.gmra.mxu0 %v4643
      %v4854 = vpop.f32.mrf.mxu0
      %v4855 = vadd.f32 0.0, %v4854
      %4856 = vmatmul.f32.gmra.mxu0 %v4646
      %v4857 = vpop.f32.mrf.mxu0
      %v4858 = vadd.f32 0.0, %v4857
      %4859 = vmatmul.f32.gmra.mxu0 %v4649
      %v4860 = vpop.f32.mrf.mxu0
      %v4861 = vadd.f32 0.0, %v4860
      %4862 = vmatmul.f32.gmra.mxu0 %v4652
      %v4863 = vpop.f32.mrf.mxu0
      %v4864 = vadd.f32 0.0, %v4863
      %4865 = vmatmul.f32.gmra.mxu0 %v4655
      %v4866 = vpop.f32.mrf.mxu0
      %v4867 = vadd.f32 0.0, %v4866
      %4868 = vmatmul.f32.gmra.mxu0 %v4658
      %v4869 = vpop.f32.mrf.mxu0
      %v4870 = vadd.f32 0.0, %v4869
      %4871 = vmatmul.f32.gmra.mxu0 %v4661
      %v4872 = vpop.f32.mrf.mxu0
      %v4873 = vadd.f32 0.0, %v4872
      %4874 = vmatmul.f32.gmra.mxu0 %v4664
      %v4875 = vpop.f32.mrf.mxu0
      %v4876 = vadd.f32 0.0, %v4875
      %4877 = vmatmul.f32.gmra.mxu0 %v4667
      %v4878 = vpop.f32.mrf.mxu0
      %v4879 = vadd.f32 0.0, %v4878
      %4880 = vmatmul.f32.gmra.mxu0 %v4670
      %v4881 = vpop.f32.mrf.mxu0
      %v4882 = vadd.f32 0.0, %v4881
      %4883 = vmatmul.f32.gmra.mxu0 %v4673
      %v4884 = vpop.f32.mrf.mxu0
      %v4885 = vadd.f32 0.0, %v4884
      %4886 = vmatmul.f32.gmra.mxu0 %v4676
      %v4887 = vpop.f32.mrf.mxu0
      %v4888 = vadd.f32 0.0, %v4887
      %4889 = vmatmul.f32.gmra.mxu0 %v4679
      %v4890 = vpop.f32.mrf.mxu0
      %v4891 = vadd.f32 0.0, %v4890
      %4892 = vmatmul.f32.gmra.mxu0 %v4682
      %v4893 = vpop.f32.mrf.mxu0
      %v4894 = vadd.f32 0.0, %v4893
      %4895 = vmatmul.f32.gmra.mxu0 %v4685
      %v4896 = vpop.f32.mrf.mxu0
      %v4897 = vadd.f32 0.0, %v4896
      %4898 = vmatmul.f32.gmra.mxu0 %v4688
      %v4899 = vpop.f32.mrf.mxu0
      %v4900 = vadd.f32 0.0, %v4899
      %4901 = vmatmul.f32.gmra.mxu0 %v4691
      %v4902 = vpop.f32.mrf.mxu0
      %v4903 = vadd.f32 0.0, %v4902
      %4904 = vmatmul.f32.gmra.mxu0 %v4694
      %v4905 = vpop.f32.mrf.mxu0
      %v4906 = vadd.f32 0.0, %v4905
      %4907 = vmatmul.f32.gmra.mxu0 %v4697
      %v4908 = vpop.f32.mrf.mxu0
      %v4909 = vadd.f32 0.0, %v4908
      %4910 = vmatmul.f32.gmra.mxu0 %v4700
      %v4911 = vpop.f32.mrf.mxu0
      %v4912 = vadd.f32 0.0, %v4911
      %4913 = vmatmul.f32.gmra.mxu0 %v4703
      %v4914 = vpop.f32.mrf.mxu0
      %v4915 = vadd.f32 0.0, %v4914
      %4916 = vmatmul.f32.gmra.mxu0 %v4706
      %v4917 = vpop.f32.mrf.mxu0
      %v4918 = vadd.f32 0.0, %v4917
      %4919 = vmatmul.f32.gmra.mxu0 %v4709
      %v4920 = vpop.f32.mrf.mxu0
      %v4921 = vadd.f32 0.0, %v4920
      %4922 = vmatmul.f32.gmra.mxu0 %v4712
      %v4923 = vpop.f32.mrf.mxu0
      %v4924 = vadd.f32 0.0, %v4923
      %4925 = vmatmul.f32.gmra.mxu0 %v4715
      %v4926 = vpop.f32.mrf.mxu0
      %v4927 = vadd.f32 0.0, %v4926
      %4928 = vmatmul.f32.gmra.mxu0 %v4718
      %v4929 = vpop.f32.mrf.mxu0
      %v4930 = vadd.f32 0.0, %v4929
      %4931 = vmatmul.f32.gmra.mxu0 %v4721
      %v4932 = vpop.f32.mrf.mxu0
      %v4933 = vadd.f32 0.0, %v4932
      %4934 = vmatmul.f32.gmra.mxu0 %v4724
      %v4935 = vpop.f32.mrf.mxu0
      %v4936 = vadd.f32 0.0, %v4935
      %4937 = vmatmul.f32.gmra.mxu0 %v4727
      %v4938 = vpop.f32.mrf.mxu0
      %v4939 = vadd.f32 0.0, %v4938
      %4940 = vmatmul.f32.gmra.mxu0 %v4730
      %v4941 = vpop.f32.mrf.mxu0
      %v4942 = vadd.f32 0.0, %v4941
      %4943 = vmatmul.f32.gmra.mxu0 %v4733
      %v4944 = vpop.f32.mrf.mxu0
      %v4945 = vadd.f32 0.0, %v4944
      %4946 = vmatmul.f32.gmra.mxu0 %v4736
      %v4947 = vpop.f32.mrf.mxu0
      %v4948 = vadd.f32 0.0, %v4947
      %4949 = vmatmul.f32.gmra.mxu0 %v4739
      %v4950 = vpop.f32.mrf.mxu0
      %v4951 = vadd.f32 0.0, %v4950
      %4952 = vmatmul.f32.gmra.mxu0 %v4742
      %v4953 = vpop.f32.mrf.mxu0
      %v4954 = vadd.f32 0.0, %v4953
      %4955 = vmatmul.f32.gmra.mxu0 %v4745
      %v4956 = vpop.f32.mrf.mxu0
      %v4957 = vadd.f32 0.0, %v4956
      %4958 = vmatmul.f32.gmra.mxu0 %v4748
      %v4959 = vpop.f32.mrf.mxu0
      %v4960 = vadd.f32 0.0, %v4959
      %4961 = vmatmul.f32.gmra.mxu0 %v4751
      %v4962 = vpop.f32.mrf.mxu0
      %v4963 = vadd.f32 0.0, %v4962
      %4964 = vmatmul.f32.gmra.mxu0 %v4754
      %v4965 = vpop.f32.mrf.mxu0
      %v4966 = vadd.f32 0.0, %v4965
      %4967 = vmatmul.f32.gmra.mxu0 %v4757
      %v4968 = vpop.f32.mrf.mxu0
      %v4969 = vadd.f32 0.0, %v4968
      %4970 = vmatmul.f32.gmra.mxu0 %v4760
      %v4971 = vpop.f32.mrf.mxu0
      %v4972 = vadd.f32 0.0, %v4971
      %4973 = vmatmul.f32.gmra.mxu0 %v4763
      %v4974 = vpop.f32.mrf.mxu0
      %v4975 = vadd.f32 0.0, %v4974
      %4976 = vmatmul.f32.gmra.mxu0 %v4766
      %v4977 = vpop.f32.mrf.mxu0
      %v4978 = vadd.f32 0.0, %v4977
      %4979 = vmatmul.f32.gmra.mxu0 %v4769
      %v4980 = vpop.f32.mrf.mxu0
      %v4981 = vadd.f32 0.0, %v4980
      %4982 = vdwg.mxu0
      %v4984 = vsel %vm495, %v4064, 0
      %v4987 = vsel %vm495, %v4065, 0
      %v4990 = vsel %vm495, %v4066, 0
      %v4993 = vsel %vm495, %v4067, 0
      %v4996 = vsel %vm495, %v4068, 0
      %v4999 = vsel %vm495, %v4069, 0
      %v5002 = vsel %vm495, %v4070, 0
      %v5005 = vsel %vm495, %v4071, 0
      %v5008 = vsel %vm495, %v4072, 0
      %v5011 = vsel %vm495, %v4073, 0
      %v5014 = vsel %vm495, %v4074, 0
      %v5017 = vsel %vm495, %v4075, 0
      %v5020 = vsel %vm495, %v4076, 0
      %v5023 = vsel %vm495, %v4077, 0
      %v5026 = vsel %vm495, %v4078, 0
      %v5029 = vsel %vm495, %v4079, 0
      %v5032 = vsel %vm495, %v4080, 0
      %v5035 = vsel %vm495, %v4081, 0
      %v5038 = vsel %vm495, %v4082, 0
      %v5041 = vsel %vm495, %v4083, 0
      %v5044 = vsel %vm495, %v4084, 0
      %v5047 = vsel %vm495, %v4085, 0
      %v5050 = vsel %vm495, %v4086, 0
      %v5053 = vsel %vm495, %v4087, 0
      %v5056 = vsel %vm495, %v4088, 0
      %v5059 = vsel %vm495, %v4089, 0
      %v5062 = vsel %vm495, %v4090, 0
      %v5065 = vsel %vm495, %v4091, 0
      %v5068 = vsel %vm495, %v4092, 0
      %v5071 = vsel %vm495, %v4093, 0
      %v5074 = vsel %vm495, %v4094, 0
      %v5077 = vsel %vm495, %v4095, 0
      %v5080 = vsel %vm495, %v4096, 0
      %v5083 = vsel %vm495, %v4097, 0
      %v5086 = vsel %vm495, %v4098, 0
      %v5089 = vsel %vm495, %v4099, 0
      %v5092 = vsel %vm495, %v4100, 0
      %v5095 = vsel %vm495, %v4101, 0
      %v5098 = vsel %vm495, %v4102, 0
      %v5101 = vsel %vm495, %v4103, 0
      %v5104 = vsel %vm495, %v4104, 0
      %v5107 = vsel %vm495, %v4105, 0
      %v5110 = vsel %vm495, %v4106, 0
      %v5113 = vsel %vm495, %v4107, 0
      %v5116 = vsel %vm495, %v4108, 0
      %v5119 = vsel %vm495, %v4109, 0
      %v5122 = vsel %vm495, %v4110, 0
      %v5125 = vsel %vm495, %v4111, 0
      %v5128 = vsel %vm495, %v4112, 0
      %v5131 = vsel %vm495, %v4113, 0
      %v5134 = vsel %vm495, %v4114, 0
      %v5137 = vsel %vm495, %v4115, 0
      %v5140 = vsel %vm495, %v4116, 0
      %v5143 = vsel %vm495, %v4117, 0
      %v5146 = vsel %vm495, %v4118, 0
      %v5149 = vsel %vm495, %v4119, 0
      %v5152 = vsel %vm495, %v4120, 0
      %v5155 = vsel %vm495, %v4121, 0
      %v5158 = vsel %vm495, %v4122, 0
      %v5161 = vsel %vm495, %v4123, 0
      %v5164 = vsel %vm495, %v4124, 0
      %v5167 = vsel %vm495, %v4125, 0
      %v5170 = vsel %vm495, %v4126, 0
      %v5173 = vsel %vm495, %v4127, 0
      %v5176 = vsel %vm2331, %v4576, 0
      %5178 = vmatpush.msra.mxu0 0.0
      %5179 = vmatpush.msra.mxu0 0.0
      %5180 = vmatpush.msra.mxu0 0.0
      %5181 = vmatpush.msra.mxu0 0.0
      %5182 = vmatpush.msra.mxu0 0.0
      %5183 = vmatpush.msra.mxu0 0.0
      %5184 = vmatpush.msra.mxu0 0.0
      %5185 = vmatpush.msra.mxu0 0.0
      %5186 = vmatpush.msra.mxu0 0.0
      %5187 = vmatpush.msra.mxu0 0.0
      %5188 = vmatpush.msra.mxu0 0.0
      %5189 = vmatpush.msra.mxu0 0.0
      %5190 = vmatpush.msra.mxu0 0.0
      %5191 = vmatpush.msra.mxu0 0.0
      %5192 = vmatpush.msra.mxu0 0.0
      %5193 = vmatpush.msra.mxu0 %v5176
      %5194 = vmatmul.f32.gmra.mxu0 %v4984
      %v5195 = vpop.f32.mrf.mxu0
      %v5196 = vadd.f32 %v4792, %v5195
      %5197 = vmatmul.f32.gmra.mxu0 %v4987
      %v5198 = vpop.f32.mrf.mxu0
      %v5199 = vadd.f32 %v4795, %v5198
      %5200 = vmatmul.f32.gmra.mxu0 %v4990
      %v5201 = vpop.f32.mrf.mxu0
      %v5202 = vadd.f32 %v4798, %v5201
      %5203 = vmatmul.f32.gmra.mxu0 %v4993
      %v5204 = vpop.f32.mrf.mxu0
      %v5205 = vadd.f32 %v4801, %v5204
      %5206 = vmatmul.f32.gmra.mxu0 %v4996
      %v5207 = vpop.f32.mrf.mxu0
      %v5208 = vadd.f32 %v4804, %v5207
      %5209 = vmatmul.f32.gmra.mxu0 %v4999
      %v5210 = vpop.f32.mrf.mxu0
      %v5211 = vadd.f32 %v4807, %v5210
      %5212 = vmatmul.f32.gmra.mxu0 %v5002
      %v5213 = vpop.f32.mrf.mxu0
      %v5214 = vadd.f32 %v4810, %v5213
      %5215 = vmatmul.f32.gmra.mxu0 %v5005
      %v5216 = vpop.f32.mrf.mxu0
      %v5217 = vadd.f32 %v4813, %v5216
      %5218 = vmatmul.f32.gmra.mxu0 %v5008
      %v5219 = vpop.f32.mrf.mxu0
      %v5220 = vadd.f32 %v4816, %v5219
      %5221 = vmatmul.f32.gmra.mxu0 %v5011
      %v5222 = vpop.f32.mrf.mxu0
      %v5223 = vadd.f32 %v4819, %v5222
      %5224 = vmatmul.f32.gmra.mxu0 %v5014
      %v5225 = vpop.f32.mrf.mxu0
      %v5226 = vadd.f32 %v4822, %v5225
      %5227 = vmatmul.f32.gmra.mxu0 %v5017
      %v5228 = vpop.f32.mrf.mxu0
      %v5229 = vadd.f32 %v4825, %v5228
      %5230 = vmatmul.f32.gmra.mxu0 %v5020
      %v5231 = vpop.f32.mrf.mxu0
      %v5232 = vadd.f32 %v4828, %v5231
      %5233 = vmatmul.f32.gmra.mxu0 %v5023
      %v5234 = vpop.f32.mrf.mxu0
      %v5235 = vadd.f32 %v4831, %v5234
      %5236 = vmatmul.f32.gmra.mxu0 %v5026
      %v5237 = vpop.f32.mrf.mxu0
      %v5238 = vadd.f32 %v4834, %v5237
      %5239 = vmatmul.f32.gmra.mxu0 %v5029
      %v5240 = vpop.f32.mrf.mxu0
      %v5241 = vadd.f32 %v4837, %v5240
      %5242 = vmatmul.f32.gmra.mxu0 %v5032
      %v5243 = vpop.f32.mrf.mxu0
      %v5244 = vadd.f32 %v4840, %v5243
      %5245 = vmatmul.f32.gmra.mxu0 %v5035
      %v5246 = vpop.f32.mrf.mxu0
      %v5247 = vadd.f32 %v4843, %v5246
      %5248 = vmatmul.f32.gmra.mxu0 %v5038
      %v5249 = vpop.f32.mrf.mxu0
      %v5250 = vadd.f32 %v4846, %v5249
      %5251 = vmatmul.f32.gmra.mxu0 %v5041
      %v5252 = vpop.f32.mrf.mxu0
      %v5253 = vadd.f32 %v4849, %v5252
      %5254 = vmatmul.f32.gmra.mxu0 %v5044
      %v5255 = vpop.f32.mrf.mxu0
      %v5256 = vadd.f32 %v4852, %v5255
      %5257 = vmatmul.f32.gmra.mxu0 %v5047
      %v5258 = vpop.f32.mrf.mxu0
      %v5259 = vadd.f32 %v4855, %v5258
      %5260 = vmatmul.f32.gmra.mxu0 %v5050
      %v5261 = vpop.f32.mrf.mxu0
      %v5262 = vadd.f32 %v4858, %v5261
      %5263 = vmatmul.f32.gmra.mxu0 %v5053
      %v5264 = vpop.f32.mrf.mxu0
      %v5265 = vadd.f32 %v4861, %v5264
      %5266 = vmatmul.f32.gmra.mxu0 %v5056
      %v5267 = vpop.f32.mrf.mxu0
      %v5268 = vadd.f32 %v4864, %v5267
      %5269 = vmatmul.f32.gmra.mxu0 %v5059
      %v5270 = vpop.f32.mrf.mxu0
      %v5271 = vadd.f32 %v4867, %v5270
      %5272 = vmatmul.f32.gmra.mxu0 %v5062
      %v5273 = vpop.f32.mrf.mxu0
      %v5274 = vadd.f32 %v4870, %v5273
      %5275 = vmatmul.f32.gmra.mxu0 %v5065
      %v5276 = vpop.f32.mrf.mxu0
      %v5277 = vadd.f32 %v4873, %v5276
      %5278 = vmatmul.f32.gmra.mxu0 %v5068
      %v5279 = vpop.f32.mrf.mxu0
      %v5280 = vadd.f32 %v4876, %v5279
      %5281 = vmatmul.f32.gmra.mxu0 %v5071
      %v5282 = vpop.f32.mrf.mxu0
      %v5283 = vadd.f32 %v4879, %v5282
      %5284 = vmatmul.f32.gmra.mxu0 %v5074
      %v5285 = vpop.f32.mrf.mxu0
      %v5286 = vadd.f32 %v4882, %v5285
      %5287 = vmatmul.f32.gmra.mxu0 %v5077
      %v5288 = vpop.f32.mrf.mxu0
      %v5289 = vadd.f32 %v4885, %v5288
      %5290 = vmatmul.f32.gmra.mxu0 %v5080
      %v5291 = vpop.f32.mrf.mxu0
      %v5292 = vadd.f32 %v4888, %v5291
      %5293 = vmatmul.f32.gmra.mxu0 %v5083
      %v5294 = vpop.f32.mrf.mxu0
      %v5295 = vadd.f32 %v4891, %v5294
      %5296 = vmatmul.f32.gmra.mxu0 %v5086
      %v5297 = vpop.f32.mrf.mxu0
      %v5298 = vadd.f32 %v4894, %v5297
      %5299 = vmatmul.f32.gmra.mxu0 %v5089
      %v5300 = vpop.f32.mrf.mxu0
      %v5301 = vadd.f32 %v4897, %v5300
      %5302 = vmatmul.f32.gmra.mxu0 %v5092
      %v5303 = vpop.f32.mrf.mxu0
      %v5304 = vadd.f32 %v4900, %v5303
      %5305 = vmatmul.f32.gmra.mxu0 %v5095
      %v5306 = vpop.f32.mrf.mxu0
      %v5307 = vadd.f32 %v4903, %v5306
      %5308 = vmatmul.f32.gmra.mxu0 %v5098
      %v5309 = vpop.f32.mrf.mxu0
      %v5310 = vadd.f32 %v4906, %v5309
      %5311 = vmatmul.f32.gmra.mxu0 %v5101
      %v5312 = vpop.f32.mrf.mxu0
      %v5313 = vadd.f32 %v4909, %v5312
      %5314 = vmatmul.f32.gmra.mxu0 %v5104
      %v5315 = vpop.f32.mrf.mxu0
      %v5316 = vadd.f32 %v4912, %v5315
      %5317 = vmatmul.f32.gmra.mxu0 %v5107
      %v5318 = vpop.f32.mrf.mxu0
      %v5319 = vadd.f32 %v4915, %v5318
      %5320 = vmatmul.f32.gmra.mxu0 %v5110
      %v5321 = vpop.f32.mrf.mxu0
      %v5322 = vadd.f32 %v4918, %v5321
      %5323 = vmatmul.f32.gmra.mxu0 %v5113
      %v5324 = vpop.f32.mrf.mxu0
      %v5325 = vadd.f32 %v4921, %v5324
      %5326 = vmatmul.f32.gmra.mxu0 %v5116
      %v5327 = vpop.f32.mrf.mxu0
      %v5328 = vadd.f32 %v4924, %v5327
      %5329 = vmatmul.f32.gmra.mxu0 %v5119
      %v5330 = vpop.f32.mrf.mxu0
      %v5331 = vadd.f32 %v4927, %v5330
      %5332 = vmatmul.f32.gmra.mxu0 %v5122
      %v5333 = vpop.f32.mrf.mxu0
      %v5334 = vadd.f32 %v4930, %v5333
      %5335 = vmatmul.f32.gmra.mxu0 %v5125
      %v5336 = vpop.f32.mrf.mxu0
      %v5337 = vadd.f32 %v4933, %v5336
      %5338 = vmatmul.f32.gmra.mxu0 %v5128
      %v5339 = vpop.f32.mrf.mxu0
      %v5340 = vadd.f32 %v4936, %v5339
      %5341 = vmatmul.f32.gmra.mxu0 %v5131
      %v5342 = vpop.f32.mrf.mxu0
      %v5343 = vadd.f32 %v4939, %v5342
      %5344 = vmatmul.f32.gmra.mxu0 %v5134
      %v5345 = vpop.f32.mrf.mxu0
      %v5346 = vadd.f32 %v4942, %v5345
      %5347 = vmatmul.f32.gmra.mxu0 %v5137
      %v5348 = vpop.f32.mrf.mxu0
      %v5349 = vadd.f32 %v4945, %v5348
      %5350 = vmatmul.f32.gmra.mxu0 %v5140
      %v5351 = vpop.f32.mrf.mxu0
      %v5352 = vadd.f32 %v4948, %v5351
      %5353 = vmatmul.f32.gmra.mxu0 %v5143
      %v5354 = vpop.f32.mrf.mxu0
      %v5355 = vadd.f32 %v4951, %v5354
      %5356 = vmatmul.f32.gmra.mxu0 %v5146
      %v5357 = vpop.f32.mrf.mxu0
      %v5358 = vadd.f32 %v4954, %v5357
      %5359 = vmatmul.f32.gmra.mxu0 %v5149
      %v5360 = vpop.f32.mrf.mxu0
      %v5361 = vadd.f32 %v4957, %v5360
      %5362 = vmatmul.f32.gmra.mxu0 %v5152
      %v5363 = vpop.f32.mrf.mxu0
      %v5364 = vadd.f32 %v4960, %v5363
      %5365 = vmatmul.f32.gmra.mxu0 %v5155
      %v5366 = vpop.f32.mrf.mxu0
      %v5367 = vadd.f32 %v4963, %v5366
      %5368 = vmatmul.f32.gmra.mxu0 %v5158
      %v5369 = vpop.f32.mrf.mxu0
      %v5370 = vadd.f32 %v4966, %v5369
      %5371 = vmatmul.f32.gmra.mxu0 %v5161
      %v5372 = vpop.f32.mrf.mxu0
      %v5373 = vadd.f32 %v4969, %v5372
      %5374 = vmatmul.f32.gmra.mxu0 %v5164
      %v5375 = vpop.f32.mrf.mxu0
      %v5376 = vadd.f32 %v4972, %v5375
      %5377 = vmatmul.f32.gmra.mxu0 %v5167
      %v5378 = vpop.f32.mrf.mxu0
      %v5379 = vadd.f32 %v4975, %v5378
      %5380 = vmatmul.f32.gmra.mxu0 %v5170
      %v5381 = vpop.f32.mrf.mxu0
      %v5382 = vadd.f32 %v4978, %v5381
      %5383 = vmatmul.f32.gmra.mxu0 %v5173
      %v5384 = vpop.f32.mrf.mxu0
      %v5385 = vadd.f32 %v4981, %v5384
      %5386 = vdwg.mxu0
      %s5387 = scalar_lea.vmem %s9, 8
      %v5388 = vld [vmem:[%s5387] sm:$0xf]
      %v5390 = vsel %vm495, %v4512, 0
      %v5393 = vsel %vm495, %v4513, 0
      %v5396 = vsel %vm495, %v4514, 0
      %v5399 = vsel %vm495, %v4515, 0
      %v5402 = vsel %vm495, %v4516, 0
      %v5405 = vsel %vm495, %v4517, 0
      %v5408 = vsel %vm495, %v4518, 0
      %v5411 = vsel %vm495, %v4519, 0
      %v5414 = vsel %vm495, %v4520, 0
      %v5417 = vsel %vm495, %v4521, 0
      %v5420 = vsel %vm495, %v4522, 0
      %v5423 = vsel %vm495, %v4523, 0
      %v5426 = vsel %vm495, %v4524, 0
      %v5429 = vsel %vm495, %v4525, 0
      %v5432 = vsel %vm495, %v4526, 0
      %v5435 = vsel %vm495, %v4527, 0
      %v5438 = vsel %vm495, %v4528, 0
      %v5441 = vsel %vm495, %v4529, 0
      %v5444 = vsel %vm495, %v4530, 0
      %v5447 = vsel %vm495, %v4531, 0
      %v5450 = vsel %vm495, %v4532, 0
      %v5453 = vsel %vm495, %v4533, 0
      %v5456 = vsel %vm495, %v4534, 0
      %v5459 = vsel %vm495, %v4535, 0
      %v5462 = vsel %vm495, %v4536, 0
      %v5465 = vsel %vm495, %v4537, 0
      %v5468 = vsel %vm495, %v4538, 0
      %v5471 = vsel %vm495, %v4539, 0
      %v5474 = vsel %vm495, %v4540, 0
      %v5477 = vsel %vm495, %v4541, 0
      %v5480 = vsel %vm495, %v4542, 0
      %v5483 = vsel %vm495, %v4543, 0
      %v5486 = vsel %vm495, %v4544, 0
      %v5489 = vsel %vm495, %v4545, 0
      %v5492 = vsel %vm495, %v4546, 0
      %v5495 = vsel %vm495, %v4547, 0
      %v5498 = vsel %vm495, %v4548, 0
      %v5501 = vsel %vm495, %v4549, 0
      %v5504 = vsel %vm495, %v4550, 0
      %v5507 = vsel %vm495, %v4551, 0
      %v5510 = vsel %vm495, %v4552, 0
      %v5513 = vsel %vm495, %v4553, 0
      %v5516 = vsel %vm495, %v4554, 0
      %v5519 = vsel %vm495, %v4555, 0
      %v5522 = vsel %vm495, %v4556, 0
      %v5525 = vsel %vm495, %v4557, 0
      %v5528 = vsel %vm495, %v4558, 0
      %v5531 = vsel %vm495, %v4559, 0
      %v5534 = vsel %vm495, %v4560, 0
      %v5537 = vsel %vm495, %v4561, 0
      %v5540 = vsel %vm495, %v4562, 0
      %v5543 = vsel %vm495, %v4563, 0
      %v5546 = vsel %vm495, %v4564, 0
      %v5549 = vsel %vm495, %v4565, 0
      %v5552 = vsel %vm495, %v4566, 0
      %v5555 = vsel %vm495, %v4567, 0
      %v5558 = vsel %vm495, %v4568, 0
      %v5561 = vsel %vm495, %v4569, 0
      %v5564 = vsel %vm495, %v4570, 0
      %v5567 = vsel %vm495, %v4571, 0
      %v5570 = vsel %vm495, %v4572, 0
      %v5573 = vsel %vm495, %v4573, 0
      %v5576 = vsel %vm495, %v4574, 0
      %v5579 = vsel %vm495, %v4575, 0
      %v5582 = vsel %vm2331, %v5388, 0
      %5584 = vmatpush.msra.mxu0 0.0
      %5585 = vmatpush.msra.mxu0 0.0
      %5586 = vmatpush.msra.mxu0 0.0
      %5587 = vmatpush.msra.mxu0 0.0
      %5588 = vmatpush.msra.mxu0 0.0
      %5589 = vmatpush.msra.mxu0 0.0
      %5590 = vmatpush.msra.mxu0 0.0
      %5591 = vmatpush.msra.mxu0 0.0
      %5592 = vmatpush.msra.mxu0 0.0
      %5593 = vmatpush.msra.mxu0 0.0
      %5594 = vmatpush.msra.mxu0 0.0
      %5595 = vmatpush.msra.mxu0 0.0
      %5596 = vmatpush.msra.mxu0 0.0
      %5597 = vmatpush.msra.mxu0 0.0
      %5598 = vmatpush.msra.mxu0 0.0
      %5599 = vmatpush.msra.mxu0 %v5582
      %5600 = vmatmul.f32.gmra.mxu0 %v5390
      %v5601 = vpop.f32.mrf.mxu0
      %v5602 = vadd.f32 0.0, %v5601
      %5603 = vmatmul.f32.gmra.mxu0 %v5393
      %v5604 = vpop.f32.mrf.mxu0
      %v5605 = vadd.f32 0.0, %v5604
      %5606 = vmatmul.f32.gmra.mxu0 %v5396
      %v5607 = vpop.f32.mrf.mxu0
      %v5608 = vadd.f32 0.0, %v5607
      %5609 = vmatmul.f32.gmra.mxu0 %v5399
      %v5610 = vpop.f32.mrf.mxu0
      %v5611 = vadd.f32 0.0, %v5610
      %5612 = vmatmul.f32.gmra.mxu0 %v5402
      %v5613 = vpop.f32.mrf.mxu0
      %v5614 = vadd.f32 0.0, %v5613
      %5615 = vmatmul.f32.gmra.mxu0 %v5405
      %v5616 = vpop.f32.mrf.mxu0
      %v5617 = vadd.f32 0.0, %v5616
      %5618 = vmatmul.f32.gmra.mxu0 %v5408
      %v5619 = vpop.f32.mrf.mxu0
      %v5620 = vadd.f32 0.0, %v5619
      %5621 = vmatmul.f32.gmra.mxu0 %v5411
      %v5622 = vpop.f32.mrf.mxu0
      %v5623 = vadd.f32 0.0, %v5622
      %5624 = vmatmul.f32.gmra.mxu0 %v5414
      %v5625 = vpop.f32.mrf.mxu0
      %v5626 = vadd.f32 0.0, %v5625
      %5627 = vmatmul.f32.gmra.mxu0 %v5417
      %v5628 = vpop.f32.mrf.mxu0
      %v5629 = vadd.f32 0.0, %v5628
      %5630 = vmatmul.f32.gmra.mxu0 %v5420
      %v5631 = vpop.f32.mrf.mxu0
      %v5632 = vadd.f32 0.0, %v5631
      %5633 = vmatmul.f32.gmra.mxu0 %v5423
      %v5634 = vpop.f32.mrf.mxu0
      %v5635 = vadd.f32 0.0, %v5634
      %5636 = vmatmul.f32.gmra.mxu0 %v5426
      %v5637 = vpop.f32.mrf.mxu0
      %v5638 = vadd.f32 0.0, %v5637
      %5639 = vmatmul.f32.gmra.mxu0 %v5429
      %v5640 = vpop.f32.mrf.mxu0
      %v5641 = vadd.f32 0.0, %v5640
      %5642 = vmatmul.f32.gmra.mxu0 %v5432
      %v5643 = vpop.f32.mrf.mxu0
      %v5644 = vadd.f32 0.0, %v5643
      %5645 = vmatmul.f32.gmra.mxu0 %v5435
      %v5646 = vpop.f32.mrf.mxu0
      %v5647 = vadd.f32 0.0, %v5646
      %5648 = vmatmul.f32.gmra.mxu0 %v5438
      %v5649 = vpop.f32.mrf.mxu0
      %v5650 = vadd.f32 0.0, %v5649
      %5651 = vmatmul.f32.gmra.mxu0 %v5441
      %v5652 = vpop.f32.mrf.mxu0
      %v5653 = vadd.f32 0.0, %v5652
      %5654 = vmatmul.f32.gmra.mxu0 %v5444
      %v5655 = vpop.f32.mrf.mxu0
      %v5656 = vadd.f32 0.0, %v5655
      %5657 = vmatmul.f32.gmra.mxu0 %v5447
      %v5658 = vpop.f32.mrf.mxu0
      %v5659 = vadd.f32 0.0, %v5658
      %5660 = vmatmul.f32.gmra.mxu0 %v5450
      %v5661 = vpop.f32.mrf.mxu0
      %v5662 = vadd.f32 0.0, %v5661
      %5663 = vmatmul.f32.gmra.mxu0 %v5453
      %v5664 = vpop.f32.mrf.mxu0
      %v5665 = vadd.f32 0.0, %v5664
      %5666 = vmatmul.f32.gmra.mxu0 %v5456
      %v5667 = vpop.f32.mrf.mxu0
      %v5668 = vadd.f32 0.0, %v5667
      %5669 = vmatmul.f32.gmra.mxu0 %v5459
      %v5670 = vpop.f32.mrf.mxu0
      %v5671 = vadd.f32 0.0, %v5670
      %5672 = vmatmul.f32.gmra.mxu0 %v5462
      %v5673 = vpop.f32.mrf.mxu0
      %v5674 = vadd.f32 0.0, %v5673
      %5675 = vmatmul.f32.gmra.mxu0 %v5465
      %v5676 = vpop.f32.mrf.mxu0
      %v5677 = vadd.f32 0.0, %v5676
      %5678 = vmatmul.f32.gmra.mxu0 %v5468
      %v5679 = vpop.f32.mrf.mxu0
      %v5680 = vadd.f32 0.0, %v5679
      %5681 = vmatmul.f32.gmra.mxu0 %v5471
      %v5682 = vpop.f32.mrf.mxu0
      %v5683 = vadd.f32 0.0, %v5682
      %5684 = vmatmul.f32.gmra.mxu0 %v5474
      %v5685 = vpop.f32.mrf.mxu0
      %v5686 = vadd.f32 0.0, %v5685
      %5687 = vmatmul.f32.gmra.mxu0 %v5477
      %v5688 = vpop.f32.mrf.mxu0
      %v5689 = vadd.f32 0.0, %v5688
      %5690 = vmatmul.f32.gmra.mxu0 %v5480
      %v5691 = vpop.f32.mrf.mxu0
      %v5692 = vadd.f32 0.0, %v5691
      %5693 = vmatmul.f32.gmra.mxu0 %v5483
      %v5694 = vpop.f32.mrf.mxu0
      %v5695 = vadd.f32 0.0, %v5694
      %5696 = vmatmul.f32.gmra.mxu0 %v5486
      %v5697 = vpop.f32.mrf.mxu0
      %v5698 = vadd.f32 0.0, %v5697
      %5699 = vmatmul.f32.gmra.mxu0 %v5489
      %v5700 = vpop.f32.mrf.mxu0
      %v5701 = vadd.f32 0.0, %v5700
      %5702 = vmatmul.f32.gmra.mxu0 %v5492
      %v5703 = vpop.f32.mrf.mxu0
      %v5704 = vadd.f32 0.0, %v5703
      %5705 = vmatmul.f32.gmra.mxu0 %v5495
      %v5706 = vpop.f32.mrf.mxu0
      %v5707 = vadd.f32 0.0, %v5706
      %5708 = vmatmul.f32.gmra.mxu0 %v5498
      %v5709 = vpop.f32.mrf.mxu0
      %v5710 = vadd.f32 0.0, %v5709
      %5711 = vmatmul.f32.gmra.mxu0 %v5501
      %v5712 = vpop.f32.mrf.mxu0
      %v5713 = vadd.f32 0.0, %v5712
      %5714 = vmatmul.f32.gmra.mxu0 %v5504
      %v5715 = vpop.f32.mrf.mxu0
      %v5716 = vadd.f32 0.0, %v5715
      %5717 = vmatmul.f32.gmra.mxu0 %v5507
      %v5718 = vpop.f32.mrf.mxu0
      %v5719 = vadd.f32 0.0, %v5718
      %5720 = vmatmul.f32.gmra.mxu0 %v5510
      %v5721 = vpop.f32.mrf.mxu0
      %v5722 = vadd.f32 0.0, %v5721
      %5723 = vmatmul.f32.gmra.mxu0 %v5513
      %v5724 = vpop.f32.mrf.mxu0
      %v5725 = vadd.f32 0.0, %v5724
      %5726 = vmatmul.f32.gmra.mxu0 %v5516
      %v5727 = vpop.f32.mrf.mxu0
      %v5728 = vadd.f32 0.0, %v5727
      %5729 = vmatmul.f32.gmra.mxu0 %v5519
      %v5730 = vpop.f32.mrf.mxu0
      %v5731 = vadd.f32 0.0, %v5730
      %5732 = vmatmul.f32.gmra.mxu0 %v5522
      %v5733 = vpop.f32.mrf.mxu0
      %v5734 = vadd.f32 0.0, %v5733
      %5735 = vmatmul.f32.gmra.mxu0 %v5525
      %v5736 = vpop.f32.mrf.mxu0
      %v5737 = vadd.f32 0.0, %v5736
      %5738 = vmatmul.f32.gmra.mxu0 %v5528
      %v5739 = vpop.f32.mrf.mxu0
      %v5740 = vadd.f32 0.0, %v5739
      %5741 = vmatmul.f32.gmra.mxu0 %v5531
      %v5742 = vpop.f32.mrf.mxu0
      %v5743 = vadd.f32 0.0, %v5742
      %5744 = vmatmul.f32.gmra.mxu0 %v5534
      %v5745 = vpop.f32.mrf.mxu0
      %v5746 = vadd.f32 0.0, %v5745
      %5747 = vmatmul.f32.gmra.mxu0 %v5537
      %v5748 = vpop.f32.mrf.mxu0
      %v5749 = vadd.f32 0.0, %v5748
      %5750 = vmatmul.f32.gmra.mxu0 %v5540
      %v5751 = vpop.f32.mrf.mxu0
      %v5752 = vadd.f32 0.0, %v5751
      %5753 = vmatmul.f32.gmra.mxu0 %v5543
      %v5754 = vpop.f32.mrf.mxu0
      %v5755 = vadd.f32 0.0, %v5754
      %5756 = vmatmul.f32.gmra.mxu0 %v5546
      %v5757 = vpop.f32.mrf.mxu0
      %v5758 = vadd.f32 0.0, %v5757
      %5759 = vmatmul.f32.gmra.mxu0 %v5549
      %v5760 = vpop.f32.mrf.mxu0
      %v5761 = vadd.f32 0.0, %v5760
      %5762 = vmatmul.f32.gmra.mxu0 %v5552
      %v5763 = vpop.f32.mrf.mxu0
      %v5764 = vadd.f32 0.0, %v5763
      %5765 = vmatmul.f32.gmra.mxu0 %v5555
      %v5766 = vpop.f32.mrf.mxu0
      %v5767 = vadd.f32 0.0, %v5766
      %5768 = vmatmul.f32.gmra.mxu0 %v5558
      %v5769 = vpop.f32.mrf.mxu0
      %v5770 = vadd.f32 0.0, %v5769
      %5771 = vmatmul.f32.gmra.mxu0 %v5561
      %v5772 = vpop.f32.mrf.mxu0
      %v5773 = vadd.f32 0.0, %v5772
      %5774 = vmatmul.f32.gmra.mxu0 %v5564
      %v5775 = vpop.f32.mrf.mxu0
      %v5776 = vadd.f32 0.0, %v5775
      %5777 = vmatmul.f32.gmra.mxu0 %v5567
      %v5778 = vpop.f32.mrf.mxu0
      %v5779 = vadd.f32 0.0, %v5778
      %5780 = vmatmul.f32.gmra.mxu0 %v5570
      %v5781 = vpop.f32.mrf.mxu0
      %v5782 = vadd.f32 0.0, %v5781
      %5783 = vmatmul.f32.gmra.mxu0 %v5573
      %v5784 = vpop.f32.mrf.mxu0
      %v5785 = vadd.f32 0.0, %v5784
      %5786 = vmatmul.f32.gmra.mxu0 %v5576
      %v5787 = vpop.f32.mrf.mxu0
      %v5788 = vadd.f32 0.0, %v5787
      %5789 = vmatmul.f32.gmra.mxu0 %v5579
      %v5790 = vpop.f32.mrf.mxu0
      %v5791 = vadd.f32 0.0, %v5790
      %5792 = vdwg.mxu0
      %v5793 = vadd.f32 %v5196, %v5602
      %v5794 = vadd.f32 %v5199, %v5605
      %v5795 = vadd.f32 %v5202, %v5608
      %v5796 = vadd.f32 %v5205, %v5611
      %v5797 = vadd.f32 %v5208, %v5614
      %v5798 = vadd.f32 %v5211, %v5617
      %v5799 = vadd.f32 %v5214, %v5620
      %v5800 = vadd.f32 %v5217, %v5623
      %v5801 = vadd.f32 %v5220, %v5626
      %v5802 = vadd.f32 %v5223, %v5629
      %v5803 = vadd.f32 %v5226, %v5632
      %v5804 = vadd.f32 %v5229, %v5635
      %v5805 = vadd.f32 %v5232, %v5638
      %v5806 = vadd.f32 %v5235, %v5641
      %v5807 = vadd.f32 %v5238, %v5644
      %v5808 = vadd.f32 %v5241, %v5647
      %v5809 = vadd.f32 %v5244, %v5650
      %v5810 = vadd.f32 %v5247, %v5653
      %v5811 = vadd.f32 %v5250, %v5656
      %v5812 = vadd.f32 %v5253, %v5659
      %v5813 = vadd.f32 %v5256, %v5662
      %v5814 = vadd.f32 %v5259, %v5665
      %v5815 = vadd.f32 %v5262, %v5668
      %v5816 = vadd.f32 %v5265, %v5671
      %v5817 = vadd.f32 %v5268, %v5674
      %v5818 = vadd.f32 %v5271, %v5677
      %v5819 = vadd.f32 %v5274, %v5680
      %v5820 = vadd.f32 %v5277, %v5683
      %v5821 = vadd.f32 %v5280, %v5686
      %v5822 = vadd.f32 %v5283, %v5689
      %v5823 = vadd.f32 %v5286, %v5692
      %v5824 = vadd.f32 %v5289, %v5695
      %v5825 = vadd.f32 %v5292, %v5698
      %v5826 = vadd.f32 %v5295, %v5701
      %v5827 = vadd.f32 %v5298, %v5704
      %v5828 = vadd.f32 %v5301, %v5707
      %v5829 = vadd.f32 %v5304, %v5710
      %v5830 = vadd.f32 %v5307, %v5713
      %v5831 = vadd.f32 %v5310, %v5716
      %v5832 = vadd.f32 %v5313, %v5719
      %v5833 = vadd.f32 %v5316, %v5722
      %v5834 = vadd.f32 %v5319, %v5725
      %v5835 = vadd.f32 %v5322, %v5728
      %v5836 = vadd.f32 %v5325, %v5731
      %v5837 = vadd.f32 %v5328, %v5734
      %v5838 = vadd.f32 %v5331, %v5737
      %v5839 = vadd.f32 %v5334, %v5740
      %v5840 = vadd.f32 %v5337, %v5743
      %v5841 = vadd.f32 %v5340, %v5746
      %v5842 = vadd.f32 %v5343, %v5749
      %v5843 = vadd.f32 %v5346, %v5752
      %v5844 = vadd.f32 %v5349, %v5755
      %v5845 = vadd.f32 %v5352, %v5758
      %v5846 = vadd.f32 %v5355, %v5761
      %v5847 = vadd.f32 %v5358, %v5764
      %v5848 = vadd.f32 %v5361, %v5767
      %v5849 = vadd.f32 %v5364, %v5770
      %v5850 = vadd.f32 %v5367, %v5773
      %v5851 = vadd.f32 %v5370, %v5776
      %v5852 = vadd.f32 %v5373, %v5779
      %v5853 = vadd.f32 %v5376, %v5782
      %v5854 = vadd.f32 %v5379, %v5785
      %v5855 = vadd.f32 %v5382, %v5788
      %v5856 = vadd.f32 %v5385, %v5791
      %v5857 = vld [vmem:[%s10] sm:$0x1]
      %v5859 = vperm.slane %v5857, 0
      %v5861 = vadd.f32 %v5793, %v5859
      %v5862 = vadd.f32 %v5794, %v5859
      %v5863 = vadd.f32 %v5795, %v5859
      %v5864 = vadd.f32 %v5796, %v5859
      %v5865 = vadd.f32 %v5797, %v5859
      %v5866 = vadd.f32 %v5798, %v5859
      %v5867 = vadd.f32 %v5799, %v5859
      %v5868 = vadd.f32 %v5800, %v5859
      %v5869 = vadd.f32 %v5801, %v5859
      %v5870 = vadd.f32 %v5802, %v5859
      %v5871 = vadd.f32 %v5803, %v5859
      %v5872 = vadd.f32 %v5804, %v5859
      %v5873 = vadd.f32 %v5805, %v5859
      %v5874 = vadd.f32 %v5806, %v5859
      %v5875 = vadd.f32 %v5807, %v5859
      %v5876 = vadd.f32 %v5808, %v5859
      %v5877 = vadd.f32 %v5809, %v5859
      %v5878 = vadd.f32 %v5810, %v5859
      %v5879 = vadd.f32 %v5811, %v5859
      %v5880 = vadd.f32 %v5812, %v5859
      %v5881 = vadd.f32 %v5813, %v5859
      %v5882 = vadd.f32 %v5814, %v5859
      %v5883 = vadd.f32 %v5815, %v5859
      %v5884 = vadd.f32 %v5816, %v5859
      %v5885 = vadd.f32 %v5817, %v5859
      %v5886 = vadd.f32 %v5818, %v5859
      %v5887 = vadd.f32 %v5819, %v5859
      %v5888 = vadd.f32 %v5820, %v5859
      %v5889 = vadd.f32 %v5821, %v5859
      %v5890 = vadd.f32 %v5822, %v5859
      %v5891 = vadd.f32 %v5823, %v5859
      %v5892 = vadd.f32 %v5824, %v5859
      %v5893 = vadd.f32 %v5825, %v5859
      %v5894 = vadd.f32 %v5826, %v5859
      %v5895 = vadd.f32 %v5827, %v5859
      %v5896 = vadd.f32 %v5828, %v5859
      %v5897 = vadd.f32 %v5829, %v5859
      %v5898 = vadd.f32 %v5830, %v5859
      %v5899 = vadd.f32 %v5831, %v5859
      %v5900 = vadd.f32 %v5832, %v5859
      %v5901 = vadd.f32 %v5833, %v5859
      %v5902 = vadd.f32 %v5834, %v5859
      %v5903 = vadd.f32 %v5835, %v5859
      %v5904 = vadd.f32 %v5836, %v5859
      %v5905 = vadd.f32 %v5837, %v5859
      %v5906 = vadd.f32 %v5838, %v5859
      %v5907 = vadd.f32 %v5839, %v5859
      %v5908 = vadd.f32 %v5840, %v5859
      %v5909 = vadd.f32 %v5841, %v5859
      %v5910 = vadd.f32 %v5842, %v5859
      %v5911 = vadd.f32 %v5843, %v5859
      %v5912 = vadd.f32 %v5844, %v5859
      %v5913 = vadd.f32 %v5845, %v5859
      %v5914 = vadd.f32 %v5846, %v5859
      %v5915 = vadd.f32 %v5847, %v5859
      %v5916 = vadd.f32 %v5848, %v5859
      %v5917 = vadd.f32 %v5849, %v5859
      %v5918 = vadd.f32 %v5850, %v5859
      %v5919 = vadd.f32 %v5851, %v5859
      %v5920 = vadd.f32 %v5852, %v5859
      %v5921 = vadd.f32 %v5853, %v5859
      %v5922 = vadd.f32 %v5854, %v5859
      %v5923 = vadd.f32 %v5855, %v5859
      %v5924 = vadd.f32 %v5856, %v5859
      %v5925 = vadd.f32 %v5861, %v3422
      %v5926 = vadd.f32 %v5862, %v3423
      %v5927 = vadd.f32 %v5863, %v3424
      %v5928 = vadd.f32 %v5864, %v3425
      %v5929 = vadd.f32 %v5865, %v3426
      %v5930 = vadd.f32 %v5866, %v3427
      %v5931 = vadd.f32 %v5867, %v3428
      %v5932 = vadd.f32 %v5868, %v3429
      %v5933 = vadd.f32 %v5869, %v3430
      %v5934 = vadd.f32 %v5870, %v3431
      %v5935 = vadd.f32 %v5871, %v3432
      %v5936 = vadd.f32 %v5872, %v3433
      %v5937 = vadd.f32 %v5873, %v3434
      %v5938 = vadd.f32 %v5874, %v3435
      %v5939 = vadd.f32 %v5875, %v3436
      %v5940 = vadd.f32 %v5876, %v3437
      %v5941 = vadd.f32 %v5877, %v3438
      %v5942 = vadd.f32 %v5878, %v3439
      %v5943 = vadd.f32 %v5879, %v3440
      %v5944 = vadd.f32 %v5880, %v3441
      %v5945 = vadd.f32 %v5881, %v3442
      %v5946 = vadd.f32 %v5882, %v3443
      %v5947 = vadd.f32 %v5883, %v3444
      %v5948 = vadd.f32 %v5884, %v3445
      %v5949 = vadd.f32 %v5885, %v3446
      %v5950 = vadd.f32 %v5886, %v3447
      %v5951 = vadd.f32 %v5887, %v3448
      %v5952 = vadd.f32 %v5888, %v3449
      %v5953 = vadd.f32 %v5889, %v3450
      %v5954 = vadd.f32 %v5890, %v3451
      %v5955 = vadd.f32 %v5891, %v3452
      %v5956 = vadd.f32 %v5892, %v3453
      %v5957 = vadd.f32 %v5893, %v3454
      %v5958 = vadd.f32 %v5894, %v3455
      %v5959 = vadd.f32 %v5895, %v3456
      %v5960 = vadd.f32 %v5896, %v3457
      %v5961 = vadd.f32 %v5897, %v3458
      %v5962 = vadd.f32 %v5898, %v3459
      %v5963 = vadd.f32 %v5899, %v3460
      %v5964 = vadd.f32 %v5900, %v3461
      %v5965 = vadd.f32 %v5901, %v3462
      %v5966 = vadd.f32 %v5902, %v3463
      %v5967 = vadd.f32 %v5903, %v3464
      %v5968 = vadd.f32 %v5904, %v3465
      %v5969 = vadd.f32 %v5905, %v3466
      %v5970 = vadd.f32 %v5906, %v3467
      %v5971 = vadd.f32 %v5907, %v3468
      %v5972 = vadd.f32 %v5908, %v3469
      %v5973 = vadd.f32 %v5909, %v3470
      %v5974 = vadd.f32 %v5910, %v3471
      %v5975 = vadd.f32 %v5911, %v3472
      %v5976 = vadd.f32 %v5912, %v3473
      %v5977 = vadd.f32 %v5913, %v3474
      %v5978 = vadd.f32 %v5914, %v3475
      %v5979 = vadd.f32 %v5915, %v3476
      %v5980 = vadd.f32 %v5916, %v3477
      %v5981 = vadd.f32 %v5917, %v3478
      %v5982 = vadd.f32 %v5918, %v3479
      %v5983 = vadd.f32 %v5919, %v3480
      %v5984 = vadd.f32 %v5920, %v3481
      %v5985 = vadd.f32 %v5921, %v3482
      %v5986 = vadd.f32 %v5922, %v3483
      %v5987 = vadd.f32 %v5923, %v3484
      %v5988 = vadd.f32 %v5924, %v3485
      %v5989 = vmax.f32 %v5925, 0.0
      %v5990 = vmax.f32 %v5926, 0.0
      %v5991 = vmax.f32 %v5927, 0.0
      %v5992 = vmax.f32 %v5928, 0.0
      %v5993 = vmax.f32 %v5929, 0.0
      %v5994 = vmax.f32 %v5930, 0.0
      %v5995 = vmax.f32 %v5931, 0.0
      %v5996 = vmax.f32 %v5932, 0.0
      %v5997 = vmax.f32 %v5933, 0.0
      %v5998 = vmax.f32 %v5934, 0.0
      %v5999 = vmax.f32 %v5935, 0.0
      %v6000 = vmax.f32 %v5936, 0.0
      %v6001 = vmax.f32 %v5937, 0.0
      %v6002 = vmax.f32 %v5938, 0.0
      %v6003 = vmax.f32 %v5939, 0.0
      %v6004 = vmax.f32 %v5940, 0.0
      %v6005 = vmax.f32 %v5941, 0.0
      %v6006 = vmax.f32 %v5942, 0.0
      %v6007 = vmax.f32 %v5943, 0.0
      %v6008 = vmax.f32 %v5944, 0.0
      %v6009 = vmax.f32 %v5945, 0.0
      %v6010 = vmax.f32 %v5946, 0.0
      %v6011 = vmax.f32 %v5947, 0.0
      %v6012 = vmax.f32 %v5948, 0.0
      %v6013 = vmax.f32 %v5949, 0.0
      %v6014 = vmax.f32 %v5950, 0.0
      %v6015 = vmax.f32 %v5951, 0.0
      %v6016 = vmax.f32 %v5952, 0.0
      %v6017 = vmax.f32 %v5953, 0.0
      %v6018 = vmax.f32 %v5954, 0.0
      %v6019 = vmax.f32 %v5955, 0.0
      %v6020 = vmax.f32 %v5956, 0.0
      %v6021 = vmax.f32 %v5957, 0.0
      %v6022 = vmax.f32 %v5958, 0.0
      %v6023 = vmax.f32 %v5959, 0.0
      %v6024 = vmax.f32 %v5960, 0.0
      %v6025 = vmax.f32 %v5961, 0.0
      %v6026 = vmax.f32 %v5962, 0.0
      %v6027 = vmax.f32 %v5963, 0.0
      %v6028 = vmax.f32 %v5964, 0.0
      %v6029 = vmax.f32 %v5965, 0.0
      %v6030 = vmax.f32 %v5966, 0.0
      %v6031 = vmax.f32 %v5967, 0.0
      %v6032 = vmax.f32 %v5968, 0.0
      %v6033 = vmax.f32 %v5969, 0.0
      %v6034 = vmax.f32 %v5970, 0.0
      %v6035 = vmax.f32 %v5971, 0.0
      %v6036 = vmax.f32 %v5972, 0.0
      %v6037 = vmax.f32 %v5973, 0.0
      %v6038 = vmax.f32 %v5974, 0.0
      %v6039 = vmax.f32 %v5975, 0.0
      %v6040 = vmax.f32 %v5976, 0.0
      %v6041 = vmax.f32 %v5977, 0.0
      %v6042 = vmax.f32 %v5978, 0.0
      %v6043 = vmax.f32 %v5979, 0.0
      %v6044 = vmax.f32 %v5980, 0.0
      %v6045 = vmax.f32 %v5981, 0.0
      %v6046 = vmax.f32 %v5982, 0.0
      %v6047 = vmax.f32 %v5983, 0.0
      %v6048 = vmax.f32 %v5984, 0.0
      %v6049 = vmax.f32 %v5985, 0.0
      %v6050 = vmax.f32 %v5986, 0.0
      %v6051 = vmax.f32 %v5987, 0.0
      %v6052 = vmax.f32 %v5988, 0.0
      %6053 = vst.msk [vmem:[#allocation2 + $0x40] sm:$0xff] %vm495, %v5989
      %6054 = vst.msk [vmem:[#allocation2 + $0x48] sm:$0xff] %vm495, %v5990
      %6055 = vst.msk [vmem:[#allocation2 + $0x50] sm:$0xff] %vm495, %v5991
      %6056 = vst.msk [vmem:[#allocation2 + $0x58] sm:$0xff] %vm495, %v5992
      %6057 = vst.msk [vmem:[#allocation2 + $0x60] sm:$0xff] %vm495, %v5993
      %6058 = vst.msk [vmem:[#allocation2 + $0x68] sm:$0xff] %vm495, %v5994
      %6059 = vst.msk [vmem:[#allocation2 + $0x70] sm:$0xff] %vm495, %v5995
      %6060 = vst.msk [vmem:[#allocation2 + $0x78] sm:$0xff] %vm495, %v5996
      %6061 = vst.msk [vmem:[#allocation2 + $0x80] sm:$0xff] %vm495, %v5997
      %6062 = vst.msk [vmem:[#allocation2 + $0x88] sm:$0xff] %vm495, %v5998
      %6063 = vst.msk [vmem:[#allocation2 + $0x90] sm:$0xff] %vm495, %v5999
      %6064 = vst.msk [vmem:[#allocation2 + $0x98] sm:$0xff] %vm495, %v6000
      %6065 = vst.msk [vmem:[#allocation2 + $0xa0] sm:$0xff] %vm495, %v6001
      %6066 = vst.msk [vmem:[#allocation2 + $0xa8] sm:$0xff] %vm495, %v6002
      %6067 = vst.msk [vmem:[#allocation2 + $0xb0] sm:$0xff] %vm495, %v6003
      %6068 = vst.msk [vmem:[#allocation2 + $0xb8] sm:$0xff] %vm495, %v6004
      %6069 = vst.msk [vmem:[#allocation2 + $0xc0] sm:$0xff] %vm495, %v6005
      %6070 = vst.msk [vmem:[#allocation2 + $0xc8] sm:$0xff] %vm495, %v6006
      %6071 = vst.msk [vmem:[#allocation2 + $0xd0] sm:$0xff] %vm495, %v6007
      %6072 = vst.msk [vmem:[#allocation2 + $0xd8] sm:$0xff] %vm495, %v6008
      %6073 = vst.msk [vmem:[#allocation2 + $0xe0] sm:$0xff] %vm495, %v6009
      %6074 = vst.msk [vmem:[#allocation2 + $0xe8] sm:$0xff] %vm495, %v6010
      %6075 = vst.msk [vmem:[#allocation2 + $0xf0] sm:$0xff] %vm495, %v6011
      %6076 = vst.msk [vmem:[#allocation2 + $0xf8] sm:$0xff] %vm495, %v6012
      %6077 = vst.msk [vmem:[#allocation2 + $0x100] sm:$0xff] %vm495, %v6013
      %6078 = vst.msk [vmem:[#allocation2 + $0x108] sm:$0xff] %vm495, %v6014
      %6079 = vst.msk [vmem:[#allocation2 + $0x110] sm:$0xff] %vm495, %v6015
      %6080 = vst.msk [vmem:[#allocation2 + $0x118] sm:$0xff] %vm495, %v6016
      %6081 = vst.msk [vmem:[#allocation2 + $0x120] sm:$0xff] %vm495, %v6017
      %6082 = vst.msk [vmem:[#allocation2 + $0x128] sm:$0xff] %vm495, %v6018
      %6083 = vst.msk [vmem:[#allocation2 + $0x130] sm:$0xff] %vm495, %v6019
      %6084 = vst.msk [vmem:[#allocation2 + $0x138] sm:$0xff] %vm495, %v6020
      %6085 = vst.msk [vmem:[#allocation2 + $0x140] sm:$0xff] %vm495, %v6021
      %6086 = vst.msk [vmem:[#allocation2 + $0x148] sm:$0xff] %vm495, %v6022
      %6087 = vst.msk [vmem:[#allocation2 + $0x150] sm:$0xff] %vm495, %v6023
      %6088 = vst.msk [vmem:[#allocation2 + $0x158] sm:$0xff] %vm495, %v6024
      %6089 = vst.msk [vmem:[#allocation2 + $0x160] sm:$0xff] %vm495, %v6025
      %6090 = vst.msk [vmem:[#allocation2 + $0x168] sm:$0xff] %vm495, %v6026
      %6091 = vst.msk [vmem:[#allocation2 + $0x170] sm:$0xff] %vm495, %v6027
      %6092 = vst.msk [vmem:[#allocation2 + $0x178] sm:$0xff] %vm495, %v6028
      %6093 = vst.msk [vmem:[#allocation2 + $0x180] sm:$0xff] %vm495, %v6029
      %6094 = vst.msk [vmem:[#allocation2 + $0x188] sm:$0xff] %vm495, %v6030
      %6095 = vst.msk [vmem:[#allocation2 + $0x190] sm:$0xff] %vm495, %v6031
      %6096 = vst.msk [vmem:[#allocation2 + $0x198] sm:$0xff] %vm495, %v6032
      %6097 = vst.msk [vmem:[#allocation2 + $0x1a0] sm:$0xff] %vm495, %v6033
      %6098 = vst.msk [vmem:[#allocation2 + $0x1a8] sm:$0xff] %vm495, %v6034
      %6099 = vst.msk [vmem:[#allocation2 + $0x1b0] sm:$0xff] %vm495, %v6035
      %6100 = vst.msk [vmem:[#allocation2 + $0x1b8] sm:$0xff] %vm495, %v6036
      %6101 = vst.msk [vmem:[#allocation2 + $0x1c0] sm:$0xff] %vm495, %v6037
      %6102 = vst.msk [vmem:[#allocation2 + $0x1c8] sm:$0xff] %vm495, %v6038
      %6103 = vst.msk [vmem:[#allocation2 + $0x1d0] sm:$0xff] %vm495, %v6039
      %6104 = vst.msk [vmem:[#allocation2 + $0x1d8] sm:$0xff] %vm495, %v6040
      %6105 = vst.msk [vmem:[#allocation2 + $0x1e0] sm:$0xff] %vm495, %v6041
      %6106 = vst.msk [vmem:[#allocation2 + $0x1e8] sm:$0xff] %vm495, %v6042
      %6107 = vst.msk [vmem:[#allocation2 + $0x1f0] sm:$0xff] %vm495, %v6043
      %6108 = vst.msk [vmem:[#allocation2 + $0x1f8] sm:$0xff] %vm495, %v6044
      %6109 = vst.msk [vmem:[#allocation2 + $0x200] sm:$0xff] %vm495, %v6045
      %6110 = vst.msk [vmem:[#allocation2 + $0x208] sm:$0xff] %vm495, %v6046
      %6111 = vst.msk [vmem:[#allocation2 + $0x210] sm:$0xff] %vm495, %v6047
      %6112 = vst.msk [vmem:[#allocation2 + $0x218] sm:$0xff] %vm495, %v6048
      %6113 = vst.msk [vmem:[#allocation2 + $0x220] sm:$0xff] %vm495, %v6049
      %6114 = vst.msk [vmem:[#allocation2 + $0x228] sm:$0xff] %vm495, %v6050
      %6115 = vst.msk [vmem:[#allocation2 + $0x230] sm:$0xff] %vm495, %v6051
      %6116 = vst.msk [vmem:[#allocation2 + $0x238] sm:$0xff] %vm495, %v6052
      %v6117 = vld [vmem:[#allocation2] sm:$0xff]
      %v6118 = vld [vmem:[#allocation2 + $0x8] sm:$0xff]
      %v6119 = vld [vmem:[#allocation2 + $0x10] sm:$0xff]
      %v6120 = vld [vmem:[#allocation2 + $0x18] sm:$0xff]
      %v6121 = vld [vmem:[#allocation2 + $0x20] sm:$0xff]
      %v6122 = vld [vmem:[#allocation2 + $0x28] sm:$0xff]
      %v6123 = vld [vmem:[#allocation2 + $0x30] sm:$0xff]
      %v6124 = vld [vmem:[#allocation2 + $0x38] sm:$0xff]
      %v6125 = vld [vmem:[#allocation2 + $0x40] sm:$0xff]
      %v6126 = vld [vmem:[#allocation2 + $0x48] sm:$0xff]
      %v6127 = vld [vmem:[#allocation2 + $0x50] sm:$0xff]
      %v6128 = vld [vmem:[#allocation2 + $0x58] sm:$0xff]
      %v6129 = vld [vmem:[#allocation2 + $0x60] sm:$0xff]
      %v6130 = vld [vmem:[#allocation2 + $0x68] sm:$0xff]
      %v6131 = vld [vmem:[#allocation2 + $0x70] sm:$0xff]
      %v6132 = vld [vmem:[#allocation2 + $0x78] sm:$0xff]
      %v6133 = vld [vmem:[#allocation2 + $0x80] sm:$0xff]
      %v6134 = vld [vmem:[#allocation2 + $0x88] sm:$0xff]
      %v6135 = vld [vmem:[#allocation2 + $0x90] sm:$0xff]
      %v6136 = vld [vmem:[#allocation2 + $0x98] sm:$0xff]
      %v6137 = vld [vmem:[#allocation2 + $0xa0] sm:$0xff]
      %v6138 = vld [vmem:[#allocation2 + $0xa8] sm:$0xff]
      %v6139 = vld [vmem:[#allocation2 + $0xb0] sm:$0xff]
      %v6140 = vld [vmem:[#allocation2 + $0xb8] sm:$0xff]
      %v6141 = vld [vmem:[#allocation2 + $0xc0] sm:$0xff]
      %v6142 = vld [vmem:[#allocation2 + $0xc8] sm:$0xff]
      %v6143 = vld [vmem:[#allocation2 + $0xd0] sm:$0xff]
      %v6144 = vld [vmem:[#allocation2 + $0xd8] sm:$0xff]
      %v6145 = vld [vmem:[#allocation2 + $0xe0] sm:$0xff]
      %v6146 = vld [vmem:[#allocation2 + $0xe8] sm:$0xff]
      %v6147 = vld [vmem:[#allocation2 + $0xf0] sm:$0xff]
      %v6148 = vld [vmem:[#allocation2 + $0xf8] sm:$0xff]
      %v6149 = vld [vmem:[#allocation2 + $0x100] sm:$0xff]
      %v6150 = vld [vmem:[#allocation2 + $0x108] sm:$0xff]
      %v6151 = vld [vmem:[#allocation2 + $0x110] sm:$0xff]
      %v6152 = vld [vmem:[#allocation2 + $0x118] sm:$0xff]
      %v6153 = vld [vmem:[#allocation2 + $0x120] sm:$0xff]
      %v6154 = vld [vmem:[#allocation2 + $0x128] sm:$0xff]
      %v6155 = vld [vmem:[#allocation2 + $0x130] sm:$0xff]
      %v6156 = vld [vmem:[#allocation2 + $0x138] sm:$0xff]
      %v6157 = vld [vmem:[#allocation2 + $0x140] sm:$0xff]
      %v6158 = vld [vmem:[#allocation2 + $0x148] sm:$0xff]
      %v6159 = vld [vmem:[#allocation2 + $0x150] sm:$0xff]
      %v6160 = vld [vmem:[#allocation2 + $0x158] sm:$0xff]
      %v6161 = vld [vmem:[#allocation2 + $0x160] sm:$0xff]
      %v6162 = vld [vmem:[#allocation2 + $0x168] sm:$0xff]
      %v6163 = vld [vmem:[#allocation2 + $0x170] sm:$0xff]
      %v6164 = vld [vmem:[#allocation2 + $0x178] sm:$0xff]
      %v6165 = vld [vmem:[#allocation2 + $0x180] sm:$0xff]
      %v6166 = vld [vmem:[#allocation2 + $0x188] sm:$0xff]
      %v6167 = vld [vmem:[#allocation2 + $0x190] sm:$0xff]
      %v6168 = vld [vmem:[#allocation2 + $0x198] sm:$0xff]
      %v6169 = vld [vmem:[#allocation2 + $0x1a0] sm:$0xff]
      %v6170 = vld [vmem:[#allocation2 + $0x1a8] sm:$0xff]
      %v6171 = vld [vmem:[#allocation2 + $0x1b0] sm:$0xff]
      %v6172 = vld [vmem:[#allocation2 + $0x1b8] sm:$0xff]
      %v6173 = vld [vmem:[#allocation2 + $0x1c0] sm:$0xff]
      %v6174 = vld [vmem:[#allocation2 + $0x1c8] sm:$0xff]
      %v6175 = vld [vmem:[#allocation2 + $0x1d0] sm:$0xff]
      %v6176 = vld [vmem:[#allocation2 + $0x1d8] sm:$0xff]
      %v6177 = vld [vmem:[#allocation2 + $0x1e0] sm:$0xff]
      %v6178 = vld [vmem:[#allocation2 + $0x1e8] sm:$0xff]
      %v6179 = vld [vmem:[#allocation2 + $0x1f0] sm:$0xff]
      %v6180 = vld [vmem:[#allocation2 + $0x1f8] sm:$0xff]
      %v6181 = vld [vmem:[#allocation2 + $0x200] sm:$0xff]
      %v6182 = vld [vmem:[#allocation2 + $0x208] sm:$0xff]
      %v6183 = vld [vmem:[#allocation2 + $0x210] sm:$0xff]
      %v6184 = vld [vmem:[#allocation2 + $0x218] sm:$0xff]
      %v6185 = vld [vmem:[#allocation2 + $0x220] sm:$0xff]
      %v6186 = vld [vmem:[#allocation2 + $0x228] sm:$0xff]
      %v6187 = vld [vmem:[#allocation2 + $0x230] sm:$0xff]
      %v6188 = vld [vmem:[#allocation2 + $0x238] sm:$0xff]
      %v6189 = vld [vmem:[#allocation2 + $0x240] sm:$0xff]
      %v6190 = vld [vmem:[#allocation2 + $0x248] sm:$0xff]
      %v6191 = vld [vmem:[#allocation2 + $0x250] sm:$0xff]
      %v6192 = vld [vmem:[#allocation2 + $0x258] sm:$0xff]
      %v6193 = vld [vmem:[#allocation2 + $0x260] sm:$0xff]
      %v6194 = vld [vmem:[#allocation2 + $0x268] sm:$0xff]
      %v6195 = vld [vmem:[#allocation2 + $0x270] sm:$0xff]
      %v6196 = vld [vmem:[#allocation2 + $0x278] sm:$0xff]
      %v6197 = vld [vmem:[%s11] sm:$0xf]
      %s6198 = scalar_lea.vmem %s11, 4
      %v6199 = vld [vmem:[%s6198] sm:$0xf]
      %v6201 = vsel %vm495, %v5989, 0
      %v6204 = vsel %vm495, %v5990, 0
      %v6207 = vsel %vm495, %v5991, 0
      %v6210 = vsel %vm495, %v5992, 0
      %v6213 = vsel %vm495, %v5993, 0
      %v6216 = vsel %vm495, %v5994, 0
      %v6219 = vsel %vm495, %v5995, 0
      %v6222 = vsel %vm495, %v5996, 0
      %v6225 = vsel %vm495, %v5997, 0
      %v6228 = vsel %vm495, %v5998, 0
      %v6231 = vsel %vm495, %v5999, 0
      %v6234 = vsel %vm495, %v6000, 0
      %v6237 = vsel %vm495, %v6001, 0
      %v6240 = vsel %vm495, %v6002, 0
      %v6243 = vsel %vm495, %v6003, 0
      %v6246 = vsel %vm495, %v6004, 0
      %v6249 = vsel %vm495, %v6005, 0
      %v6252 = vsel %vm495, %v6006, 0
      %v6255 = vsel %vm495, %v6007, 0
      %v6258 = vsel %vm495, %v6008, 0
      %v6261 = vsel %vm495, %v6009, 0
      %v6264 = vsel %vm495, %v6010, 0
      %v6267 = vsel %vm495, %v6011, 0
      %v6270 = vsel %vm495, %v6012, 0
      %v6273 = vsel %vm495, %v6013, 0
      %v6276 = vsel %vm495, %v6014, 0
      %v6279 = vsel %vm495, %v6015, 0
      %v6282 = vsel %vm495, %v6016, 0
      %v6285 = vsel %vm495, %v6017, 0
      %v6288 = vsel %vm495, %v6018, 0
      %v6291 = vsel %vm495, %v6019, 0
      %v6294 = vsel %vm495, %v6020, 0
      %v6297 = vsel %vm495, %v6021, 0
      %v6300 = vsel %vm495, %v6022, 0
      %v6303 = vsel %vm495, %v6023, 0
      %v6306 = vsel %vm495, %v6024, 0
      %v6309 = vsel %vm495, %v6025, 0
      %v6312 = vsel %vm495, %v6026, 0
      %v6315 = vsel %vm495, %v6027, 0
      %v6318 = vsel %vm495, %v6028, 0
      %v6321 = vsel %vm495, %v6029, 0
      %v6324 = vsel %vm495, %v6030, 0
      %v6327 = vsel %vm495, %v6031, 0
      %v6330 = vsel %vm495, %v6032, 0
      %v6333 = vsel %vm495, %v6033, 0
      %v6336 = vsel %vm495, %v6034, 0
      %v6339 = vsel %vm495, %v6035, 0
      %v6342 = vsel %vm495, %v6036, 0
      %v6345 = vsel %vm495, %v6037, 0
      %v6348 = vsel %vm495, %v6038, 0
      %v6351 = vsel %vm495, %v6039, 0
      %v6354 = vsel %vm495, %v6040, 0
      %v6357 = vsel %vm495, %v6041, 0
      %v6360 = vsel %vm495, %v6042, 0
      %v6363 = vsel %vm495, %v6043, 0
      %v6366 = vsel %vm495, %v6044, 0
      %v6369 = vsel %vm495, %v6045, 0
      %v6372 = vsel %vm495, %v6046, 0
      %v6375 = vsel %vm495, %v6047, 0
      %v6378 = vsel %vm495, %v6048, 0
      %v6381 = vsel %vm495, %v6049, 0
      %v6384 = vsel %vm495, %v6050, 0
      %v6387 = vsel %vm495, %v6051, 0
      %v6390 = vsel %vm495, %v6052, 0
      %v6393 = vsel %vm2331, %v6199, 0
      %6395 = vmatpush.msra.mxu0 0.0
      %6396 = vmatpush.msra.mxu0 0.0
      %6397 = vmatpush.msra.mxu0 0.0
      %6398 = vmatpush.msra.mxu0 0.0
      %6399 = vmatpush.msra.mxu0 0.0
      %6400 = vmatpush.msra.mxu0 0.0
      %6401 = vmatpush.msra.mxu0 0.0
      %6402 = vmatpush.msra.mxu0 0.0
      %6403 = vmatpush.msra.mxu0 0.0
      %6404 = vmatpush.msra.mxu0 0.0
      %6405 = vmatpush.msra.mxu0 0.0
      %6406 = vmatpush.msra.mxu0 0.0
      %6407 = vmatpush.msra.mxu0 0.0
      %6408 = vmatpush.msra.mxu0 0.0
      %6409 = vmatpush.msra.mxu0 0.0
      %6410 = vmatpush.msra.mxu0 %v6393
      %6411 = vmatmul.f32.gmra.mxu0 %v6201
      %v6412 = vpop.f32.mrf.mxu0
      %v6413 = vadd.f32 0.0, %v6412
      %6414 = vmatmul.f32.gmra.mxu0 %v6204
      %v6415 = vpop.f32.mrf.mxu0
      %v6416 = vadd.f32 0.0, %v6415
      %6417 = vmatmul.f32.gmra.mxu0 %v6207
      %v6418 = vpop.f32.mrf.mxu0
      %v6419 = vadd.f32 0.0, %v6418
      %6420 = vmatmul.f32.gmra.mxu0 %v6210
      %v6421 = vpop.f32.mrf.mxu0
      %v6422 = vadd.f32 0.0, %v6421
      %6423 = vmatmul.f32.gmra.mxu0 %v6213
      %v6424 = vpop.f32.mrf.mxu0
      %v6425 = vadd.f32 0.0, %v6424
      %6426 = vmatmul.f32.gmra.mxu0 %v6216
      %v6427 = vpop.f32.mrf.mxu0
      %v6428 = vadd.f32 0.0, %v6427
      %6429 = vmatmul.f32.gmra.mxu0 %v6219
      %v6430 = vpop.f32.mrf.mxu0
      %v6431 = vadd.f32 0.0, %v6430
      %6432 = vmatmul.f32.gmra.mxu0 %v6222
      %v6433 = vpop.f32.mrf.mxu0
      %v6434 = vadd.f32 0.0, %v6433
      %6435 = vmatmul.f32.gmra.mxu0 %v6225
      %v6436 = vpop.f32.mrf.mxu0
      %v6437 = vadd.f32 0.0, %v6436
      %6438 = vmatmul.f32.gmra.mxu0 %v6228
      %v6439 = vpop.f32.mrf.mxu0
      %v6440 = vadd.f32 0.0, %v6439
      %6441 = vmatmul.f32.gmra.mxu0 %v6231
      %v6442 = vpop.f32.mrf.mxu0
      %v6443 = vadd.f32 0.0, %v6442
      %6444 = vmatmul.f32.gmra.mxu0 %v6234
      %v6445 = vpop.f32.mrf.mxu0
      %v6446 = vadd.f32 0.0, %v6445
      %6447 = vmatmul.f32.gmra.mxu0 %v6237
      %v6448 = vpop.f32.mrf.mxu0
      %v6449 = vadd.f32 0.0, %v6448
      %6450 = vmatmul.f32.gmra.mxu0 %v6240
      %v6451 = vpop.f32.mrf.mxu0
      %v6452 = vadd.f32 0.0, %v6451
      %6453 = vmatmul.f32.gmra.mxu0 %v6243
      %v6454 = vpop.f32.mrf.mxu0
      %v6455 = vadd.f32 0.0, %v6454
      %6456 = vmatmul.f32.gmra.mxu0 %v6246
      %v6457 = vpop.f32.mrf.mxu0
      %v6458 = vadd.f32 0.0, %v6457
      %6459 = vmatmul.f32.gmra.mxu0 %v6249
      %v6460 = vpop.f32.mrf.mxu0
      %v6461 = vadd.f32 0.0, %v6460
      %6462 = vmatmul.f32.gmra.mxu0 %v6252
      %v6463 = vpop.f32.mrf.mxu0
      %v6464 = vadd.f32 0.0, %v6463
      %6465 = vmatmul.f32.gmra.mxu0 %v6255
      %v6466 = vpop.f32.mrf.mxu0
      %v6467 = vadd.f32 0.0, %v6466
      %6468 = vmatmul.f32.gmra.mxu0 %v6258
      %v6469 = vpop.f32.mrf.mxu0
      %v6470 = vadd.f32 0.0, %v6469
      %6471 = vmatmul.f32.gmra.mxu0 %v6261
      %v6472 = vpop.f32.mrf.mxu0
      %v6473 = vadd.f32 0.0, %v6472
      %6474 = vmatmul.f32.gmra.mxu0 %v6264
      %v6475 = vpop.f32.mrf.mxu0
      %v6476 = vadd.f32 0.0, %v6475
      %6477 = vmatmul.f32.gmra.mxu0 %v6267
      %v6478 = vpop.f32.mrf.mxu0
      %v6479 = vadd.f32 0.0, %v6478
      %6480 = vmatmul.f32.gmra.mxu0 %v6270
      %v6481 = vpop.f32.mrf.mxu0
      %v6482 = vadd.f32 0.0, %v6481
      %6483 = vmatmul.f32.gmra.mxu0 %v6273
      %v6484 = vpop.f32.mrf.mxu0
      %v6485 = vadd.f32 0.0, %v6484
      %6486 = vmatmul.f32.gmra.mxu0 %v6276
      %v6487 = vpop.f32.mrf.mxu0
      %v6488 = vadd.f32 0.0, %v6487
      %6489 = vmatmul.f32.gmra.mxu0 %v6279
      %v6490 = vpop.f32.mrf.mxu0
      %v6491 = vadd.f32 0.0, %v6490
      %6492 = vmatmul.f32.gmra.mxu0 %v6282
      %v6493 = vpop.f32.mrf.mxu0
      %v6494 = vadd.f32 0.0, %v6493
      %6495 = vmatmul.f32.gmra.mxu0 %v6285
      %v6496 = vpop.f32.mrf.mxu0
      %v6497 = vadd.f32 0.0, %v6496
      %6498 = vmatmul.f32.gmra.mxu0 %v6288
      %v6499 = vpop.f32.mrf.mxu0
      %v6500 = vadd.f32 0.0, %v6499
      %6501 = vmatmul.f32.gmra.mxu0 %v6291
      %v6502 = vpop.f32.mrf.mxu0
      %v6503 = vadd.f32 0.0, %v6502
      %6504 = vmatmul.f32.gmra.mxu0 %v6294
      %v6505 = vpop.f32.mrf.mxu0
      %v6506 = vadd.f32 0.0, %v6505
      %6507 = vmatmul.f32.gmra.mxu0 %v6297
      %v6508 = vpop.f32.mrf.mxu0
      %v6509 = vadd.f32 0.0, %v6508
      %6510 = vmatmul.f32.gmra.mxu0 %v6300
      %v6511 = vpop.f32.mrf.mxu0
      %v6512 = vadd.f32 0.0, %v6511
      %6513 = vmatmul.f32.gmra.mxu0 %v6303
      %v6514 = vpop.f32.mrf.mxu0
      %v6515 = vadd.f32 0.0, %v6514
      %6516 = vmatmul.f32.gmra.mxu0 %v6306
      %v6517 = vpop.f32.mrf.mxu0
      %v6518 = vadd.f32 0.0, %v6517
      %6519 = vmatmul.f32.gmra.mxu0 %v6309
      %v6520 = vpop.f32.mrf.mxu0
      %v6521 = vadd.f32 0.0, %v6520
      %6522 = vmatmul.f32.gmra.mxu0 %v6312
      %v6523 = vpop.f32.mrf.mxu0
      %v6524 = vadd.f32 0.0, %v6523
      %6525 = vmatmul.f32.gmra.mxu0 %v6315
      %v6526 = vpop.f32.mrf.mxu0
      %v6527 = vadd.f32 0.0, %v6526
      %6528 = vmatmul.f32.gmra.mxu0 %v6318
      %v6529 = vpop.f32.mrf.mxu0
      %v6530 = vadd.f32 0.0, %v6529
      %6531 = vmatmul.f32.gmra.mxu0 %v6321
      %v6532 = vpop.f32.mrf.mxu0
      %v6533 = vadd.f32 0.0, %v6532
      %6534 = vmatmul.f32.gmra.mxu0 %v6324
      %v6535 = vpop.f32.mrf.mxu0
      %v6536 = vadd.f32 0.0, %v6535
      %6537 = vmatmul.f32.gmra.mxu0 %v6327
      %v6538 = vpop.f32.mrf.mxu0
      %v6539 = vadd.f32 0.0, %v6538
      %6540 = vmatmul.f32.gmra.mxu0 %v6330
      %v6541 = vpop.f32.mrf.mxu0
      %v6542 = vadd.f32 0.0, %v6541
      %6543 = vmatmul.f32.gmra.mxu0 %v6333
      %v6544 = vpop.f32.mrf.mxu0
      %v6545 = vadd.f32 0.0, %v6544
      %6546 = vmatmul.f32.gmra.mxu0 %v6336
      %v6547 = vpop.f32.mrf.mxu0
      %v6548 = vadd.f32 0.0, %v6547
      %6549 = vmatmul.f32.gmra.mxu0 %v6339
      %v6550 = vpop.f32.mrf.mxu0
      %v6551 = vadd.f32 0.0, %v6550
      %6552 = vmatmul.f32.gmra.mxu0 %v6342
      %v6553 = vpop.f32.mrf.mxu0
      %v6554 = vadd.f32 0.0, %v6553
      %6555 = vmatmul.f32.gmra.mxu0 %v6345
      %v6556 = vpop.f32.mrf.mxu0
      %v6557 = vadd.f32 0.0, %v6556
      %6558 = vmatmul.f32.gmra.mxu0 %v6348
      %v6559 = vpop.f32.mrf.mxu0
      %v6560 = vadd.f32 0.0, %v6559
      %6561 = vmatmul.f32.gmra.mxu0 %v6351
      %v6562 = vpop.f32.mrf.mxu0
      %v6563 = vadd.f32 0.0, %v6562
      %6564 = vmatmul.f32.gmra.mxu0 %v6354
      %v6565 = vpop.f32.mrf.mxu0
      %v6566 = vadd.f32 0.0, %v6565
      %6567 = vmatmul.f32.gmra.mxu0 %v6357
      %v6568 = vpop.f32.mrf.mxu0
      %v6569 = vadd.f32 0.0, %v6568
      %6570 = vmatmul.f32.gmra.mxu0 %v6360
      %v6571 = vpop.f32.mrf.mxu0
      %v6572 = vadd.f32 0.0, %v6571
      %6573 = vmatmul.f32.gmra.mxu0 %v6363
      %v6574 = vpop.f32.mrf.mxu0
      %v6575 = vadd.f32 0.0, %v6574
      %6576 = vmatmul.f32.gmra.mxu0 %v6366
      %v6577 = vpop.f32.mrf.mxu0
      %v6578 = vadd.f32 0.0, %v6577
      %6579 = vmatmul.f32.gmra.mxu0 %v6369
      %v6580 = vpop.f32.mrf.mxu0
      %v6581 = vadd.f32 0.0, %v6580
      %6582 = vmatmul.f32.gmra.mxu0 %v6372
      %v6583 = vpop.f32.mrf.mxu0
      %v6584 = vadd.f32 0.0, %v6583
      %6585 = vmatmul.f32.gmra.mxu0 %v6375
      %v6586 = vpop.f32.mrf.mxu0
      %v6587 = vadd.f32 0.0, %v6586
      %6588 = vmatmul.f32.gmra.mxu0 %v6378
      %v6589 = vpop.f32.mrf.mxu0
      %v6590 = vadd.f32 0.0, %v6589
      %6591 = vmatmul.f32.gmra.mxu0 %v6381
      %v6592 = vpop.f32.mrf.mxu0
      %v6593 = vadd.f32 0.0, %v6592
      %6594 = vmatmul.f32.gmra.mxu0 %v6384
      %v6595 = vpop.f32.mrf.mxu0
      %v6596 = vadd.f32 0.0, %v6595
      %6597 = vmatmul.f32.gmra.mxu0 %v6387
      %v6598 = vpop.f32.mrf.mxu0
      %v6599 = vadd.f32 0.0, %v6598
      %6600 = vmatmul.f32.gmra.mxu0 %v6390
      %v6601 = vpop.f32.mrf.mxu0
      %v6602 = vadd.f32 0.0, %v6601
      %6603 = vdwg.mxu0
      %v6605 = vsel %vm495, %v6117, 0
      %v6608 = vsel %vm495, %v6118, 0
      %v6611 = vsel %vm495, %v6119, 0
      %v6614 = vsel %vm495, %v6120, 0
      %v6617 = vsel %vm495, %v6121, 0
      %v6620 = vsel %vm495, %v6122, 0
      %v6623 = vsel %vm495, %v6123, 0
      %v6626 = vsel %vm495, %v6124, 0
      %v6629 = vsel %vm495, %v6125, 0
      %v6632 = vsel %vm495, %v6126, 0
      %v6635 = vsel %vm495, %v6127, 0
      %v6638 = vsel %vm495, %v6128, 0
      %v6641 = vsel %vm495, %v6129, 0
      %v6644 = vsel %vm495, %v6130, 0
      %v6647 = vsel %vm495, %v6131, 0
      %v6650 = vsel %vm495, %v6132, 0
      %v6653 = vsel %vm495, %v6133, 0
      %v6656 = vsel %vm495, %v6134, 0
      %v6659 = vsel %vm495, %v6135, 0
      %v6662 = vsel %vm495, %v6136, 0
      %v6665 = vsel %vm495, %v6137, 0
      %v6668 = vsel %vm495, %v6138, 0
      %v6671 = vsel %vm495, %v6139, 0
      %v6674 = vsel %vm495, %v6140, 0
      %v6677 = vsel %vm495, %v6141, 0
      %v6680 = vsel %vm495, %v6142, 0
      %v6683 = vsel %vm495, %v6143, 0
      %v6686 = vsel %vm495, %v6144, 0
      %v6689 = vsel %vm495, %v6145, 0
      %v6692 = vsel %vm495, %v6146, 0
      %v6695 = vsel %vm495, %v6147, 0
      %v6698 = vsel %vm495, %v6148, 0
      %v6701 = vsel %vm495, %v6149, 0
      %v6704 = vsel %vm495, %v6150, 0
      %v6707 = vsel %vm495, %v6151, 0
      %v6710 = vsel %vm495, %v6152, 0
      %v6713 = vsel %vm495, %v6153, 0
      %v6716 = vsel %vm495, %v6154, 0
      %v6719 = vsel %vm495, %v6155, 0
      %v6722 = vsel %vm495, %v6156, 0
      %v6725 = vsel %vm495, %v6157, 0
      %v6728 = vsel %vm495, %v6158, 0
      %v6731 = vsel %vm495, %v6159, 0
      %v6734 = vsel %vm495, %v6160, 0
      %v6737 = vsel %vm495, %v6161, 0
      %v6740 = vsel %vm495, %v6162, 0
      %v6743 = vsel %vm495, %v6163, 0
      %v6746 = vsel %vm495, %v6164, 0
      %v6749 = vsel %vm495, %v6165, 0
      %v6752 = vsel %vm495, %v6166, 0
      %v6755 = vsel %vm495, %v6167, 0
      %v6758 = vsel %vm495, %v6168, 0
      %v6761 = vsel %vm495, %v6169, 0
      %v6764 = vsel %vm495, %v6170, 0
      %v6767 = vsel %vm495, %v6171, 0
      %v6770 = vsel %vm495, %v6172, 0
      %v6773 = vsel %vm495, %v6173, 0
      %v6776 = vsel %vm495, %v6174, 0
      %v6779 = vsel %vm495, %v6175, 0
      %v6782 = vsel %vm495, %v6176, 0
      %v6785 = vsel %vm495, %v6177, 0
      %v6788 = vsel %vm495, %v6178, 0
      %v6791 = vsel %vm495, %v6179, 0
      %v6794 = vsel %vm495, %v6180, 0
      %v6797 = vsel %vm2331, %v6197, 0
      %6799 = vmatpush.msra.mxu0 0.0
      %6800 = vmatpush.msra.mxu0 0.0
      %6801 = vmatpush.msra.mxu0 0.0
      %6802 = vmatpush.msra.mxu0 0.0
      %6803 = vmatpush.msra.mxu0 0.0
      %6804 = vmatpush.msra.mxu0 0.0
      %6805 = vmatpush.msra.mxu0 0.0
      %6806 = vmatpush.msra.mxu0 0.0
      %6807 = vmatpush.msra.mxu0 0.0
      %6808 = vmatpush.msra.mxu0 0.0
      %6809 = vmatpush.msra.mxu0 0.0
      %6810 = vmatpush.msra.mxu0 0.0
      %6811 = vmatpush.msra.mxu0 0.0
      %6812 = vmatpush.msra.mxu0 0.0
      %6813 = vmatpush.msra.mxu0 0.0
      %6814 = vmatpush.msra.mxu0 %v6797
      %6815 = vmatmul.f32.gmra.mxu0 %v6605
      %v6816 = vpop.f32.mrf.mxu0
      %v6817 = vadd.f32 %v6413, %v6816
      %6818 = vmatmul.f32.gmra.mxu0 %v6608
      %v6819 = vpop.f32.mrf.mxu0
      %v6820 = vadd.f32 %v6416, %v6819
      %6821 = vmatmul.f32.gmra.mxu0 %v6611
      %v6822 = vpop.f32.mrf.mxu0
      %v6823 = vadd.f32 %v6419, %v6822
      %6824 = vmatmul.f32.gmra.mxu0 %v6614
      %v6825 = vpop.f32.mrf.mxu0
      %v6826 = vadd.f32 %v6422, %v6825
      %6827 = vmatmul.f32.gmra.mxu0 %v6617
      %v6828 = vpop.f32.mrf.mxu0
      %v6829 = vadd.f32 %v6425, %v6828
      %6830 = vmatmul.f32.gmra.mxu0 %v6620
      %v6831 = vpop.f32.mrf.mxu0
      %v6832 = vadd.f32 %v6428, %v6831
      %6833 = vmatmul.f32.gmra.mxu0 %v6623
      %v6834 = vpop.f32.mrf.mxu0
      %v6835 = vadd.f32 %v6431, %v6834
      %6836 = vmatmul.f32.gmra.mxu0 %v6626
      %v6837 = vpop.f32.mrf.mxu0
      %v6838 = vadd.f32 %v6434, %v6837
      %6839 = vmatmul.f32.gmra.mxu0 %v6629
      %v6840 = vpop.f32.mrf.mxu0
      %v6841 = vadd.f32 %v6437, %v6840
      %6842 = vmatmul.f32.gmra.mxu0 %v6632
      %v6843 = vpop.f32.mrf.mxu0
      %v6844 = vadd.f32 %v6440, %v6843
      %6845 = vmatmul.f32.gmra.mxu0 %v6635
      %v6846 = vpop.f32.mrf.mxu0
      %v6847 = vadd.f32 %v6443, %v6846
      %6848 = vmatmul.f32.gmra.mxu0 %v6638
      %v6849 = vpop.f32.mrf.mxu0
      %v6850 = vadd.f32 %v6446, %v6849
      %6851 = vmatmul.f32.gmra.mxu0 %v6641
      %v6852 = vpop.f32.mrf.mxu0
      %v6853 = vadd.f32 %v6449, %v6852
      %6854 = vmatmul.f32.gmra.mxu0 %v6644
      %v6855 = vpop.f32.mrf.mxu0
      %v6856 = vadd.f32 %v6452, %v6855
      %6857 = vmatmul.f32.gmra.mxu0 %v6647
      %v6858 = vpop.f32.mrf.mxu0
      %v6859 = vadd.f32 %v6455, %v6858
      %6860 = vmatmul.f32.gmra.mxu0 %v6650
      %v6861 = vpop.f32.mrf.mxu0
      %v6862 = vadd.f32 %v6458, %v6861
      %6863 = vmatmul.f32.gmra.mxu0 %v6653
      %v6864 = vpop.f32.mrf.mxu0
      %v6865 = vadd.f32 %v6461, %v6864
      %6866 = vmatmul.f32.gmra.mxu0 %v6656
      %v6867 = vpop.f32.mrf.mxu0
      %v6868 = vadd.f32 %v6464, %v6867
      %6869 = vmatmul.f32.gmra.mxu0 %v6659
      %v6870 = vpop.f32.mrf.mxu0
      %v6871 = vadd.f32 %v6467, %v6870
      %6872 = vmatmul.f32.gmra.mxu0 %v6662
      %v6873 = vpop.f32.mrf.mxu0
      %v6874 = vadd.f32 %v6470, %v6873
      %6875 = vmatmul.f32.gmra.mxu0 %v6665
      %v6876 = vpop.f32.mrf.mxu0
      %v6877 = vadd.f32 %v6473, %v6876
      %6878 = vmatmul.f32.gmra.mxu0 %v6668
      %v6879 = vpop.f32.mrf.mxu0
      %v6880 = vadd.f32 %v6476, %v6879
      %6881 = vmatmul.f32.gmra.mxu0 %v6671
      %v6882 = vpop.f32.mrf.mxu0
      %v6883 = vadd.f32 %v6479, %v6882
      %6884 = vmatmul.f32.gmra.mxu0 %v6674
      %v6885 = vpop.f32.mrf.mxu0
      %v6886 = vadd.f32 %v6482, %v6885
      %6887 = vmatmul.f32.gmra.mxu0 %v6677
      %v6888 = vpop.f32.mrf.mxu0
      %v6889 = vadd.f32 %v6485, %v6888
      %6890 = vmatmul.f32.gmra.mxu0 %v6680
      %v6891 = vpop.f32.mrf.mxu0
      %v6892 = vadd.f32 %v6488, %v6891
      %6893 = vmatmul.f32.gmra.mxu0 %v6683
      %v6894 = vpop.f32.mrf.mxu0
      %v6895 = vadd.f32 %v6491, %v6894
      %6896 = vmatmul.f32.gmra.mxu0 %v6686
      %v6897 = vpop.f32.mrf.mxu0
      %v6898 = vadd.f32 %v6494, %v6897
      %6899 = vmatmul.f32.gmra.mxu0 %v6689
      %v6900 = vpop.f32.mrf.mxu0
      %v6901 = vadd.f32 %v6497, %v6900
      %6902 = vmatmul.f32.gmra.mxu0 %v6692
      %v6903 = vpop.f32.mrf.mxu0
      %v6904 = vadd.f32 %v6500, %v6903
      %6905 = vmatmul.f32.gmra.mxu0 %v6695
      %v6906 = vpop.f32.mrf.mxu0
      %v6907 = vadd.f32 %v6503, %v6906
      %6908 = vmatmul.f32.gmra.mxu0 %v6698
      %v6909 = vpop.f32.mrf.mxu0
      %v6910 = vadd.f32 %v6506, %v6909
      %6911 = vmatmul.f32.gmra.mxu0 %v6701
      %v6912 = vpop.f32.mrf.mxu0
      %v6913 = vadd.f32 %v6509, %v6912
      %6914 = vmatmul.f32.gmra.mxu0 %v6704
      %v6915 = vpop.f32.mrf.mxu0
      %v6916 = vadd.f32 %v6512, %v6915
      %6917 = vmatmul.f32.gmra.mxu0 %v6707
      %v6918 = vpop.f32.mrf.mxu0
      %v6919 = vadd.f32 %v6515, %v6918
      %6920 = vmatmul.f32.gmra.mxu0 %v6710
      %v6921 = vpop.f32.mrf.mxu0
      %v6922 = vadd.f32 %v6518, %v6921
      %6923 = vmatmul.f32.gmra.mxu0 %v6713
      %v6924 = vpop.f32.mrf.mxu0
      %v6925 = vadd.f32 %v6521, %v6924
      %6926 = vmatmul.f32.gmra.mxu0 %v6716
      %v6927 = vpop.f32.mrf.mxu0
      %v6928 = vadd.f32 %v6524, %v6927
      %6929 = vmatmul.f32.gmra.mxu0 %v6719
      %v6930 = vpop.f32.mrf.mxu0
      %v6931 = vadd.f32 %v6527, %v6930
      %6932 = vmatmul.f32.gmra.mxu0 %v6722
      %v6933 = vpop.f32.mrf.mxu0
      %v6934 = vadd.f32 %v6530, %v6933
      %6935 = vmatmul.f32.gmra.mxu0 %v6725
      %v6936 = vpop.f32.mrf.mxu0
      %v6937 = vadd.f32 %v6533, %v6936
      %6938 = vmatmul.f32.gmra.mxu0 %v6728
      %v6939 = vpop.f32.mrf.mxu0
      %v6940 = vadd.f32 %v6536, %v6939
      %6941 = vmatmul.f32.gmra.mxu0 %v6731
      %v6942 = vpop.f32.mrf.mxu0
      %v6943 = vadd.f32 %v6539, %v6942
      %6944 = vmatmul.f32.gmra.mxu0 %v6734
      %v6945 = vpop.f32.mrf.mxu0
      %v6946 = vadd.f32 %v6542, %v6945
      %6947 = vmatmul.f32.gmra.mxu0 %v6737
      %v6948 = vpop.f32.mrf.mxu0
      %v6949 = vadd.f32 %v6545, %v6948
      %6950 = vmatmul.f32.gmra.mxu0 %v6740
      %v6951 = vpop.f32.mrf.mxu0
      %v6952 = vadd.f32 %v6548, %v6951
      %6953 = vmatmul.f32.gmra.mxu0 %v6743
      %v6954 = vpop.f32.mrf.mxu0
      %v6955 = vadd.f32 %v6551, %v6954
      %6956 = vmatmul.f32.gmra.mxu0 %v6746
      %v6957 = vpop.f32.mrf.mxu0
      %v6958 = vadd.f32 %v6554, %v6957
      %6959 = vmatmul.f32.gmra.mxu0 %v6749
      %v6960 = vpop.f32.mrf.mxu0
      %v6961 = vadd.f32 %v6557, %v6960
      %6962 = vmatmul.f32.gmra.mxu0 %v6752
      %v6963 = vpop.f32.mrf.mxu0
      %v6964 = vadd.f32 %v6560, %v6963
      %6965 = vmatmul.f32.gmra.mxu0 %v6755
      %v6966 = vpop.f32.mrf.mxu0
      %v6967 = vadd.f32 %v6563, %v6966
      %6968 = vmatmul.f32.gmra.mxu0 %v6758
      %v6969 = vpop.f32.mrf.mxu0
      %v6970 = vadd.f32 %v6566, %v6969
      %6971 = vmatmul.f32.gmra.mxu0 %v6761
      %v6972 = vpop.f32.mrf.mxu0
      %v6973 = vadd.f32 %v6569, %v6972
      %6974 = vmatmul.f32.gmra.mxu0 %v6764
      %v6975 = vpop.f32.mrf.mxu0
      %v6976 = vadd.f32 %v6572, %v6975
      %6977 = vmatmul.f32.gmra.mxu0 %v6767
      %v6978 = vpop.f32.mrf.mxu0
      %v6979 = vadd.f32 %v6575, %v6978
      %6980 = vmatmul.f32.gmra.mxu0 %v6770
      %v6981 = vpop.f32.mrf.mxu0
      %v6982 = vadd.f32 %v6578, %v6981
      %6983 = vmatmul.f32.gmra.mxu0 %v6773
      %v6984 = vpop.f32.mrf.mxu0
      %v6985 = vadd.f32 %v6581, %v6984
      %6986 = vmatmul.f32.gmra.mxu0 %v6776
      %v6987 = vpop.f32.mrf.mxu0
      %v6988 = vadd.f32 %v6584, %v6987
      %6989 = vmatmul.f32.gmra.mxu0 %v6779
      %v6990 = vpop.f32.mrf.mxu0
      %v6991 = vadd.f32 %v6587, %v6990
      %6992 = vmatmul.f32.gmra.mxu0 %v6782
      %v6993 = vpop.f32.mrf.mxu0
      %v6994 = vadd.f32 %v6590, %v6993
      %6995 = vmatmul.f32.gmra.mxu0 %v6785
      %v6996 = vpop.f32.mrf.mxu0
      %v6997 = vadd.f32 %v6593, %v6996
      %6998 = vmatmul.f32.gmra.mxu0 %v6788
      %v6999 = vpop.f32.mrf.mxu0
      %v7000 = vadd.f32 %v6596, %v6999
      %7001 = vmatmul.f32.gmra.mxu0 %v6791
      %v7002 = vpop.f32.mrf.mxu0
      %v7003 = vadd.f32 %v6599, %v7002
      %7004 = vmatmul.f32.gmra.mxu0 %v6794
      %v7005 = vpop.f32.mrf.mxu0
      %v7006 = vadd.f32 %v6602, %v7005
      %7007 = vdwg.mxu0
      %s7008 = scalar_lea.vmem %s11, 8
      %v7009 = vld [vmem:[%s7008] sm:$0xf]
      %v7011 = vsel %vm495, %v6181, 0
      %v7014 = vsel %vm495, %v6182, 0
      %v7017 = vsel %vm495, %v6183, 0
      %v7020 = vsel %vm495, %v6184, 0
      %v7023 = vsel %vm495, %v6185, 0
      %v7026 = vsel %vm495, %v6186, 0
      %v7029 = vsel %vm495, %v6187, 0
      %v7032 = vsel %vm495, %v6188, 0
      %v7035 = vsel %vm495, %v6189, 0
      %v7038 = vsel %vm495, %v6190, 0
      %v7041 = vsel %vm495, %v6191, 0
      %v7044 = vsel %vm495, %v6192, 0
      %v7047 = vsel %vm495, %v6193, 0
      %v7050 = vsel %vm495, %v6194, 0
      %v7053 = vsel %vm495, %v6195, 0
      %v7056 = vsel %vm495, %v6196, 0
      %v7059 = vsel %vm2331, %v7009, 0
      %7061 = vmatpush.msra.mxu0 0.0
      %7062 = vmatpush.msra.mxu0 0.0
      %7063 = vmatpush.msra.mxu0 0.0
      %7064 = vmatpush.msra.mxu0 0.0
      %7065 = vmatpush.msra.mxu0 0.0
      %7066 = vmatpush.msra.mxu0 0.0
      %7067 = vmatpush.msra.mxu0 0.0
      %7068 = vmatpush.msra.mxu0 0.0
      %7069 = vmatpush.msra.mxu0 0.0
      %7070 = vmatpush.msra.mxu0 0.0
      %7071 = vmatpush.msra.mxu0 0.0
      %7072 = vmatpush.msra.mxu0 0.0
      %7073 = vmatpush.msra.mxu0 0.0
      %7074 = vmatpush.msra.mxu0 0.0
      %7075 = vmatpush.msra.mxu0 0.0
      %7076 = vmatpush.msra.mxu0 %v7059
      %7077 = vmatmul.f32.gmra.mxu0 %v6653
      %v7078 = vpop.f32.mrf.mxu0
      %v7079 = vadd.f32 0.0, %v7078
      %7080 = vmatmul.f32.gmra.mxu0 %v6656
      %v7081 = vpop.f32.mrf.mxu0
      %v7082 = vadd.f32 0.0, %v7081
      %7083 = vmatmul.f32.gmra.mxu0 %v6659
      %v7084 = vpop.f32.mrf.mxu0
      %v7085 = vadd.f32 0.0, %v7084
      %7086 = vmatmul.f32.gmra.mxu0 %v6662
      %v7087 = vpop.f32.mrf.mxu0
      %v7088 = vadd.f32 0.0, %v7087
      %7089 = vmatmul.f32.gmra.mxu0 %v6665
      %v7090 = vpop.f32.mrf.mxu0
      %v7091 = vadd.f32 0.0, %v7090
      %7092 = vmatmul.f32.gmra.mxu0 %v6668
      %v7093 = vpop.f32.mrf.mxu0
      %v7094 = vadd.f32 0.0, %v7093
      %7095 = vmatmul.f32.gmra.mxu0 %v6671
      %v7096 = vpop.f32.mrf.mxu0
      %v7097 = vadd.f32 0.0, %v7096
      %7098 = vmatmul.f32.gmra.mxu0 %v6674
      %v7099 = vpop.f32.mrf.mxu0
      %v7100 = vadd.f32 0.0, %v7099
      %7101 = vmatmul.f32.gmra.mxu0 %v6677
      %v7102 = vpop.f32.mrf.mxu0
      %v7103 = vadd.f32 0.0, %v7102
      %7104 = vmatmul.f32.gmra.mxu0 %v6680
      %v7105 = vpop.f32.mrf.mxu0
      %v7106 = vadd.f32 0.0, %v7105
      %7107 = vmatmul.f32.gmra.mxu0 %v6683
      %v7108 = vpop.f32.mrf.mxu0
      %v7109 = vadd.f32 0.0, %v7108
      %7110 = vmatmul.f32.gmra.mxu0 %v6686
      %v7111 = vpop.f32.mrf.mxu0
      %v7112 = vadd.f32 0.0, %v7111
      %7113 = vmatmul.f32.gmra.mxu0 %v6689
      %v7114 = vpop.f32.mrf.mxu0
      %v7115 = vadd.f32 0.0, %v7114
      %7116 = vmatmul.f32.gmra.mxu0 %v6692
      %v7117 = vpop.f32.mrf.mxu0
      %v7118 = vadd.f32 0.0, %v7117
      %7119 = vmatmul.f32.gmra.mxu0 %v6695
      %v7120 = vpop.f32.mrf.mxu0
      %v7121 = vadd.f32 0.0, %v7120
      %7122 = vmatmul.f32.gmra.mxu0 %v6698
      %v7123 = vpop.f32.mrf.mxu0
      %v7124 = vadd.f32 0.0, %v7123
      %7125 = vmatmul.f32.gmra.mxu0 %v6701
      %v7126 = vpop.f32.mrf.mxu0
      %v7127 = vadd.f32 0.0, %v7126
      %7128 = vmatmul.f32.gmra.mxu0 %v6704
      %v7129 = vpop.f32.mrf.mxu0
      %v7130 = vadd.f32 0.0, %v7129
      %7131 = vmatmul.f32.gmra.mxu0 %v6707
      %v7132 = vpop.f32.mrf.mxu0
      %v7133 = vadd.f32 0.0, %v7132
      %7134 = vmatmul.f32.gmra.mxu0 %v6710
      %v7135 = vpop.f32.mrf.mxu0
      %v7136 = vadd.f32 0.0, %v7135
      %7137 = vmatmul.f32.gmra.mxu0 %v6713
      %v7138 = vpop.f32.mrf.mxu0
      %v7139 = vadd.f32 0.0, %v7138
      %7140 = vmatmul.f32.gmra.mxu0 %v6716
      %v7141 = vpop.f32.mrf.mxu0
      %v7142 = vadd.f32 0.0, %v7141
      %7143 = vmatmul.f32.gmra.mxu0 %v6719
      %v7144 = vpop.f32.mrf.mxu0
      %v7145 = vadd.f32 0.0, %v7144
      %7146 = vmatmul.f32.gmra.mxu0 %v6722
      %v7147 = vpop.f32.mrf.mxu0
      %v7148 = vadd.f32 0.0, %v7147
      %7149 = vmatmul.f32.gmra.mxu0 %v6725
      %v7150 = vpop.f32.mrf.mxu0
      %v7151 = vadd.f32 0.0, %v7150
      %7152 = vmatmul.f32.gmra.mxu0 %v6728
      %v7153 = vpop.f32.mrf.mxu0
      %v7154 = vadd.f32 0.0, %v7153
      %7155 = vmatmul.f32.gmra.mxu0 %v6731
      %v7156 = vpop.f32.mrf.mxu0
      %v7157 = vadd.f32 0.0, %v7156
      %7158 = vmatmul.f32.gmra.mxu0 %v6734
      %v7159 = vpop.f32.mrf.mxu0
      %v7160 = vadd.f32 0.0, %v7159
      %7161 = vmatmul.f32.gmra.mxu0 %v6737
      %v7162 = vpop.f32.mrf.mxu0
      %v7163 = vadd.f32 0.0, %v7162
      %7164 = vmatmul.f32.gmra.mxu0 %v6740
      %v7165 = vpop.f32.mrf.mxu0
      %v7166 = vadd.f32 0.0, %v7165
      %7167 = vmatmul.f32.gmra.mxu0 %v6743
      %v7168 = vpop.f32.mrf.mxu0
      %v7169 = vadd.f32 0.0, %v7168
      %7170 = vmatmul.f32.gmra.mxu0 %v6746
      %v7171 = vpop.f32.mrf.mxu0
      %v7172 = vadd.f32 0.0, %v7171
      %7173 = vmatmul.f32.gmra.mxu0 %v6749
      %v7174 = vpop.f32.mrf.mxu0
      %v7175 = vadd.f32 0.0, %v7174
      %7176 = vmatmul.f32.gmra.mxu0 %v6752
      %v7177 = vpop.f32.mrf.mxu0
      %v7178 = vadd.f32 0.0, %v7177
      %7179 = vmatmul.f32.gmra.mxu0 %v6755
      %v7180 = vpop.f32.mrf.mxu0
      %v7181 = vadd.f32 0.0, %v7180
      %7182 = vmatmul.f32.gmra.mxu0 %v6758
      %v7183 = vpop.f32.mrf.mxu0
      %v7184 = vadd.f32 0.0, %v7183
      %7185 = vmatmul.f32.gmra.mxu0 %v6761
      %v7186 = vpop.f32.mrf.mxu0
      %v7187 = vadd.f32 0.0, %v7186
      %7188 = vmatmul.f32.gmra.mxu0 %v6764
      %v7189 = vpop.f32.mrf.mxu0
      %v7190 = vadd.f32 0.0, %v7189
      %7191 = vmatmul.f32.gmra.mxu0 %v6767
      %v7192 = vpop.f32.mrf.mxu0
      %v7193 = vadd.f32 0.0, %v7192
      %7194 = vmatmul.f32.gmra.mxu0 %v6770
      %v7195 = vpop.f32.mrf.mxu0
      %v7196 = vadd.f32 0.0, %v7195
      %7197 = vmatmul.f32.gmra.mxu0 %v6773
      %v7198 = vpop.f32.mrf.mxu0
      %v7199 = vadd.f32 0.0, %v7198
      %7200 = vmatmul.f32.gmra.mxu0 %v6776
      %v7201 = vpop.f32.mrf.mxu0
      %v7202 = vadd.f32 0.0, %v7201
      %7203 = vmatmul.f32.gmra.mxu0 %v6779
      %v7204 = vpop.f32.mrf.mxu0
      %v7205 = vadd.f32 0.0, %v7204
      %7206 = vmatmul.f32.gmra.mxu0 %v6782
      %v7207 = vpop.f32.mrf.mxu0
      %v7208 = vadd.f32 0.0, %v7207
      %7209 = vmatmul.f32.gmra.mxu0 %v6785
      %v7210 = vpop.f32.mrf.mxu0
      %v7211 = vadd.f32 0.0, %v7210
      %7212 = vmatmul.f32.gmra.mxu0 %v6788
      %v7213 = vpop.f32.mrf.mxu0
      %v7214 = vadd.f32 0.0, %v7213
      %7215 = vmatmul.f32.gmra.mxu0 %v6791
      %v7216 = vpop.f32.mrf.mxu0
      %v7217 = vadd.f32 0.0, %v7216
      %7218 = vmatmul.f32.gmra.mxu0 %v6794
      %v7219 = vpop.f32.mrf.mxu0
      %v7220 = vadd.f32 0.0, %v7219
      %7221 = vmatmul.f32.gmra.mxu0 %v7011
      %v7222 = vpop.f32.mrf.mxu0
      %v7223 = vadd.f32 0.0, %v7222
      %7224 = vmatmul.f32.gmra.mxu0 %v7014
      %v7225 = vpop.f32.mrf.mxu0
      %v7226 = vadd.f32 0.0, %v7225
      %7227 = vmatmul.f32.gmra.mxu0 %v7017
      %v7228 = vpop.f32.mrf.mxu0
      %v7229 = vadd.f32 0.0, %v7228
      %7230 = vmatmul.f32.gmra.mxu0 %v7020
      %v7231 = vpop.f32.mrf.mxu0
      %v7232 = vadd.f32 0.0, %v7231
      %7233 = vmatmul.f32.gmra.mxu0 %v7023
      %v7234 = vpop.f32.mrf.mxu0
      %v7235 = vadd.f32 0.0, %v7234
      %7236 = vmatmul.f32.gmra.mxu0 %v7026
      %v7237 = vpop.f32.mrf.mxu0
      %v7238 = vadd.f32 0.0, %v7237
      %7239 = vmatmul.f32.gmra.mxu0 %v7029
      %v7240 = vpop.f32.mrf.mxu0
      %v7241 = vadd.f32 0.0, %v7240
      %7242 = vmatmul.f32.gmra.mxu0 %v7032
      %v7243 = vpop.f32.mrf.mxu0
      %v7244 = vadd.f32 0.0, %v7243
      %7245 = vmatmul.f32.gmra.mxu0 %v7035
      %v7246 = vpop.f32.mrf.mxu0
      %v7247 = vadd.f32 0.0, %v7246
      %7248 = vmatmul.f32.gmra.mxu0 %v7038
      %v7249 = vpop.f32.mrf.mxu0
      %v7250 = vadd.f32 0.0, %v7249
      %7251 = vmatmul.f32.gmra.mxu0 %v7041
      %v7252 = vpop.f32.mrf.mxu0
      %v7253 = vadd.f32 0.0, %v7252
      %7254 = vmatmul.f32.gmra.mxu0 %v7044
      %v7255 = vpop.f32.mrf.mxu0
      %v7256 = vadd.f32 0.0, %v7255
      %7257 = vmatmul.f32.gmra.mxu0 %v7047
      %v7258 = vpop.f32.mrf.mxu0
      %v7259 = vadd.f32 0.0, %v7258
      %7260 = vmatmul.f32.gmra.mxu0 %v7050
      %v7261 = vpop.f32.mrf.mxu0
      %v7262 = vadd.f32 0.0, %v7261
      %7263 = vmatmul.f32.gmra.mxu0 %v7053
      %v7264 = vpop.f32.mrf.mxu0
      %v7265 = vadd.f32 0.0, %v7264
      %7266 = vmatmul.f32.gmra.mxu0 %v7056
      %v7267 = vpop.f32.mrf.mxu0
      %v7268 = vadd.f32 0.0, %v7267
      %7269 = vdwg.mxu0
      %v7270 = vadd.f32 %v6817, %v7079
      %v7271 = vadd.f32 %v6820, %v7082
      %v7272 = vadd.f32 %v6823, %v7085
      %v7273 = vadd.f32 %v6826, %v7088
      %v7274 = vadd.f32 %v6829, %v7091
      %v7275 = vadd.f32 %v6832, %v7094
      %v7276 = vadd.f32 %v6835, %v7097
      %v7277 = vadd.f32 %v6838, %v7100
      %v7278 = vadd.f32 %v6841, %v7103
      %v7279 = vadd.f32 %v6844, %v7106
      %v7280 = vadd.f32 %v6847, %v7109
      %v7281 = vadd.f32 %v6850, %v7112
      %v7282 = vadd.f32 %v6853, %v7115
      %v7283 = vadd.f32 %v6856, %v7118
      %v7284 = vadd.f32 %v6859, %v7121
      %v7285 = vadd.f32 %v6862, %v7124
      %v7286 = vadd.f32 %v6865, %v7127
      %v7287 = vadd.f32 %v6868, %v7130
      %v7288 = vadd.f32 %v6871, %v7133
      %v7289 = vadd.f32 %v6874, %v7136
      %v7290 = vadd.f32 %v6877, %v7139
      %v7291 = vadd.f32 %v6880, %v7142
      %v7292 = vadd.f32 %v6883, %v7145
      %v7293 = vadd.f32 %v6886, %v7148
      %v7294 = vadd.f32 %v6889, %v7151
      %v7295 = vadd.f32 %v6892, %v7154
      %v7296 = vadd.f32 %v6895, %v7157
      %v7297 = vadd.f32 %v6898, %v7160
      %v7298 = vadd.f32 %v6901, %v7163
      %v7299 = vadd.f32 %v6904, %v7166
      %v7300 = vadd.f32 %v6907, %v7169
      %v7301 = vadd.f32 %v6910, %v7172
      %v7302 = vadd.f32 %v6913, %v7175
      %v7303 = vadd.f32 %v6916, %v7178
      %v7304 = vadd.f32 %v6919, %v7181
      %v7305 = vadd.f32 %v6922, %v7184
      %v7306 = vadd.f32 %v6925, %v7187
      %v7307 = vadd.f32 %v6928, %v7190
      %v7308 = vadd.f32 %v6931, %v7193
      %v7309 = vadd.f32 %v6934, %v7196
      %v7310 = vadd.f32 %v6937, %v7199
      %v7311 = vadd.f32 %v6940, %v7202
      %v7312 = vadd.f32 %v6943, %v7205
      %v7313 = vadd.f32 %v6946, %v7208
      %v7314 = vadd.f32 %v6949, %v7211
      %v7315 = vadd.f32 %v6952, %v7214
      %v7316 = vadd.f32 %v6955, %v7217
      %v7317 = vadd.f32 %v6958, %v7220
      %v7318 = vadd.f32 %v6961, %v7223
      %v7319 = vadd.f32 %v6964, %v7226
      %v7320 = vadd.f32 %v6967, %v7229
      %v7321 = vadd.f32 %v6970, %v7232
      %v7322 = vadd.f32 %v6973, %v7235
      %v7323 = vadd.f32 %v6976, %v7238
      %v7324 = vadd.f32 %v6979, %v7241
      %v7325 = vadd.f32 %v6982, %v7244
      %v7326 = vadd.f32 %v6985, %v7247
      %v7327 = vadd.f32 %v6988, %v7250
      %v7328 = vadd.f32 %v6991, %v7253
      %v7329 = vadd.f32 %v6994, %v7256
      %v7330 = vadd.f32 %v6997, %v7259
      %v7331 = vadd.f32 %v7000, %v7262
      %v7332 = vadd.f32 %v7003, %v7265
      %v7333 = vadd.f32 %v7006, %v7268
      %v7334 = vld [vmem:[%s12] sm:$0x1]
      %v7336 = vperm.slane %v7334, 0
      %v7338 = vadd.f32 %v7270, %v7336
      %v7339 = vadd.f32 %v7271, %v7336
      %v7340 = vadd.f32 %v7272, %v7336
      %v7341 = vadd.f32 %v7273, %v7336
      %v7342 = vadd.f32 %v7274, %v7336
      %v7343 = vadd.f32 %v7275, %v7336
      %v7344 = vadd.f32 %v7276, %v7336
      %v7345 = vadd.f32 %v7277, %v7336
      %v7346 = vadd.f32 %v7278, %v7336
      %v7347 = vadd.f32 %v7279, %v7336
      %v7348 = vadd.f32 %v7280, %v7336
      %v7349 = vadd.f32 %v7281, %v7336
      %v7350 = vadd.f32 %v7282, %v7336
      %v7351 = vadd.f32 %v7283, %v7336
      %v7352 = vadd.f32 %v7284, %v7336
      %v7353 = vadd.f32 %v7285, %v7336
      %v7354 = vadd.f32 %v7286, %v7336
      %v7355 = vadd.f32 %v7287, %v7336
      %v7356 = vadd.f32 %v7288, %v7336
      %v7357 = vadd.f32 %v7289, %v7336
      %v7358 = vadd.f32 %v7290, %v7336
      %v7359 = vadd.f32 %v7291, %v7336
      %v7360 = vadd.f32 %v7292, %v7336
      %v7361 = vadd.f32 %v7293, %v7336
      %v7362 = vadd.f32 %v7294, %v7336
      %v7363 = vadd.f32 %v7295, %v7336
      %v7364 = vadd.f32 %v7296, %v7336
      %v7365 = vadd.f32 %v7297, %v7336
      %v7366 = vadd.f32 %v7298, %v7336
      %v7367 = vadd.f32 %v7299, %v7336
      %v7368 = vadd.f32 %v7300, %v7336
      %v7369 = vadd.f32 %v7301, %v7336
      %v7370 = vadd.f32 %v7302, %v7336
      %v7371 = vadd.f32 %v7303, %v7336
      %v7372 = vadd.f32 %v7304, %v7336
      %v7373 = vadd.f32 %v7305, %v7336
      %v7374 = vadd.f32 %v7306, %v7336
      %v7375 = vadd.f32 %v7307, %v7336
      %v7376 = vadd.f32 %v7308, %v7336
      %v7377 = vadd.f32 %v7309, %v7336
      %v7378 = vadd.f32 %v7310, %v7336
      %v7379 = vadd.f32 %v7311, %v7336
      %v7380 = vadd.f32 %v7312, %v7336
      %v7381 = vadd.f32 %v7313, %v7336
      %v7382 = vadd.f32 %v7314, %v7336
      %v7383 = vadd.f32 %v7315, %v7336
      %v7384 = vadd.f32 %v7316, %v7336
      %v7385 = vadd.f32 %v7317, %v7336
      %v7386 = vadd.f32 %v7318, %v7336
      %v7387 = vadd.f32 %v7319, %v7336
      %v7388 = vadd.f32 %v7320, %v7336
      %v7389 = vadd.f32 %v7321, %v7336
      %v7390 = vadd.f32 %v7322, %v7336
      %v7391 = vadd.f32 %v7323, %v7336
      %v7392 = vadd.f32 %v7324, %v7336
      %v7393 = vadd.f32 %v7325, %v7336
      %v7394 = vadd.f32 %v7326, %v7336
      %v7395 = vadd.f32 %v7327, %v7336
      %v7396 = vadd.f32 %v7328, %v7336
      %v7397 = vadd.f32 %v7329, %v7336
      %v7398 = vadd.f32 %v7330, %v7336
      %v7399 = vadd.f32 %v7331, %v7336
      %v7400 = vadd.f32 %v7332, %v7336
      %v7401 = vadd.f32 %v7333, %v7336
      %v7402 = vadd.f32 %v7338, %v3422
      %v7403 = vadd.f32 %v7339, %v3423
      %v7404 = vadd.f32 %v7340, %v3424
      %v7405 = vadd.f32 %v7341, %v3425
      %v7406 = vadd.f32 %v7342, %v3426
      %v7407 = vadd.f32 %v7343, %v3427
      %v7408 = vadd.f32 %v7344, %v3428
      %v7409 = vadd.f32 %v7345, %v3429
      %v7410 = vadd.f32 %v7346, %v3430
      %v7411 = vadd.f32 %v7347, %v3431
      %v7412 = vadd.f32 %v7348, %v3432
      %v7413 = vadd.f32 %v7349, %v3433
      %v7414 = vadd.f32 %v7350, %v3434
      %v7415 = vadd.f32 %v7351, %v3435
      %v7416 = vadd.f32 %v7352, %v3436
      %v7417 = vadd.f32 %v7353, %v3437
      %v7418 = vadd.f32 %v7354, %v3438
      %v7419 = vadd.f32 %v7355, %v3439
      %v7420 = vadd.f32 %v7356, %v3440
      %v7421 = vadd.f32 %v7357, %v3441
      %v7422 = vadd.f32 %v7358, %v3442
      %v7423 = vadd.f32 %v7359, %v3443
      %v7424 = vadd.f32 %v7360, %v3444
      %v7425 = vadd.f32 %v7361, %v3445
      %v7426 = vadd.f32 %v7362, %v3446
      %v7427 = vadd.f32 %v7363, %v3447
      %v7428 = vadd.f32 %v7364, %v3448
      %v7429 = vadd.f32 %v7365, %v3449
      %v7430 = vadd.f32 %v7366, %v3450
      %v7431 = vadd.f32 %v7367, %v3451
      %v7432 = vadd.f32 %v7368, %v3452
      %v7433 = vadd.f32 %v7369, %v3453
      %v7434 = vadd.f32 %v7370, %v3454
      %v7435 = vadd.f32 %v7371, %v3455
      %v7436 = vadd.f32 %v7372, %v3456
      %v7437 = vadd.f32 %v7373, %v3457
      %v7438 = vadd.f32 %v7374, %v3458
      %v7439 = vadd.f32 %v7375, %v3459
      %v7440 = vadd.f32 %v7376, %v3460
      %v7441 = vadd.f32 %v7377, %v3461
      %v7442 = vadd.f32 %v7378, %v3462
      %v7443 = vadd.f32 %v7379, %v3463
      %v7444 = vadd.f32 %v7380, %v3464
      %v7445 = vadd.f32 %v7381, %v3465
      %v7446 = vadd.f32 %v7382, %v3466
      %v7447 = vadd.f32 %v7383, %v3467
      %v7448 = vadd.f32 %v7384, %v3468
      %v7449 = vadd.f32 %v7385, %v3469
      %v7450 = vadd.f32 %v7386, %v3470
      %v7451 = vadd.f32 %v7387, %v3471
      %v7452 = vadd.f32 %v7388, %v3472
      %v7453 = vadd.f32 %v7389, %v3473
      %v7454 = vadd.f32 %v7390, %v3474
      %v7455 = vadd.f32 %v7391, %v3475
      %v7456 = vadd.f32 %v7392, %v3476
      %v7457 = vadd.f32 %v7393, %v3477
      %v7458 = vadd.f32 %v7394, %v3478
      %v7459 = vadd.f32 %v7395, %v3479
      %v7460 = vadd.f32 %v7396, %v3480
      %v7461 = vadd.f32 %v7397, %v3481
      %v7462 = vadd.f32 %v7398, %v3482
      %v7463 = vadd.f32 %v7399, %v3483
      %v7464 = vadd.f32 %v7400, %v3484
      %v7465 = vadd.f32 %v7401, %v3485
      %v7466 = vadd.f32 %v7402, %v5925
      %v7467 = vadd.f32 %v7403, %v5926
      %v7468 = vadd.f32 %v7404, %v5927
      %v7469 = vadd.f32 %v7405, %v5928
      %v7470 = vadd.f32 %v7406, %v5929
      %v7471 = vadd.f32 %v7407, %v5930
      %v7472 = vadd.f32 %v7408, %v5931
      %v7473 = vadd.f32 %v7409, %v5932
      %v7474 = vadd.f32 %v7410, %v5933
      %v7475 = vadd.f32 %v7411, %v5934
      %v7476 = vadd.f32 %v7412, %v5935
      %v7477 = vadd.f32 %v7413, %v5936
      %v7478 = vadd.f32 %v7414, %v5937
      %v7479 = vadd.f32 %v7415, %v5938
      %v7480 = vadd.f32 %v7416, %v5939
      %v7481 = vadd.f32 %v7417, %v5940
      %v7482 = vadd.f32 %v7418, %v5941
      %v7483 = vadd.f32 %v7419, %v5942
      %v7484 = vadd.f32 %v7420, %v5943
      %v7485 = vadd.f32 %v7421, %v5944
      %v7486 = vadd.f32 %v7422, %v5945
      %v7487 = vadd.f32 %v7423, %v5946
      %v7488 = vadd.f32 %v7424, %v5947
      %v7489 = vadd.f32 %v7425, %v5948
      %v7490 = vadd.f32 %v7426, %v5949
      %v7491 = vadd.f32 %v7427, %v5950
      %v7492 = vadd.f32 %v7428, %v5951
      %v7493 = vadd.f32 %v7429, %v5952
      %v7494 = vadd.f32 %v7430, %v5953
      %v7495 = vadd.f32 %v7431, %v5954
      %v7496 = vadd.f32 %v7432, %v5955
      %v7497 = vadd.f32 %v7433, %v5956
      %v7498 = vadd.f32 %v7434, %v5957
      %v7499 = vadd.f32 %v7435, %v5958
      %v7500 = vadd.f32 %v7436, %v5959
      %v7501 = vadd.f32 %v7437, %v5960
      %v7502 = vadd.f32 %v7438, %v5961
      %v7503 = vadd.f32 %v7439, %v5962
      %v7504 = vadd.f32 %v7440, %v5963
      %v7505 = vadd.f32 %v7441, %v5964
      %v7506 = vadd.f32 %v7442, %v5965
      %v7507 = vadd.f32 %v7443, %v5966
      %v7508 = vadd.f32 %v7444, %v5967
      %v7509 = vadd.f32 %v7445, %v5968
      %v7510 = vadd.f32 %v7446, %v5969
      %v7511 = vadd.f32 %v7447, %v5970
      %v7512 = vadd.f32 %v7448, %v5971
      %v7513 = vadd.f32 %v7449, %v5972
      %v7514 = vadd.f32 %v7450, %v5973
      %v7515 = vadd.f32 %v7451, %v5974
      %v7516 = vadd.f32 %v7452, %v5975
      %v7517 = vadd.f32 %v7453, %v5976
      %v7518 = vadd.f32 %v7454, %v5977
      %v7519 = vadd.f32 %v7455, %v5978
      %v7520 = vadd.f32 %v7456, %v5979
      %v7521 = vadd.f32 %v7457, %v5980
      %v7522 = vadd.f32 %v7458, %v5981
      %v7523 = vadd.f32 %v7459, %v5982
      %v7524 = vadd.f32 %v7460, %v5983
      %v7525 = vadd.f32 %v7461, %v5984
      %v7526 = vadd.f32 %v7462, %v5985
      %v7527 = vadd.f32 %v7463, %v5986
      %v7528 = vadd.f32 %v7464, %v5987
      %v7529 = vadd.f32 %v7465, %v5988
      %v7530 = vmax.f32 %v7466, 0.0
      %v7531 = vmax.f32 %v7467, 0.0
      %v7532 = vmax.f32 %v7468, 0.0
      %v7533 = vmax.f32 %v7469, 0.0
      %v7534 = vmax.f32 %v7470, 0.0
      %v7535 = vmax.f32 %v7471, 0.0
      %v7536 = vmax.f32 %v7472, 0.0
      %v7537 = vmax.f32 %v7473, 0.0
      %v7538 = vmax.f32 %v7474, 0.0
      %v7539 = vmax.f32 %v7475, 0.0
      %v7540 = vmax.f32 %v7476, 0.0
      %v7541 = vmax.f32 %v7477, 0.0
      %v7542 = vmax.f32 %v7478, 0.0
      %v7543 = vmax.f32 %v7479, 0.0
      %v7544 = vmax.f32 %v7480, 0.0
      %v7545 = vmax.f32 %v7481, 0.0
      %v7546 = vmax.f32 %v7482, 0.0
      %v7547 = vmax.f32 %v7483, 0.0
      %v7548 = vmax.f32 %v7484, 0.0
      %v7549 = vmax.f32 %v7485, 0.0
      %v7550 = vmax.f32 %v7486, 0.0
      %v7551 = vmax.f32 %v7487, 0.0
      %v7552 = vmax.f32 %v7488, 0.0
      %v7553 = vmax.f32 %v7489, 0.0
      %v7554 = vmax.f32 %v7490, 0.0
      %v7555 = vmax.f32 %v7491, 0.0
      %v7556 = vmax.f32 %v7492, 0.0
      %v7557 = vmax.f32 %v7493, 0.0
      %v7558 = vmax.f32 %v7494, 0.0
      %v7559 = vmax.f32 %v7495, 0.0
      %v7560 = vmax.f32 %v7496, 0.0
      %v7561 = vmax.f32 %v7497, 0.0
      %v7562 = vmax.f32 %v7498, 0.0
      %v7563 = vmax.f32 %v7499, 0.0
      %v7564 = vmax.f32 %v7500, 0.0
      %v7565 = vmax.f32 %v7501, 0.0
      %v7566 = vmax.f32 %v7502, 0.0
      %v7567 = vmax.f32 %v7503, 0.0
      %v7568 = vmax.f32 %v7504, 0.0
      %v7569 = vmax.f32 %v7505, 0.0
      %v7570 = vmax.f32 %v7506, 0.0
      %v7571 = vmax.f32 %v7507, 0.0
      %v7572 = vmax.f32 %v7508, 0.0
      %v7573 = vmax.f32 %v7509, 0.0
      %v7574 = vmax.f32 %v7510, 0.0
      %v7575 = vmax.f32 %v7511, 0.0
      %v7576 = vmax.f32 %v7512, 0.0
      %v7577 = vmax.f32 %v7513, 0.0
      %v7578 = vmax.f32 %v7514, 0.0
      %v7579 = vmax.f32 %v7515, 0.0
      %v7580 = vmax.f32 %v7516, 0.0
      %v7581 = vmax.f32 %v7517, 0.0
      %v7582 = vmax.f32 %v7518, 0.0
      %v7583 = vmax.f32 %v7519, 0.0
      %v7584 = vmax.f32 %v7520, 0.0
      %v7585 = vmax.f32 %v7521, 0.0
      %v7586 = vmax.f32 %v7522, 0.0
      %v7587 = vmax.f32 %v7523, 0.0
      %v7588 = vmax.f32 %v7524, 0.0
      %v7589 = vmax.f32 %v7525, 0.0
      %v7590 = vmax.f32 %v7526, 0.0
      %v7591 = vmax.f32 %v7527, 0.0
      %v7592 = vmax.f32 %v7528, 0.0
      %v7593 = vmax.f32 %v7529, 0.0
      %v7594 = vld [vmem:[%s13] sm:$0xf]
      %v7595 = vld [vmem:[%s14] sm:$0x1]
      %v7597 = vperm.slane %v7595, 0
      %v7600 = vsel %vm495, %v7530, 0
      %v7603 = vsel %vm495, %v7531, 0
      %v7606 = vsel %vm495, %v7532, 0
      %v7609 = vsel %vm495, %v7533, 0
      %v7612 = vsel %vm495, %v7534, 0
      %v7615 = vsel %vm495, %v7535, 0
      %v7618 = vsel %vm495, %v7536, 0
      %v7621 = vsel %vm495, %v7537, 0
      %v7624 = vsel %vm495, %v7538, 0
      %v7627 = vsel %vm495, %v7539, 0
      %v7630 = vsel %vm495, %v7540, 0
      %v7633 = vsel %vm495, %v7541, 0
      %v7636 = vsel %vm495, %v7542, 0
      %v7639 = vsel %vm495, %v7543, 0
      %v7642 = vsel %vm495, %v7544, 0
      %v7645 = vsel %vm495, %v7545, 0
      %v7648 = vsel %vm495, %v7546, 0
      %v7651 = vsel %vm495, %v7547, 0
      %v7654 = vsel %vm495, %v7548, 0
      %v7657 = vsel %vm495, %v7549, 0
      %v7660 = vsel %vm495, %v7550, 0
      %v7663 = vsel %vm495, %v7551, 0
      %v7666 = vsel %vm495, %v7552, 0
      %v7669 = vsel %vm495, %v7553, 0
      %v7672 = vsel %vm495, %v7554, 0
      %v7675 = vsel %vm495, %v7555, 0
      %v7678 = vsel %vm495, %v7556, 0
      %v7681 = vsel %vm495, %v7557, 0
      %v7684 = vsel %vm495, %v7558, 0
      %v7687 = vsel %vm495, %v7559, 0
      %v7690 = vsel %vm495, %v7560, 0
      %v7693 = vsel %vm495, %v7561, 0
      %v7696 = vsel %vm495, %v7562, 0
      %v7699 = vsel %vm495, %v7563, 0
      %v7702 = vsel %vm495, %v7564, 0
      %v7705 = vsel %vm495, %v7565, 0
      %v7708 = vsel %vm495, %v7566, 0
      %v7711 = vsel %vm495, %v7567, 0
      %v7714 = vsel %vm495, %v7568, 0
      %v7717 = vsel %vm495, %v7569, 0
      %v7720 = vsel %vm495, %v7570, 0
      %v7723 = vsel %vm495, %v7571, 0
      %v7726 = vsel %vm495, %v7572, 0
      %v7729 = vsel %vm495, %v7573, 0
      %v7732 = vsel %vm495, %v7574, 0
      %v7735 = vsel %vm495, %v7575, 0
      %v7738 = vsel %vm495, %v7576, 0
      %v7741 = vsel %vm495, %v7577, 0
      %v7744 = vsel %vm495, %v7578, 0
      %v7747 = vsel %vm495, %v7579, 0
      %v7750 = vsel %vm495, %v7580, 0
      %v7753 = vsel %vm495, %v7581, 0
      %v7756 = vsel %vm495, %v7582, 0
      %v7759 = vsel %vm495, %v7583, 0
      %v7762 = vsel %vm495, %v7584, 0
      %v7765 = vsel %vm495, %v7585, 0
      %v7768 = vsel %vm495, %v7586, 0
      %v7771 = vsel %vm495, %v7587, 0
      %v7774 = vsel %vm495, %v7588, 0
      %v7777 = vsel %vm495, %v7589, 0
      %v7780 = vsel %vm495, %v7590, 0
      %v7783 = vsel %vm495, %v7591, 0
      %v7786 = vsel %vm495, %v7592, 0
      %v7789 = vsel %vm495, %v7593, 0
      %v7792 = vsel %vm2331, %v7594, 0
      %7794 = vmatpush.msra.mxu0 0.0
      %7795 = vmatpush.msra.mxu0 0.0
      %7796 = vmatpush.msra.mxu0 0.0
      %7797 = vmatpush.msra.mxu0 0.0
      %7798 = vmatpush.msra.mxu0 0.0
      %7799 = vmatpush.msra.mxu0 0.0
      %7800 = vmatpush.msra.mxu0 0.0
      %7801 = vmatpush.msra.mxu0 0.0
      %7802 = vmatpush.msra.mxu0 0.0
      %7803 = vmatpush.msra.mxu0 0.0
      %7804 = vmatpush.msra.mxu0 0.0
      %7805 = vmatpush.msra.mxu0 0.0
      %7806 = vmatpush.msra.mxu0 0.0
      %7807 = vmatpush.msra.mxu0 0.0
      %7808 = vmatpush.msra.mxu0 0.0
      %7809 = vmatpush.msra.mxu0 %v7792
      %7810 = vmatmul.f32.gmra.mxu0 %v7600
      %v7811 = vpop.f32.mrf.mxu0
      %v7812 = vadd.f32 %v7597, %v7811
      %7813 = vmatmul.f32.gmra.mxu0 %v7603
      %v7814 = vpop.f32.mrf.mxu0
      %v7815 = vadd.f32 %v7597, %v7814
      %7816 = vmatmul.f32.gmra.mxu0 %v7606
      %v7817 = vpop.f32.mrf.mxu0
      %v7818 = vadd.f32 %v7597, %v7817
      %7819 = vmatmul.f32.gmra.mxu0 %v7609
      %v7820 = vpop.f32.mrf.mxu0
      %v7821 = vadd.f32 %v7597, %v7820
      %7822 = vmatmul.f32.gmra.mxu0 %v7612
      %v7823 = vpop.f32.mrf.mxu0
      %v7824 = vadd.f32 %v7597, %v7823
      %7825 = vmatmul.f32.gmra.mxu0 %v7615
      %v7826 = vpop.f32.mrf.mxu0
      %v7827 = vadd.f32 %v7597, %v7826
      %7828 = vmatmul.f32.gmra.mxu0 %v7618
      %v7829 = vpop.f32.mrf.mxu0
      %v7830 = vadd.f32 %v7597, %v7829
      %7831 = vmatmul.f32.gmra.mxu0 %v7621
      %v7832 = vpop.f32.mrf.mxu0
      %v7833 = vadd.f32 %v7597, %v7832
      %7834 = vmatmul.f32.gmra.mxu0 %v7624
      %v7835 = vpop.f32.mrf.mxu0
      %v7836 = vadd.f32 %v7597, %v7835
      %7837 = vmatmul.f32.gmra.mxu0 %v7627
      %v7838 = vpop.f32.mrf.mxu0
      %v7839 = vadd.f32 %v7597, %v7838
      %7840 = vmatmul.f32.gmra.mxu0 %v7630
      %v7841 = vpop.f32.mrf.mxu0
      %v7842 = vadd.f32 %v7597, %v7841
      %7843 = vmatmul.f32.gmra.mxu0 %v7633
      %v7844 = vpop.f32.mrf.mxu0
      %v7845 = vadd.f32 %v7597, %v7844
      %7846 = vmatmul.f32.gmra.mxu0 %v7636
      %v7847 = vpop.f32.mrf.mxu0
      %v7848 = vadd.f32 %v7597, %v7847
      %7849 = vmatmul.f32.gmra.mxu0 %v7639
      %v7850 = vpop.f32.mrf.mxu0
      %v7851 = vadd.f32 %v7597, %v7850
      %7852 = vmatmul.f32.gmra.mxu0 %v7642
      %v7853 = vpop.f32.mrf.mxu0
      %v7854 = vadd.f32 %v7597, %v7853
      %7855 = vmatmul.f32.gmra.mxu0 %v7645
      %v7856 = vpop.f32.mrf.mxu0
      %v7857 = vadd.f32 %v7597, %v7856
      %7858 = vmatmul.f32.gmra.mxu0 %v7648
      %v7859 = vpop.f32.mrf.mxu0
      %v7860 = vadd.f32 %v7597, %v7859
      %7861 = vmatmul.f32.gmra.mxu0 %v7651
      %v7862 = vpop.f32.mrf.mxu0
      %v7863 = vadd.f32 %v7597, %v7862
      %7864 = vmatmul.f32.gmra.mxu0 %v7654
      %v7865 = vpop.f32.mrf.mxu0
      %v7866 = vadd.f32 %v7597, %v7865
      %7867 = vmatmul.f32.gmra.mxu0 %v7657
      %v7868 = vpop.f32.mrf.mxu0
      %v7869 = vadd.f32 %v7597, %v7868
      %7870 = vmatmul.f32.gmra.mxu0 %v7660
      %v7871 = vpop.f32.mrf.mxu0
      %v7872 = vadd.f32 %v7597, %v7871
      %7873 = vmatmul.f32.gmra.mxu0 %v7663
      %v7874 = vpop.f32.mrf.mxu0
      %v7875 = vadd.f32 %v7597, %v7874
      %7876 = vmatmul.f32.gmra.mxu0 %v7666
      %v7877 = vpop.f32.mrf.mxu0
      %v7878 = vadd.f32 %v7597, %v7877
      %7879 = vmatmul.f32.gmra.mxu0 %v7669
      %v7880 = vpop.f32.mrf.mxu0
      %v7881 = vadd.f32 %v7597, %v7880
      %7882 = vmatmul.f32.gmra.mxu0 %v7672
      %v7883 = vpop.f32.mrf.mxu0
      %v7884 = vadd.f32 %v7597, %v7883
      %7885 = vmatmul.f32.gmra.mxu0 %v7675
      %v7886 = vpop.f32.mrf.mxu0
      %v7887 = vadd.f32 %v7597, %v7886
      %7888 = vmatmul.f32.gmra.mxu0 %v7678
      %v7889 = vpop.f32.mrf.mxu0
      %v7890 = vadd.f32 %v7597, %v7889
      %7891 = vmatmul.f32.gmra.mxu0 %v7681
      %v7892 = vpop.f32.mrf.mxu0
      %v7893 = vadd.f32 %v7597, %v7892
      %7894 = vmatmul.f32.gmra.mxu0 %v7684
      %v7895 = vpop.f32.mrf.mxu0
      %v7896 = vadd.f32 %v7597, %v7895
      %7897 = vmatmul.f32.gmra.mxu0 %v7687
      %v7898 = vpop.f32.mrf.mxu0
      %v7899 = vadd.f32 %v7597, %v7898
      %7900 = vmatmul.f32.gmra.mxu0 %v7690
      %v7901 = vpop.f32.mrf.mxu0
      %v7902 = vadd.f32 %v7597, %v7901
      %7903 = vmatmul.f32.gmra.mxu0 %v7693
      %v7904 = vpop.f32.mrf.mxu0
      %v7905 = vadd.f32 %v7597, %v7904
      %7906 = vmatmul.f32.gmra.mxu0 %v7696
      %v7907 = vpop.f32.mrf.mxu0
      %v7908 = vadd.f32 %v7597, %v7907
      %7909 = vmatmul.f32.gmra.mxu0 %v7699
      %v7910 = vpop.f32.mrf.mxu0
      %v7911 = vadd.f32 %v7597, %v7910
      %7912 = vmatmul.f32.gmra.mxu0 %v7702
      %v7913 = vpop.f32.mrf.mxu0
      %v7914 = vadd.f32 %v7597, %v7913
      %7915 = vmatmul.f32.gmra.mxu0 %v7705
      %v7916 = vpop.f32.mrf.mxu0
      %v7917 = vadd.f32 %v7597, %v7916
      %7918 = vmatmul.f32.gmra.mxu0 %v7708
      %v7919 = vpop.f32.mrf.mxu0
      %v7920 = vadd.f32 %v7597, %v7919
      %7921 = vmatmul.f32.gmra.mxu0 %v7711
      %v7922 = vpop.f32.mrf.mxu0
      %v7923 = vadd.f32 %v7597, %v7922
      %7924 = vmatmul.f32.gmra.mxu0 %v7714
      %v7925 = vpop.f32.mrf.mxu0
      %v7926 = vadd.f32 %v7597, %v7925
      %7927 = vmatmul.f32.gmra.mxu0 %v7717
      %v7928 = vpop.f32.mrf.mxu0
      %v7929 = vadd.f32 %v7597, %v7928
      %7930 = vmatmul.f32.gmra.mxu0 %v7720
      %v7931 = vpop.f32.mrf.mxu0
      %v7932 = vadd.f32 %v7597, %v7931
      %7933 = vmatmul.f32.gmra.mxu0 %v7723
      %v7934 = vpop.f32.mrf.mxu0
      %v7935 = vadd.f32 %v7597, %v7934
      %7936 = vmatmul.f32.gmra.mxu0 %v7726
      %v7937 = vpop.f32.mrf.mxu0
      %v7938 = vadd.f32 %v7597, %v7937
      %7939 = vmatmul.f32.gmra.mxu0 %v7729
      %v7940 = vpop.f32.mrf.mxu0
      %v7941 = vadd.f32 %v7597, %v7940
      %7942 = vmatmul.f32.gmra.mxu0 %v7732
      %v7943 = vpop.f32.mrf.mxu0
      %v7944 = vadd.f32 %v7597, %v7943
      %7945 = vmatmul.f32.gmra.mxu0 %v7735
      %v7946 = vpop.f32.mrf.mxu0
      %v7947 = vadd.f32 %v7597, %v7946
      %7948 = vmatmul.f32.gmra.mxu0 %v7738
      %v7949 = vpop.f32.mrf.mxu0
      %v7950 = vadd.f32 %v7597, %v7949
      %7951 = vmatmul.f32.gmra.mxu0 %v7741
      %v7952 = vpop.f32.mrf.mxu0
      %v7953 = vadd.f32 %v7597, %v7952
      %7954 = vmatmul.f32.gmra.mxu0 %v7744
      %v7955 = vpop.f32.mrf.mxu0
      %v7956 = vadd.f32 %v7597, %v7955
      %7957 = vmatmul.f32.gmra.mxu0 %v7747
      %v7958 = vpop.f32.mrf.mxu0
      %v7959 = vadd.f32 %v7597, %v7958
      %7960 = vmatmul.f32.gmra.mxu0 %v7750
      %v7961 = vpop.f32.mrf.mxu0
      %v7962 = vadd.f32 %v7597, %v7961
      %7963 = vmatmul.f32.gmra.mxu0 %v7753
      %v7964 = vpop.f32.mrf.mxu0
      %v7965 = vadd.f32 %v7597, %v7964
      %7966 = vmatmul.f32.gmra.mxu0 %v7756
      %v7967 = vpop.f32.mrf.mxu0
      %v7968 = vadd.f32 %v7597, %v7967
      %7969 = vmatmul.f32.gmra.mxu0 %v7759
      %v7970 = vpop.f32.mrf.mxu0
      %v7971 = vadd.f32 %v7597, %v7970
      %7972 = vmatmul.f32.gmra.mxu0 %v7762
      %v7973 = vpop.f32.mrf.mxu0
      %v7974 = vadd.f32 %v7597, %v7973
      %7975 = vmatmul.f32.gmra.mxu0 %v7765
      %v7976 = vpop.f32.mrf.mxu0
      %v7977 = vadd.f32 %v7597, %v7976
      %7978 = vmatmul.f32.gmra.mxu0 %v7768
      %v7979 = vpop.f32.mrf.mxu0
      %v7980 = vadd.f32 %v7597, %v7979
      %7981 = vmatmul.f32.gmra.mxu0 %v7771
      %v7982 = vpop.f32.mrf.mxu0
      %v7983 = vadd.f32 %v7597, %v7982
      %7984 = vmatmul.f32.gmra.mxu0 %v7774
      %v7985 = vpop.f32.mrf.mxu0
      %v7986 = vadd.f32 %v7597, %v7985
      %7987 = vmatmul.f32.gmra.mxu0 %v7777
      %v7988 = vpop.f32.mrf.mxu0
      %v7989 = vadd.f32 %v7597, %v7988
      %7990 = vmatmul.f32.gmra.mxu0 %v7780
      %v7991 = vpop.f32.mrf.mxu0
      %v7992 = vadd.f32 %v7597, %v7991
      %7993 = vmatmul.f32.gmra.mxu0 %v7783
      %v7994 = vpop.f32.mrf.mxu0
      %v7995 = vadd.f32 %v7597, %v7994
      %7996 = vmatmul.f32.gmra.mxu0 %v7786
      %v7997 = vpop.f32.mrf.mxu0
      %v7998 = vadd.f32 %v7597, %v7997
      %7999 = vmatmul.f32.gmra.mxu0 %v7789
      %v8000 = vpop.f32.mrf.mxu0
      %v8001 = vadd.f32 %v7597, %v8000
      %8002 = vdwg.mxu0
      %v8003 = vadd.f32 %v7812, %v512
      %v8004 = vadd.f32 %v7815, %v513
      %v8005 = vadd.f32 %v7818, %v514
      %v8006 = vadd.f32 %v7821, %v515
      %v8007 = vadd.f32 %v7824, %v516
      %v8008 = vadd.f32 %v7827, %v517
      %v8009 = vadd.f32 %v7830, %v518
      %v8010 = vadd.f32 %v7833, %v519
      %v8011 = vadd.f32 %v7836, %v520
      %v8012 = vadd.f32 %v7839, %v521
      %v8013 = vadd.f32 %v7842, %v522
      %v8014 = vadd.f32 %v7845, %v523
      %v8015 = vadd.f32 %v7848, %v524
      %v8016 = vadd.f32 %v7851, %v525
      %v8017 = vadd.f32 %v7854, %v526
      %v8018 = vadd.f32 %v7857, %v527
      %v8019 = vadd.f32 %v7860, %v528
      %v8020 = vadd.f32 %v7863, %v529
      %v8021 = vadd.f32 %v7866, %v530
      %v8022 = vadd.f32 %v7869, %v531
      %v8023 = vadd.f32 %v7872, %v532
      %v8024 = vadd.f32 %v7875, %v533
      %v8025 = vadd.f32 %v7878, %v534
      %v8026 = vadd.f32 %v7881, %v535
      %v8027 = vadd.f32 %v7884, %v536
      %v8028 = vadd.f32 %v7887, %v537
      %v8029 = vadd.f32 %v7890, %v538
      %v8030 = vadd.f32 %v7893, %v539
      %v8031 = vadd.f32 %v7896, %v540
      %v8032 = vadd.f32 %v7899, %v541
      %v8033 = vadd.f32 %v7902, %v542
      %v8034 = vadd.f32 %v7905, %v543
      %v8035 = vadd.f32 %v7908, %v544
      %v8036 = vadd.f32 %v7911, %v545
      %v8037 = vadd.f32 %v7914, %v546
      %v8038 = vadd.f32 %v7917, %v547
      %v8039 = vadd.f32 %v7920, %v548
      %v8040 = vadd.f32 %v7923, %v549
      %v8041 = vadd.f32 %v7926, %v550
      %v8042 = vadd.f32 %v7929, %v551
      %v8043 = vadd.f32 %v7932, %v552
      %v8044 = vadd.f32 %v7935, %v553
      %v8045 = vadd.f32 %v7938, %v554
      %v8046 = vadd.f32 %v7941, %v555
      %v8047 = vadd.f32 %v7944, %v556
      %v8048 = vadd.f32 %v7947, %v557
      %v8049 = vadd.f32 %v7950, %v558
      %v8050 = vadd.f32 %v7953, %v559
      %v8051 = vadd.f32 %v7956, %v560
      %v8052 = vadd.f32 %v7959, %v561
      %v8053 = vadd.f32 %v7962, %v562
      %v8054 = vadd.f32 %v7965, %v563
      %v8055 = vadd.f32 %v7968, %v564
      %v8056 = vadd.f32 %v7971, %v565
      %v8057 = vadd.f32 %v7974, %v566
      %v8058 = vadd.f32 %v7977, %v567
      %v8059 = vadd.f32 %v7980, %v568
      %v8060 = vadd.f32 %v7983, %v569
      %v8061 = vadd.f32 %v7986, %v570
      %v8062 = vadd.f32 %v7989, %v571
      %v8063 = vadd.f32 %v7992, %v572
      %v8064 = vadd.f32 %v7995, %v573
      %v8065 = vadd.f32 %v7998, %v574
      %v8066 = vadd.f32 %v8001, %v575
      %v8067 = vmax.f32 %v8003, 0.0
      %v8068 = vmax.f32 %v8004, 0.0
      %v8069 = vmax.f32 %v8005, 0.0
      %v8070 = vmax.f32 %v8006, 0.0
      %v8071 = vmax.f32 %v8007, 0.0
      %v8072 = vmax.f32 %v8008, 0.0
      %v8073 = vmax.f32 %v8009, 0.0
      %v8074 = vmax.f32 %v8010, 0.0
      %v8075 = vmax.f32 %v8011, 0.0
      %v8076 = vmax.f32 %v8012, 0.0
      %v8077 = vmax.f32 %v8013, 0.0
      %v8078 = vmax.f32 %v8014, 0.0
      %v8079 = vmax.f32 %v8015, 0.0
      %v8080 = vmax.f32 %v8016, 0.0
      %v8081 = vmax.f32 %v8017, 0.0
      %v8082 = vmax.f32 %v8018, 0.0
      %v8083 = vmax.f32 %v8019, 0.0
      %v8084 = vmax.f32 %v8020, 0.0
      %v8085 = vmax.f32 %v8021, 0.0
      %v8086 = vmax.f32 %v8022, 0.0
      %v8087 = vmax.f32 %v8023, 0.0
      %v8088 = vmax.f32 %v8024, 0.0
      %v8089 = vmax.f32 %v8025, 0.0
      %v8090 = vmax.f32 %v8026, 0.0
      %v8091 = vmax.f32 %v8027, 0.0
      %v8092 = vmax.f32 %v8028, 0.0
      %v8093 = vmax.f32 %v8029, 0.0
      %v8094 = vmax.f32 %v8030, 0.0
      %v8095 = vmax.f32 %v8031, 0.0
      %v8096 = vmax.f32 %v8032, 0.0
      %v8097 = vmax.f32 %v8033, 0.0
      %v8098 = vmax.f32 %v8034, 0.0
      %v8099 = vmax.f32 %v8035, 0.0
      %v8100 = vmax.f32 %v8036, 0.0
      %v8101 = vmax.f32 %v8037, 0.0
      %v8102 = vmax.f32 %v8038, 0.0
      %v8103 = vmax.f32 %v8039, 0.0
      %v8104 = vmax.f32 %v8040, 0.0
      %v8105 = vmax.f32 %v8041, 0.0
      %v8106 = vmax.f32 %v8042, 0.0
      %v8107 = vmax.f32 %v8043, 0.0
      %v8108 = vmax.f32 %v8044, 0.0
      %v8109 = vmax.f32 %v8045, 0.0
      %v8110 = vmax.f32 %v8046, 0.0
      %v8111 = vmax.f32 %v8047, 0.0
      %v8112 = vmax.f32 %v8048, 0.0
      %v8113 = vmax.f32 %v8049, 0.0
      %v8114 = vmax.f32 %v8050, 0.0
      %v8115 = vmax.f32 %v8051, 0.0
      %v8116 = vmax.f32 %v8052, 0.0
      %v8117 = vmax.f32 %v8053, 0.0
      %v8118 = vmax.f32 %v8054, 0.0
      %v8119 = vmax.f32 %v8055, 0.0
      %v8120 = vmax.f32 %v8056, 0.0
      %v8121 = vmax.f32 %v8057, 0.0
      %v8122 = vmax.f32 %v8058, 0.0
      %v8123 = vmax.f32 %v8059, 0.0
      %v8124 = vmax.f32 %v8060, 0.0
      %v8125 = vmax.f32 %v8061, 0.0
      %v8126 = vmax.f32 %v8062, 0.0
      %v8127 = vmax.f32 %v8063, 0.0
      %v8128 = vmax.f32 %v8064, 0.0
      %v8129 = vmax.f32 %v8065, 0.0
      %v8130 = vmax.f32 %v8066, 0.0
      %8131 = vst.msk [vmem:[%s494] sm:$0xff] %vm582, %v8067
      %8132 = vst.msk [vmem:[%s494 + $0x8] sm:$0xff] %vm582, %v8068
      %8133 = vst.msk [vmem:[%s494 + $0x10] sm:$0xff] %vm582, %v8069
      %8134 = vst.msk [vmem:[%s494 + $0x18] sm:$0xff] %vm582, %v8070
      %8135 = vst.msk [vmem:[%s494 + $0x20] sm:$0xff] %vm582, %v8071
      %8136 = vst.msk [vmem:[%s494 + $0x28] sm:$0xff] %vm582, %v8072
      %8137 = vst.msk [vmem:[%s494 + $0x30] sm:$0xff] %vm582, %v8073
      %8138 = vst.msk [vmem:[%s494 + $0x38] sm:$0xff] %vm582, %v8074
      %8139 = vst.msk [vmem:[%s494 + $0x40] sm:$0xff] %vm582, %v8075
      %8140 = vst.msk [vmem:[%s494 + $0x48] sm:$0xff] %vm582, %v8076
      %8141 = vst.msk [vmem:[%s494 + $0x50] sm:$0xff] %vm582, %v8077
      %8142 = vst.msk [vmem:[%s494 + $0x58] sm:$0xff] %vm582, %v8078
      %8143 = vst.msk [vmem:[%s494 + $0x60] sm:$0xff] %vm582, %v8079
      %8144 = vst.msk [vmem:[%s494 + $0x68] sm:$0xff] %vm582, %v8080
      %8145 = vst.msk [vmem:[%s494 + $0x70] sm:$0xff] %vm582, %v8081
      %8146 = vst.msk [vmem:[%s494 + $0x78] sm:$0xff] %vm582, %v8082
      %8147 = vst.msk [vmem:[%s494 + $0x80] sm:$0xff] %vm582, %v8083
      %8148 = vst.msk [vmem:[%s494 + $0x88] sm:$0xff] %vm582, %v8084
      %8149 = vst.msk [vmem:[%s494 + $0x90] sm:$0xff] %vm582, %v8085
      %8150 = vst.msk [vmem:[%s494 + $0x98] sm:$0xff] %vm582, %v8086
      %8151 = vst.msk [vmem:[%s494 + $0xa0] sm:$0xff] %vm582, %v8087
      %8152 = vst.msk [vmem:[%s494 + $0xa8] sm:$0xff] %vm582, %v8088
      %8153 = vst.msk [vmem:[%s494 + $0xb0] sm:$0xff] %vm582, %v8089
      %8154 = vst.msk [vmem:[%s494 + $0xb8] sm:$0xff] %vm582, %v8090
      %8155 = vst.msk [vmem:[%s494 + $0xc0] sm:$0xff] %vm582, %v8091
      %8156 = vst.msk [vmem:[%s494 + $0xc8] sm:$0xff] %vm582, %v8092
      %8157 = vst.msk [vmem:[%s494 + $0xd0] sm:$0xff] %vm582, %v8093
      %8158 = vst.msk [vmem:[%s494 + $0xd8] sm:$0xff] %vm582, %v8094
      %8159 = vst.msk [vmem:[%s494 + $0xe0] sm:$0xff] %vm582, %v8095
      %8160 = vst.msk [vmem:[%s494 + $0xe8] sm:$0xff] %vm582, %v8096
      %8161 = vst.msk [vmem:[%s494 + $0xf0] sm:$0xff] %vm582, %v8097
      %8162 = vst.msk [vmem:[%s494 + $0xf8] sm:$0xff] %vm582, %v8098
      %8163 = vst.msk [vmem:[%s494 + $0x100] sm:$0xff] %vm582, %v8099
      %8164 = vst.msk [vmem:[%s494 + $0x108] sm:$0xff] %vm582, %v8100
      %8165 = vst.msk [vmem:[%s494 + $0x110] sm:$0xff] %vm582, %v8101
      %8166 = vst.msk [vmem:[%s494 + $0x118] sm:$0xff] %vm582, %v8102
      %8167 = vst.msk [vmem:[%s494 + $0x120] sm:$0xff] %vm582, %v8103
      %8168 = vst.msk [vmem:[%s494 + $0x128] sm:$0xff] %vm582, %v8104
      %8169 = vst.msk [vmem:[%s494 + $0x130] sm:$0xff] %vm582, %v8105
      %8170 = vst.msk [vmem:[%s494 + $0x138] sm:$0xff] %vm582, %v8106
      %8171 = vst.msk [vmem:[%s494 + $0x140] sm:$0xff] %vm582, %v8107
      %8172 = vst.msk [vmem:[%s494 + $0x148] sm:$0xff] %vm582, %v8108
      %8173 = vst.msk [vmem:[%s494 + $0x150] sm:$0xff] %vm582, %v8109
      %8174 = vst.msk [vmem:[%s494 + $0x158] sm:$0xff] %vm582, %v8110
      %8175 = vst.msk [vmem:[%s494 + $0x160] sm:$0xff] %vm582, %v8111
      %8176 = vst.msk [vmem:[%s494 + $0x168] sm:$0xff] %vm582, %v8112
      %8177 = vst.msk [vmem:[%s494 + $0x170] sm:$0xff] %vm582, %v8113
      %8178 = vst.msk [vmem:[%s494 + $0x178] sm:$0xff] %vm582, %v8114
      %8179 = vst.msk [vmem:[%s494 + $0x180] sm:$0xff] %vm582, %v8115
      %8180 = vst.msk [vmem:[%s494 + $0x188] sm:$0xff] %vm582, %v8116
      %8181 = vst.msk [vmem:[%s494 + $0x190] sm:$0xff] %vm582, %v8117
      %8182 = vst.msk [vmem:[%s494 + $0x198] sm:$0xff] %vm582, %v8118
      %8183 = vst.msk [vmem:[%s494 + $0x1a0] sm:$0xff] %vm582, %v8119
      %8184 = vst.msk [vmem:[%s494 + $0x1a8] sm:$0xff] %vm582, %v8120
      %8185 = vst.msk [vmem:[%s494 + $0x1b0] sm:$0xff] %vm582, %v8121
      %8186 = vst.msk [vmem:[%s494 + $0x1b8] sm:$0xff] %vm582, %v8122
      %8187 = vst.msk [vmem:[%s494 + $0x1c0] sm:$0xff] %vm582, %v8123
      %8188 = vst.msk [vmem:[%s494 + $0x1c8] sm:$0xff] %vm582, %v8124
      %8189 = vst.msk [vmem:[%s494 + $0x1d0] sm:$0xff] %vm582, %v8125
      %8190 = vst.msk [vmem:[%s494 + $0x1d8] sm:$0xff] %vm582, %v8126
      %8191 = vst.msk [vmem:[%s494 + $0x1e0] sm:$0xff] %vm582, %v8127
      %8192 = vst.msk [vmem:[%s494 + $0x1e8] sm:$0xff] %vm582, %v8128
      %8193 = vst.msk [vmem:[%s494 + $0x1f0] sm:$0xff] %vm582, %v8129
      %8194 = vst.msk [vmem:[%s494 + $0x1f8] sm:$0xff] %vm582, %v8130
      %p8195 = scmp.lt.s32.totalorder %s26, 1
      %s8196 = scalar_select %p8195, %s26, 1
      %s8197 = smul.addr %s8196, 64
      %s8198 = smul.addr %s8197, 8
      %s8199 = scalar_lea.vmem %s15, %s8198
      // Predicated region
      $region81: #{tpu_custom_call.1} parent=79 // pred_check
        %p8200 = pneg %p364
      $region82: #{tpu_custom_call.1} parent=79 // pred_check_branch
        %8202 = sbr.rel (%p8200) target = $region84
      $region83: #{tpu_custom_call.1} parent=79 // pred_region
        _
      $region84: #{tpu_custom_call.1} parent=79 // pred_fallthru
        _
    $region80: #{tpu_custom_call.1} parent=5 // pred_fallthru
      _
    %p8203 = scmp.le.s32.totalorder 2, %s21
    // Predicated region
    $region85: #{tpu_custom_call.1} parent=5 // pred_check
      %p8204 = pneg %p8203
    $region86: #{tpu_custom_call.1} parent=5 // pred_check_branch
      %8206 = sbr.rel (%p8204) target = $region88
    $region87: #{tpu_custom_call.1} parent=5 // pred_region
      %s8207 = ssub.s32 %s21, 2
      // Predicated region
      $region89: #{tpu_custom_call.1} parent=87 // pred_check
        %p8208 = pneg %p370
      $region90: #{tpu_custom_call.1} parent=87 // pred_check_branch
        %8210 = sbr.rel (%p8208) target = $region92
      $region91: #{tpu_custom_call.1} parent=87 // pred_region
        %p8211 = scmp.lt.s32.totalorder %s27, 1
        %s8212 = scalar_select %p8211, %s27, 1
        %s8213 = smul.addr %s8212, 64
        %s8214 = smul.addr %s8213, 8
        %s8215 = scalar_lea.vmem %s15, %s8214
      $region92: #{tpu_custom_call.1} parent=87 // pred_fallthru
        _
    $region88: #{tpu_custom_call.1} parent=5 // pred_fallthru
      _
  $region6: #{tpu_custom_call.1} parent=0 // loop_footer
    %s25 = sadd.s32 1, %s21
  $region7: #{tpu_custom_call.1} parent=0 // loop_footer_branch
    %20 = sbr.rel target = $region3
  $region8: #{tpu_custom_call.1} parent=0 // loop_exit
    _

</llo_original>
